<compile_context>
chip_gen: v7x
topology: tpu7x:2x2x1
jax: 0.10.0
libtpu: 0.0.40
codegen_flags: <defaults>
</compile_context>

<pallas_src>
import functools

import jax
import jax.numpy as jnp
import numpy as np
from jax.experimental import pallas as pl
from jax.experimental.pallas import tpu as pltpu

EPS = 1e-8  # matches SpeechBrain's ChannelwiseLayerNorm / GlobalLayerNorm


# ----------------------------------------------------------------------------
# In-kernel helpers (operate on values; all called from the single fused kernel)
# ----------------------------------------------------------------------------
def _mm(a_f32, w_bf16):
    """MXU matmul: bf16 operands, f32 accumulation."""
    return jnp.dot(a_f32.astype(jnp.bfloat16), w_bf16,
                   preferred_element_type=jnp.float32)


def _prelu(v, alpha):
    """PReLU with a single shared (SMEM scalar) alpha."""
    return jnp.where(v >= 0, v, alpha * v)


def _cln(v, gamma, beta):
    """Channel-wise LayerNorm over last dim; single-pass mean/var + rsqrt."""
    n = v.shape[-1]
    s = jnp.sum(v, axis=-1, keepdims=True)
    ss = jnp.sum(v * v, axis=-1, keepdims=True)
    mean = s / n
    var = jnp.maximum(ss / n - mean * mean, 0.0)
    return gamma * (v - mean) * jax.lax.rsqrt(var + EPS) + beta


def _gln(v, gamma, beta):
    """Global LayerNorm over (time, channel) of this sample; single pass."""
    n = v.shape[0] * v.shape[1]
    s = jnp.sum(v, keepdims=True)
    ss = jnp.sum(v * v, keepdims=True)
    mean = s / n
    var = jnp.maximum(ss / n - mean * mean, 0.0)
    return gamma * (v - mean) * jax.lax.rsqrt(var + EPS) + beta


# ----------------------------------------------------------------------------
# Fused MaskNet kernel: one grid step == one batch element, whole net in VMEM.
# ----------------------------------------------------------------------------
def masknet_kernel(alpha1_ref, alpha2_ref,                     # SMEM scalars
                   x_ref, emb_ref,
                   ln_g_ref, ln_b_ref, w_bneck_ref,
                   wx_ref, we_ref, fb_ref,
                   w1_ref, g1_ref, b1_ref, wdw_ref, g2_ref, b2_ref, w2_ref,
                   w_mask_ref,
                   o_ref,
                   hp_ref,                                     # VMEM scratch
                   *, P, X, R):
    x = x_ref[0]                                               # (K, N) f32
    K = x.shape[0]

    # --- ChannelwiseLayerNorm + bottleneck 1x1 conv (N -> B) -----------------
    y = _cln(x, ln_g_ref[...], ln_b_ref[...])
    y = _mm(y, w_bneck_ref[...])                               # (K, B) f32

    emb = emb_ref[0].astype(jnp.bfloat16)                      # (1, emb_dim)

    for r in range(R):
        # --- FusionLayer('cat'): Linear(concat([y, emb])) as a split matmul --
        y = (_mm(y, wx_ref[r])
             + jnp.dot(emb, we_ref[r], preferred_element_type=jnp.float32)
             + fb_ref[r])                                      # (K, B)

        for xi in range(X):
            idx = r * X + xi
            d = 2 ** xi                                        # dilation
            pad = (P - 1) * d // 2                             # 'same', stride=1
            res = y

            # 1x1 conv (B -> H) + PReLU + gLN
            h = _mm(y, w1_ref[idx])                            # (K, H)
            h = _prelu(h, alpha1_ref[idx])
            h = _gln(h, g1_ref[idx:idx + 1, :], b1_ref[idx:idx + 1, :])

            # Reflect padding of the time axis done in-kernel into VMEM scratch
            # (SpeechBrain Conv1d default padding_mode='reflect').
            hp_ref[pad:pad + K, :] = h
            for i in range(pad):
                hp_ref[pad - 1 - i:pad - i, :] = h[1 + i:2 + i, :]
                hp_ref[pad + K + i:pad + K + i + 1, :] = h[K - 2 - i:K - 1 - i, :]

            # Depthwise dilated conv (groups=H, bias=False), static taps
            wdw = wdw_ref[idx]                                 # (P, H) f32
            acc = hp_ref[0:K, :] * wdw[0:1, :]
            for t in range(1, P):
                acc = acc + hp_ref[t * d:t * d + K, :] * wdw[t:t + 1, :]

            acc = _prelu(acc, alpha2_ref[idx])
            acc = _gln(acc, g2_ref[idx:idx + 1, :], b2_ref[idx:idx + 1, :])

            # Pointwise 1x1 conv (H -> B) + residual
            y = _mm(acc, w2_ref[idx]) + res

    # --- mask_conv1x1 (B -> C*N) + ReLU --------------------------------------
    # TODO(synk): only mask_nonlinear='relu' (module default) is implemented;
    # the 'softmax' branch over C is not generated here.
    o_ref[0] = jnp.maximum(_mm(y, w_mask_ref[...]), 0.0)


# ----------------------------------------------------------------------------
# Parameters (deterministic, synthetic). Matmul weights stored in bf16.
# ----------------------------------------------------------------------------
def init_params(key, N, B, H, P, X, R, C, emb_dim):
    keys = iter(jax.random.split(key, 32))
    bf = jnp.bfloat16

    def nrm(shape, scale=0.1, dtype=jnp.float32):
        return (scale * jax.random.normal(next(keys), shape, jnp.float32)).astype(dtype)

    RX = R * X
    return {
        "ln_gamma": jnp.ones((1, N), jnp.float32),
        "ln_beta": jnp.zeros((1, N), jnp.float32),
        "w_bottleneck": nrm((N, B), dtype=bf),        # Conv1d(N->B, k=1, no bias)
        "wx": nrm((R, B, B), dtype=bf),               # FusionLayer W columns on x
        "we": nrm((R, emb_dim, B), dtype=bf),         # FusionLayer W columns on emb
        "fb": nrm((R, 1, B), 0.01),                   # FusionLayer bias
        "w1": nrm((RX, B, H), dtype=bf),              # 1x1 conv B->H
        "alpha1": jnp.full((RX,), 0.25, jnp.float32), # PReLU init
        "g1": jnp.ones((RX, H), jnp.float32),
        "b1": jnp.zeros((RX, H), jnp.float32),
        "wdw": nrm((RX, P, H)),                       # depthwise taps (f32, VPU)
        "alpha2": jnp.full((RX,), 0.25, jnp.float32),
        "g2": jnp.ones((RX, H), jnp.float32),
        "b2": jnp.zeros((RX, H), jnp.float32),
        "w2": nrm((RX, H, B), dtype=bf),              # 1x1 conv H->B
        "w_mask": nrm((B, C * N), dtype=bf),          # mask conv B->C*N
    }


# ----------------------------------------------------------------------------
# Forward pass: single fused pallas_call, grid over batch.
# ----------------------------------------------------------------------------
def masknet_forward(params, mixture_w, emb, *, N, B, H, P, X, R, C, emb_dim):
    """mixture_w: [M, N, K] (NCW), emb: [M, D] -> est_mask [C, M, N, K]."""
    x = jnp.transpose(mixture_w, (0, 2, 1)).astype(jnp.float32)   # [M, K, N]
    M, K, _ = x.shape
    RX = R * X
    max_pad = (P - 1) * (2 ** (X - 1)) // 2
    assert max_pad < K, "reflect padding requires pad < K"
    emb3 = emb.astype(jnp.float32).reshape(M, 1, emb_dim)

    def rep(shape):       # weight block, resident across all grid steps
        return pl.BlockSpec(shape, lambda m: (0,) * len(shape))

    smem = pl.BlockSpec(memory_space=pltpu.MemorySpace.SMEM)

    in_specs = [
        smem, smem,                                            # alpha1, alpha2
        pl.BlockSpec((1, K, N), lambda m: (m, 0, 0)),          # x (per-sample)
        pl.BlockSpec((1, 1, emb_dim), lambda m: (m, 0, 0)),    # emb (per-sample)
        rep((1, N)), rep((1, N)), rep((N, B)),                 # cLN + bottleneck
        rep((R, B, B)), rep((R, emb_dim, B)), rep((R, 1, B)),  # fusion
        rep((RX, B, H)), rep((RX, H)), rep((RX, H)),           # block first half
        rep((RX, P, H)), rep((RX, H)), rep((RX, H)),           # depthwise + gLN2
        rep((RX, H, B)),                                       # pointwise
        rep((B, C * N)),                                       # mask conv
    ]

    out = pl.pallas_call(
        functools.partial(masknet_kernel, P=P, X=X, R=R),
        out_shape=jax.ShapeDtypeStruct((M, K, C * N), jnp.float32),
        grid=(M,),
        in_specs=in_specs,
        out_specs=pl.BlockSpec((1, K, C * N), lambda m: (m, 0, 0)),
        scratch_shapes=[pltpu.VMEM((K + 2 * max_pad, H), jnp.float32)],
        compiler_params=pltpu.CompilerParams(
            dimension_semantics=("parallel",),        # v7x: 2 TCs split batch
            vmem_limit_bytes=32 * 1024 * 1024),       # safe on v5e/v6e/v7x
    )(params["alpha1"], params["alpha2"], x, emb3,
      params["ln_gamma"], params["ln_beta"], params["w_bottleneck"],
      params["wx"], params["we"], params["fb"],
      params["w1"], params["g1"], params["b1"],
      params["wdw"], params["g2"], params["b2"], params["w2"],
      params["w_mask"])

    score = out.reshape(M, K, C, N)
    return jnp.transpose(score, (2, 0, 3, 1))                  # [C, M, N, K]


# ----------------------------------------------------------------------------
# Pure-JAX reference (mirrors PyTorch semantics; same bf16-operand matmuls)
# ----------------------------------------------------------------------------
def masknet_reference(params, mixture_w, emb, *, N, B, H, P, X, R, C, emb_dim):
    def mm(a, w):
        return jnp.dot(a.astype(jnp.bfloat16), w, preferred_element_type=jnp.float32)

    x = jnp.transpose(mixture_w, (0, 2, 1)).astype(jnp.float32)  # [M, K, N]
    M, K, _ = x.shape
    mean = jnp.mean(x, -1, keepdims=True)
    var = jnp.mean((x - mean) ** 2, -1, keepdims=True)
    y = params["ln_gamma"] * (x - mean) / jnp.sqrt(var + EPS) + params["ln_beta"]
    y = mm(y, params["w_bottleneck"])
    for r in range(R):
        y = (mm(y, params["wx"][r])
             + mm(emb.astype(jnp.float32), params["we"][r])[:, None, :]
             + params["fb"][r])
        for xi in range(X):
            idx = r * X + xi
            d = 2 ** xi
            pad = (P - 1) * d // 2
            h = mm(y, params["w1"][idx])
            h = jnp.where(h >= 0, h, params["alpha1"][idx] * h)
            m_ = jnp.mean(h, (1, 2), keepdims=True)
            v_ = jnp.mean((h - m_) ** 2, (1, 2), keepdims=True)
            h = params["g1"][idx] * (h - m_) / jnp.sqrt(v_ + EPS) + params["b1"][idx]
            hp = jnp.pad(h, ((0, 0), (pad, pad), (0, 0)), mode="reflect")
            acc = sum(hp[:, t * d:t * d + K, :] * params["wdw"][idx, t][None, None, :]
                      for t in range(P))
            acc = jnp.where(acc >= 0, acc, params["alpha2"][idx] * acc)
            m_ = jnp.mean(acc, (1, 2), keepdims=True)
            v_ = jnp.mean((acc - m_) ** 2, (1, 2), keepdims=True)
            acc = params["g2"][idx] * (acc - m_) / jnp.sqrt(v_ + EPS) + params["b2"][idx]
            y = mm(acc, params["w2"][idx]) + y
    score = jnp.maximum(mm(y, params["w_mask"]), 0.0)
    return jnp.transpose(score.reshape(M, K, C, N), (2, 0, 3, 1))


# ----------------------------------------------------------------------------
if __name__ == "__main__":
    # Small, module-consistent shapes; channel widths lane-dense (128).
    N, B, H, P, X, R, C, emb_dim = 64, 128, 128, 3, 2, 2, 2, 64
    M, K = 2, 128

    key = jax.random.PRNGKey(0)
    kp, kx, ke = jax.random.split(key, 3)
    params = init_params(kp, N, B, H, P, X, R, C, emb_dim)
    mixture_w = jax.random.normal(kx, (M, N, K), jnp.float32)   # [M, N, K] (NCW)
    emb = jax.random.normal(ke, (M, emb_dim), jnp.float32)

    fwd = jax.jit(functools.partial(
        masknet_forward, N=N, B=B, H=H, P=P, X=X, R=R, C=C, emb_dim=emb_dim))
    out = jax.block_until_ready(fwd(params, mixture_w, emb))

    ref = masknet_reference(params, mixture_w, emb,
                            N=N, B=B, H=H, P=P, X=X, R=R, C=C, emb_dim=emb_dim)
    assert out.shape == (C, M, N, K), out.shape
    np.testing.assert_allclose(np.asarray(out), np.asarray(ref),
                               rtol=2e-2, atol=2e-2)
    print("KERNEL_OK")
</pallas_src>

<mosaic_0001>
module attributes {stable_mosaic.version = 11 : i64} {
  func.func @masknet_kernel(%arg0: i32, %arg1: memref<4xf32, #tpu.memory_space<smem>>, %arg2: memref<4xf32, #tpu.memory_space<smem>>, %arg3: memref<1x128x64xf32, #tpu.memory_space<vmem>>, %arg4: memref<1x1x64xf32, #tpu.memory_space<vmem>>, %arg5: memref<1x64xf32, #tpu.memory_space<vmem>>, %arg6: memref<1x64xf32, #tpu.memory_space<vmem>>, %arg7: memref<64x128xbf16, #tpu.memory_space<vmem>>, %arg8: memref<2x128x128xbf16, #tpu.memory_space<vmem>>, %arg9: memref<2x64x128xbf16, #tpu.memory_space<vmem>>, %arg10: memref<2x1x128xf32, #tpu.memory_space<vmem>>, %arg11: memref<4x128x128xbf16, #tpu.memory_space<vmem>>, %arg12: memref<4x128xf32, #tpu.memory_space<vmem>>, %arg13: memref<4x128xf32, #tpu.memory_space<vmem>>, %arg14: memref<4x3x128xf32, #tpu.memory_space<vmem>>, %arg15: memref<4x128xf32, #tpu.memory_space<vmem>>, %arg16: memref<4x128xf32, #tpu.memory_space<vmem>>, %arg17: memref<4x128x128xbf16, #tpu.memory_space<vmem>>, %arg18: memref<128x128xbf16, #tpu.memory_space<vmem>>, %arg19: memref<1x128x128xf32, #tpu.memory_space<vmem>>, %arg20: memref<132x128xf32, #tpu.memory_space<vmem>>) attributes {dimension_semantics = [#tpu.dimension_semantics<parallel>], iteration_bounds = array<i64: 2>, scalar_prefetch = 0 : i64, scratch_operands = 1 : i64, tpu.core_type = #tpu.core_type<tc>, window_params = [{transform_indices = @transform_0, window_bounds = array<i64: 4>}, {transform_indices = @transform_1, window_bounds = array<i64: 4>}, {transform_indices = @transform_2, window_bounds = array<i64: 1, 128, 64>}, {transform_indices = @transform_3, window_bounds = array<i64: 1, 1, 64>}, {pipeline_mode = #tpu.pipeline_mode<synchronous>, transform_indices = @transform_4, window_bounds = array<i64: 1, 64>}, {pipeline_mode = #tpu.pipeline_mode<synchronous>, transform_indices = @transform_5, window_bounds = array<i64: 1, 64>}, {pipeline_mode = #tpu.pipeline_mode<synchronous>, transform_indices = @transform_6, window_bounds = array<i64: 64, 128>}, {pipeline_mode = #tpu.pipeline_mode<synchronous>, transform_indices = @transform_7, window_bounds = array<i64: 2, 128, 128>}, {pipeline_mode = #tpu.pipeline_mode<synchronous>, transform_indices = @transform_8, window_bounds = array<i64: 2, 64, 128>}, {pipeline_mode = #tpu.pipeline_mode<synchronous>, transform_indices = @transform_9, window_bounds = array<i64: 2, 1, 128>}, {pipeline_mode = #tpu.pipeline_mode<synchronous>, transform_indices = @transform_10, window_bounds = array<i64: 4, 128, 128>}, {pipeline_mode = #tpu.pipeline_mode<synchronous>, transform_indices = @transform_11, window_bounds = array<i64: 4, 128>}, {pipeline_mode = #tpu.pipeline_mode<synchronous>, transform_indices = @transform_12, window_bounds = array<i64: 4, 128>}, {pipeline_mode = #tpu.pipeline_mode<synchronous>, transform_indices = @transform_13, window_bounds = array<i64: 4, 3, 128>}, {pipeline_mode = #tpu.pipeline_mode<synchronous>, transform_indices = @transform_14, window_bounds = array<i64: 4, 128>}, {pipeline_mode = #tpu.pipeline_mode<synchronous>, transform_indices = @transform_15, window_bounds = array<i64: 4, 128>}, {pipeline_mode = #tpu.pipeline_mode<synchronous>, transform_indices = @transform_16, window_bounds = array<i64: 4, 128, 128>}, {pipeline_mode = #tpu.pipeline_mode<synchronous>, transform_indices = @transform_17, window_bounds = array<i64: 128, 128>}, {transform_indices = @transform_18, window_bounds = array<i64: 1, 128, 128>}]} {
    %c0 = arith.constant 0 : index
    %c0_0 = arith.constant 0 : index
    %c0_1 = arith.constant 0 : index
    %0 = vector.load %arg3[%c0, %c0_0, %c0_1] : memref<1x128x64xf32, #tpu.memory_space<vmem>>, vector<1x128x64xf32>
    %1 = vector.shape_cast %0 : vector<1x128x64xf32> to vector<128x64xf32>
    %c0_2 = arith.constant 0 : index
    %c0_3 = arith.constant 0 : index
    %2 = vector.load %arg5[%c0_2, %c0_3] : memref<1x64xf32, #tpu.memory_space<vmem>>, vector<1x64xf32>
    %c0_4 = arith.constant 0 : index
    %c0_5 = arith.constant 0 : index
    %3 = vector.load %arg6[%c0_4, %c0_5] : memref<1x64xf32, #tpu.memory_space<vmem>>, vector<1x64xf32>
    %cst = arith.constant dense<0.000000e+00> : vector<128xf32>
    %4 = vector.multi_reduction <add>, %1, %cst [1] : vector<128x64xf32> to vector<128xf32>
    %5 = vector.shape_cast %4 : vector<128xf32> to vector<128x1xf32>
    %6 = arith.mulf %1, %1 : vector<128x64xf32>
    %cst_6 = arith.constant dense<0.000000e+00> : vector<128xf32>
    %7 = vector.multi_reduction <add>, %6, %cst_6 [1] : vector<128x64xf32> to vector<128xf32>
    %8 = vector.shape_cast %7 : vector<128xf32> to vector<128x1xf32>
    %cst_7 = arith.constant 6.400000e+01 : f32
    %9 = vector.broadcast %cst_7 : f32 to vector<128x1xf32>
    %10 = arith.divf %5, %9 : vector<128x1xf32>
    %cst_8 = arith.constant 6.400000e+01 : f32
    %11 = vector.broadcast %cst_8 : f32 to vector<128x1xf32>
    %12 = arith.divf %8, %11 : vector<128x1xf32>
    %13 = arith.mulf %10, %10 : vector<128x1xf32>
    %14 = arith.subf %12, %13 : vector<128x1xf32>
    %cst_9 = arith.constant 0.000000e+00 : f32
    %15 = vector.broadcast %cst_9 : f32 to vector<128x1xf32>
    %16 = arith.maximumf %14, %15 : vector<128x1xf32>
    %17 = vector.broadcast %10 : vector<128x1xf32> to vector<128x64xf32>
    %18 = arith.subf %1, %17 : vector<128x64xf32>
    %19 = vector.broadcast %2 : vector<1x64xf32> to vector<128x64xf32>
    %20 = arith.mulf %19, %18 : vector<128x64xf32>
    %cst_10 = arith.constant 9.99999993E-9 : f32
    %21 = vector.broadcast %cst_10 : f32 to vector<128x1xf32>
    %22 = arith.addf %16, %21 : vector<128x1xf32>
    %23 = math.rsqrt %22 : vector<128x1xf32>
    %24 = vector.broadcast %23 : vector<128x1xf32> to vector<128x64xf32>
    %25 = arith.mulf %20, %24 : vector<128x64xf32>
    %26 = vector.broadcast %3 : vector<1x64xf32> to vector<128x64xf32>
    %27 = arith.addf %25, %26 : vector<128x64xf32>
    %c0_11 = arith.constant 0 : index
    %c0_12 = arith.constant 0 : index
    %28 = vector.load %arg7[%c0_11, %c0_12] : memref<64x128xbf16, #tpu.memory_space<vmem>>, vector<64x128xbf16>
    %29 = arith.truncf %27 : vector<128x64xf32> to vector<128x64xbf16>
    %cst_13 = arith.constant dense<0.000000e+00> : vector<128x128xf32>
    %30 = tpu.matmul %29, %28, %cst_13 {dimension_numbers = #tpu.dot_dimension_numbers<[1], [0], [0], [1], [0, 0, 1, 1], [], []>} : vector<128x64xbf16>, vector<64x128xbf16>, vector<128x128xf32> -> vector<128x128xf32>
    %c0_14 = arith.constant 0 : index
    %c0_15 = arith.constant 0 : index
    %c0_16 = arith.constant 0 : index
    %31 = vector.load %arg4[%c0_14, %c0_15, %c0_16] : memref<1x1x64xf32, #tpu.memory_space<vmem>>, vector<1x1x64xf32>
    %32 = vector.shape_cast %31 : vector<1x1x64xf32> to vector<1x64xf32>
    %33 = arith.truncf %32 : vector<1x64xf32> to vector<1x64xbf16>
    %c0_17 = arith.constant 0 : index
    %c0_18 = arith.constant 0 : index
    %c0_19 = arith.constant 0 : index
    %34 = vector.load %arg8[%c0_17, %c0_18, %c0_19] : memref<2x128x128xbf16, #tpu.memory_space<vmem>>, vector<1x128x128xbf16>
    %35 = vector.shape_cast %34 : vector<1x128x128xbf16> to vector<128x128xbf16>
    %36 = arith.truncf %30 : vector<128x128xf32> to vector<128x128xbf16>
    %cst_20 = arith.constant dense<0.000000e+00> : vector<128x128xf32>
    %37 = tpu.matmul %36, %35, %cst_20 {dimension_numbers = #tpu.dot_dimension_numbers<[1], [0], [0], [1], [0, 0, 1, 1], [], []>} : vector<128x128xbf16>, vector<128x128xbf16>, vector<128x128xf32> -> vector<128x128xf32>
    %c0_21 = arith.constant 0 : index
    %c0_22 = arith.constant 0 : index
    %c0_23 = arith.constant 0 : index
    %38 = vector.load %arg9[%c0_21, %c0_22, %c0_23] : memref<2x64x128xbf16, #tpu.memory_space<vmem>>, vector<1x64x128xbf16>
    %39 = vector.shape_cast %38 : vector<1x64x128xbf16> to vector<64x128xbf16>
    %cst_24 = arith.constant dense<0.000000e+00> : vector<1x128xf32>
    %40 = tpu.matmul %33, %39, %cst_24 {dimension_numbers = #tpu.dot_dimension_numbers<[1], [0], [0], [1], [0, 0, 1, 1], [], []>} : vector<1x64xbf16>, vector<64x128xbf16>, vector<1x128xf32> -> vector<1x128xf32>
    %41 = vector.broadcast %40 : vector<1x128xf32> to vector<128x128xf32>
    %42 = arith.addf %37, %41 : vector<128x128xf32>
    %c0_25 = arith.constant 0 : index
    %c0_26 = arith.constant 0 : index
    %c0_27 = arith.constant 0 : index
    %43 = vector.load %arg10[%c0_25, %c0_26, %c0_27] : memref<2x1x128xf32, #tpu.memory_space<vmem>>, vector<1x1x128xf32>
    %44 = vector.shape_cast %43 : vector<1x1x128xf32> to vector<1x128xf32>
    %45 = vector.broadcast %44 : vector<1x128xf32> to vector<128x128xf32>
    %46 = arith.addf %42, %45 : vector<128x128xf32>
    %c0_28 = arith.constant 0 : index
    %c0_29 = arith.constant 0 : index
    %c0_30 = arith.constant 0 : index
    %47 = vector.load %arg11[%c0_28, %c0_29, %c0_30] : memref<4x128x128xbf16, #tpu.memory_space<vmem>>, vector<1x128x128xbf16>
    %48 = vector.shape_cast %47 : vector<1x128x128xbf16> to vector<128x128xbf16>
    %49 = arith.truncf %46 : vector<128x128xf32> to vector<128x128xbf16>
    %cst_31 = arith.constant dense<0.000000e+00> : vector<128x128xf32>
    %50 = tpu.matmul %49, %48, %cst_31 {dimension_numbers = #tpu.dot_dimension_numbers<[1], [0], [0], [1], [0, 0, 1, 1], [], []>} : vector<128x128xbf16>, vector<128x128xbf16>, vector<128x128xf32> -> vector<128x128xf32>
    %c0_32 = arith.constant 0 : index
    %51 = memref.load %arg1[%c0_32] : memref<4xf32, #tpu.memory_space<smem>>
    %cst_33 = arith.constant 0.000000e+00 : f32
    %52 = vector.broadcast %cst_33 : f32 to vector<128x128xf32>
    %53 = arith.cmpf oge, %50, %52 : vector<128x128xf32>
    %54 = vector.broadcast %51 : f32 to vector<128x128xf32>
    %55 = arith.mulf %54, %50 : vector<128x128xf32>
    %56 = arith.select %53, %50, %55 : vector<128x128xi1>, vector<128x128xf32>
    %c0_34 = arith.constant 0 : index
    %c0_35 = arith.constant 0 : index
    %57 = vector.load %arg12[%c0_34, %c0_35] : memref<4x128xf32, #tpu.memory_space<vmem>>, vector<1x128xf32>
    %c0_36 = arith.constant 0 : index
    %c0_37 = arith.constant 0 : index
    %58 = vector.load %arg13[%c0_36, %c0_37] : memref<4x128xf32, #tpu.memory_space<vmem>>, vector<1x128xf32>
    %59 = vector.shape_cast %56 : vector<128x128xf32> to vector<1x128x128xf32>
    %cst_38 = arith.constant dense<0.000000e+00> : vector<1xf32>
    %60 = vector.multi_reduction <add>, %59, %cst_38 [1, 2] : vector<1x128x128xf32> to vector<1xf32>
    %61 = vector.shape_cast %60 : vector<1xf32> to vector<1x1x1xf32>
    %62 = vector.extract %61[0, 0, 0] : f32 from vector<1x1x1xf32>
    %63 = vector.broadcast %62 : f32 to vector<1x1xf32>
    %64 = arith.mulf %56, %56 : vector<128x128xf32>
    %65 = vector.shape_cast %64 : vector<128x128xf32> to vector<1x128x128xf32>
    %cst_39 = arith.constant dense<0.000000e+00> : vector<1xf32>
    %66 = vector.multi_reduction <add>, %65, %cst_39 [1, 2] : vector<1x128x128xf32> to vector<1xf32>
    %67 = vector.shape_cast %66 : vector<1xf32> to vector<1x1x1xf32>
    %68 = vector.extract %67[0, 0, 0] : f32 from vector<1x1x1xf32>
    %69 = vector.broadcast %68 : f32 to vector<1x1xf32>
    %cst_40 = arith.constant 1.638400e+04 : f32
    %70 = vector.broadcast %cst_40 : f32 to vector<1x1xf32>
    %71 = arith.divf %63, %70 : vector<1x1xf32>
    %cst_41 = arith.constant 1.638400e+04 : f32
    %72 = vector.broadcast %cst_41 : f32 to vector<1x1xf32>
    %73 = arith.divf %69, %72 : vector<1x1xf32>
    %74 = arith.mulf %71, %71 : vector<1x1xf32>
    %75 = arith.subf %73, %74 : vector<1x1xf32>
    %cst_42 = arith.constant 0.000000e+00 : f32
    %76 = vector.broadcast %cst_42 : f32 to vector<1x1xf32>
    %77 = arith.maximumf %75, %76 : vector<1x1xf32>
    %78 = vector.broadcast %71 : vector<1x1xf32> to vector<128x128xf32>
    %79 = arith.subf %56, %78 : vector<128x128xf32>
    %80 = vector.broadcast %57 : vector<1x128xf32> to vector<128x128xf32>
    %81 = arith.mulf %80, %79 : vector<128x128xf32>
    %cst_43 = arith.constant 9.99999993E-9 : f32
    %82 = vector.broadcast %cst_43 : f32 to vector<1x1xf32>
    %83 = arith.addf %77, %82 : vector<1x1xf32>
    %84 = math.rsqrt %83 : vector<1x1xf32>
    %85 = vector.broadcast %84 : vector<1x1xf32> to vector<128x128xf32>
    %86 = arith.mulf %81, %85 : vector<128x128xf32>
    %87 = vector.broadcast %58 : vector<1x128xf32> to vector<128x128xf32>
    %88 = arith.addf %86, %87 : vector<128x128xf32>
    %c1 = arith.constant 1 : index
    %c0_44 = arith.constant 0 : index
    %89 = vector.load %arg20[%c1, %c0_44] : memref<132x128xf32, #tpu.memory_space<vmem>>, vector<128x128xf32>
    tpu.vector_store %arg20[%c1, %c0_44], %88 {strides = array<i32>} : memref<132x128xf32, #tpu.memory_space<vmem>>, vector<128x128xf32>,
    %90 = vector.extract_strided_slice %88 {offsets = [1, 0], sizes = [1, 128], strides = [1, 1]} : vector<128x128xf32> to vector<1x128xf32>
    %c0_45 = arith.constant 0 : index
    %c0_46 = arith.constant 0 : index
    %91 = vector.load %arg20[%c0_45, %c0_46] : memref<132x128xf32, #tpu.memory_space<vmem>>, vector<1x128xf32>
    tpu.vector_store %arg20[%c0_45, %c0_46], %90 {strides = array<i32>} : memref<132x128xf32, #tpu.memory_space<vmem>>, vector<1x128xf32>,
    %92 = vector.extract_strided_slice %88 {offsets = [126, 0], sizes = [1, 128], strides = [1, 1]} : vector<128x128xf32> to vector<1x128xf32>
    %c129 = arith.constant 129 : index
    %c0_47 = arith.constant 0 : index
    %93 = vector.load %arg20[%c129, %c0_47] : memref<132x128xf32, #tpu.memory_space<vmem>>, vector<1x128xf32>
    tpu.vector_store %arg20[%c129, %c0_47], %92 {strides = array<i32>} : memref<132x128xf32, #tpu.memory_space<vmem>>, vector<1x128xf32>,
    %c0_48 = arith.constant 0 : index
    %c0_49 = arith.constant 0 : index
    %c0_50 = arith.constant 0 : index
    %94 = vector.load %arg14[%c0_48, %c0_49, %c0_50] : memref<4x3x128xf32, #tpu.memory_space<vmem>>, vector<1x3x128xf32>
    %95 = vector.shape_cast %94 : vector<1x3x128xf32> to vector<3x128xf32>
    %c0_51 = arith.constant 0 : index
    %c0_52 = arith.constant 0 : index
    %96 = vector.load %arg20[%c0_51, %c0_52] : memref<132x128xf32, #tpu.memory_space<vmem>>, vector<128x128xf32>
    %97 = vector.extract_strided_slice %95 {offsets = [0, 0], sizes = [1, 128], strides = [1, 1]} : vector<3x128xf32> to vector<1x128xf32>
    %98 = vector.broadcast %97 : vector<1x128xf32> to vector<128x128xf32>
    %99 = arith.mulf %96, %98 : vector<128x128xf32>
    %c1_53 = arith.constant 1 : index
    %c0_54 = arith.constant 0 : index
    %100 = vector.load %arg20[%c1_53, %c0_54] : memref<132x128xf32, #tpu.memory_space<vmem>>, vector<128x128xf32>
    %101 = vector.extract_strided_slice %95 {offsets = [1, 0], sizes = [1, 128], strides = [1, 1]} : vector<3x128xf32> to vector<1x128xf32>
    %102 = vector.broadcast %101 : vector<1x128xf32> to vector<128x128xf32>
    %103 = arith.mulf %100, %102 : vector<128x128xf32>
    %104 = arith.addf %99, %103 : vector<128x128xf32>
    %c2 = arith.constant 2 : index
    %c0_55 = arith.constant 0 : index
    %105 = vector.load %arg20[%c2, %c0_55] : memref<132x128xf32, #tpu.memory_space<vmem>>, vector<128x128xf32>
    %106 = vector.extract_strided_slice %95 {offsets = [2, 0], sizes = [1, 128], strides = [1, 1]} : vector<3x128xf32> to vector<1x128xf32>
    %107 = vector.broadcast %106 : vector<1x128xf32> to vector<128x128xf32>
    %108 = arith.mulf %105, %107 : vector<128x128xf32>
    %109 = arith.addf %104, %108 : vector<128x128xf32>
    %c0_56 = arith.constant 0 : index
    %110 = memref.load %arg2[%c0_56] : memref<4xf32, #tpu.memory_space<smem>>
    %cst_57 = arith.constant 0.000000e+00 : f32
    %111 = vector.broadcast %cst_57 : f32 to vector<128x128xf32>
    %112 = arith.cmpf oge, %109, %111 : vector<128x128xf32>
    %113 = vector.broadcast %110 : f32 to vector<128x128xf32>
    %114 = arith.mulf %113, %109 : vector<128x128xf32>
    %115 = arith.select %112, %109, %114 : vector<128x128xi1>, vector<128x128xf32>
    %c0_58 = arith.constant 0 : index
    %c0_59 = arith.constant 0 : index
    %116 = vector.load %arg15[%c0_58, %c0_59] : memref<4x128xf32, #tpu.memory_space<vmem>>, vector<1x128xf32>
    %c0_60 = arith.constant 0 : index
    %c0_61 = arith.constant 0 : index
    %117 = vector.load %arg16[%c0_60, %c0_61] : memref<4x128xf32, #tpu.memory_space<vmem>>, vector<1x128xf32>
    %118 = vector.shape_cast %115 : vector<128x128xf32> to vector<1x128x128xf32>
    %cst_62 = arith.constant dense<0.000000e+00> : vector<1xf32>
    %119 = vector.multi_reduction <add>, %118, %cst_62 [1, 2] : vector<1x128x128xf32> to vector<1xf32>
    %120 = vector.shape_cast %119 : vector<1xf32> to vector<1x1x1xf32>
    %121 = vector.extract %120[0, 0, 0] : f32 from vector<1x1x1xf32>
    %122 = vector.broadcast %121 : f32 to vector<1x1xf32>
    %123 = arith.mulf %115, %115 : vector<128x128xf32>
    %124 = vector.shape_cast %123 : vector<128x128xf32> to vector<1x128x128xf32>
    %cst_63 = arith.constant dense<0.000000e+00> : vector<1xf32>
    %125 = vector.multi_reduction <add>, %124, %cst_63 [1, 2] : vector<1x128x128xf32> to vector<1xf32>
    %126 = vector.shape_cast %125 : vector<1xf32> to vector<1x1x1xf32>
    %127 = vector.extract %126[0, 0, 0] : f32 from vector<1x1x1xf32>
    %128 = vector.broadcast %127 : f32 to vector<1x1xf32>
    %cst_64 = arith.constant 1.638400e+04 : f32
    %129 = vector.broadcast %cst_64 : f32 to vector<1x1xf32>
    %130 = arith.divf %122, %129 : vector<1x1xf32>
    %cst_65 = arith.constant 1.638400e+04 : f32
    %131 = vector.broadcast %cst_65 : f32 to vector<1x1xf32>
    %132 = arith.divf %128, %131 : vector<1x1xf32>
    %133 = arith.mulf %130, %130 : vector<1x1xf32>
    %134 = arith.subf %132, %133 : vector<1x1xf32>
    %cst_66 = arith.constant 0.000000e+00 : f32
    %135 = vector.broadcast %cst_66 : f32 to vector<1x1xf32>
    %136 = arith.maximumf %134, %135 : vector<1x1xf32>
    %137 = vector.broadcast %130 : vector<1x1xf32> to vector<128x128xf32>
    %138 = arith.subf %115, %137 : vector<128x128xf32>
    %139 = vector.broadcast %116 : vector<1x128xf32> to vector<128x128xf32>
    %140 = arith.mulf %139, %138 : vector<128x128xf32>
    %cst_67 = arith.constant 9.99999993E-9 : f32
    %141 = vector.broadcast %cst_67 : f32 to vector<1x1xf32>
    %142 = arith.addf %136, %141 : vector<1x1xf32>
    %143 = math.rsqrt %142 : vector<1x1xf32>
    %144 = vector.broadcast %143 : vector<1x1xf32> to vector<128x128xf32>
    %145 = arith.mulf %140, %144 : vector<128x128xf32>
    %146 = vector.broadcast %117 : vector<1x128xf32> to vector<128x128xf32>
    %147 = arith.addf %145, %146 : vector<128x128xf32>
    %c0_68 = arith.constant 0 : index
    %c0_69 = arith.constant 0 : index
    %c0_70 = arith.constant 0 : index
    %148 = vector.load %arg17[%c0_68, %c0_69, %c0_70] : memref<4x128x128xbf16, #tpu.memory_space<vmem>>, vector<1x128x128xbf16>
    %149 = vector.shape_cast %148 : vector<1x128x128xbf16> to vector<128x128xbf16>
    %150 = arith.truncf %147 : vector<128x128xf32> to vector<128x128xbf16>
    %cst_71 = arith.constant dense<0.000000e+00> : vector<128x128xf32>
    %151 = tpu.matmul %150, %149, %cst_71 {dimension_numbers = #tpu.dot_dimension_numbers<[1], [0], [0], [1], [0, 0, 1, 1], [], []>} : vector<128x128xbf16>, vector<128x128xbf16>, vector<128x128xf32> -> vector<128x128xf32>
    %152 = arith.addf %151, %46 : vector<128x128xf32>
    %c1_72 = arith.constant 1 : index
    %c0_73 = arith.constant 0 : index
    %c0_74 = arith.constant 0 : index
    %153 = vector.load %arg11[%c1_72, %c0_73, %c0_74] : memref<4x128x128xbf16, #tpu.memory_space<vmem>>, vector<1x128x128xbf16>
    %154 = vector.shape_cast %153 : vector<1x128x128xbf16> to vector<128x128xbf16>
    %155 = arith.truncf %152 : vector<128x128xf32> to vector<128x128xbf16>
    %cst_75 = arith.constant dense<0.000000e+00> : vector<128x128xf32>
    %156 = tpu.matmul %155, %154, %cst_75 {dimension_numbers = #tpu.dot_dimension_numbers<[1], [0], [0], [1], [0, 0, 1, 1], [], []>} : vector<128x128xbf16>, vector<128x128xbf16>, vector<128x128xf32> -> vector<128x128xf32>
    %c1_76 = arith.constant 1 : index
    %157 = memref.load %arg1[%c1_76] : memref<4xf32, #tpu.memory_space<smem>>
    %cst_77 = arith.constant 0.000000e+00 : f32
    %158 = vector.broadcast %cst_77 : f32 to vector<128x128xf32>
    %159 = arith.cmpf oge, %156, %158 : vector<128x128xf32>
    %160 = vector.broadcast %157 : f32 to vector<128x128xf32>
    %161 = arith.mulf %160, %156 : vector<128x128xf32>
    %162 = arith.select %159, %156, %161 : vector<128x128xi1>, vector<128x128xf32>
    %c1_78 = arith.constant 1 : index
    %c0_79 = arith.constant 0 : index
    %163 = vector.load %arg12[%c1_78, %c0_79] : memref<4x128xf32, #tpu.memory_space<vmem>>, vector<1x128xf32>
    %c1_80 = arith.constant 1 : index
    %c0_81 = arith.constant 0 : index
    %164 = vector.load %arg13[%c1_80, %c0_81] : memref<4x128xf32, #tpu.memory_space<vmem>>, vector<1x128xf32>
    %165 = vector.shape_cast %162 : vector<128x128xf32> to vector<1x128x128xf32>
    %cst_82 = arith.constant dense<0.000000e+00> : vector<1xf32>
    %166 = vector.multi_reduction <add>, %165, %cst_82 [1, 2] : vector<1x128x128xf32> to vector<1xf32>
    %167 = vector.shape_cast %166 : vector<1xf32> to vector<1x1x1xf32>
    %168 = vector.extract %167[0, 0, 0] : f32 from vector<1x1x1xf32>
    %169 = vector.broadcast %168 : f32 to vector<1x1xf32>
    %170 = arith.mulf %162, %162 : vector<128x128xf32>
    %171 = vector.shape_cast %170 : vector<128x128xf32> to vector<1x128x128xf32>
    %cst_83 = arith.constant dense<0.000000e+00> : vector<1xf32>
    %172 = vector.multi_reduction <add>, %171, %cst_83 [1, 2] : vector<1x128x128xf32> to vector<1xf32>
    %173 = vector.shape_cast %172 : vector<1xf32> to vector<1x1x1xf32>
    %174 = vector.extract %173[0, 0, 0] : f32 from vector<1x1x1xf32>
    %175 = vector.broadcast %174 : f32 to vector<1x1xf32>
    %cst_84 = arith.constant 1.638400e+04 : f32
    %176 = vector.broadcast %cst_84 : f32 to vector<1x1xf32>
    %177 = arith.divf %169, %176 : vector<1x1xf32>
    %cst_85 = arith.constant 1.638400e+04 : f32
    %178 = vector.broadcast %cst_85 : f32 to vector<1x1xf32>
    %179 = arith.divf %175, %178 : vector<1x1xf32>
    %180 = arith.mulf %177, %177 : vector<1x1xf32>
    %181 = arith.subf %179, %180 : vector<1x1xf32>
    %cst_86 = arith.constant 0.000000e+00 : f32
    %182 = vector.broadcast %cst_86 : f32 to vector<1x1xf32>
    %183 = arith.maximumf %181, %182 : vector<1x1xf32>
    %184 = vector.broadcast %177 : vector<1x1xf32> to vector<128x128xf32>
    %185 = arith.subf %162, %184 : vector<128x128xf32>
    %186 = vector.broadcast %163 : vector<1x128xf32> to vector<128x128xf32>
    %187 = arith.mulf %186, %185 : vector<128x128xf32>
    %cst_87 = arith.constant 9.99999993E-9 : f32
    %188 = vector.broadcast %cst_87 : f32 to vector<1x1xf32>
    %189 = arith.addf %183, %188 : vector<1x1xf32>
    %190 = math.rsqrt %189 : vector<1x1xf32>
    %191 = vector.broadcast %190 : vector<1x1xf32> to vector<128x128xf32>
    %192 = arith.mulf %187, %191 : vector<128x128xf32>
    %193 = vector.broadcast %164 : vector<1x128xf32> to vector<128x128xf32>
    %194 = arith.addf %192, %193 : vector<128x128xf32>
    %c2_88 = arith.constant 2 : index
    %c0_89 = arith.constant 0 : index
    %195 = vector.load %arg20[%c2_88, %c0_89] : memref<132x128xf32, #tpu.memory_space<vmem>>, vector<128x128xf32>
    tpu.vector_store %arg20[%c2_88, %c0_89], %194 {strides = array<i32>} : memref<132x128xf32, #tpu.memory_space<vmem>>, vector<128x128xf32>,
    %196 = vector.extract_strided_slice %194 {offsets = [1, 0], sizes = [1, 128], strides = [1, 1]} : vector<128x128xf32> to vector<1x128xf32>
    %c1_90 = arith.constant 1 : index
    %c0_91 = arith.constant 0 : index
    %197 = vector.load %arg20[%c1_90, %c0_91] : memref<132x128xf32, #tpu.memory_space<vmem>>, vector<1x128xf32>
    tpu.vector_store %arg20[%c1_90, %c0_91], %196 {strides = array<i32>} : memref<132x128xf32, #tpu.memory_space<vmem>>, vector<1x128xf32>,
    %198 = vector.extract_strided_slice %194 {offsets = [126, 0], sizes = [1, 128], strides = [1, 1]} : vector<128x128xf32> to vector<1x128xf32>
    %c130 = arith.constant 130 : index
    %c0_92 = arith.constant 0 : index
    %199 = vector.load %arg20[%c130, %c0_92] : memref<132x128xf32, #tpu.memory_space<vmem>>, vector<1x128xf32>
    tpu.vector_store %arg20[%c130, %c0_92], %198 {strides = array<i32>} : memref<132x128xf32, #tpu.memory_space<vmem>>, vector<1x128xf32>,
    %200 = vector.extract_strided_slice %194 {offsets = [2, 0], sizes = [1, 128], strides = [1, 1]} : vector<128x128xf32> to vector<1x128xf32>
    %c0_93 = arith.constant 0 : index
    %c0_94 = arith.constant 0 : index
    %201 = vector.load %arg20[%c0_93, %c0_94] : memref<132x128xf32, #tpu.memory_space<vmem>>, vector<1x128xf32>
    tpu.vector_store %arg20[%c0_93, %c0_94], %200 {strides = array<i32>} : memref<132x128xf32, #tpu.memory_space<vmem>>, vector<1x128xf32>,
    %202 = vector.extract_strided_slice %194 {offsets = [125, 0], sizes = [1, 128], strides = [1, 1]} : vector<128x128xf32> to vector<1x128xf32>
    %c131 = arith.constant 131 : index
    %c0_95 = arith.constant 0 : index
    %203 = vector.load %arg20[%c131, %c0_95] : memref<132x128xf32, #tpu.memory_space<vmem>>, vector<1x128xf32>
    tpu.vector_store %arg20[%c131, %c0_95], %202 {strides = array<i32>} : memref<132x128xf32, #tpu.memory_space<vmem>>, vector<1x128xf32>,
    %c1_96 = arith.constant 1 : index
    %c0_97 = arith.constant 0 : index
    %c0_98 = arith.constant 0 : index
    %204 = vector.load %arg14[%c1_96, %c0_97, %c0_98] : memref<4x3x128xf32, #tpu.memory_space<vmem>>, vector<1x3x128xf32>
    %205 = vector.shape_cast %204 : vector<1x3x128xf32> to vector<3x128xf32>
    %c0_99 = arith.constant 0 : index
    %c0_100 = arith.constant 0 : index
    %206 = vector.load %arg20[%c0_99, %c0_100] : memref<132x128xf32, #tpu.memory_space<vmem>>, vector<128x128xf32>
    %207 = vector.extract_strided_slice %205 {offsets = [0, 0], sizes = [1, 128], strides = [1, 1]} : vector<3x128xf32> to vector<1x128xf32>
    %208 = vector.broadcast %207 : vector<1x128xf32> to vector<128x128xf32>
    %209 = arith.mulf %206, %208 : vector<128x128xf32>
    %c2_101 = arith.constant 2 : index
    %c0_102 = arith.constant 0 : index
    %210 = vector.load %arg20[%c2_101, %c0_102] : memref<132x128xf32, #tpu.memory_space<vmem>>, vector<128x128xf32>
    %211 = vector.extract_strided_slice %205 {offsets = [1, 0], sizes = [1, 128], strides = [1, 1]} : vector<3x128xf32> to vector<1x128xf32>
    %212 = vector.broadcast %211 : vector<1x128xf32> to vector<128x128xf32>
    %213 = arith.mulf %210, %212 : vector<128x128xf32>
    %214 = arith.addf %209, %213 : vector<128x128xf32>
    %c4 = arith.constant 4 : index
    %c0_103 = arith.constant 0 : index
    %215 = vector.load %arg20[%c4, %c0_103] : memref<132x128xf32, #tpu.memory_space<vmem>>, vector<128x128xf32>
    %216 = vector.extract_strided_slice %205 {offsets = [2, 0], sizes = [1, 128], strides = [1, 1]} : vector<3x128xf32> to vector<1x128xf32>
    %217 = vector.broadcast %216 : vector<1x128xf32> to vector<128x128xf32>
    %218 = arith.mulf %215, %217 : vector<128x128xf32>
    %219 = arith.addf %214, %218 : vector<128x128xf32>
    %c1_104 = arith.constant 1 : index
    %220 = memref.load %arg2[%c1_104] : memref<4xf32, #tpu.memory_space<smem>>
    %cst_105 = arith.constant 0.000000e+00 : f32
    %221 = vector.broadcast %cst_105 : f32 to vector<128x128xf32>
    %222 = arith.cmpf oge, %219, %221 : vector<128x128xf32>
    %223 = vector.broadcast %220 : f32 to vector<128x128xf32>
    %224 = arith.mulf %223, %219 : vector<128x128xf32>
    %225 = arith.select %222, %219, %224 : vector<128x128xi1>, vector<128x128xf32>
    %c1_106 = arith.constant 1 : index
    %c0_107 = arith.constant 0 : index
    %226 = vector.load %arg15[%c1_106, %c0_107] : memref<4x128xf32, #tpu.memory_space<vmem>>, vector<1x128xf32>
    %c1_108 = arith.constant 1 : index
    %c0_109 = arith.constant 0 : index
    %227 = vector.load %arg16[%c1_108, %c0_109] : memref<4x128xf32, #tpu.memory_space<vmem>>, vector<1x128xf32>
    %228 = vector.shape_cast %225 : vector<128x128xf32> to vector<1x128x128xf32>
    %cst_110 = arith.constant dense<0.000000e+00> : vector<1xf32>
    %229 = vector.multi_reduction <add>, %228, %cst_110 [1, 2] : vector<1x128x128xf32> to vector<1xf32>
    %230 = vector.shape_cast %229 : vector<1xf32> to vector<1x1x1xf32>
    %231 = vector.extract %230[0, 0, 0] : f32 from vector<1x1x1xf32>
    %232 = vector.broadcast %231 : f32 to vector<1x1xf32>
    %233 = arith.mulf %225, %225 : vector<128x128xf32>
    %234 = vector.shape_cast %233 : vector<128x128xf32> to vector<1x128x128xf32>
    %cst_111 = arith.constant dense<0.000000e+00> : vector<1xf32>
    %235 = vector.multi_reduction <add>, %234, %cst_111 [1, 2] : vector<1x128x128xf32> to vector<1xf32>
    %236 = vector.shape_cast %235 : vector<1xf32> to vector<1x1x1xf32>
    %237 = vector.extract %236[0, 0, 0] : f32 from vector<1x1x1xf32>
    %238 = vector.broadcast %237 : f32 to vector<1x1xf32>
    %cst_112 = arith.constant 1.638400e+04 : f32
    %239 = vector.broadcast %cst_112 : f32 to vector<1x1xf32>
    %240 = arith.divf %232, %239 : vector<1x1xf32>
    %cst_113 = arith.constant 1.638400e+04 : f32
    %241 = vector.broadcast %cst_113 : f32 to vector<1x1xf32>
    %242 = arith.divf %238, %241 : vector<1x1xf32>
    %243 = arith.mulf %240, %240 : vector<1x1xf32>
    %244 = arith.subf %242, %243 : vector<1x1xf32>
    %cst_114 = arith.constant 0.000000e+00 : f32
    %245 = vector.broadcast %cst_114 : f32 to vector<1x1xf32>
    %246 = arith.maximumf %244, %245 : vector<1x1xf32>
    %247 = vector.broadcast %240 : vector<1x1xf32> to vector<128x128xf32>
    %248 = arith.subf %225, %247 : vector<128x128xf32>
    %249 = vector.broadcast %226 : vector<1x128xf32> to vector<128x128xf32>
    %250 = arith.mulf %249, %248 : vector<128x128xf32>
    %cst_115 = arith.constant 9.99999993E-9 : f32
    %251 = vector.broadcast %cst_115 : f32 to vector<1x1xf32>
    %252 = arith.addf %246, %251 : vector<1x1xf32>
    %253 = math.rsqrt %252 : vector<1x1xf32>
    %254 = vector.broadcast %253 : vector<1x1xf32> to vector<128x128xf32>
    %255 = arith.mulf %250, %254 : vector<128x128xf32>
    %256 = vector.broadcast %227 : vector<1x128xf32> to vector<128x128xf32>
    %257 = arith.addf %255, %256 : vector<128x128xf32>
    %c1_116 = arith.constant 1 : index
    %c0_117 = arith.constant 0 : index
    %c0_118 = arith.constant 0 : index
    %258 = vector.load %arg17[%c1_116, %c0_117, %c0_118] : memref<4x128x128xbf16, #tpu.memory_space<vmem>>, vector<1x128x128xbf16>
    %259 = vector.shape_cast %258 : vector<1x128x128xbf16> to vector<128x128xbf16>
    %260 = arith.truncf %257 : vector<128x128xf32> to vector<128x128xbf16>
    %cst_119 = arith.constant dense<0.000000e+00> : vector<128x128xf32>
    %261 = tpu.matmul %260, %259, %cst_119 {dimension_numbers = #tpu.dot_dimension_numbers<[1], [0], [0], [1], [0, 0, 1, 1], [], []>} : vector<128x128xbf16>, vector<128x128xbf16>, vector<128x128xf32> -> vector<128x128xf32>
    %262 = arith.addf %261, %152 : vector<128x128xf32>
    %c1_120 = arith.constant 1 : index
    %c0_121 = arith.constant 0 : index
    %c0_122 = arith.constant 0 : index
    %263 = vector.load %arg8[%c1_120, %c0_121, %c0_122] : memref<2x128x128xbf16, #tpu.memory_space<vmem>>, vector<1x128x128xbf16>
    %264 = vector.shape_cast %263 : vector<1x128x128xbf16> to vector<128x128xbf16>
    %265 = arith.truncf %262 : vector<128x128xf32> to vector<128x128xbf16>
    %cst_123 = arith.constant dense<0.000000e+00> : vector<128x128xf32>
    %266 = tpu.matmul %265, %264, %cst_123 {dimension_numbers = #tpu.dot_dimension_numbers<[1], [0], [0], [1], [0, 0, 1, 1], [], []>} : vector<128x128xbf16>, vector<128x128xbf16>, vector<128x128xf32> -> vector<128x128xf32>
    %c1_124 = arith.constant 1 : index
    %c0_125 = arith.constant 0 : index
    %c0_126 = arith.constant 0 : index
    %267 = vector.load %arg9[%c1_124, %c0_125, %c0_126] : memref<2x64x128xbf16, #tpu.memory_space<vmem>>, vector<1x64x128xbf16>
    %268 = vector.shape_cast %267 : vector<1x64x128xbf16> to vector<64x128xbf16>
    %cst_127 = arith.constant dense<0.000000e+00> : vector<1x128xf32>
    %269 = tpu.matmul %33, %268, %cst_127 {dimension_numbers = #tpu.dot_dimension_numbers<[1], [0], [0], [1], [0, 0, 1, 1], [], []>} : vector<1x64xbf16>, vector<64x128xbf16>, vector<1x128xf32> -> vector<1x128xf32>
    %270 = vector.broadcast %269 : vector<1x128xf32> to vector<128x128xf32>
    %271 = arith.addf %266, %270 : vector<128x128xf32>
    %c1_128 = arith.constant 1 : index
    %c0_129 = arith.constant 0 : index
    %c0_130 = arith.constant 0 : index
    %272 = vector.load %arg10[%c1_128, %c0_129, %c0_130] : memref<2x1x128xf32, #tpu.memory_space<vmem>>, vector<1x1x128xf32>
    %273 = vector.shape_cast %272 : vector<1x1x128xf32> to vector<1x128xf32>
    %274 = vector.broadcast %273 : vector<1x128xf32> to vector<128x128xf32>
    %275 = arith.addf %271, %274 : vector<128x128xf32>
    %c2_131 = arith.constant 2 : index
    %c0_132 = arith.constant 0 : index
    %c0_133 = arith.constant 0 : index
    %276 = vector.load %arg11[%c2_131, %c0_132, %c0_133] : memref<4x128x128xbf16, #tpu.memory_space<vmem>>, vector<1x128x128xbf16>
    %277 = vector.shape_cast %276 : vector<1x128x128xbf16> to vector<128x128xbf16>
    %278 = arith.truncf %275 : vector<128x128xf32> to vector<128x128xbf16>
    %cst_134 = arith.constant dense<0.000000e+00> : vector<128x128xf32>
    %279 = tpu.matmul %278, %277, %cst_134 {dimension_numbers = #tpu.dot_dimension_numbers<[1], [0], [0], [1], [0, 0, 1, 1], [], []>} : vector<128x128xbf16>, vector<128x128xbf16>, vector<128x128xf32> -> vector<128x128xf32>
    %c2_135 = arith.constant 2 : index
    %280 = memref.load %arg1[%c2_135] : memref<4xf32, #tpu.memory_space<smem>>
    %cst_136 = arith.constant 0.000000e+00 : f32
    %281 = vector.broadcast %cst_136 : f32 to vector<128x128xf32>
    %282 = arith.cmpf oge, %279, %281 : vector<128x128xf32>
    %283 = vector.broadcast %280 : f32 to vector<128x128xf32>
    %284 = arith.mulf %283, %279 : vector<128x128xf32>
    %285 = arith.select %282, %279, %284 : vector<128x128xi1>, vector<128x128xf32>
    %c2_137 = arith.constant 2 : index
    %c0_138 = arith.constant 0 : index
    %286 = vector.load %arg12[%c2_137, %c0_138] : memref<4x128xf32, #tpu.memory_space<vmem>>, vector<1x128xf32>
    %c2_139 = arith.constant 2 : index
    %c0_140 = arith.constant 0 : index
    %287 = vector.load %arg13[%c2_139, %c0_140] : memref<4x128xf32, #tpu.memory_space<vmem>>, vector<1x128xf32>
    %288 = vector.shape_cast %285 : vector<128x128xf32> to vector<1x128x128xf32>
    %cst_141 = arith.constant dense<0.000000e+00> : vector<1xf32>
    %289 = vector.multi_reduction <add>, %288, %cst_141 [1, 2] : vector<1x128x128xf32> to vector<1xf32>
    %290 = vector.shape_cast %289 : vector<1xf32> to vector<1x1x1xf32>
    %291 = vector.extract %290[0, 0, 0] : f32 from vector<1x1x1xf32>
    %292 = vector.broadcast %291 : f32 to vector<1x1xf32>
    %293 = arith.mulf %285, %285 : vector<128x128xf32>
    %294 = vector.shape_cast %293 : vector<128x128xf32> to vector<1x128x128xf32>
    %cst_142 = arith.constant dense<0.000000e+00> : vector<1xf32>
    %295 = vector.multi_reduction <add>, %294, %cst_142 [1, 2] : vector<1x128x128xf32> to vector<1xf32>
    %296 = vector.shape_cast %295 : vector<1xf32> to vector<1x1x1xf32>
    %297 = vector.extract %296[0, 0, 0] : f32 from vector<1x1x1xf32>
    %298 = vector.broadcast %297 : f32 to vector<1x1xf32>
    %cst_143 = arith.constant 1.638400e+04 : f32
    %299 = vector.broadcast %cst_143 : f32 to vector<1x1xf32>
    %300 = arith.divf %292, %299 : vector<1x1xf32>
    %cst_144 = arith.constant 1.638400e+04 : f32
    %301 = vector.broadcast %cst_144 : f32 to vector<1x1xf32>
    %302 = arith.divf %298, %301 : vector<1x1xf32>
    %303 = arith.mulf %300, %300 : vector<1x1xf32>
    %304 = arith.subf %302, %303 : vector<1x1xf32>
    %cst_145 = arith.constant 0.000000e+00 : f32
    %305 = vector.broadcast %cst_145 : f32 to vector<1x1xf32>
    %306 = arith.maximumf %304, %305 : vector<1x1xf32>
    %307 = vector.broadcast %300 : vector<1x1xf32> to vector<128x128xf32>
    %308 = arith.subf %285, %307 : vector<128x128xf32>
    %309 = vector.broadcast %286 : vector<1x128xf32> to vector<128x128xf32>
    %310 = arith.mulf %309, %308 : vector<128x128xf32>
    %cst_146 = arith.constant 9.99999993E-9 : f32
    %311 = vector.broadcast %cst_146 : f32 to vector<1x1xf32>
    %312 = arith.addf %306, %311 : vector<1x1xf32>
    %313 = math.rsqrt %312 : vector<1x1xf32>
    %314 = vector.broadcast %313 : vector<1x1xf32> to vector<128x128xf32>
    %315 = arith.mulf %310, %314 : vector<128x128xf32>
    %316 = vector.broadcast %287 : vector<1x128xf32> to vector<128x128xf32>
    %317 = arith.addf %315, %316 : vector<128x128xf32>
    %c1_147 = arith.constant 1 : index
    %c0_148 = arith.constant 0 : index
    %318 = vector.load %arg20[%c1_147, %c0_148] : memref<132x128xf32, #tpu.memory_space<vmem>>, vector<128x128xf32>
    tpu.vector_store %arg20[%c1_147, %c0_148], %317 {strides = array<i32>} : memref<132x128xf32, #tpu.memory_space<vmem>>, vector<128x128xf32>,
    %319 = vector.extract_strided_slice %317 {offsets = [1, 0], sizes = [1, 128], strides = [1, 1]} : vector<128x128xf32> to vector<1x128xf32>
    %c0_149 = arith.constant 0 : index
    %c0_150 = arith.constant 0 : index
    %320 = vector.load %arg20[%c0_149, %c0_150] : memref<132x128xf32, #tpu.memory_space<vmem>>, vector<1x128xf32>
    tpu.vector_store %arg20[%c0_149, %c0_150], %319 {strides = array<i32>} : memref<132x128xf32, #tpu.memory_space<vmem>>, vector<1x128xf32>,
    %321 = vector.extract_strided_slice %317 {offsets = [126, 0], sizes = [1, 128], strides = [1, 1]} : vector<128x128xf32> to vector<1x128xf32>
    %c129_151 = arith.constant 129 : index
    %c0_152 = arith.constant 0 : index
    %322 = vector.load %arg20[%c129_151, %c0_152] : memref<132x128xf32, #tpu.memory_space<vmem>>, vector<1x128xf32>
    tpu.vector_store %arg20[%c129_151, %c0_152], %321 {strides = array<i32>} : memref<132x128xf32, #tpu.memory_space<vmem>>, vector<1x128xf32>,
    %c2_153 = arith.constant 2 : index
    %c0_154 = arith.constant 0 : index
    %c0_155 = arith.constant 0 : index
    %323 = vector.load %arg14[%c2_153, %c0_154, %c0_155] : memref<4x3x128xf32, #tpu.memory_space<vmem>>, vector<1x3x128xf32>
    %324 = vector.shape_cast %323 : vector<1x3x128xf32> to vector<3x128xf32>
    %c0_156 = arith.constant 0 : index
    %c0_157 = arith.constant 0 : index
    %325 = vector.load %arg20[%c0_156, %c0_157] : memref<132x128xf32, #tpu.memory_space<vmem>>, vector<128x128xf32>
    %326 = vector.extract_strided_slice %324 {offsets = [0, 0], sizes = [1, 128], strides = [1, 1]} : vector<3x128xf32> to vector<1x128xf32>
    %327 = vector.broadcast %326 : vector<1x128xf32> to vector<128x128xf32>
    %328 = arith.mulf %325, %327 : vector<128x128xf32>
    %c1_158 = arith.constant 1 : index
    %c0_159 = arith.constant 0 : index
    %329 = vector.load %arg20[%c1_158, %c0_159] : memref<132x128xf32, #tpu.memory_space<vmem>>, vector<128x128xf32>
    %330 = vector.extract_strided_slice %324 {offsets = [1, 0], sizes = [1, 128], strides = [1, 1]} : vector<3x128xf32> to vector<1x128xf32>
    %331 = vector.broadcast %330 : vector<1x128xf32> to vector<128x128xf32>
    %332 = arith.mulf %329, %331 : vector<128x128xf32>
    %333 = arith.addf %328, %332 : vector<128x128xf32>
    %c2_160 = arith.constant 2 : index
    %c0_161 = arith.constant 0 : index
    %334 = vector.load %arg20[%c2_160, %c0_161] : memref<132x128xf32, #tpu.memory_space<vmem>>, vector<128x128xf32>
    %335 = vector.extract_strided_slice %324 {offsets = [2, 0], sizes = [1, 128], strides = [1, 1]} : vector<3x128xf32> to vector<1x128xf32>
    %336 = vector.broadcast %335 : vector<1x128xf32> to vector<128x128xf32>
    %337 = arith.mulf %334, %336 : vector<128x128xf32>
    %338 = arith.addf %333, %337 : vector<128x128xf32>
    %c2_162 = arith.constant 2 : index
    %339 = memref.load %arg2[%c2_162] : memref<4xf32, #tpu.memory_space<smem>>
    %cst_163 = arith.constant 0.000000e+00 : f32
    %340 = vector.broadcast %cst_163 : f32 to vector<128x128xf32>
    %341 = arith.cmpf oge, %338, %340 : vector<128x128xf32>
    %342 = vector.broadcast %339 : f32 to vector<128x128xf32>
    %343 = arith.mulf %342, %338 : vector<128x128xf32>
    %344 = arith.select %341, %338, %343 : vector<128x128xi1>, vector<128x128xf32>
    %c2_164 = arith.constant 2 : index
    %c0_165 = arith.constant 0 : index
    %345 = vector.load %arg15[%c2_164, %c0_165] : memref<4x128xf32, #tpu.memory_space<vmem>>, vector<1x128xf32>
    %c2_166 = arith.constant 2 : index
    %c0_167 = arith.constant 0 : index
    %346 = vector.load %arg16[%c2_166, %c0_167] : memref<4x128xf32, #tpu.memory_space<vmem>>, vector<1x128xf32>
    %347 = vector.shape_cast %344 : vector<128x128xf32> to vector<1x128x128xf32>
    %cst_168 = arith.constant dense<0.000000e+00> : vector<1xf32>
    %348 = vector.multi_reduction <add>, %347, %cst_168 [1, 2] : vector<1x128x128xf32> to vector<1xf32>
    %349 = vector.shape_cast %348 : vector<1xf32> to vector<1x1x1xf32>
    %350 = vector.extract %349[0, 0, 0] : f32 from vector<1x1x1xf32>
    %351 = vector.broadcast %350 : f32 to vector<1x1xf32>
    %352 = arith.mulf %344, %344 : vector<128x128xf32>
    %353 = vector.shape_cast %352 : vector<128x128xf32> to vector<1x128x128xf32>
    %cst_169 = arith.constant dense<0.000000e+00> : vector<1xf32>
    %354 = vector.multi_reduction <add>, %353, %cst_169 [1, 2] : vector<1x128x128xf32> to vector<1xf32>
    %355 = vector.shape_cast %354 : vector<1xf32> to vector<1x1x1xf32>
    %356 = vector.extract %355[0, 0, 0] : f32 from vector<1x1x1xf32>
    %357 = vector.broadcast %356 : f32 to vector<1x1xf32>
    %cst_170 = arith.constant 1.638400e+04 : f32
    %358 = vector.broadcast %cst_170 : f32 to vector<1x1xf32>
    %359 = arith.divf %351, %358 : vector<1x1xf32>
    %cst_171 = arith.constant 1.638400e+04 : f32
    %360 = vector.broadcast %cst_171 : f32 to vector<1x1xf32>
    %361 = arith.divf %357, %360 : vector<1x1xf32>
    %362 = arith.mulf %359, %359 : vector<1x1xf32>
    %363 = arith.subf %361, %362 : vector<1x1xf32>
    %cst_172 = arith.constant 0.000000e+00 : f32
    %364 = vector.broadcast %cst_172 : f32 to vector<1x1xf32>
    %365 = arith.maximumf %363, %364 : vector<1x1xf32>
    %366 = vector.broadcast %359 : vector<1x1xf32> to vector<128x128xf32>
    %367 = arith.subf %344, %366 : vector<128x128xf32>
    %368 = vector.broadcast %345 : vector<1x128xf32> to vector<128x128xf32>
    %369 = arith.mulf %368, %367 : vector<128x128xf32>
    %cst_173 = arith.constant 9.99999993E-9 : f32
    %370 = vector.broadcast %cst_173 : f32 to vector<1x1xf32>
    %371 = arith.addf %365, %370 : vector<1x1xf32>
    %372 = math.rsqrt %371 : vector<1x1xf32>
    %373 = vector.broadcast %372 : vector<1x1xf32> to vector<128x128xf32>
    %374 = arith.mulf %369, %373 : vector<128x128xf32>
    %375 = vector.broadcast %346 : vector<1x128xf32> to vector<128x128xf32>
    %376 = arith.addf %374, %375 : vector<128x128xf32>
    %c2_174 = arith.constant 2 : index
    %c0_175 = arith.constant 0 : index
    %c0_176 = arith.constant 0 : index
    %377 = vector.load %arg17[%c2_174, %c0_175, %c0_176] : memref<4x128x128xbf16, #tpu.memory_space<vmem>>, vector<1x128x128xbf16>
    %378 = vector.shape_cast %377 : vector<1x128x128xbf16> to vector<128x128xbf16>
    %379 = arith.truncf %376 : vector<128x128xf32> to vector<128x128xbf16>
    %cst_177 = arith.constant dense<0.000000e+00> : vector<128x128xf32>
    %380 = tpu.matmul %379, %378, %cst_177 {dimension_numbers = #tpu.dot_dimension_numbers<[1], [0], [0], [1], [0, 0, 1, 1], [], []>} : vector<128x128xbf16>, vector<128x128xbf16>, vector<128x128xf32> -> vector<128x128xf32>
    %381 = arith.addf %380, %275 : vector<128x128xf32>
    %c3 = arith.constant 3 : index
    %c0_178 = arith.constant 0 : index
    %c0_179 = arith.constant 0 : index
    %382 = vector.load %arg11[%c3, %c0_178, %c0_179] : memref<4x128x128xbf16, #tpu.memory_space<vmem>>, vector<1x128x128xbf16>
    %383 = vector.shape_cast %382 : vector<1x128x128xbf16> to vector<128x128xbf16>
    %384 = arith.truncf %381 : vector<128x128xf32> to vector<128x128xbf16>
    %cst_180 = arith.constant dense<0.000000e+00> : vector<128x128xf32>
    %385 = tpu.matmul %384, %383, %cst_180 {dimension_numbers = #tpu.dot_dimension_numbers<[1], [0], [0], [1], [0, 0, 1, 1], [], []>} : vector<128x128xbf16>, vector<128x128xbf16>, vector<128x128xf32> -> vector<128x128xf32>
    %c3_181 = arith.constant 3 : index
    %386 = memref.load %arg1[%c3_181] : memref<4xf32, #tpu.memory_space<smem>>
    %cst_182 = arith.constant 0.000000e+00 : f32
    %387 = vector.broadcast %cst_182 : f32 to vector<128x128xf32>
    %388 = arith.cmpf oge, %385, %387 : vector<128x128xf32>
    %389 = vector.broadcast %386 : f32 to vector<128x128xf32>
    %390 = arith.mulf %389, %385 : vector<128x128xf32>
    %391 = arith.select %388, %385, %390 : vector<128x128xi1>, vector<128x128xf32>
    %c3_183 = arith.constant 3 : index
    %c0_184 = arith.constant 0 : index
    %392 = vector.load %arg12[%c3_183, %c0_184] : memref<4x128xf32, #tpu.memory_space<vmem>>, vector<1x128xf32>
    %c3_185 = arith.constant 3 : index
    %c0_186 = arith.constant 0 : index
    %393 = vector.load %arg13[%c3_185, %c0_186] : memref<4x128xf32, #tpu.memory_space<vmem>>, vector<1x128xf32>
    %394 = vector.shape_cast %391 : vector<128x128xf32> to vector<1x128x128xf32>
    %cst_187 = arith.constant dense<0.000000e+00> : vector<1xf32>
    %395 = vector.multi_reduction <add>, %394, %cst_187 [1, 2] : vector<1x128x128xf32> to vector<1xf32>
    %396 = vector.shape_cast %395 : vector<1xf32> to vector<1x1x1xf32>
    %397 = vector.extract %396[0, 0, 0] : f32 from vector<1x1x1xf32>
    %398 = vector.broadcast %397 : f32 to vector<1x1xf32>
    %399 = arith.mulf %391, %391 : vector<128x128xf32>
    %400 = vector.shape_cast %399 : vector<128x128xf32> to vector<1x128x128xf32>
    %cst_188 = arith.constant dense<0.000000e+00> : vector<1xf32>
    %401 = vector.multi_reduction <add>, %400, %cst_188 [1, 2] : vector<1x128x128xf32> to vector<1xf32>
    %402 = vector.shape_cast %401 : vector<1xf32> to vector<1x1x1xf32>
    %403 = vector.extract %402[0, 0, 0] : f32 from vector<1x1x1xf32>
    %404 = vector.broadcast %403 : f32 to vector<1x1xf32>
    %cst_189 = arith.constant 1.638400e+04 : f32
    %405 = vector.broadcast %cst_189 : f32 to vector<1x1xf32>
    %406 = arith.divf %398, %405 : vector<1x1xf32>
    %cst_190 = arith.constant 1.638400e+04 : f32
    %407 = vector.broadcast %cst_190 : f32 to vector<1x1xf32>
    %408 = arith.divf %404, %407 : vector<1x1xf32>
    %409 = arith.mulf %406, %406 : vector<1x1xf32>
    %410 = arith.subf %408, %409 : vector<1x1xf32>
    %cst_191 = arith.constant 0.000000e+00 : f32
    %411 = vector.broadcast %cst_191 : f32 to vector<1x1xf32>
    %412 = arith.maximumf %410, %411 : vector<1x1xf32>
    %413 = vector.broadcast %406 : vector<1x1xf32> to vector<128x128xf32>
    %414 = arith.subf %391, %413 : vector<128x128xf32>
    %415 = vector.broadcast %392 : vector<1x128xf32> to vector<128x128xf32>
    %416 = arith.mulf %415, %414 : vector<128x128xf32>
    %cst_192 = arith.constant 9.99999993E-9 : f32
    %417 = vector.broadcast %cst_192 : f32 to vector<1x1xf32>
    %418 = arith.addf %412, %417 : vector<1x1xf32>
    %419 = math.rsqrt %418 : vector<1x1xf32>
    %420 = vector.broadcast %419 : vector<1x1xf32> to vector<128x128xf32>
    %421 = arith.mulf %416, %420 : vector<128x128xf32>
    %422 = vector.broadcast %393 : vector<1x128xf32> to vector<128x128xf32>
    %423 = arith.addf %421, %422 : vector<128x128xf32>
    %c2_193 = arith.constant 2 : index
    %c0_194 = arith.constant 0 : index
    %424 = vector.load %arg20[%c2_193, %c0_194] : memref<132x128xf32, #tpu.memory_space<vmem>>, vector<128x128xf32>
    tpu.vector_store %arg20[%c2_193, %c0_194], %423 {strides = array<i32>} : memref<132x128xf32, #tpu.memory_space<vmem>>, vector<128x128xf32>,
    %425 = vector.extract_strided_slice %423 {offsets = [1, 0], sizes = [1, 128], strides = [1, 1]} : vector<128x128xf32> to vector<1x128xf32>
    %c1_195 = arith.constant 1 : index
    %c0_196 = arith.constant 0 : index
    %426 = vector.load %arg20[%c1_195, %c0_196] : memref<132x128xf32, #tpu.memory_space<vmem>>, vector<1x128xf32>
    tpu.vector_store %arg20[%c1_195, %c0_196], %425 {strides = array<i32>} : memref<132x128xf32, #tpu.memory_space<vmem>>, vector<1x128xf32>,
    %427 = vector.extract_strided_slice %423 {offsets = [126, 0], sizes = [1, 128], strides = [1, 1]} : vector<128x128xf32> to vector<1x128xf32>
    %c130_197 = arith.constant 130 : index
    %c0_198 = arith.constant 0 : index
    %428 = vector.load %arg20[%c130_197, %c0_198] : memref<132x128xf32, #tpu.memory_space<vmem>>, vector<1x128xf32>
    tpu.vector_store %arg20[%c130_197, %c0_198], %427 {strides = array<i32>} : memref<132x128xf32, #tpu.memory_space<vmem>>, vector<1x128xf32>,
    %429 = vector.extract_strided_slice %423 {offsets = [2, 0], sizes = [1, 128], strides = [1, 1]} : vector<128x128xf32> to vector<1x128xf32>
    %c0_199 = arith.constant 0 : index
    %c0_200 = arith.constant 0 : index
    %430 = vector.load %arg20[%c0_199, %c0_200] : memref<132x128xf32, #tpu.memory_space<vmem>>, vector<1x128xf32>
    tpu.vector_store %arg20[%c0_199, %c0_200], %429 {strides = array<i32>} : memref<132x128xf32, #tpu.memory_space<vmem>>, vector<1x128xf32>,
    %431 = vector.extract_strided_slice %423 {offsets = [125, 0], sizes = [1, 128], strides = [1, 1]} : vector<128x128xf32> to vector<1x128xf32>
    %c131_201 = arith.constant 131 : index
    %c0_202 = arith.constant 0 : index
    %432 = vector.load %arg20[%c131_201, %c0_202] : memref<132x128xf32, #tpu.memory_space<vmem>>, vector<1x128xf32>
    tpu.vector_store %arg20[%c131_201, %c0_202], %431 {strides = array<i32>} : memref<132x128xf32, #tpu.memory_space<vmem>>, vector<1x128xf32>,
    %c3_203 = arith.constant 3 : index
    %c0_204 = arith.constant 0 : index
    %c0_205 = arith.constant 0 : index
    %433 = vector.load %arg14[%c3_203, %c0_204, %c0_205] : memref<4x3x128xf32, #tpu.memory_space<vmem>>, vector<1x3x128xf32>
    %434 = vector.shape_cast %433 : vector<1x3x128xf32> to vector<3x128xf32>
    %c0_206 = arith.constant 0 : index
    %c0_207 = arith.constant 0 : index
    %435 = vector.load %arg20[%c0_206, %c0_207] : memref<132x128xf32, #tpu.memory_space<vmem>>, vector<128x128xf32>
    %436 = vector.extract_strided_slice %434 {offsets = [0, 0], sizes = [1, 128], strides = [1, 1]} : vector<3x128xf32> to vector<1x128xf32>
    %437 = vector.broadcast %436 : vector<1x128xf32> to vector<128x128xf32>
    %438 = arith.mulf %435, %437 : vector<128x128xf32>
    %c2_208 = arith.constant 2 : index
    %c0_209 = arith.constant 0 : index
    %439 = vector.load %arg20[%c2_208, %c0_209] : memref<132x128xf32, #tpu.memory_space<vmem>>, vector<128x128xf32>
    %440 = vector.extract_strided_slice %434 {offsets = [1, 0], sizes = [1, 128], strides = [1, 1]} : vector<3x128xf32> to vector<1x128xf32>
    %441 = vector.broadcast %440 : vector<1x128xf32> to vector<128x128xf32>
    %442 = arith.mulf %439, %441 : vector<128x128xf32>
    %443 = arith.addf %438, %442 : vector<128x128xf32>
    %c4_210 = arith.constant 4 : index
    %c0_211 = arith.constant 0 : index
    %444 = vector.load %arg20[%c4_210, %c0_211] : memref<132x128xf32, #tpu.memory_space<vmem>>, vector<128x128xf32>
    %445 = vector.extract_strided_slice %434 {offsets = [2, 0], sizes = [1, 128], strides = [1, 1]} : vector<3x128xf32> to vector<1x128xf32>
    %446 = vector.broadcast %445 : vector<1x128xf32> to vector<128x128xf32>
    %447 = arith.mulf %444, %446 : vector<128x128xf32>
    %448 = arith.addf %443, %447 : vector<128x128xf32>
    %c3_212 = arith.constant 3 : index
    %449 = memref.load %arg2[%c3_212] : memref<4xf32, #tpu.memory_space<smem>>
    %cst_213 = arith.constant 0.000000e+00 : f32
    %450 = vector.broadcast %cst_213 : f32 to vector<128x128xf32>
    %451 = arith.cmpf oge, %448, %450 : vector<128x128xf32>
    %452 = vector.broadcast %449 : f32 to vector<128x128xf32>
    %453 = arith.mulf %452, %448 : vector<128x128xf32>
    %454 = arith.select %451, %448, %453 : vector<128x128xi1>, vector<128x128xf32>
    %c3_214 = arith.constant 3 : index
    %c0_215 = arith.constant 0 : index
    %455 = vector.load %arg15[%c3_214, %c0_215] : memref<4x128xf32, #tpu.memory_space<vmem>>, vector<1x128xf32>
    %c3_216 = arith.constant 3 : index
    %c0_217 = arith.constant 0 : index
    %456 = vector.load %arg16[%c3_216, %c0_217] : memref<4x128xf32, #tpu.memory_space<vmem>>, vector<1x128xf32>
    %457 = vector.shape_cast %454 : vector<128x128xf32> to vector<1x128x128xf32>
    %cst_218 = arith.constant dense<0.000000e+00> : vector<1xf32>
    %458 = vector.multi_reduction <add>, %457, %cst_218 [1, 2] : vector<1x128x128xf32> to vector<1xf32>
    %459 = vector.shape_cast %458 : vector<1xf32> to vector<1x1x1xf32>
    %460 = vector.extract %459[0, 0, 0] : f32 from vector<1x1x1xf32>
    %461 = vector.broadcast %460 : f32 to vector<1x1xf32>
    %462 = arith.mulf %454, %454 : vector<128x128xf32>
    %463 = vector.shape_cast %462 : vector<128x128xf32> to vector<1x128x128xf32>
    %cst_219 = arith.constant dense<0.000000e+00> : vector<1xf32>
    %464 = vector.multi_reduction <add>, %463, %cst_219 [1, 2] : vector<1x128x128xf32> to vector<1xf32>
    %465 = vector.shape_cast %464 : vector<1xf32> to vector<1x1x1xf32>
    %466 = vector.extract %465[0, 0, 0] : f32 from vector<1x1x1xf32>
    %467 = vector.broadcast %466 : f32 to vector<1x1xf32>
    %cst_220 = arith.constant 1.638400e+04 : f32
    %468 = vector.broadcast %cst_220 : f32 to vector<1x1xf32>
    %469 = arith.divf %461, %468 : vector<1x1xf32>
    %cst_221 = arith.constant 1.638400e+04 : f32
    %470 = vector.broadcast %cst_221 : f32 to vector<1x1xf32>
    %471 = arith.divf %467, %470 : vector<1x1xf32>
    %472 = arith.mulf %469, %469 : vector<1x1xf32>
    %473 = arith.subf %471, %472 : vector<1x1xf32>
    %cst_222 = arith.constant 0.000000e+00 : f32
    %474 = vector.broadcast %cst_222 : f32 to vector<1x1xf32>
    %475 = arith.maximumf %473, %474 : vector<1x1xf32>
    %476 = vector.broadcast %469 : vector<1x1xf32> to vector<128x128xf32>
    %477 = arith.subf %454, %476 : vector<128x128xf32>
    %478 = vector.broadcast %455 : vector<1x128xf32> to vector<128x128xf32>
    %479 = arith.mulf %478, %477 : vector<128x128xf32>
    %cst_223 = arith.constant 9.99999993E-9 : f32
    %480 = vector.broadcast %cst_223 : f32 to vector<1x1xf32>
    %481 = arith.addf %475, %480 : vector<1x1xf32>
    %482 = math.rsqrt %481 : vector<1x1xf32>
    %483 = vector.broadcast %482 : vector<1x1xf32> to vector<128x128xf32>
    %484 = arith.mulf %479, %483 : vector<128x128xf32>
    %485 = vector.broadcast %456 : vector<1x128xf32> to vector<128x128xf32>
    %486 = arith.addf %484, %485 : vector<128x128xf32>
    %c3_224 = arith.constant 3 : index
    %c0_225 = arith.constant 0 : index
    %c0_226 = arith.constant 0 : index
    %487 = vector.load %arg17[%c3_224, %c0_225, %c0_226] : memref<4x128x128xbf16, #tpu.memory_space<vmem>>, vector<1x128x128xbf16>
    %488 = vector.shape_cast %487 : vector<1x128x128xbf16> to vector<128x128xbf16>
    %489 = arith.truncf %486 : vector<128x128xf32> to vector<128x128xbf16>
    %cst_227 = arith.constant dense<0.000000e+00> : vector<128x128xf32>
    %490 = tpu.matmul %489, %488, %cst_227 {dimension_numbers = #tpu.dot_dimension_numbers<[1], [0], [0], [1], [0, 0, 1, 1], [], []>} : vector<128x128xbf16>, vector<128x128xbf16>, vector<128x128xf32> -> vector<128x128xf32>
    %491 = arith.addf %490, %381 : vector<128x128xf32>
    %c0_228 = arith.constant 0 : index
    %c0_229 = arith.constant 0 : index
    %492 = vector.load %arg18[%c0_228, %c0_229] : memref<128x128xbf16, #tpu.memory_space<vmem>>, vector<128x128xbf16>
    %493 = arith.truncf %491 : vector<128x128xf32> to vector<128x128xbf16>
    %cst_230 = arith.constant dense<0.000000e+00> : vector<128x128xf32>
    %494 = tpu.matmul %493, %492, %cst_230 {dimension_numbers = #tpu.dot_dimension_numbers<[1], [0], [0], [1], [0, 0, 1, 1], [], []>} : vector<128x128xbf16>, vector<128x128xbf16>, vector<128x128xf32> -> vector<128x128xf32>
    %cst_231 = arith.constant 0.000000e+00 : f32
    %495 = vector.broadcast %cst_231 : f32 to vector<128x128xf32>
    %496 = arith.maximumf %494, %495 : vector<128x128xf32>
    %c0_232 = arith.constant 0 : index
    %c0_233 = arith.constant 0 : index
    %c0_234 = arith.constant 0 : index
    %497 = vector.load %arg19[%c0_232, %c0_233, %c0_234] : memref<1x128x128xf32, #tpu.memory_space<vmem>>, vector<1x128x128xf32>
    %498 = vector.shape_cast %497 : vector<1x128x128xf32> to vector<128x128xf32>
    %499 = vector.shape_cast %496 : vector<128x128xf32> to vector<1x128x128xf32>
    tpu.vector_store %arg19[%c0_232, %c0_233, %c0_234], %499 {strides = array<i32>} : memref<1x128x128xf32, #tpu.memory_space<vmem>>, vector<1x128x128xf32>,
    return
  }
  func.func @transform_0(%arg0: i32) -> i32 {
    %c0_i32 = arith.constant 0 : i32
    %c0_i32_0 = arith.constant 0 : i32
    return %c0_i32 : i32
  }
  func.func @transform_1(%arg0: i32) -> i32 {
    %c0_i32 = arith.constant 0 : i32
    %c0_i32_0 = arith.constant 0 : i32
    return %c0_i32 : i32
  }
  func.func @transform_2(%arg0: i32) -> (i32, i32, i32) {
    %c0_i32 = arith.constant 0 : i32
    %c0_i32_0 = arith.constant 0 : i32
    %c0_i32_1 = arith.constant 0 : i32
    return %arg0, %c0_i32, %c0_i32_0 : i32, i32, i32
  }
  func.func @transform_3(%arg0: i32) -> (i32, i32, i32) {
    %c0_i32 = arith.constant 0 : i32
    %c0_i32_0 = arith.constant 0 : i32
    %c0_i32_1 = arith.constant 0 : i32
    return %arg0, %c0_i32, %c0_i32_0 : i32, i32, i32
  }
  func.func @transform_4(%arg0: i32) -> (i32, i32) {
    %c0_i32 = arith.constant 0 : i32
    %c0_i32_0 = arith.constant 0 : i32
    %c0_i32_1 = arith.constant 0 : i32
    return %c0_i32, %c0_i32_0 : i32, i32
  }
  func.func @transform_5(%arg0: i32) -> (i32, i32) {
    %c0_i32 = arith.constant 0 : i32
    %c0_i32_0 = arith.constant 0 : i32
    %c0_i32_1 = arith.constant 0 : i32
    return %c0_i32, %c0_i32_0 : i32, i32
  }
  func.func @transform_6(%arg0: i32) -> (i32, i32) {
    %c0_i32 = arith.constant 0 : i32
    %c0_i32_0 = arith.constant 0 : i32
    %c0_i32_1 = arith.constant 0 : i32
    return %c0_i32, %c0_i32_0 : i32, i32
  }
  func.func @transform_7(%arg0: i32) -> (i32, i32, i32) {
    %c0_i32 = arith.constant 0 : i32
    %c0_i32_0 = arith.constant 0 : i32
    %c0_i32_1 = arith.constant 0 : i32
    %c0_i32_2 = arith.constant 0 : i32
    return %c0_i32, %c0_i32_0, %c0_i32_1 : i32, i32, i32
  }
  func.func @transform_8(%arg0: i32) -> (i32, i32, i32) {
    %c0_i32 = arith.constant 0 : i32
    %c0_i32_0 = arith.constant 0 : i32
    %c0_i32_1 = arith.constant 0 : i32
    %c0_i32_2 = arith.constant 0 : i32
    return %c0_i32, %c0_i32_0, %c0_i32_1 : i32, i32, i32
  }
  func.func @transform_9(%arg0: i32) -> (i32, i32, i32) {
    %c0_i32 = arith.constant 0 : i32
    %c0_i32_0 = arith.constant 0 : i32
    %c0_i32_1 = arith.constant 0 : i32
    %c0_i32_2 = arith.constant 0 : i32
    return %c0_i32, %c0_i32_0, %c0_i32_1 : i32, i32, i32
  }
  func.func @transform_10(%arg0: i32) -> (i32, i32, i32) {
    %c0_i32 = arith.constant 0 : i32
    %c0_i32_0 = arith.constant 0 : i32
    %c0_i32_1 = arith.constant 0 : i32
    %c0_i32_2 = arith.constant 0 : i32
    return %c0_i32, %c0_i32_0, %c0_i32_1 : i32, i32, i32
  }
  func.func @transform_11(%arg0: i32) -> (i32, i32) {
    %c0_i32 = arith.constant 0 : i32
    %c0_i32_0 = arith.constant 0 : i32
    %c0_i32_1 = arith.constant 0 : i32
    return %c0_i32, %c0_i32_0 : i32, i32
  }
  func.func @transform_12(%arg0: i32) -> (i32, i32) {
    %c0_i32 = arith.constant 0 : i32
    %c0_i32_0 = arith.constant 0 : i32
    %c0_i32_1 = arith.constant 0 : i32
    return %c0_i32, %c0_i32_0 : i32, i32
  }
  func.func @transform_13(%arg0: i32) -> (i32, i32, i32) {
    %c0_i32 = arith.constant 0 : i32
    %c0_i32_0 = arith.constant 0 : i32
    %c0_i32_1 = arith.constant 0 : i32
    %c0_i32_2 = arith.constant 0 : i32
    return %c0_i32, %c0_i32_0, %c0_i32_1 : i32, i32, i32
  }
  func.func @transform_14(%arg0: i32) -> (i32, i32) {
    %c0_i32 = arith.constant 0 : i32
    %c0_i32_0 = arith.constant 0 : i32
    %c0_i32_1 = arith.constant 0 : i32
    return %c0_i32, %c0_i32_0 : i32, i32
  }
  func.func @transform_15(%arg0: i32) -> (i32, i32) {
    %c0_i32 = arith.constant 0 : i32
    %c0_i32_0 = arith.constant 0 : i32
    %c0_i32_1 = arith.constant 0 : i32
    return %c0_i32, %c0_i32_0 : i32, i32
  }
  func.func @transform_16(%arg0: i32) -> (i32, i32, i32) {
    %c0_i32 = arith.constant 0 : i32
    %c0_i32_0 = arith.constant 0 : i32
    %c0_i32_1 = arith.constant 0 : i32
    %c0_i32_2 = arith.constant 0 : i32
    return %c0_i32, %c0_i32_0, %c0_i32_1 : i32, i32, i32
  }
  func.func @transform_17(%arg0: i32) -> (i32, i32) {
    %c0_i32 = arith.constant 0 : i32
    %c0_i32_0 = arith.constant 0 : i32
    %c0_i32_1 = arith.constant 0 : i32
    return %c0_i32, %c0_i32_0 : i32, i32
  }
  func.func @transform_18(%arg0: i32) -> (i32, i32, i32) {
    %c0_i32 = arith.constant 0 : i32
    %c0_i32_0 = arith.constant 0 : i32
    %c0_i32_1 = arith.constant 0 : i32
    return %arg0, %c0_i32, %c0_i32_0 : i32, i32, i32
  }
}

</mosaic_0001>

<llo_original>
// kernel: masknet_forward.1
$region0: #{masknet_forward.1}
  #allocation0 [shape = 'u32[]', space=smem, size = 0x4, offset = 0x4, fixed_abs, tag = 'smem constant byte address 0x4 - core index']
  #allocation1 [shape = 'u32[144,128]{1,0:T(1,128)}', space=vmem, size = 0x12000, scoped, tag = 'internal scratch']
  #allocation2 [shape = 'f32[132,128]{1,0:T(8,128)}', space=vmem, size = 0x11000, scoped, tag = 'scratch operand']
  %s0 = inlined_call_operand.vmem [shape: f32[4], index: 0, kind: input, shape index: {}]
  %s1 = inlined_call_operand.hbm [shape: f32[4], index: 1, kind: input, shape index: {}]
  %s2 = inlined_call_operand.vmem [shape: f32[2,128,64], index: 2, kind: input, shape index: {}]
  %s3 = inlined_call_operand.vmem [shape: f32[2,1,64], index: 3, kind: input, shape index: {}]
  %s4 = inlined_call_operand.hbm [shape: f32[1,64], index: 4, kind: input, shape index: {}]
  %s5 = inlined_call_operand.hbm [shape: f32[1,64], index: 5, kind: input, shape index: {}]
  %s6 = inlined_call_operand.hbm [shape: bf16[64,128], index: 6, kind: input, shape index: {}]
  %s7 = inlined_call_operand.vmem [shape: bf16[2,128,128], index: 7, kind: input, shape index: {}]
  %s8 = inlined_call_operand.vmem [shape: bf16[2,64,128], index: 8, kind: input, shape index: {}]
  %s9 = inlined_call_operand.hbm [shape: f32[2,1,128], index: 9, kind: input, shape index: {}]
  %s10 = inlined_call_operand.vmem [shape: bf16[4,128,128], index: 10, kind: input, shape index: {}]
  %s11 = inlined_call_operand.hbm [shape: f32[4,128], index: 11, kind: input, shape index: {}]
  %s12 = inlined_call_operand.hbm [shape: f32[4,128], index: 12, kind: input, shape index: {}]
  %s13 = inlined_call_operand.vmem [shape: f32[4,3,128], index: 13, kind: input, shape index: {}]
  %s14 = inlined_call_operand.hbm [shape: f32[4,128], index: 14, kind: input, shape index: {}]
  %s15 = inlined_call_operand.hbm [shape: f32[4,128], index: 15, kind: input, shape index: {}]
  %s16 = inlined_call_operand.hbm [shape: bf16[4,128,128], index: 16, kind: input, shape index: {}]
  %s17 = inlined_call_operand.hbm [shape: bf16[128,128], index: 17, kind: input, shape index: {}]
  %s18 = inlined_call_operand.vmem [shape: f32[2,128,128], index: 18, kind: output, shape index: {}]
  %s19 = sld [smem:[#allocation0]]
  $region153: #{masknet_forward.1} parent=0
    _
  %s21 = ssub.s32 1, %s19
  %s22 = scalar_select 0, %s21, %s19
  $region1: #{masknet_forward.1} parent=0
    #allocation3 [shape = 'u8[512]{0}', space=smem, size = 0x200, scoped, tag = 'input window, operand 0, single buffered']
    #allocation4 [shape = 's32[2]{0}', space=sflag, size = 0x8, scoped, tag = 'scoped memory for masknet_forward.1']
    #allocation5 [shape = 's32[2]{0}', space=sflag, size = 0x8, scoped, tag = 'scoped memory for masknet_forward.1']
    #allocation6 [shape = 's32[2]{0}', space=sflag, size = 0x8, scoped, tag = 'scoped memory for masknet_forward.1']
    #allocation7 [shape = 'u8[512]{0}', space=smem, size = 0x200, scoped, tag = 'input window, operand 1, single buffered']
    #allocation8 [shape = 'u8[512]{0}', space=vmem, size = 0x400, scoped, tag = 'input window, operand 4, single buffered']
    #allocation9 [shape = 'u8[512]{0}', space=vmem, size = 0x400, scoped, tag = 'input window, operand 5, single buffered']
    #allocation10 [shape = 's32[1]{0}', space=sflag, size = 0x4, scoped, tag = 'scoped memory for masknet_forward.1']
    #allocation11 [shape = 'u8[16384]{0}', space=vmem, size = 0x4000, scoped, tag = 'input window, operand 6, single buffered']
    #allocation12 [shape = 'u8[1024]{0}', space=vmem, size = 0x400, scoped, tag = 'input window, operand 9, single buffered']
    #allocation13 [shape = 's32[1]{0}', space=sflag, size = 0x4, scoped, tag = 'scoped memory for masknet_forward.1']
    #allocation14 [shape = 'u8[2048]{0}', space=vmem, size = 0x800, scoped, tag = 'input window, operand 11, single buffered']
    #allocation15 [shape = 'u8[2048]{0}', space=vmem, size = 0x800, scoped, tag = 'input window, operand 12, single buffered']
    #allocation16 [shape = 's32[1]{0}', space=sflag, size = 0x4, scoped, tag = 'scoped memory for masknet_forward.1']
    #allocation17 [shape = 'u8[2048]{0}', space=vmem, size = 0x800, scoped, tag = 'input window, operand 14, single buffered']
    #allocation18 [shape = 'u8[2048]{0}', space=vmem, size = 0x800, scoped, tag = 'input window, operand 15, single buffered']
    #allocation19 [shape = 's32[1]{0}', space=sflag, size = 0x4, scoped, tag = 'scoped memory for masknet_forward.1']
    #allocation20 [shape = 'u8[131072]{0}', space=vmem, size = 0x20000, scoped, tag = 'input window, operand 16, single buffered']
    #allocation21 [shape = 'u8[32768]{0}', space=vmem, size = 0x8000, scoped, tag = 'input window, operand 17, single buffered']
    #allocation22 [shape = 's32[1]{0}', space=sflag, size = 0x4, scoped, tag = 'scoped memory for masknet_forward.1']
    %23 = vsyncpa [#allocation6], 0
    %24 = vsyncpa [#allocation5], 0
    %25 = vsyncpa [#allocation4], 0
    %26 = vsyncpa [#allocation10], 0
    %27 = vsyncpa [#allocation13], 0
    %28 = vsyncpa [#allocation16], 0
    %29 = vsyncpa [#allocation19], 0
    %30 = vsyncpa [#allocation22], 0
    loop: start=0, step=1, limit=4
    $region2: #{masknet_forward.1} parent=1 // loop_pre_header
      _
    $region3: #{masknet_forward.1} parent=1 // loop_header
      %s32 = sphi 0, %s36
      %p33 = scmp.ge.s32.totalorder %s32, 4
      %s40 = sphi 0, %s40
      %s42 = sphi 0, %s40
      %s43 = sphi 0, %s42
      %s57 = sphi 0, %s43
      %s61 = sphi 0, %s61
      %s63 = sphi 0, %s61
      %s64 = sphi 0, %s63
      %s78 = sphi 0, %s64
      %s84 = sphi 0, %s86
      %s87 = sphi 0, %s84
      %s88 = sphi 0, %s87
      %s104 = sphi 0, %s88
      %s110 = sphi 0, %s112
      %s113 = sphi 0, %s110
      %s114 = sphi 0, %s113
      %s130 = sphi 0, %s114
      %s134 = sphi 0, %s134
      %s136 = sphi 0, %s134
      %s137 = sphi 0, %s136
      %s151 = sphi 0, %s137
      %s155 = sphi 0, %s155
      %s157 = sphi 0, %s155
      %s158 = sphi 0, %s157
      %s172 = sphi 0, %s158
      %s176 = sphi 0, %s176
      %s178 = sphi 0, %s176
      %s179 = sphi 0, %s178
      %s193 = sphi 0, %s179
      %s197 = sphi 0, %s197
      %s199 = sphi 0, %s197
      %s200 = sphi 0, %s199
      %s214 = sphi 0, %s200
      %s218 = sphi 0, %s218
      %s220 = sphi 0, %s218
      %s221 = sphi 0, %s220
      %s235 = sphi 0, %s221
      %s239 = sphi 0, %s239
      %s241 = sphi 0, %s239
      %s242 = sphi 0, %s241
      %s256 = sphi 0, %s242
      %s260 = sphi 0, %s260
      %s262 = sphi 0, %s260
      %s263 = sphi 0, %s262
      %s277 = sphi 0, %s263
      %s281 = sphi 0, %s281
      %s283 = sphi 0, %s281
      %s284 = sphi 0, %s283
      %s298 = sphi 0, %s284
      %s302 = sphi 0, %s302
      %s304 = sphi 0, %s302
      %s305 = sphi 0, %s304
      %s319 = sphi 0, %s305
      %s323 = sphi 0, %s323
      %s325 = sphi 0, %s323
      %s326 = sphi 0, %s325
      %s340 = sphi 0, %s326
      %s344 = sphi 0, %s344
      %s346 = sphi 0, %s344
      %s347 = sphi 0, %s346
      %s361 = sphi 0, %s347
      %s365 = sphi 0, %s365
      %s367 = sphi 0, %s365
      %s368 = sphi 0, %s367
      %s382 = sphi 0, %s368
      %s386 = sphi 0, %s386
      %s388 = sphi 0, %s386
      %s389 = sphi 0, %s388
      %s403 = sphi 0, %s389
      %s407 = sphi 0, %s407
      %s409 = sphi 0, %s407
      %s410 = sphi 0, %s409
      %s424 = sphi 0, %s410
      %s430 = sphi 0, %s432
      %s433 = sphi 0, %s430
      %s434 = sphi 0, %s433
      %s450 = sphi 0, %s434
    $region4: #{masknet_forward.1} parent=1 // loop_header_branch
      %35 = sbr.rel (%p33) target = $region8
    $region5: #{masknet_forward.1} parent=1 // loop_body
      %s37 = ssub.s32 %s32, 1
      %s38 = ssub.s32 %s32, 2
      %s39 = sadd.s32 %s32, 1
      %s41 = sadd.s32 %s40, 1
      %p44 = scmp.eq.s32.totalorder %s32, 1
      %p45 = scmp.ne.s32.totalorder %s40, %s42
      %p46 = scmp.eq.s32.totalorder %s32, 0
      %p47 = por %p45, %p46
      %p48 = scmp.ne.s32.totalorder %s40, %s42
      %p49 = scmp.eq.s32.totalorder %s37, 1
      %p50 = por %p48, %p49
      %p51 = scmp.ne.s32.totalorder %s42, %s43
      %p52 = scmp.eq.s32.totalorder %s37, 0
      %p53 = por %p51, %p52
      %p54 = scmp.ne.s32.totalorder %s42, %s43
      %p55 = scmp.eq.s32.totalorder %s38, 1
      %p56 = por %p54, %p55
      %p58 = scmp.ne.s32.totalorder %s43, %s57
      %p59 = scmp.eq.s32.totalorder %s38, 0
      %p60 = por %p58, %p59
      %s62 = sadd.s32 %s61, 1
      %p65 = scmp.eq.s32.totalorder %s32, 1
      %p66 = scmp.ne.s32.totalorder %s61, %s63
      %p67 = scmp.eq.s32.totalorder %s32, 0
      %p68 = por %p66, %p67
      %p69 = scmp.ne.s32.totalorder %s61, %s63
      %p70 = scmp.eq.s32.totalorder %s37, 1
      %p71 = por %p69, %p70
      %p72 = scmp.ne.s32.totalorder %s63, %s64
      %p73 = scmp.eq.s32.totalorder %s37, 0
      %p74 = por %p72, %p73
      %p75 = scmp.ne.s32.totalorder %s63, %s64
      %p76 = scmp.eq.s32.totalorder %s38, 1
      %p77 = por %p75, %p76
      %p79 = scmp.ne.s32.totalorder %s64, %s78
      %p80 = scmp.eq.s32.totalorder %s38, 0
      %p81 = por %p79, %p80
      %s82 = ssub.s32 %s32, %s39
      %p83 = scmp.eq.s32.totalorder %s82, 0
      %s85 = sadd.s32 %s84, 1
      %s86 = scalar_select %p83, %s84, %s85
      %p89 = pneg %p83
      %p90 = scmp.eq.s32.totalorder %s32, 1
      %p91 = por %p89, %p90
      %p92 = scmp.ne.s32.totalorder %s84, %s87
      %p93 = scmp.eq.s32.totalorder %s32, 0
      %p94 = por %p92, %p93
      %p95 = scmp.ne.s32.totalorder %s84, %s87
      %p96 = scmp.eq.s32.totalorder %s37, 1
      %p97 = por %p95, %p96
      %p98 = scmp.ne.s32.totalorder %s87, %s88
      %p99 = scmp.eq.s32.totalorder %s37, 0
      %p100 = por %p98, %p99
      %p101 = scmp.ne.s32.totalorder %s87, %s88
      %p102 = scmp.eq.s32.totalorder %s38, 1
      %p103 = por %p101, %p102
      %p105 = scmp.ne.s32.totalorder %s88, %s104
      %p106 = scmp.eq.s32.totalorder %s38, 0
      %p107 = por %p105, %p106
      %s108 = ssub.s32 %s32, %s39
      %p109 = scmp.eq.s32.totalorder %s108, 0
      %s111 = sadd.s32 %s110, 1
      %s112 = scalar_select %p109, %s110, %s111
      %p115 = pneg %p109
      %p116 = scmp.eq.s32.totalorder %s32, 1
      %p117 = por %p115, %p116
      %p118 = scmp.ne.s32.totalorder %s110, %s113
      %p119 = scmp.eq.s32.totalorder %s32, 0
      %p120 = por %p118, %p119
      %p121 = scmp.ne.s32.totalorder %s110, %s113
      %p122 = scmp.eq.s32.totalorder %s37, 1
      %p123 = por %p121, %p122
      %p124 = scmp.ne.s32.totalorder %s113, %s114
      %p125 = scmp.eq.s32.totalorder %s37, 0
      %p126 = por %p124, %p125
      %p127 = scmp.ne.s32.totalorder %s113, %s114
      %p128 = scmp.eq.s32.totalorder %s38, 1
      %p129 = por %p127, %p128
      %p131 = scmp.ne.s32.totalorder %s114, %s130
      %p132 = scmp.eq.s32.totalorder %s38, 0
      %p133 = por %p131, %p132
      %s135 = sadd.s32 %s134, 1
      %p138 = scmp.eq.s32.totalorder %s32, 1
      %p139 = scmp.ne.s32.totalorder %s134, %s136
      %p140 = scmp.eq.s32.totalorder %s32, 0
      %p141 = por %p139, %p140
      %p142 = scmp.ne.s32.totalorder %s134, %s136
      %p143 = scmp.eq.s32.totalorder %s37, 1
      %p144 = por %p142, %p143
      %p145 = scmp.ne.s32.totalorder %s136, %s137
      %p146 = scmp.eq.s32.totalorder %s37, 0
      %p147 = por %p145, %p146
      %p148 = scmp.ne.s32.totalorder %s136, %s137
      %p149 = scmp.eq.s32.totalorder %s38, 1
      %p150 = por %p148, %p149
      %p152 = scmp.ne.s32.totalorder %s137, %s151
      %p153 = scmp.eq.s32.totalorder %s38, 0
      %p154 = por %p152, %p153
      %s156 = sadd.s32 %s155, 1
      %p159 = scmp.eq.s32.totalorder %s32, 1
      %p160 = scmp.ne.s32.totalorder %s155, %s157
      %p161 = scmp.eq.s32.totalorder %s32, 0
      %p162 = por %p160, %p161
      %p163 = scmp.ne.s32.totalorder %s155, %s157
      %p164 = scmp.eq.s32.totalorder %s37, 1
      %p165 = por %p163, %p164
      %p166 = scmp.ne.s32.totalorder %s157, %s158
      %p167 = scmp.eq.s32.totalorder %s37, 0
      %p168 = por %p166, %p167
      %p169 = scmp.ne.s32.totalorder %s157, %s158
      %p170 = scmp.eq.s32.totalorder %s38, 1
      %p171 = por %p169, %p170
      %p173 = scmp.ne.s32.totalorder %s158, %s172
      %p174 = scmp.eq.s32.totalorder %s38, 0
      %p175 = por %p173, %p174
      %s177 = sadd.s32 %s176, 1
      %p180 = scmp.eq.s32.totalorder %s32, 1
      %p181 = scmp.ne.s32.totalorder %s176, %s178
      %p182 = scmp.eq.s32.totalorder %s32, 0
      %p183 = por %p181, %p182
      %p184 = scmp.ne.s32.totalorder %s176, %s178
      %p185 = scmp.eq.s32.totalorder %s37, 1
      %p186 = por %p184, %p185
      %p187 = scmp.ne.s32.totalorder %s178, %s179
      %p188 = scmp.eq.s32.totalorder %s37, 0
      %p189 = por %p187, %p188
      %p190 = scmp.ne.s32.totalorder %s178, %s179
      %p191 = scmp.eq.s32.totalorder %s38, 1
      %p192 = por %p190, %p191
      %p194 = scmp.ne.s32.totalorder %s179, %s193
      %p195 = scmp.eq.s32.totalorder %s38, 0
      %p196 = por %p194, %p195
      %s198 = sadd.s32 %s197, 1
      %p201 = scmp.eq.s32.totalorder %s32, 1
      %p202 = scmp.ne.s32.totalorder %s197, %s199
      %p203 = scmp.eq.s32.totalorder %s32, 0
      %p204 = por %p202, %p203
      %p205 = scmp.ne.s32.totalorder %s197, %s199
      %p206 = scmp.eq.s32.totalorder %s37, 1
      %p207 = por %p205, %p206
      %p208 = scmp.ne.s32.totalorder %s199, %s200
      %p209 = scmp.eq.s32.totalorder %s37, 0
      %p210 = por %p208, %p209
      %p211 = scmp.ne.s32.totalorder %s199, %s200
      %p212 = scmp.eq.s32.totalorder %s38, 1
      %p213 = por %p211, %p212
      %p215 = scmp.ne.s32.totalorder %s200, %s214
      %p216 = scmp.eq.s32.totalorder %s38, 0
      %p217 = por %p215, %p216
      %s219 = sadd.s32 %s218, 1
      %p222 = scmp.eq.s32.totalorder %s32, 1
      %p223 = scmp.ne.s32.totalorder %s218, %s220
      %p224 = scmp.eq.s32.totalorder %s32, 0
      %p225 = por %p223, %p224
      %p226 = scmp.ne.s32.totalorder %s218, %s220
      %p227 = scmp.eq.s32.totalorder %s37, 1
      %p228 = por %p226, %p227
      %p229 = scmp.ne.s32.totalorder %s220, %s221
      %p230 = scmp.eq.s32.totalorder %s37, 0
      %p231 = por %p229, %p230
      %p232 = scmp.ne.s32.totalorder %s220, %s221
      %p233 = scmp.eq.s32.totalorder %s38, 1
      %p234 = por %p232, %p233
      %p236 = scmp.ne.s32.totalorder %s221, %s235
      %p237 = scmp.eq.s32.totalorder %s38, 0
      %p238 = por %p236, %p237
      %s240 = sadd.s32 %s239, 1
      %p243 = scmp.eq.s32.totalorder %s32, 1
      %p244 = scmp.ne.s32.totalorder %s239, %s241
      %p245 = scmp.eq.s32.totalorder %s32, 0
      %p246 = por %p244, %p245
      %p247 = scmp.ne.s32.totalorder %s239, %s241
      %p248 = scmp.eq.s32.totalorder %s37, 1
      %p249 = por %p247, %p248
      %p250 = scmp.ne.s32.totalorder %s241, %s242
      %p251 = scmp.eq.s32.totalorder %s37, 0
      %p252 = por %p250, %p251
      %p253 = scmp.ne.s32.totalorder %s241, %s242
      %p254 = scmp.eq.s32.totalorder %s38, 1
      %p255 = por %p253, %p254
      %p257 = scmp.ne.s32.totalorder %s242, %s256
      %p258 = scmp.eq.s32.totalorder %s38, 0
      %p259 = por %p257, %p258
      %s261 = sadd.s32 %s260, 1
      %p264 = scmp.eq.s32.totalorder %s32, 1
      %p265 = scmp.ne.s32.totalorder %s260, %s262
      %p266 = scmp.eq.s32.totalorder %s32, 0
      %p267 = por %p265, %p266
      %p268 = scmp.ne.s32.totalorder %s260, %s262
      %p269 = scmp.eq.s32.totalorder %s37, 1
      %p270 = por %p268, %p269
      %p271 = scmp.ne.s32.totalorder %s262, %s263
      %p272 = scmp.eq.s32.totalorder %s37, 0
      %p273 = por %p271, %p272
      %p274 = scmp.ne.s32.totalorder %s262, %s263
      %p275 = scmp.eq.s32.totalorder %s38, 1
      %p276 = por %p274, %p275
      %p278 = scmp.ne.s32.totalorder %s263, %s277
      %p279 = scmp.eq.s32.totalorder %s38, 0
      %p280 = por %p278, %p279
      %s282 = sadd.s32 %s281, 1
      %p285 = scmp.eq.s32.totalorder %s32, 1
      %p286 = scmp.ne.s32.totalorder %s281, %s283
      %p287 = scmp.eq.s32.totalorder %s32, 0
      %p288 = por %p286, %p287
      %p289 = scmp.ne.s32.totalorder %s281, %s283
      %p290 = scmp.eq.s32.totalorder %s37, 1
      %p291 = por %p289, %p290
      %p292 = scmp.ne.s32.totalorder %s283, %s284
      %p293 = scmp.eq.s32.totalorder %s37, 0
      %p294 = por %p292, %p293
      %p295 = scmp.ne.s32.totalorder %s283, %s284
      %p296 = scmp.eq.s32.totalorder %s38, 1
      %p297 = por %p295, %p296
      %p299 = scmp.ne.s32.totalorder %s284, %s298
      %p300 = scmp.eq.s32.totalorder %s38, 0
      %p301 = por %p299, %p300
      %s303 = sadd.s32 %s302, 1
      %p306 = scmp.eq.s32.totalorder %s32, 1
      %p307 = scmp.ne.s32.totalorder %s302, %s304
      %p308 = scmp.eq.s32.totalorder %s32, 0
      %p309 = por %p307, %p308
      %p310 = scmp.ne.s32.totalorder %s302, %s304
      %p311 = scmp.eq.s32.totalorder %s37, 1
      %p312 = por %p310, %p311
      %p313 = scmp.ne.s32.totalorder %s304, %s305
      %p314 = scmp.eq.s32.totalorder %s37, 0
      %p315 = por %p313, %p314
      %p316 = scmp.ne.s32.totalorder %s304, %s305
      %p317 = scmp.eq.s32.totalorder %s38, 1
      %p318 = por %p316, %p317
      %p320 = scmp.ne.s32.totalorder %s305, %s319
      %p321 = scmp.eq.s32.totalorder %s38, 0
      %p322 = por %p320, %p321
      %s324 = sadd.s32 %s323, 1
      %p327 = scmp.eq.s32.totalorder %s32, 1
      %p328 = scmp.ne.s32.totalorder %s323, %s325
      %p329 = scmp.eq.s32.totalorder %s32, 0
      %p330 = por %p328, %p329
      %p331 = scmp.ne.s32.totalorder %s323, %s325
      %p332 = scmp.eq.s32.totalorder %s37, 1
      %p333 = por %p331, %p332
      %p334 = scmp.ne.s32.totalorder %s325, %s326
      %p335 = scmp.eq.s32.totalorder %s37, 0
      %p336 = por %p334, %p335
      %p337 = scmp.ne.s32.totalorder %s325, %s326
      %p338 = scmp.eq.s32.totalorder %s38, 1
      %p339 = por %p337, %p338
      %p341 = scmp.ne.s32.totalorder %s326, %s340
      %p342 = scmp.eq.s32.totalorder %s38, 0
      %p343 = por %p341, %p342
      %s345 = sadd.s32 %s344, 1
      %p348 = scmp.eq.s32.totalorder %s32, 1
      %p349 = scmp.ne.s32.totalorder %s344, %s346
      %p350 = scmp.eq.s32.totalorder %s32, 0
      %p351 = por %p349, %p350
      %p352 = scmp.ne.s32.totalorder %s344, %s346
      %p353 = scmp.eq.s32.totalorder %s37, 1
      %p354 = por %p352, %p353
      %p355 = scmp.ne.s32.totalorder %s346, %s347
      %p356 = scmp.eq.s32.totalorder %s37, 0
      %p357 = por %p355, %p356
      %p358 = scmp.ne.s32.totalorder %s346, %s347
      %p359 = scmp.eq.s32.totalorder %s38, 1
      %p360 = por %p358, %p359
      %p362 = scmp.ne.s32.totalorder %s347, %s361
      %p363 = scmp.eq.s32.totalorder %s38, 0
      %p364 = por %p362, %p363
      %s366 = sadd.s32 %s365, 1
      %p369 = scmp.eq.s32.totalorder %s32, 1
      %p370 = scmp.ne.s32.totalorder %s365, %s367
      %p371 = scmp.eq.s32.totalorder %s32, 0
      %p372 = por %p370, %p371
      %p373 = scmp.ne.s32.totalorder %s365, %s367
      %p374 = scmp.eq.s32.totalorder %s37, 1
      %p375 = por %p373, %p374
      %p376 = scmp.ne.s32.totalorder %s367, %s368
      %p377 = scmp.eq.s32.totalorder %s37, 0
      %p378 = por %p376, %p377
      %p379 = scmp.ne.s32.totalorder %s367, %s368
      %p380 = scmp.eq.s32.totalorder %s38, 1
      %p381 = por %p379, %p380
      %p383 = scmp.ne.s32.totalorder %s368, %s382
      %p384 = scmp.eq.s32.totalorder %s38, 0
      %p385 = por %p383, %p384
      %s387 = sadd.s32 %s386, 1
      %p390 = scmp.eq.s32.totalorder %s32, 1
      %p391 = scmp.ne.s32.totalorder %s386, %s388
      %p392 = scmp.eq.s32.totalorder %s32, 0
      %p393 = por %p391, %p392
      %p394 = scmp.ne.s32.totalorder %s386, %s388
      %p395 = scmp.eq.s32.totalorder %s37, 1
      %p396 = por %p394, %p395
      %p397 = scmp.ne.s32.totalorder %s388, %s389
      %p398 = scmp.eq.s32.totalorder %s37, 0
      %p399 = por %p397, %p398
      %p400 = scmp.ne.s32.totalorder %s388, %s389
      %p401 = scmp.eq.s32.totalorder %s38, 1
      %p402 = por %p400, %p401
      %p404 = scmp.ne.s32.totalorder %s389, %s403
      %p405 = scmp.eq.s32.totalorder %s38, 0
      %p406 = por %p404, %p405
      %s408 = sadd.s32 %s407, 1
      %p411 = scmp.eq.s32.totalorder %s32, 1
      %p412 = scmp.ne.s32.totalorder %s407, %s409
      %p413 = scmp.eq.s32.totalorder %s32, 0
      %p414 = por %p412, %p413
      %p415 = scmp.ne.s32.totalorder %s407, %s409
      %p416 = scmp.eq.s32.totalorder %s37, 1
      %p417 = por %p415, %p416
      %p418 = scmp.ne.s32.totalorder %s409, %s410
      %p419 = scmp.eq.s32.totalorder %s37, 0
      %p420 = por %p418, %p419
      %p421 = scmp.ne.s32.totalorder %s409, %s410
      %p422 = scmp.eq.s32.totalorder %s38, 1
      %p423 = por %p421, %p422
      %p425 = scmp.ne.s32.totalorder %s410, %s424
      %p426 = scmp.eq.s32.totalorder %s38, 0
      %p427 = por %p425, %p426
      %s428 = ssub.s32 %s32, %s39
      %p429 = scmp.eq.s32.totalorder %s428, 0
      %s431 = sadd.s32 %s430, 1
      %s432 = scalar_select %p429, %s430, %s431
      %p435 = pneg %p429
      %p436 = scmp.eq.s32.totalorder %s32, 1
      %p437 = por %p435, %p436
      %p438 = scmp.ne.s32.totalorder %s430, %s433
      %p439 = scmp.eq.s32.totalorder %s32, 0
      %p440 = por %p438, %p439
      %p441 = scmp.ne.s32.totalorder %s430, %s433
      %p442 = scmp.eq.s32.totalorder %s37, 1
      %p443 = por %p441, %p442
      %p444 = scmp.ne.s32.totalorder %s433, %s434
      %p445 = scmp.eq.s32.totalorder %s37, 0
      %p446 = por %p444, %p445
      %p447 = scmp.ne.s32.totalorder %s433, %s434
      %p448 = scmp.eq.s32.totalorder %s38, 1
      %p449 = por %p447, %p448
      %p451 = scmp.ne.s32.totalorder %s434, %s450
      %p452 = scmp.eq.s32.totalorder %s38, 0
      %p453 = por %p451, %p452
      %p454 = scmp.le.s32.totalorder 1, %s32
      %p455 = scmp.lt.s32.totalorder %s32, 3
      %p456 = pnand %p454, %p455
      %p457 = pneg %p456
      // Predicated region
      $region9: #{masknet_forward.1} parent=5 // pred_check
        _
      $region10: #{masknet_forward.1} parent=5 // pred_check_branch
        %459 = sbr.rel (%p456) target = $region12
      $region11: #{masknet_forward.1} parent=5 // pred_region
        %s460 = ssub.s32 %s32, 1
        // Predicated region
        $region13: #{masknet_forward.1} parent=11 // pred_check
          %p461 = pneg %p53
        $region14: #{masknet_forward.1} parent=11 // pred_check_branch
          %463 = sbr.rel (%p461) target = $region16
        $region15: #{masknet_forward.1} parent=11 // pred_region
          %s465 = ssub.s32 16, 16
          %466 = vsyncadd [#allocation6], %s465
          %s468 = sshll.u32 %s0, 4
          %s469 = int_to_ptr.vmem [resolvable:$true] %s468
          %471 = dma.vmem_to_smem %s469, 16, [#allocation3], [#allocation6]
        $region16: #{masknet_forward.1} parent=11 // pred_fallthru
          _
        // Predicated region
        $region17: #{masknet_forward.1} parent=11 // pred_check
          %p472 = pneg %p74
        $region18: #{masknet_forward.1} parent=11 // pred_check_branch
          %474 = sbr.rel (%p472) target = $region20
        $region19: #{masknet_forward.1} parent=11 // pred_region
          %s476 = ssub.s32 16, 16
          %477 = vsyncadd [#allocation5], %s476
          %480 = dma.hbm_to_smem %s1, 16, [#allocation7], [#allocation5]
        $region20: #{masknet_forward.1} parent=11 // pred_fallthru
          _
        // Predicated region
        $region21: #{masknet_forward.1} parent=11 // pred_check
          %p481 = pneg %p147
        $region22: #{masknet_forward.1} parent=11 // pred_check_branch
          %483 = sbr.rel (%p481) target = $region24
        $region23: #{masknet_forward.1} parent=11 // pred_region
          %s485 = ssub.s32 16, 16
          %486 = vsyncadd [#allocation4], %s485
          %s488 = sshll.u32 [#allocation8], 4
          %s489 = int_to_ptr.vmem [resolvable:$true] %s488
          %491 = dma.hbm_to_vmem [thread:$0]  %s4, 16, %s489, [#allocation4]
        $region24: #{masknet_forward.1} parent=11 // pred_fallthru
          _
        // Predicated region
        $region25: #{masknet_forward.1} parent=11 // pred_check
          %p492 = pneg %p168
        $region26: #{masknet_forward.1} parent=11 // pred_check_branch
          %494 = sbr.rel (%p492) target = $region28
        $region27: #{masknet_forward.1} parent=11 // pred_region
          %s496 = ssub.s32 16, 16
          %497 = vsyncadd [#allocation10], %s496
          %s499 = sshll.u32 [#allocation9], 4
          %s500 = int_to_ptr.vmem [resolvable:$true] %s499
          %502 = dma.hbm_to_vmem [thread:$0]  %s5, 16, %s500, [#allocation10]
        $region28: #{masknet_forward.1} parent=11 // pred_fallthru
          _
        // Predicated region
        $region29: #{masknet_forward.1} parent=11 // pred_check
          %p503 = pneg %p189
        $region30: #{masknet_forward.1} parent=11 // pred_check_branch
          %505 = sbr.rel (%p503) target = $region32
        $region31: #{masknet_forward.1} parent=11 // pred_region
          %s507 = ssub.s32 512, 512
          %508 = vsyncadd [#allocation10], %s507
          %s509 = sshll.u32 [#allocation11], 4
          %s510 = int_to_ptr.vmem [resolvable:$true] %s509
          %515 = dma.hbm_to_vmem [thread:$0]  %s6, 512, %s510, [#allocation10], 64, 64, 4
        $region32: #{masknet_forward.1} parent=11 // pred_fallthru
          _
        // Predicated region
        $region33: #{masknet_forward.1} parent=11 // pred_check
          %p516 = pneg %p210
        $region34: #{masknet_forward.1} parent=11 // pred_check_branch
          %518 = sbr.rel (%p516) target = $region36
        $region35: #{masknet_forward.1} parent=11 // pred_region
          _
        $region36: #{masknet_forward.1} parent=11 // pred_fallthru
          _
        // Predicated region
        $region37: #{masknet_forward.1} parent=11 // pred_check
          %p519 = pneg %p231
        $region38: #{masknet_forward.1} parent=11 // pred_check_branch
          %521 = sbr.rel (%p519) target = $region40
        $region39: #{masknet_forward.1} parent=11 // pred_region
          _
        $region40: #{masknet_forward.1} parent=11 // pred_fallthru
          _
        // Predicated region
        $region41: #{masknet_forward.1} parent=11 // pred_check
          %p522 = pneg %p252
        $region42: #{masknet_forward.1} parent=11 // pred_check_branch
          %524 = sbr.rel (%p522) target = $region44
        $region43: #{masknet_forward.1} parent=11 // pred_region
          %s526 = ssub.s32 32, 32
          %527 = vsyncadd [#allocation13], %s526
          %s528 = sshll.u32 [#allocation12], 4
          %s529 = int_to_ptr.vmem [resolvable:$true] %s528
          %534 = dma.hbm_to_vmem [thread:$0]  %s9, 32, %s529, [#allocation13], 16, 16, 1
        $region44: #{masknet_forward.1} parent=11 // pred_fallthru
          _
        // Predicated region
        $region45: #{masknet_forward.1} parent=11 // pred_check
          %p535 = pneg %p273
        $region46: #{masknet_forward.1} parent=11 // pred_check_branch
          %537 = sbr.rel (%p535) target = $region48
        $region47: #{masknet_forward.1} parent=11 // pred_region
          _
        $region48: #{masknet_forward.1} parent=11 // pred_fallthru
          _
        // Predicated region
        $region49: #{masknet_forward.1} parent=11 // pred_check
          %p538 = pneg %p294
        $region50: #{masknet_forward.1} parent=11 // pred_check_branch
          %540 = sbr.rel (%p538) target = $region52
        $region51: #{masknet_forward.1} parent=11 // pred_region
          %s542 = ssub.s32 64, 64
          %543 = vsyncadd [#allocation13], %s542
          %s545 = sshll.u32 [#allocation14], 4
          %s546 = int_to_ptr.vmem [resolvable:$true] %s545
          %548 = dma.hbm_to_vmem [thread:$0]  %s11, 64, %s546, [#allocation13]
        $region52: #{masknet_forward.1} parent=11 // pred_fallthru
          _
        // Predicated region
        $region53: #{masknet_forward.1} parent=11 // pred_check
          %p549 = pneg %p315
        $region54: #{masknet_forward.1} parent=11 // pred_check_branch
          %551 = sbr.rel (%p549) target = $region56
        $region55: #{masknet_forward.1} parent=11 // pred_region
          %s553 = ssub.s32 64, 64
          %554 = vsyncadd [#allocation16], %s553
          %s556 = sshll.u32 [#allocation15], 4
          %s557 = int_to_ptr.vmem [resolvable:$true] %s556
          %559 = dma.hbm_to_vmem [thread:$0]  %s12, 64, %s557, [#allocation16]
        $region56: #{masknet_forward.1} parent=11 // pred_fallthru
          _
        // Predicated region
        $region57: #{masknet_forward.1} parent=11 // pred_check
          %p560 = pneg %p336
        $region58: #{masknet_forward.1} parent=11 // pred_check_branch
          %562 = sbr.rel (%p560) target = $region60
        $region59: #{masknet_forward.1} parent=11 // pred_region
          _
        $region60: #{masknet_forward.1} parent=11 // pred_fallthru
          _
        // Predicated region
        $region61: #{masknet_forward.1} parent=11 // pred_check
          %p563 = pneg %p357
        $region62: #{masknet_forward.1} parent=11 // pred_check_branch
          %565 = sbr.rel (%p563) target = $region64
        $region63: #{masknet_forward.1} parent=11 // pred_region
          %s567 = ssub.s32 64, 64
          %568 = vsyncadd [#allocation16], %s567
          %s570 = sshll.u32 [#allocation17], 4
          %s571 = int_to_ptr.vmem [resolvable:$true] %s570
          %573 = dma.hbm_to_vmem [thread:$0]  %s14, 64, %s571, [#allocation16]
        $region64: #{masknet_forward.1} parent=11 // pred_fallthru
          _
        // Predicated region
        $region65: #{masknet_forward.1} parent=11 // pred_check
          %p574 = pneg %p378
        $region66: #{masknet_forward.1} parent=11 // pred_check_branch
          %576 = sbr.rel (%p574) target = $region68
        $region67: #{masknet_forward.1} parent=11 // pred_region
          %s578 = ssub.s32 64, 64
          %579 = vsyncadd [#allocation19], %s578
          %s581 = sshll.u32 [#allocation18], 4
          %s582 = int_to_ptr.vmem [resolvable:$true] %s581
          %584 = dma.hbm_to_vmem [thread:$0]  %s15, 64, %s582, [#allocation19]
        $region68: #{masknet_forward.1} parent=11 // pred_fallthru
          _
        // Predicated region
        $region69: #{masknet_forward.1} parent=11 // pred_check
          %p585 = pneg %p399
        $region70: #{masknet_forward.1} parent=11 // pred_check_branch
          %587 = sbr.rel (%p585) target = $region72
        $region71: #{masknet_forward.1} parent=11 // pred_region
          %s589 = ssub.s32 4096, 4096
          %590 = vsyncadd [#allocation19], %s589
          %s591 = sshll.u32 [#allocation20], 4
          %s592 = int_to_ptr.vmem [resolvable:$true] %s591
          %597 = dma.hbm_to_vmem [thread:$0]  %s16, 4096, %s592, [#allocation19], 64, 64, 4
        $region72: #{masknet_forward.1} parent=11 // pred_fallthru
          _
        // Predicated region
        $region73: #{masknet_forward.1} parent=11 // pred_check
          %p598 = pneg %p420
        $region74: #{masknet_forward.1} parent=11 // pred_check_branch
          %600 = sbr.rel (%p598) target = $region76
        $region75: #{masknet_forward.1} parent=11 // pred_region
          %s602 = ssub.s32 1024, 1024
          %603 = vsyncadd [#allocation22], %s602
          %s604 = sshll.u32 [#allocation21], 4
          %s605 = int_to_ptr.vmem [resolvable:$true] %s604
          %610 = dma.hbm_to_vmem [thread:$0]  %s17, 1024, %s605, [#allocation22], 64, 64, 4
        $region76: #{masknet_forward.1} parent=11 // pred_fallthru
          _
      $region12: #{masknet_forward.1} parent=5 // pred_fallthru
        _
      %p611 = scmp.lt.s32.totalorder %s32, 2
      // Predicated region
      $region77: #{masknet_forward.1} parent=5 // pred_check
        %p612 = pneg %p611
      $region78: #{masknet_forward.1} parent=5 // pred_check_branch
        %614 = sbr.rel (%p612) target = $region80
      $region79: #{masknet_forward.1} parent=5 // pred_region
        // Predicated region
        $region81: #{masknet_forward.1} parent=79 // pred_check
          %p615 = pneg %p94
        $region82: #{masknet_forward.1} parent=79 // pred_check_branch
          %617 = sbr.rel (%p615) target = $region84
        $region83: #{masknet_forward.1} parent=79 // pred_region
          %p618 = scmp.lt.s32.totalorder %s32, 1
          %s619 = scalar_select %p618, %s32, 1
          %s620 = smul.addr %s619, 16
          %s621 = smul.addr %s620, 8
          %s622 = scalar_lea.vmem %s2, %s621
        $region84: #{masknet_forward.1} parent=79 // pred_fallthru
          _
        // Predicated region
        $region85: #{masknet_forward.1} parent=79 // pred_check
          %p623 = pneg %p120
        $region86: #{masknet_forward.1} parent=79 // pred_check_branch
          %625 = sbr.rel (%p623) target = $region88
        $region87: #{masknet_forward.1} parent=79 // pred_region
          %p626 = scmp.lt.s32.totalorder %s32, 1
          %s627 = scalar_select %p626, %s32, 1
          %s628 = scalar_lea.vmem %s3, %s627
        $region88: #{masknet_forward.1} parent=79 // pred_fallthru
          _
      $region80: #{masknet_forward.1} parent=5 // pred_fallthru
        _
      %p629 = scmp.le.s32.totalorder 1, %s32
      %p630 = scmp.lt.s32.totalorder %s32, 3
      %p631 = pnand %p629, %p630
      %p632 = pneg %p631
      // Predicated region
      $region89: #{masknet_forward.1} parent=5 // pred_check
        _
      $region90: #{masknet_forward.1} parent=5 // pred_check_branch
        %634 = sbr.rel (%p631) target = $region92
      $region91: #{masknet_forward.1} parent=5 // pred_region
        %s635 = ssub.s32 %s32, 1
        // Predicated region
        $region93: #{masknet_forward.1} parent=91 // pred_check
          %p636 = pneg %p53
        $region94: #{masknet_forward.1} parent=91 // pred_check_branch
          %638 = sbr.rel (%p636) target = $region96
        $region95: #{masknet_forward.1} parent=91 // pred_region
          %639 = dma.done [#allocation6], 16
        $region96: #{masknet_forward.1} parent=91 // pred_fallthru
          _
        // Predicated region
        $region97: #{masknet_forward.1} parent=91 // pred_check
          %p640 = pneg %p74
        $region98: #{masknet_forward.1} parent=91 // pred_check_branch
          %642 = sbr.rel (%p640) target = $region100
        $region99: #{masknet_forward.1} parent=91 // pred_region
          %643 = dma.done [#allocation5], 16
        $region100: #{masknet_forward.1} parent=91 // pred_fallthru
          _
        // Predicated region
        $region101: #{masknet_forward.1} parent=91 // pred_check
          %p644 = pneg %p147
        $region102: #{masknet_forward.1} parent=91 // pred_check_branch
          %646 = sbr.rel (%p644) target = $region104
        $region103: #{masknet_forward.1} parent=91 // pred_region
          %647 = dma.done [#allocation4], 16
        $region104: #{masknet_forward.1} parent=91 // pred_fallthru
          _
        // Predicated region
        $region105: #{masknet_forward.1} parent=91 // pred_check
          %p648 = pneg %p168
        $region106: #{masknet_forward.1} parent=91 // pred_check_branch
          %650 = sbr.rel (%p648) target = $region108
        $region107: #{masknet_forward.1} parent=91 // pred_region
          %651 = dma.done [#allocation10], 16
        $region108: #{masknet_forward.1} parent=91 // pred_fallthru
          _
        // Predicated region
        $region109: #{masknet_forward.1} parent=91 // pred_check
          %p652 = pneg %p189
        $region110: #{masknet_forward.1} parent=91 // pred_check_branch
          %654 = sbr.rel (%p652) target = $region112
        $region111: #{masknet_forward.1} parent=91 // pred_region
          %655 = dma.done [#allocation10], 512
        $region112: #{masknet_forward.1} parent=91 // pred_fallthru
          _
        // Predicated region
        $region113: #{masknet_forward.1} parent=91 // pred_check
          %p656 = pneg %p252
        $region114: #{masknet_forward.1} parent=91 // pred_check_branch
          %658 = sbr.rel (%p656) target = $region116
        $region115: #{masknet_forward.1} parent=91 // pred_region
          %659 = dma.done [#allocation13], 32
        $region116: #{masknet_forward.1} parent=91 // pred_fallthru
          _
        // Predicated region
        $region117: #{masknet_forward.1} parent=91 // pred_check
          %p660 = pneg %p294
        $region118: #{masknet_forward.1} parent=91 // pred_check_branch
          %662 = sbr.rel (%p660) target = $region120
        $region119: #{masknet_forward.1} parent=91 // pred_region
          %663 = dma.done [#allocation13], 64
        $region120: #{masknet_forward.1} parent=91 // pred_fallthru
          _
        // Predicated region
        $region121: #{masknet_forward.1} parent=91 // pred_check
          %p664 = pneg %p315
        $region122: #{masknet_forward.1} parent=91 // pred_check_branch
          %666 = sbr.rel (%p664) target = $region124
        $region123: #{masknet_forward.1} parent=91 // pred_region
          %667 = dma.done [#allocation16], 64
        $region124: #{masknet_forward.1} parent=91 // pred_fallthru
          _
        // Predicated region
        $region125: #{masknet_forward.1} parent=91 // pred_check
          %p668 = pneg %p357
        $region126: #{masknet_forward.1} parent=91 // pred_check_branch
          %670 = sbr.rel (%p668) target = $region128
        $region127: #{masknet_forward.1} parent=91 // pred_region
          %671 = dma.done [#allocation16], 64
        $region128: #{masknet_forward.1} parent=91 // pred_fallthru
          _
        // Predicated region
        $region129: #{masknet_forward.1} parent=91 // pred_check
          %p672 = pneg %p378
        $region130: #{masknet_forward.1} parent=91 // pred_check_branch
          %674 = sbr.rel (%p672) target = $region132
        $region131: #{masknet_forward.1} parent=91 // pred_region
          %675 = dma.done [#allocation19], 64
        $region132: #{masknet_forward.1} parent=91 // pred_fallthru
          _
        // Predicated region
        $region133: #{masknet_forward.1} parent=91 // pred_check
          %p676 = pneg %p399
        $region134: #{masknet_forward.1} parent=91 // pred_check_branch
          %678 = sbr.rel (%p676) target = $region136
        $region135: #{masknet_forward.1} parent=91 // pred_region
          %679 = dma.done [#allocation19], 4096
        $region136: #{masknet_forward.1} parent=91 // pred_fallthru
          _
        // Predicated region
        $region137: #{masknet_forward.1} parent=91 // pred_check
          %p680 = pneg %p420
        $region138: #{masknet_forward.1} parent=91 // pred_check_branch
          %682 = sbr.rel (%p680) target = $region140
        $region139: #{masknet_forward.1} parent=91 // pred_region
          %683 = dma.done [#allocation22], 1024
        $region140: #{masknet_forward.1} parent=91 // pred_fallthru
          _
        %684 = sfence
        %p685 = pneg %p53
        %p686 = pneg %p50
        %p687 = pneg %p74
        %p688 = pneg %p71
        %p689 = scmp.lt.s32.totalorder %s37, 1
        %s690 = scalar_select %p689, %s37, 1
        %s691 = smul.addr %s690, 16
        %s692 = smul.addr %s691, 8
        %s693 = scalar_lea.vmem %s2, %s692
        %p694 = pneg %p100
        %p695 = pneg %p97
        %p696 = scmp.lt.s32.totalorder %s37, 1
        %s697 = scalar_select %p696, %s37, 1
        %s698 = scalar_lea.vmem %s3, %s697
        %p699 = pneg %p126
        %p700 = pneg %p123
        %p701 = pneg %p147
        %p702 = pneg %p144
        %p703 = pneg %p168
        %p704 = pneg %p165
        %p705 = pneg %p189
        %p706 = pneg %p186
        %p707 = pneg %p210
        %p708 = pneg %p207
        %p709 = pneg %p231
        %p710 = pneg %p228
        %p711 = pneg %p252
        %p712 = pneg %p249
        %p713 = pneg %p273
        %p714 = pneg %p270
        %p715 = pneg %p294
        %p716 = pneg %p291
        %p717 = pneg %p315
        %p718 = pneg %p312
        %p719 = pneg %p336
        %p720 = pneg %p333
        %p721 = pneg %p357
        %p722 = pneg %p354
        %p723 = pneg %p378
        %p724 = pneg %p375
        %p725 = pneg %p399
        %p726 = pneg %p396
        %p727 = pneg %p420
        %p728 = pneg %p417
        %p729 = pneg %p446
        %p730 = pneg %p443
        %p731 = scmp.lt.s32.totalorder %s37, 1
        %s732 = scalar_select %p731, %s37, 1
        %s733 = smul.addr %s732, 16
        %s734 = smul.addr %s733, 8
        %s735 = scalar_lea.vmem %s18, %s734
        %p736 = scmp.lt.s32.totalorder %s37, 1
        %s737 = scalar_select %p736, %s37, 1
        %s738 = smul.addr %s737, 16
        %s739 = smul.addr %s738, 8
        %s740 = scalar_lea.vmem %s2, %s739
        %p741 = scmp.lt.s32.totalorder %s37, 1
        %s742 = scalar_select %p741, %s37, 1
        %s743 = scalar_lea.vmem %s3, %s742
        %p744 = scmp.lt.s32.totalorder %s37, 1
        %s745 = scalar_select %p744, %s37, 1
        %s746 = smul.addr %s745, 16
        %s747 = smul.addr %s746, 8
        %s748 = scalar_lea.vmem %s18, %s747
        %v750 = vld [vmem:[%s740] sm:$0xff]
        %v751 = vld [vmem:[%s740 + $0x8] sm:$0xff]
        %v752 = vld [vmem:[%s740 + $0x10] sm:$0xff]
        %v753 = vld [vmem:[%s740 + $0x18] sm:$0xff]
        %v754 = vld [vmem:[%s740 + $0x20] sm:$0xff]
        %v755 = vld [vmem:[%s740 + $0x28] sm:$0xff]
        %v756 = vld [vmem:[%s740 + $0x30] sm:$0xff]
        %v757 = vld [vmem:[%s740 + $0x38] sm:$0xff]
        %v758 = vld [vmem:[%s740 + $0x40] sm:$0xff]
        %v759 = vld [vmem:[%s740 + $0x48] sm:$0xff]
        %v760 = vld [vmem:[%s740 + $0x50] sm:$0xff]
        %v761 = vld [vmem:[%s740 + $0x58] sm:$0xff]
        %v762 = vld [vmem:[%s740 + $0x60] sm:$0xff]
        %v763 = vld [vmem:[%s740 + $0x68] sm:$0xff]
        %v764 = vld [vmem:[%s740 + $0x70] sm:$0xff]
        %v765 = vld [vmem:[%s740 + $0x78] sm:$0xff]
        %v766 = vld [vmem:[#allocation8] sm:$0x1]
        %v767 = vld [vmem:[#allocation9] sm:$0x1]
        %vm768 = vcmask 523264
        %v769 = vsel %vm768, %v750, 0.0
        %770 = vadd.xlane.f32.xlu0 %v769
        %v771 = vpop.xlane.xlu0 %770
        %v772 = vsel %vm768, %v751, 0.0
        %773 = vadd.xlane.f32.xlu0 %v772
        %v774 = vpop.xlane.xlu0 %773
        %v775 = vsel %vm768, %v752, 0.0
        %776 = vadd.xlane.f32.xlu0 %v775
        %v777 = vpop.xlane.xlu0 %776
        %v778 = vsel %vm768, %v753, 0.0
        %779 = vadd.xlane.f32.xlu0 %v778
        %v780 = vpop.xlane.xlu0 %779
        %v781 = vsel %vm768, %v754, 0.0
        %782 = vadd.xlane.f32.xlu0 %v781
        %v783 = vpop.xlane.xlu0 %782
        %v784 = vsel %vm768, %v755, 0.0
        %785 = vadd.xlane.f32.xlu0 %v784
        %v786 = vpop.xlane.xlu0 %785
        %v787 = vsel %vm768, %v756, 0.0
        %788 = vadd.xlane.f32.xlu0 %v787
        %v789 = vpop.xlane.xlu0 %788
        %v790 = vsel %vm768, %v757, 0.0
        %791 = vadd.xlane.f32.xlu0 %v790
        %v792 = vpop.xlane.xlu0 %791
        %v793 = vsel %vm768, %v758, 0.0
        %794 = vadd.xlane.f32.xlu0 %v793
        %v795 = vpop.xlane.xlu0 %794
        %v796 = vsel %vm768, %v759, 0.0
        %797 = vadd.xlane.f32.xlu0 %v796
        %v798 = vpop.xlane.xlu0 %797
        %v799 = vsel %vm768, %v760, 0.0
        %800 = vadd.xlane.f32.xlu0 %v799
        %v801 = vpop.xlane.xlu0 %800
        %v802 = vsel %vm768, %v761, 0.0
        %803 = vadd.xlane.f32.xlu0 %v802
        %v804 = vpop.xlane.xlu0 %803
        %v805 = vsel %vm768, %v762, 0.0
        %806 = vadd.xlane.f32.xlu0 %v805
        %v807 = vpop.xlane.xlu0 %806
        %v808 = vsel %vm768, %v763, 0.0
        %809 = vadd.xlane.f32.xlu0 %v808
        %v810 = vpop.xlane.xlu0 %809
        %v811 = vsel %vm768, %v764, 0.0
        %812 = vadd.xlane.f32.xlu0 %v811
        %v813 = vpop.xlane.xlu0 %812
        %v814 = vsel %vm768, %v765, 0.0
        %815 = vadd.xlane.f32.xlu0 %v814
        %v816 = vpop.xlane.xlu0 %815
        %v817 = vmul.f32 %v750, %v750
        %v818 = vmul.f32 %v751, %v751
        %v819 = vmul.f32 %v752, %v752
        %v820 = vmul.f32 %v753, %v753
        %v821 = vmul.f32 %v754, %v754
        %v822 = vmul.f32 %v755, %v755
        %v823 = vmul.f32 %v756, %v756
        %v824 = vmul.f32 %v757, %v757
        %v825 = vmul.f32 %v758, %v758
        %v826 = vmul.f32 %v759, %v759
        %v827 = vmul.f32 %v760, %v760
        %v828 = vmul.f32 %v761, %v761
        %v829 = vmul.f32 %v762, %v762
        %v830 = vmul.f32 %v763, %v763
        %v831 = vmul.f32 %v764, %v764
        %v832 = vmul.f32 %v765, %v765
        %v833 = vsel %vm768, %v817, 0.0
        %834 = vadd.xlane.f32.xlu0 %v833
        %v835 = vpop.xlane.xlu0 %834
        %v836 = vsel %vm768, %v818, 0.0
        %837 = vadd.xlane.f32.xlu0 %v836
        %v838 = vpop.xlane.xlu0 %837
        %v839 = vsel %vm768, %v819, 0.0
        %840 = vadd.xlane.f32.xlu0 %v839
        %v841 = vpop.xlane.xlu0 %840
        %v842 = vsel %vm768, %v820, 0.0
        %843 = vadd.xlane.f32.xlu0 %v842
        %v844 = vpop.xlane.xlu0 %843
        %v845 = vsel %vm768, %v821, 0.0
        %846 = vadd.xlane.f32.xlu0 %v845
        %v847 = vpop.xlane.xlu0 %846
        %v848 = vsel %vm768, %v822, 0.0
        %849 = vadd.xlane.f32.xlu0 %v848
        %v850 = vpop.xlane.xlu0 %849
        %v851 = vsel %vm768, %v823, 0.0
        %852 = vadd.xlane.f32.xlu0 %v851
        %v853 = vpop.xlane.xlu0 %852
        %v854 = vsel %vm768, %v824, 0.0
        %855 = vadd.xlane.f32.xlu0 %v854
        %v856 = vpop.xlane.xlu0 %855
        %v857 = vsel %vm768, %v825, 0.0
        %858 = vadd.xlane.f32.xlu0 %v857
        %v859 = vpop.xlane.xlu0 %858
        %v860 = vsel %vm768, %v826, 0.0
        %861 = vadd.xlane.f32.xlu0 %v860
        %v862 = vpop.xlane.xlu0 %861
        %v863 = vsel %vm768, %v827, 0.0
        %864 = vadd.xlane.f32.xlu0 %v863
        %v865 = vpop.xlane.xlu0 %864
        %v866 = vsel %vm768, %v828, 0.0
        %867 = vadd.xlane.f32.xlu0 %v866
        %v868 = vpop.xlane.xlu0 %867
        %v869 = vsel %vm768, %v829, 0.0
        %870 = vadd.xlane.f32.xlu0 %v869
        %v871 = vpop.xlane.xlu0 %870
        %v872 = vsel %vm768, %v830, 0.0
        %873 = vadd.xlane.f32.xlu0 %v872
        %v874 = vpop.xlane.xlu0 %873
        %v875 = vsel %vm768, %v831, 0.0
        %876 = vadd.xlane.f32.xlu0 %v875
        %v877 = vpop.xlane.xlu0 %876
        %v878 = vsel %vm768, %v832, 0.0
        %879 = vadd.xlane.f32.xlu0 %v878
        %v880 = vpop.xlane.xlu0 %879
        %v881 = vrcp.pop 64.0
        %v882 = vmul.f32 %v771, %v881
        %v883 = vmul.f32 %v774, %v881
        %v884 = vmul.f32 %v777, %v881
        %v885 = vmul.f32 %v780, %v881
        %v886 = vmul.f32 %v783, %v881
        %v887 = vmul.f32 %v786, %v881
        %v888 = vmul.f32 %v789, %v881
        %v889 = vmul.f32 %v792, %v881
        %v890 = vmul.f32 %v795, %v881
        %v891 = vmul.f32 %v798, %v881
        %v892 = vmul.f32 %v801, %v881
        %v893 = vmul.f32 %v804, %v881
        %v894 = vmul.f32 %v807, %v881
        %v895 = vmul.f32 %v810, %v881
        %v896 = vmul.f32 %v813, %v881
        %v897 = vmul.f32 %v816, %v881
        %v898 = vmul.f32 %v835, %v881
        %v899 = vmul.f32 %v838, %v881
        %v900 = vmul.f32 %v841, %v881
        %v901 = vmul.f32 %v844, %v881
        %v902 = vmul.f32 %v847, %v881
        %v903 = vmul.f32 %v850, %v881
        %v904 = vmul.f32 %v853, %v881
        %v905 = vmul.f32 %v856, %v881
        %v906 = vmul.f32 %v859, %v881
        %v907 = vmul.f32 %v862, %v881
        %v908 = vmul.f32 %v865, %v881
        %v909 = vmul.f32 %v868, %v881
        %v910 = vmul.f32 %v871, %v881
        %v911 = vmul.f32 %v874, %v881
        %v912 = vmul.f32 %v877, %v881
        %v913 = vmul.f32 %v880, %v881
        %v914 = vmul.f32 %v882, %v882
        %v915 = vmul.f32 %v883, %v883
        %v916 = vmul.f32 %v884, %v884
        %v917 = vmul.f32 %v885, %v885
        %v918 = vmul.f32 %v886, %v886
        %v919 = vmul.f32 %v887, %v887
        %v920 = vmul.f32 %v888, %v888
        %v921 = vmul.f32 %v889, %v889
        %v922 = vmul.f32 %v890, %v890
        %v923 = vmul.f32 %v891, %v891
        %v924 = vmul.f32 %v892, %v892
        %v925 = vmul.f32 %v893, %v893
        %v926 = vmul.f32 %v894, %v894
        %v927 = vmul.f32 %v895, %v895
        %v928 = vmul.f32 %v896, %v896
        %v929 = vmul.f32 %v897, %v897
        %v930 = vsub.f32 %v898, %v914
        %v931 = vsub.f32 %v899, %v915
        %v932 = vsub.f32 %v900, %v916
        %v933 = vsub.f32 %v901, %v917
        %v934 = vsub.f32 %v902, %v918
        %v935 = vsub.f32 %v903, %v919
        %v936 = vsub.f32 %v904, %v920
        %v937 = vsub.f32 %v905, %v921
        %v938 = vsub.f32 %v906, %v922
        %v939 = vsub.f32 %v907, %v923
        %v940 = vsub.f32 %v908, %v924
        %v941 = vsub.f32 %v909, %v925
        %v942 = vsub.f32 %v910, %v926
        %v943 = vsub.f32 %v911, %v927
        %v944 = vsub.f32 %v912, %v928
        %v945 = vsub.f32 %v913, %v929
        %v946 = vmax.f32 %v930, 0.0
        %v947 = vmax.f32 %v931, 0.0
        %v948 = vmax.f32 %v932, 0.0
        %v949 = vmax.f32 %v933, 0.0
        %v950 = vmax.f32 %v934, 0.0
        %v951 = vmax.f32 %v935, 0.0
        %v952 = vmax.f32 %v936, 0.0
        %v953 = vmax.f32 %v937, 0.0
        %v954 = vmax.f32 %v938, 0.0
        %v955 = vmax.f32 %v939, 0.0
        %v956 = vmax.f32 %v940, 0.0
        %v957 = vmax.f32 %v941, 0.0
        %v958 = vmax.f32 %v942, 0.0
        %v959 = vmax.f32 %v943, 0.0
        %v960 = vmax.f32 %v944, 0.0
        %v961 = vmax.f32 %v945, 0.0
        %v962 = vsub.f32 %v750, %v882
        %v963 = vsub.f32 %v751, %v883
        %v964 = vsub.f32 %v752, %v884
        %v965 = vsub.f32 %v753, %v885
        %v966 = vsub.f32 %v754, %v886
        %v967 = vsub.f32 %v755, %v887
        %v968 = vsub.f32 %v756, %v888
        %v969 = vsub.f32 %v757, %v889
        %v970 = vsub.f32 %v758, %v890
        %v971 = vsub.f32 %v759, %v891
        %v972 = vsub.f32 %v760, %v892
        %v973 = vsub.f32 %v761, %v893
        %v974 = vsub.f32 %v762, %v894
        %v975 = vsub.f32 %v763, %v895
        %v976 = vsub.f32 %v764, %v896
        %v977 = vsub.f32 %v765, %v897
        %v979 = vlaneseq
        %v980 = vshrl.u32 %v979, 7
        %v981 = vsub.s32 0, %v980
        %v982 = vrot.slane %v766, %v981
        %v984 = vmul.f32 %v982, %v962
        %v985 = vmul.f32 %v982, %v963
        %v986 = vmul.f32 %v982, %v964
        %v987 = vmul.f32 %v982, %v965
        %v988 = vmul.f32 %v982, %v966
        %v989 = vmul.f32 %v982, %v967
        %v990 = vmul.f32 %v982, %v968
        %v991 = vmul.f32 %v982, %v969
        %v992 = vmul.f32 %v982, %v970
        %v993 = vmul.f32 %v982, %v971
        %v994 = vmul.f32 %v982, %v972
        %v995 = vmul.f32 %v982, %v973
        %v996 = vmul.f32 %v982, %v974
        %v997 = vmul.f32 %v982, %v975
        %v998 = vmul.f32 %v982, %v976
        %v999 = vmul.f32 %v982, %v977
        %v1000 = vadd.f32 %v946, 1e-08
        %v1001 = vadd.f32 %v947, 1e-08
        %v1002 = vadd.f32 %v948, 1e-08
        %v1003 = vadd.f32 %v949, 1e-08
        %v1004 = vadd.f32 %v950, 1e-08
        %v1005 = vadd.f32 %v951, 1e-08
        %v1006 = vadd.f32 %v952, 1e-08
        %v1007 = vadd.f32 %v953, 1e-08
        %v1008 = vadd.f32 %v954, 1e-08
        %v1009 = vadd.f32 %v955, 1e-08
        %v1010 = vadd.f32 %v956, 1e-08
        %v1011 = vadd.f32 %v957, 1e-08
        %v1012 = vadd.f32 %v958, 1e-08
        %v1013 = vadd.f32 %v959, 1e-08
        %v1014 = vadd.f32 %v960, 1e-08
        %v1015 = vadd.f32 %v961, 1e-08
        %v1016 = vrsqrt.pop %v1000
        %v1017 = vrsqrt.pop %v1001
        %v1018 = vrsqrt.pop %v1002
        %v1019 = vrsqrt.pop %v1003
        %v1020 = vrsqrt.pop %v1004
        %v1021 = vrsqrt.pop %v1005
        %v1022 = vrsqrt.pop %v1006
        %v1023 = vrsqrt.pop %v1007
        %v1024 = vrsqrt.pop %v1008
        %v1025 = vrsqrt.pop %v1009
        %v1026 = vrsqrt.pop %v1010
        %v1027 = vrsqrt.pop %v1011
        %v1028 = vrsqrt.pop %v1012
        %v1029 = vrsqrt.pop %v1013
        %v1030 = vrsqrt.pop %v1014
        %v1031 = vrsqrt.pop %v1015
        %v1032 = vmul.f32 %v984, %v1016
        %v1033 = vmul.f32 %v985, %v1017
        %v1034 = vmul.f32 %v986, %v1018
        %v1035 = vmul.f32 %v987, %v1019
        %v1036 = vmul.f32 %v988, %v1020
        %v1037 = vmul.f32 %v989, %v1021
        %v1038 = vmul.f32 %v990, %v1022
        %v1039 = vmul.f32 %v991, %v1023
        %v1040 = vmul.f32 %v992, %v1024
        %v1041 = vmul.f32 %v993, %v1025
        %v1042 = vmul.f32 %v994, %v1026
        %v1043 = vmul.f32 %v995, %v1027
        %v1044 = vmul.f32 %v996, %v1028
        %v1045 = vmul.f32 %v997, %v1029
        %v1046 = vmul.f32 %v998, %v1030
        %v1047 = vmul.f32 %v999, %v1031
        %v1049 = vlaneseq
        %v1050 = vshrl.u32 %v1049, 7
        %v1051 = vsub.s32 0, %v1050
        %v1052 = vrot.slane %v767, %v1051
        %v1054 = vadd.f32 %v1032, %v1052
        %v1055 = vadd.f32 %v1033, %v1052
        %v1056 = vadd.f32 %v1034, %v1052
        %v1057 = vadd.f32 %v1035, %v1052
        %v1058 = vadd.f32 %v1036, %v1052
        %v1059 = vadd.f32 %v1037, %v1052
        %v1060 = vadd.f32 %v1038, %v1052
        %v1061 = vadd.f32 %v1039, %v1052
        %v1062 = vadd.f32 %v1040, %v1052
        %v1063 = vadd.f32 %v1041, %v1052
        %v1064 = vadd.f32 %v1042, %v1052
        %v1065 = vadd.f32 %v1043, %v1052
        %v1066 = vadd.f32 %v1044, %v1052
        %v1067 = vadd.f32 %v1045, %v1052
        %v1068 = vadd.f32 %v1046, %v1052
        %v1069 = vadd.f32 %v1047, %v1052
        %v1070 = vld [vmem:[#allocation11] sm:$0xf]
        %v1071 = vld [vmem:[#allocation11 + $0x4] sm:$0xf]
        %v1072 = vld [vmem:[#allocation11 + $0x8] sm:$0xf]
        %v1073 = vld [vmem:[#allocation11 + $0xc] sm:$0xf]
        %v1074 = vld [vmem:[#allocation11 + $0x10] sm:$0xf]
        %v1075 = vld [vmem:[#allocation11 + $0x14] sm:$0xf]
        %v1076 = vld [vmem:[#allocation11 + $0x18] sm:$0xf]
        %v1077 = vld [vmem:[#allocation11 + $0x1c] sm:$0xf]
        %v1078 = vpack.c.bf16 %v1055, %v1054
        %v1079 = vpack.c.bf16 %v1057, %v1056
        %v1080 = vpack.c.bf16 %v1059, %v1058
        %v1081 = vpack.c.bf16 %v1061, %v1060
        %v1082 = vpack.c.bf16 %v1063, %v1062
        %v1083 = vpack.c.bf16 %v1065, %v1064
        %v1084 = vpack.c.bf16 %v1067, %v1066
        %v1085 = vpack.c.bf16 %v1069, %v1068
        %v1094 = vunpack.c.l.b16 %v1070
        %v1095 = vunpack.c.l.b16 %v1071
        %v1096 = vunpack.c.l.b16 %v1072
        %v1097 = vunpack.c.l.b16 %v1073
        %v1098 = vunpack.c.l.b16 %v1074
        %v1099 = vunpack.c.l.b16 %v1075
        %v1100 = vunpack.c.l.b16 %v1076
        %v1101 = vunpack.c.l.b16 %v1077
        %v1102 = vpack.c.b16 %v1095, %v1094
        %v1103 = vpack.c.b16 %v1097, %v1096
        %v1104 = vpack.c.b16 %v1099, %v1098
        %v1105 = vpack.c.b16 %v1101, %v1100
        %v1111 = vsel %vm768, %v1078, 0
        %v1114 = vsel %vm768, %v1079, 0
        %v1117 = vsel %vm768, %v1080, 0
        %v1120 = vsel %vm768, %v1081, 0
        %v1123 = vsel %vm768, %v1082, 0
        %v1126 = vsel %vm768, %v1083, 0
        %v1129 = vsel %vm768, %v1084, 0
        %v1132 = vsel %vm768, %v1085, 0
        %1134 = vmatprep.subr.bf16.mxu0 0
        %1135 = vmatpush1.bf16.msra.mxu0 %v1102
        %1136 = vmatprep.subr.bf16.mxu0 0
        %1137 = vmatpush1.bf16.msra.mxu0 %v1103
        %1138 = vmatprep.subr.bf16.mxu0 0
        %1139 = vmatpush1.bf16.msra.mxu0 %v1104
        %1140 = vmatprep.subr.bf16.mxu0 0
        %1141 = vmatpush1.bf16.msra.mxu0 %v1105
        %1142 = vmatprep.subr.bf16.mxu0 0
        %1143 = vmatpush1.bf16.msra.mxu0 0
        %1144 = vmatprep.subr.bf16.mxu0 0
        %1145 = vmatpush1.bf16.msra.mxu0 0
        %1146 = vmatprep.subr.bf16.mxu0 0
        %1147 = vmatpush1.bf16.msra.mxu0 0
        %1148 = vmatprep.subr.bf16.mxu0 0
        %1149 = vmatpush1.bf16.msra.mxu0 0
        %1150 = vmatprep.subr.bf16.mxu0 0
        %1151 = vmatpush1.bf16.msra.mxu0 0
        %1152 = vmatprep.subr.bf16.mxu0 0
        %1153 = vmatpush1.bf16.msra.mxu0 0
        %1154 = vmatprep.subr.bf16.mxu0 0
        %1155 = vmatpush1.bf16.msra.mxu0 0
        %1156 = vmatprep.subr.bf16.mxu0 0
        %1157 = vmatpush1.bf16.msra.mxu0 0
        %1158 = vmatprep.subr.bf16.mxu0 0
        %1159 = vmatpush1.bf16.msra.mxu0 0
        %1160 = vmatprep.subr.bf16.mxu0 0
        %1161 = vmatpush1.bf16.msra.mxu0 0
        %1162 = vmatprep.subr.bf16.mxu0 0
        %1163 = vmatpush1.bf16.msra.mxu0 0
        %1164 = vmatprep.subr.bf16.mxu0 0
        %1165 = vmatpush1.bf16.msra.mxu0 0
        %1166 = vmatprep.mubr.bf16.mxu0 0
        %1167 = vmatmul.mubr.bf16.gmra.mrb[0].mxu0 %v1111
        %v1168 = vpop.f32.mrb[0].mxu0
        %v1169 = vadd.f32 0.0, %v1168
        %v1170 = vpop.f32.mrb[0].mxu0
        %v1171 = vpop.f32.mrb[0].mxu0
        %v1172 = vadd.f32 0.0, %v1171
        %v1173 = vpop.f32.mrb[0].mxu0
        %1174 = vmatprep.mubr.bf16.mxu0 0
        %1175 = vmatmul.mubr.bf16.gmra.mrb[0].mxu0 %v1114
        %v1176 = vpop.f32.mrb[0].mxu0
        %v1177 = vadd.f32 0.0, %v1176
        %v1178 = vpop.f32.mrb[0].mxu0
        %v1179 = vpop.f32.mrb[0].mxu0
        %v1180 = vadd.f32 0.0, %v1179
        %v1181 = vpop.f32.mrb[0].mxu0
        %1182 = vmatprep.mubr.bf16.mxu0 0
        %1183 = vmatmul.mubr.bf16.gmra.mrb[0].mxu0 %v1117
        %v1184 = vpop.f32.mrb[0].mxu0
        %v1185 = vadd.f32 0.0, %v1184
        %v1186 = vpop.f32.mrb[0].mxu0
        %v1187 = vpop.f32.mrb[0].mxu0
        %v1188 = vadd.f32 0.0, %v1187
        %v1189 = vpop.f32.mrb[0].mxu0
        %1190 = vmatprep.mubr.bf16.mxu0 0
        %1191 = vmatmul.mubr.bf16.gmra.mrb[0].mxu0 %v1120
        %v1192 = vpop.f32.mrb[0].mxu0
        %v1193 = vadd.f32 0.0, %v1192
        %v1194 = vpop.f32.mrb[0].mxu0
        %v1195 = vpop.f32.mrb[0].mxu0
        %v1196 = vadd.f32 0.0, %v1195
        %v1197 = vpop.f32.mrb[0].mxu0
        %1198 = vmatprep.mubr.bf16.mxu0 0
        %1199 = vmatmul.mubr.bf16.gmra.mrb[0].mxu0 %v1123
        %v1200 = vpop.f32.mrb[0].mxu0
        %v1201 = vadd.f32 0.0, %v1200
        %v1202 = vpop.f32.mrb[0].mxu0
        %v1203 = vpop.f32.mrb[0].mxu0
        %v1204 = vadd.f32 0.0, %v1203
        %v1205 = vpop.f32.mrb[0].mxu0
        %1206 = vmatprep.mubr.bf16.mxu0 0
        %1207 = vmatmul.mubr.bf16.gmra.mrb[0].mxu0 %v1126
        %v1208 = vpop.f32.mrb[0].mxu0
        %v1209 = vadd.f32 0.0, %v1208
        %v1210 = vpop.f32.mrb[0].mxu0
        %v1211 = vpop.f32.mrb[0].mxu0
        %v1212 = vadd.f32 0.0, %v1211
        %v1213 = vpop.f32.mrb[0].mxu0
        %1214 = vmatprep.mubr.bf16.mxu0 0
        %1215 = vmatmul.mubr.bf16.gmra.mrb[0].mxu0 %v1129
        %v1216 = vpop.f32.mrb[0].mxu0
        %v1217 = vadd.f32 0.0, %v1216
        %v1218 = vpop.f32.mrb[0].mxu0
        %v1219 = vpop.f32.mrb[0].mxu0
        %v1220 = vadd.f32 0.0, %v1219
        %v1221 = vpop.f32.mrb[0].mxu0
        %1222 = vmatprep.mubr.bf16.mxu0 0
        %1223 = vmatmul.mubr.bf16.gmra.mrb[0].mxu0 %v1132
        %v1224 = vpop.f32.mrb[0].mxu0
        %v1225 = vadd.f32 0.0, %v1224
        %v1226 = vpop.f32.mrb[0].mxu0
        %v1227 = vpop.f32.mrb[0].mxu0
        %v1228 = vadd.f32 0.0, %v1227
        %v1229 = vpop.f32.mrb[0].mxu0
        %1230 = vdwg.mxu0
        %v1231 = vld [vmem:[%s743] sm:$0x1]
        %v1232 = vpack.c.bf16 %v1231, %v1231
        %v1233 = vld [vmem:[%s7] sm:$0xf]
        %v1234 = vld [vmem:[%s7 + $0x4] sm:$0xf]
        %v1235 = vld [vmem:[%s7 + $0x8] sm:$0xf]
        %v1236 = vld [vmem:[%s7 + $0xc] sm:$0xf]
        %v1237 = vld [vmem:[%s7 + $0x10] sm:$0xf]
        %v1238 = vld [vmem:[%s7 + $0x14] sm:$0xf]
        %v1239 = vld [vmem:[%s7 + $0x18] sm:$0xf]
        %v1240 = vld [vmem:[%s7 + $0x1c] sm:$0xf]
        %v1241 = vld [vmem:[%s7 + $0x20] sm:$0xf]
        %v1242 = vld [vmem:[%s7 + $0x24] sm:$0xf]
        %v1243 = vld [vmem:[%s7 + $0x28] sm:$0xf]
        %v1244 = vld [vmem:[%s7 + $0x2c] sm:$0xf]
        %v1245 = vld [vmem:[%s7 + $0x30] sm:$0xf]
        %v1246 = vld [vmem:[%s7 + $0x34] sm:$0xf]
        %v1247 = vld [vmem:[%s7 + $0x38] sm:$0xf]
        %v1248 = vld [vmem:[%s7 + $0x3c] sm:$0xf]
        %v1249 = vpack.c.bf16 %v1172, %v1169
        %v1250 = vpack.c.bf16 %v1180, %v1177
        %v1251 = vpack.c.bf16 %v1188, %v1185
        %v1252 = vpack.c.bf16 %v1196, %v1193
        %v1253 = vpack.c.bf16 %v1204, %v1201
        %v1254 = vpack.c.bf16 %v1212, %v1209
        %v1255 = vpack.c.bf16 %v1220, %v1217
        %v1256 = vpack.c.bf16 %v1228, %v1225
        %v1257 = vld [vmem:[%s8] sm:$0xf]
        %v1258 = vld [vmem:[%s8 + $0x4] sm:$0xf]
        %v1259 = vld [vmem:[%s8 + $0x8] sm:$0xf]
        %v1260 = vld [vmem:[%s8 + $0xc] sm:$0xf]
        %v1261 = vld [vmem:[%s8 + $0x10] sm:$0xf]
        %v1262 = vld [vmem:[%s8 + $0x14] sm:$0xf]
        %v1263 = vld [vmem:[%s8 + $0x18] sm:$0xf]
        %v1264 = vld [vmem:[%s8 + $0x1c] sm:$0xf]
        %v1273 = vunpack.c.l.b16 %v1257
        %v1274 = vunpack.c.l.b16 %v1258
        %v1275 = vunpack.c.l.b16 %v1259
        %v1276 = vunpack.c.l.b16 %v1260
        %v1277 = vunpack.c.l.b16 %v1261
        %v1278 = vunpack.c.l.b16 %v1262
        %v1279 = vunpack.c.l.b16 %v1263
        %v1280 = vunpack.c.l.b16 %v1264
        %v1281 = vpack.c.b16 %v1274, %v1273
        %v1282 = vpack.c.b16 %v1276, %v1275
        %v1283 = vpack.c.b16 %v1278, %v1277
        %v1284 = vpack.c.b16 %v1280, %v1279
        %v1290 = vsel %vm768, %v1232, 0
        %1292 = vmatprep.subr.bf16.mxu0 0
        %1293 = vmatpush1.bf16.msra.mxu0 %v1281
        %1294 = vmatprep.subr.bf16.mxu0 0
        %1295 = vmatpush1.bf16.msra.mxu0 %v1282
        %1296 = vmatprep.subr.bf16.mxu0 0
        %1297 = vmatpush1.bf16.msra.mxu0 %v1283
        %1298 = vmatprep.subr.bf16.mxu0 0
        %1299 = vmatpush1.bf16.msra.mxu0 %v1284
        %1300 = vmatprep.subr.bf16.mxu0 0
        %1301 = vmatpush1.bf16.msra.mxu0 0
        %1302 = vmatprep.subr.bf16.mxu0 0
        %1303 = vmatpush1.bf16.msra.mxu0 0
        %1304 = vmatprep.subr.bf16.mxu0 0
        %1305 = vmatpush1.bf16.msra.mxu0 0
        %1306 = vmatprep.subr.bf16.mxu0 0
        %1307 = vmatpush1.bf16.msra.mxu0 0
        %1308 = vmatprep.subr.bf16.mxu0 0
        %1309 = vmatpush1.bf16.msra.mxu0 0
        %1310 = vmatprep.subr.bf16.mxu0 0
        %1311 = vmatpush1.bf16.msra.mxu0 0
        %1312 = vmatprep.subr.bf16.mxu0 0
        %1313 = vmatpush1.bf16.msra.mxu0 0
        %1314 = vmatprep.subr.bf16.mxu0 0
        %1315 = vmatpush1.bf16.msra.mxu0 0
        %1316 = vmatprep.subr.bf16.mxu0 0
        %1317 = vmatpush1.bf16.msra.mxu0 0
        %1318 = vmatprep.subr.bf16.mxu0 0
        %1319 = vmatpush1.bf16.msra.mxu0 0
        %1320 = vmatprep.subr.bf16.mxu0 0
        %1321 = vmatpush1.bf16.msra.mxu0 0
        %1322 = vmatprep.subr.bf16.mxu0 0
        %1323 = vmatpush1.bf16.msra.mxu0 0
        %1324 = vmatprep.mubr.bf16.mxu0 0
        %1325 = vmatmul.mubr.bf16.gmra.mrb[0].mxu0 %v1290
        %v1326 = vpop.f32.mrb[0].mxu0
        %v1327 = vadd.f32 0.0, %v1326
        %v1328 = vpop.f32.mrb[0].mxu0
        %v1329 = vpop.f32.mrb[0].mxu0
        %v1330 = vpop.f32.mrb[0].mxu0
        %1331 = vdwg.mxu0
        %v1332 = vlaneseq
        %v1333 = vshrl.u32 %v1332, 7
        %v1334 = vsub.s32 0, %v1333
        %v1335 = vrot.slane %v1327, %v1334
        %v1352 = vunpack.c.l.b16 %v1233
        %v1353 = vunpack.c.l.b16 %v1234
        %v1354 = vunpack.c.l.b16 %v1235
        %v1355 = vunpack.c.l.b16 %v1236
        %v1356 = vunpack.c.l.b16 %v1237
        %v1357 = vunpack.c.l.b16 %v1238
        %v1358 = vunpack.c.l.b16 %v1239
        %v1359 = vunpack.c.l.b16 %v1240
        %v1360 = vunpack.c.l.b16 %v1241
        %v1361 = vunpack.c.l.b16 %v1242
        %v1362 = vunpack.c.l.b16 %v1243
        %v1363 = vunpack.c.l.b16 %v1244
        %v1364 = vunpack.c.l.b16 %v1245
        %v1365 = vunpack.c.l.b16 %v1246
        %v1366 = vunpack.c.l.b16 %v1247
        %v1367 = vunpack.c.l.b16 %v1248
        %v1368 = vpack.c.b16 %v1353, %v1352
        %v1369 = vpack.c.b16 %v1355, %v1354
        %v1370 = vpack.c.b16 %v1357, %v1356
        %v1371 = vpack.c.b16 %v1359, %v1358
        %v1372 = vpack.c.b16 %v1361, %v1360
        %v1373 = vpack.c.b16 %v1363, %v1362
        %v1374 = vpack.c.b16 %v1365, %v1364
        %v1375 = vpack.c.b16 %v1367, %v1366
        %1384 = vmatprep.subr.bf16.mxu0 0
        %1385 = vmatpush1.bf16.msra.mxu0 %v1368
        %1386 = vmatprep.subr.bf16.mxu0 0
        %1387 = vmatpush1.bf16.msra.mxu0 %v1369
        %1388 = vmatprep.subr.bf16.mxu0 0
        %1389 = vmatpush1.bf16.msra.mxu0 %v1370
        %1390 = vmatprep.subr.bf16.mxu0 0
        %1391 = vmatpush1.bf16.msra.mxu0 %v1371
        %1392 = vmatprep.subr.bf16.mxu0 0
        %1393 = vmatpush1.bf16.msra.mxu0 %v1372
        %1394 = vmatprep.subr.bf16.mxu0 0
        %1395 = vmatpush1.bf16.msra.mxu0 %v1373
        %1396 = vmatprep.subr.bf16.mxu0 0
        %1397 = vmatpush1.bf16.msra.mxu0 %v1374
        %1398 = vmatprep.subr.bf16.mxu0 0
        %1399 = vmatpush1.bf16.msra.mxu0 %v1375
        %1400 = vmatprep.subr.bf16.mxu0 0
        %1401 = vmatpush1.bf16.msra.mxu0 0
        %1402 = vmatprep.subr.bf16.mxu0 0
        %1403 = vmatpush1.bf16.msra.mxu0 0
        %1404 = vmatprep.subr.bf16.mxu0 0
        %1405 = vmatpush1.bf16.msra.mxu0 0
        %1406 = vmatprep.subr.bf16.mxu0 0
        %1407 = vmatpush1.bf16.msra.mxu0 0
        %1408 = vmatprep.subr.bf16.mxu0 0
        %1409 = vmatpush1.bf16.msra.mxu0 0
        %1410 = vmatprep.subr.bf16.mxu0 0
        %1411 = vmatpush1.bf16.msra.mxu0 0
        %1412 = vmatprep.subr.bf16.mxu0 0
        %1413 = vmatpush1.bf16.msra.mxu0 0
        %1414 = vmatprep.subr.bf16.mxu0 0
        %1415 = vmatpush1.bf16.msra.mxu0 0
        %1416 = vmatprep.mubr.bf16.mxu0 0
        %1417 = vmatmul.mubr.bf16.gmra.mrb[0].mxu0 %v1249
        %v1418 = vpop.f32.mrb[0].mxu0
        %v1419 = vadd.f32 %v1335, %v1418
        %v1420 = vpop.f32.mrb[0].mxu0
        %v1421 = vpop.f32.mrb[0].mxu0
        %v1422 = vadd.f32 %v1335, %v1421
        %v1423 = vpop.f32.mrb[0].mxu0
        %1424 = vmatprep.mubr.bf16.mxu0 0
        %1425 = vmatmul.mubr.bf16.gmra.mrb[0].mxu0 %v1250
        %v1426 = vpop.f32.mrb[0].mxu0
        %v1427 = vadd.f32 %v1335, %v1426
        %v1428 = vpop.f32.mrb[0].mxu0
        %v1429 = vpop.f32.mrb[0].mxu0
        %v1430 = vadd.f32 %v1335, %v1429
        %v1431 = vpop.f32.mrb[0].mxu0
        %1432 = vmatprep.mubr.bf16.mxu0 0
        %1433 = vmatmul.mubr.bf16.gmra.mrb[0].mxu0 %v1251
        %v1434 = vpop.f32.mrb[0].mxu0
        %v1435 = vadd.f32 %v1335, %v1434
        %v1436 = vpop.f32.mrb[0].mxu0
        %v1437 = vpop.f32.mrb[0].mxu0
        %v1438 = vadd.f32 %v1335, %v1437
        %v1439 = vpop.f32.mrb[0].mxu0
        %1440 = vmatprep.mubr.bf16.mxu0 0
        %1441 = vmatmul.mubr.bf16.gmra.mrb[0].mxu0 %v1252
        %v1442 = vpop.f32.mrb[0].mxu0
        %v1443 = vadd.f32 %v1335, %v1442
        %v1444 = vpop.f32.mrb[0].mxu0
        %v1445 = vpop.f32.mrb[0].mxu0
        %v1446 = vadd.f32 %v1335, %v1445
        %v1447 = vpop.f32.mrb[0].mxu0
        %1448 = vmatprep.mubr.bf16.mxu0 0
        %1449 = vmatmul.mubr.bf16.gmra.mrb[0].mxu0 %v1253
        %v1450 = vpop.f32.mrb[0].mxu0
        %v1451 = vadd.f32 %v1335, %v1450
        %v1452 = vpop.f32.mrb[0].mxu0
        %v1453 = vpop.f32.mrb[0].mxu0
        %v1454 = vadd.f32 %v1335, %v1453
        %v1455 = vpop.f32.mrb[0].mxu0
        %1456 = vmatprep.mubr.bf16.mxu0 0
        %1457 = vmatmul.mubr.bf16.gmra.mrb[0].mxu0 %v1254
        %v1458 = vpop.f32.mrb[0].mxu0
        %v1459 = vadd.f32 %v1335, %v1458
        %v1460 = vpop.f32.mrb[0].mxu0
        %v1461 = vpop.f32.mrb[0].mxu0
        %v1462 = vadd.f32 %v1335, %v1461
        %v1463 = vpop.f32.mrb[0].mxu0
        %1464 = vmatprep.mubr.bf16.mxu0 0
        %1465 = vmatmul.mubr.bf16.gmra.mrb[0].mxu0 %v1255
        %v1466 = vpop.f32.mrb[0].mxu0
        %v1467 = vadd.f32 %v1335, %v1466
        %v1468 = vpop.f32.mrb[0].mxu0
        %v1469 = vpop.f32.mrb[0].mxu0
        %v1470 = vadd.f32 %v1335, %v1469
        %v1471 = vpop.f32.mrb[0].mxu0
        %1472 = vmatprep.mubr.bf16.mxu0 0
        %1473 = vmatmul.mubr.bf16.gmra.mrb[0].mxu0 %v1256
        %v1474 = vpop.f32.mrb[0].mxu0
        %v1475 = vadd.f32 %v1335, %v1474
        %v1476 = vpop.f32.mrb[0].mxu0
        %v1477 = vpop.f32.mrb[0].mxu0
        %v1478 = vadd.f32 %v1335, %v1477
        %v1479 = vpop.f32.mrb[0].mxu0
        %1480 = vdwg.mxu0
        %v1481 = vld [vmem:[#allocation12] sm:$0x1]
        %v1483 = vlaneseq
        %v1484 = vshrl.u32 %v1483, 7
        %v1485 = vsub.s32 0, %v1484
        %v1486 = vrot.slane %v1481, %v1485
        %v1488 = vadd.f32 %v1419, %v1486
        %v1489 = vadd.f32 %v1422, %v1486
        %v1490 = vadd.f32 %v1427, %v1486
        %v1491 = vadd.f32 %v1430, %v1486
        %v1492 = vadd.f32 %v1435, %v1486
        %v1493 = vadd.f32 %v1438, %v1486
        %v1494 = vadd.f32 %v1443, %v1486
        %v1495 = vadd.f32 %v1446, %v1486
        %v1496 = vadd.f32 %v1451, %v1486
        %v1497 = vadd.f32 %v1454, %v1486
        %v1498 = vadd.f32 %v1459, %v1486
        %v1499 = vadd.f32 %v1462, %v1486
        %v1500 = vadd.f32 %v1467, %v1486
        %v1501 = vadd.f32 %v1470, %v1486
        %v1502 = vadd.f32 %v1475, %v1486
        %v1503 = vadd.f32 %v1478, %v1486
        %v1504 = vld [vmem:[%s10] sm:$0xf]
        %v1505 = vld [vmem:[%s10 + $0x4] sm:$0xf]
        %v1506 = vld [vmem:[%s10 + $0x8] sm:$0xf]
        %v1507 = vld [vmem:[%s10 + $0xc] sm:$0xf]
        %v1508 = vld [vmem:[%s10 + $0x10] sm:$0xf]
        %v1509 = vld [vmem:[%s10 + $0x14] sm:$0xf]
        %v1510 = vld [vmem:[%s10 + $0x18] sm:$0xf]
        %v1511 = vld [vmem:[%s10 + $0x1c] sm:$0xf]
        %v1512 = vld [vmem:[%s10 + $0x20] sm:$0xf]
        %v1513 = vld [vmem:[%s10 + $0x24] sm:$0xf]
        %v1514 = vld [vmem:[%s10 + $0x28] sm:$0xf]
        %v1515 = vld [vmem:[%s10 + $0x2c] sm:$0xf]
        %v1516 = vld [vmem:[%s10 + $0x30] sm:$0xf]
        %v1517 = vld [vmem:[%s10 + $0x34] sm:$0xf]
        %v1518 = vld [vmem:[%s10 + $0x38] sm:$0xf]
        %v1519 = vld [vmem:[%s10 + $0x3c] sm:$0xf]
        %v1520 = vpack.c.bf16 %v1489, %v1488
        %v1521 = vpack.c.bf16 %v1491, %v1490
        %v1522 = vpack.c.bf16 %v1493, %v1492
        %v1523 = vpack.c.bf16 %v1495, %v1494
        %v1524 = vpack.c.bf16 %v1497, %v1496
        %v1525 = vpack.c.bf16 %v1499, %v1498
        %v1526 = vpack.c.bf16 %v1501, %v1500
        %v1527 = vpack.c.bf16 %v1503, %v1502
        %v1544 = vunpack.c.l.b16 %v1504
        %v1545 = vunpack.c.l.b16 %v1505
        %v1546 = vunpack.c.l.b16 %v1506
        %v1547 = vunpack.c.l.b16 %v1507
        %v1548 = vunpack.c.l.b16 %v1508
        %v1549 = vunpack.c.l.b16 %v1509
        %v1550 = vunpack.c.l.b16 %v1510
        %v1551 = vunpack.c.l.b16 %v1511
        %v1552 = vunpack.c.l.b16 %v1512
        %v1553 = vunpack.c.l.b16 %v1513
        %v1554 = vunpack.c.l.b16 %v1514
        %v1555 = vunpack.c.l.b16 %v1515
        %v1556 = vunpack.c.l.b16 %v1516
        %v1557 = vunpack.c.l.b16 %v1517
        %v1558 = vunpack.c.l.b16 %v1518
        %v1559 = vunpack.c.l.b16 %v1519
        %v1560 = vpack.c.b16 %v1545, %v1544
        %v1561 = vpack.c.b16 %v1547, %v1546
        %v1562 = vpack.c.b16 %v1549, %v1548
        %v1563 = vpack.c.b16 %v1551, %v1550
        %v1564 = vpack.c.b16 %v1553, %v1552
        %v1565 = vpack.c.b16 %v1555, %v1554
        %v1566 = vpack.c.b16 %v1557, %v1556
        %v1567 = vpack.c.b16 %v1559, %v1558
        %1576 = vmatprep.subr.bf16.mxu0 0
        %1577 = vmatpush1.bf16.msra.mxu0 %v1560
        %1578 = vmatprep.subr.bf16.mxu0 0
        %1579 = vmatpush1.bf16.msra.mxu0 %v1561
        %1580 = vmatprep.subr.bf16.mxu0 0
        %1581 = vmatpush1.bf16.msra.mxu0 %v1562
        %1582 = vmatprep.subr.bf16.mxu0 0
        %1583 = vmatpush1.bf16.msra.mxu0 %v1563
        %1584 = vmatprep.subr.bf16.mxu0 0
        %1585 = vmatpush1.bf16.msra.mxu0 %v1564
        %1586 = vmatprep.subr.bf16.mxu0 0
        %1587 = vmatpush1.bf16.msra.mxu0 %v1565
        %1588 = vmatprep.subr.bf16.mxu0 0
        %1589 = vmatpush1.bf16.msra.mxu0 %v1566
        %1590 = vmatprep.subr.bf16.mxu0 0
        %1591 = vmatpush1.bf16.msra.mxu0 %v1567
        %1592 = vmatprep.subr.bf16.mxu0 0
        %1593 = vmatpush1.bf16.msra.mxu0 0
        %1594 = vmatprep.subr.bf16.mxu0 0
        %1595 = vmatpush1.bf16.msra.mxu0 0
        %1596 = vmatprep.subr.bf16.mxu0 0
        %1597 = vmatpush1.bf16.msra.mxu0 0
        %1598 = vmatprep.subr.bf16.mxu0 0
        %1599 = vmatpush1.bf16.msra.mxu0 0
        %1600 = vmatprep.subr.bf16.mxu0 0
        %1601 = vmatpush1.bf16.msra.mxu0 0
        %1602 = vmatprep.subr.bf16.mxu0 0
        %1603 = vmatpush1.bf16.msra.mxu0 0
        %1604 = vmatprep.subr.bf16.mxu0 0
        %1605 = vmatpush1.bf16.msra.mxu0 0
        %1606 = vmatprep.subr.bf16.mxu0 0
        %1607 = vmatpush1.bf16.msra.mxu0 0
        %1608 = vmatprep.mubr.bf16.mxu0 0
        %1609 = vmatmul.mubr.bf16.gmra.mrb[0].mxu0 %v1520
        %v1610 = vpop.f32.mrb[0].mxu0
        %v1611 = vadd.f32 0.0, %v1610
        %v1612 = vpop.f32.mrb[0].mxu0
        %v1613 = vpop.f32.mrb[0].mxu0
        %v1614 = vadd.f32 0.0, %v1613
        %v1615 = vpop.f32.mrb[0].mxu0
        %1616 = vmatprep.mubr.bf16.mxu0 0
        %1617 = vmatmul.mubr.bf16.gmra.mrb[0].mxu0 %v1521
        %v1618 = vpop.f32.mrb[0].mxu0
        %v1619 = vadd.f32 0.0, %v1618
        %v1620 = vpop.f32.mrb[0].mxu0
        %v1621 = vpop.f32.mrb[0].mxu0
        %v1622 = vadd.f32 0.0, %v1621
        %v1623 = vpop.f32.mrb[0].mxu0
        %1624 = vmatprep.mubr.bf16.mxu0 0
        %1625 = vmatmul.mubr.bf16.gmra.mrb[0].mxu0 %v1522
        %v1626 = vpop.f32.mrb[0].mxu0
        %v1627 = vadd.f32 0.0, %v1626
        %v1628 = vpop.f32.mrb[0].mxu0
        %v1629 = vpop.f32.mrb[0].mxu0
        %v1630 = vadd.f32 0.0, %v1629
        %v1631 = vpop.f32.mrb[0].mxu0
        %1632 = vmatprep.mubr.bf16.mxu0 0
        %1633 = vmatmul.mubr.bf16.gmra.mrb[0].mxu0 %v1523
        %v1634 = vpop.f32.mrb[0].mxu0
        %v1635 = vadd.f32 0.0, %v1634
        %v1636 = vpop.f32.mrb[0].mxu0
        %v1637 = vpop.f32.mrb[0].mxu0
        %v1638 = vadd.f32 0.0, %v1637
        %v1639 = vpop.f32.mrb[0].mxu0
        %1640 = vmatprep.mubr.bf16.mxu0 0
        %1641 = vmatmul.mubr.bf16.gmra.mrb[0].mxu0 %v1524
        %v1642 = vpop.f32.mrb[0].mxu0
        %v1643 = vadd.f32 0.0, %v1642
        %v1644 = vpop.f32.mrb[0].mxu0
        %v1645 = vpop.f32.mrb[0].mxu0
        %v1646 = vadd.f32 0.0, %v1645
        %v1647 = vpop.f32.mrb[0].mxu0
        %1648 = vmatprep.mubr.bf16.mxu0 0
        %1649 = vmatmul.mubr.bf16.gmra.mrb[0].mxu0 %v1525
        %v1650 = vpop.f32.mrb[0].mxu0
        %v1651 = vadd.f32 0.0, %v1650
        %v1652 = vpop.f32.mrb[0].mxu0
        %v1653 = vpop.f32.mrb[0].mxu0
        %v1654 = vadd.f32 0.0, %v1653
        %v1655 = vpop.f32.mrb[0].mxu0
        %1656 = vmatprep.mubr.bf16.mxu0 0
        %1657 = vmatmul.mubr.bf16.gmra.mrb[0].mxu0 %v1526
        %v1658 = vpop.f32.mrb[0].mxu0
        %v1659 = vadd.f32 0.0, %v1658
        %v1660 = vpop.f32.mrb[0].mxu0
        %v1661 = vpop.f32.mrb[0].mxu0
        %v1662 = vadd.f32 0.0, %v1661
        %v1663 = vpop.f32.mrb[0].mxu0
        %1664 = vmatprep.mubr.bf16.mxu0 0
        %1665 = vmatmul.mubr.bf16.gmra.mrb[0].mxu0 %v1527
        %v1666 = vpop.f32.mrb[0].mxu0
        %v1667 = vadd.f32 0.0, %v1666
        %v1668 = vpop.f32.mrb[0].mxu0
        %v1669 = vpop.f32.mrb[0].mxu0
        %v1670 = vadd.f32 0.0, %v1669
        %v1671 = vpop.f32.mrb[0].mxu0
        %1672 = vdwg.mxu0
        %s1673 = sld [smem:[#allocation3]]
        %vm1674 = vcmp.ge.f32.partialorder %v1611, 0.0
        %vm1675 = vcmp.ge.f32.partialorder %v1614, 0.0
        %vm1676 = vcmp.ge.f32.partialorder %v1619, 0.0
        %vm1677 = vcmp.ge.f32.partialorder %v1622, 0.0
        %vm1678 = vcmp.ge.f32.partialorder %v1627, 0.0
        %vm1679 = vcmp.ge.f32.partialorder %v1630, 0.0
        %vm1680 = vcmp.ge.f32.partialorder %v1635, 0.0
        %vm1681 = vcmp.ge.f32.partialorder %v1638, 0.0
        %vm1682 = vcmp.ge.f32.partialorder %v1643, 0.0
        %vm1683 = vcmp.ge.f32.partialorder %v1646, 0.0
        %vm1684 = vcmp.ge.f32.partialorder %v1651, 0.0
        %vm1685 = vcmp.ge.f32.partialorder %v1654, 0.0
        %vm1686 = vcmp.ge.f32.partialorder %v1659, 0.0
        %vm1687 = vcmp.ge.f32.partialorder %v1662, 0.0
        %vm1688 = vcmp.ge.f32.partialorder %v1667, 0.0
        %vm1689 = vcmp.ge.f32.partialorder %v1670, 0.0
        %v1690 = vstv %s1673
        %v1691 = vmul.f32 %v1690, %v1611
        %v1692 = vmul.f32 %v1690, %v1614
        %v1693 = vmul.f32 %v1690, %v1619
        %v1694 = vmul.f32 %v1690, %v1622
        %v1695 = vmul.f32 %v1690, %v1627
        %v1696 = vmul.f32 %v1690, %v1630
        %v1697 = vmul.f32 %v1690, %v1635
        %v1698 = vmul.f32 %v1690, %v1638
        %v1699 = vmul.f32 %v1690, %v1643
        %v1700 = vmul.f32 %v1690, %v1646
        %v1701 = vmul.f32 %v1690, %v1651
        %v1702 = vmul.f32 %v1690, %v1654
        %v1703 = vmul.f32 %v1690, %v1659
        %v1704 = vmul.f32 %v1690, %v1662
        %v1705 = vmul.f32 %v1690, %v1667
        %v1706 = vmul.f32 %v1690, %v1670
        %v1707 = vsel %vm1674, %v1611, %v1691
        %v1708 = vsel %vm1675, %v1614, %v1692
        %v1709 = vsel %vm1676, %v1619, %v1693
        %v1710 = vsel %vm1677, %v1622, %v1694
        %v1711 = vsel %vm1678, %v1627, %v1695
        %v1712 = vsel %vm1679, %v1630, %v1696
        %v1713 = vsel %vm1680, %v1635, %v1697
        %v1714 = vsel %vm1681, %v1638, %v1698
        %v1715 = vsel %vm1682, %v1643, %v1699
        %v1716 = vsel %vm1683, %v1646, %v1700
        %v1717 = vsel %vm1684, %v1651, %v1701
        %v1718 = vsel %vm1685, %v1654, %v1702
        %v1719 = vsel %vm1686, %v1659, %v1703
        %v1720 = vsel %vm1687, %v1662, %v1704
        %v1721 = vsel %vm1688, %v1667, %v1705
        %v1722 = vsel %vm1689, %v1670, %v1706
        %v1723 = vld [vmem:[#allocation14] sm:$0x1]
        %v1724 = vld [vmem:[#allocation15] sm:$0x1]
        %v1725 = vadd.f32 %v1707, %v1708
        %v1726 = vadd.f32 %v1725, %v1709
        %v1727 = vadd.f32 %v1726, %v1710
        %v1728 = vadd.f32 %v1727, %v1711
        %v1729 = vadd.f32 %v1728, %v1712
        %v1730 = vadd.f32 %v1729, %v1713
        %v1731 = vadd.f32 %v1730, %v1714
        %v1732 = vadd.f32 %v1731, %v1715
        %v1733 = vadd.f32 %v1732, %v1716
        %v1734 = vadd.f32 %v1733, %v1717
        %v1735 = vadd.f32 %v1734, %v1718
        %v1736 = vadd.f32 %v1735, %v1719
        %v1737 = vadd.f32 %v1736, %v1720
        %v1738 = vadd.f32 %v1737, %v1721
        %v1739 = vadd.f32 %v1738, %v1722
        %1740 = vadd.xlane.f32.xlu0 %v1739
        %v1741 = vpop.xlane.xlu0 %1740
        %v1742 = vrot.slane %v1741, 4
        %v1743 = vadd.f32 %v1741, %v1742
        %v1744 = vrot.slane %v1743, 2
        %v1745 = vadd.f32 %v1743, %v1744
        %v1746 = vrot.slane %v1745, 1
        %v1747 = vadd.f32 %v1745, %v1746
        %s1748 = vtos %v1747
        %v1749 = vstv %s1748
        %v1750 = vmul.f32 %v1707, %v1707
        %v1751 = vmul.f32 %v1708, %v1708
        %v1752 = vmul.f32 %v1709, %v1709
        %v1753 = vmul.f32 %v1710, %v1710
        %v1754 = vmul.f32 %v1711, %v1711
        %v1755 = vmul.f32 %v1712, %v1712
        %v1756 = vmul.f32 %v1713, %v1713
        %v1757 = vmul.f32 %v1714, %v1714
        %v1758 = vmul.f32 %v1715, %v1715
        %v1759 = vmul.f32 %v1716, %v1716
        %v1760 = vmul.f32 %v1717, %v1717
        %v1761 = vmul.f32 %v1718, %v1718
        %v1762 = vmul.f32 %v1719, %v1719
        %v1763 = vmul.f32 %v1720, %v1720
        %v1764 = vmul.f32 %v1721, %v1721
        %v1765 = vmul.f32 %v1722, %v1722
        %v1766 = vadd.f32 %v1750, %v1751
        %v1767 = vadd.f32 %v1766, %v1752
        %v1768 = vadd.f32 %v1767, %v1753
        %v1769 = vadd.f32 %v1768, %v1754
        %v1770 = vadd.f32 %v1769, %v1755
        %v1771 = vadd.f32 %v1770, %v1756
        %v1772 = vadd.f32 %v1771, %v1757
        %v1773 = vadd.f32 %v1772, %v1758
        %v1774 = vadd.f32 %v1773, %v1759
        %v1775 = vadd.f32 %v1774, %v1760
        %v1776 = vadd.f32 %v1775, %v1761
        %v1777 = vadd.f32 %v1776, %v1762
        %v1778 = vadd.f32 %v1777, %v1763
        %v1779 = vadd.f32 %v1778, %v1764
        %v1780 = vadd.f32 %v1779, %v1765
        %1781 = vadd.xlane.f32.xlu0 %v1780
        %v1782 = vpop.xlane.xlu0 %1781
        %v1783 = vrot.slane %v1782, 4
        %v1784 = vadd.f32 %v1782, %v1783
        %v1785 = vrot.slane %v1784, 2
        %v1786 = vadd.f32 %v1784, %v1785
        %v1787 = vrot.slane %v1786, 1
        %v1788 = vadd.f32 %v1786, %v1787
        %s1789 = vtos %v1788
        %v1790 = vstv %s1789
        %v1791 = vrcp.pop 16384.0
        %v1792 = vmul.f32 %v1749, %v1791
        %v1793 = vmul.f32 %v1790, %v1791
        %v1794 = vmul.f32 %v1792, %v1792
        %v1795 = vsub.f32 %v1793, %v1794
        %v1796 = vmax.f32 %v1795, 0.0
        %v1797 = vsub.f32 %v1707, %v1792
        %v1798 = vsub.f32 %v1708, %v1792
        %v1799 = vsub.f32 %v1709, %v1792
        %v1800 = vsub.f32 %v1710, %v1792
        %v1801 = vsub.f32 %v1711, %v1792
        %v1802 = vsub.f32 %v1712, %v1792
        %v1803 = vsub.f32 %v1713, %v1792
        %v1804 = vsub.f32 %v1714, %v1792
        %v1805 = vsub.f32 %v1715, %v1792
        %v1806 = vsub.f32 %v1716, %v1792
        %v1807 = vsub.f32 %v1717, %v1792
        %v1808 = vsub.f32 %v1718, %v1792
        %v1809 = vsub.f32 %v1719, %v1792
        %v1810 = vsub.f32 %v1720, %v1792
        %v1811 = vsub.f32 %v1721, %v1792
        %v1812 = vsub.f32 %v1722, %v1792
        %v1813 = vlaneseq
        %v1814 = vshrl.u32 %v1813, 7
        %v1815 = vsub.s32 0, %v1814
        %v1816 = vrot.slane %v1723, %v1815
        %v1817 = vmul.f32 %v1816, %v1797
        %v1818 = vmul.f32 %v1816, %v1798
        %v1819 = vmul.f32 %v1816, %v1799
        %v1820 = vmul.f32 %v1816, %v1800
        %v1821 = vmul.f32 %v1816, %v1801
        %v1822 = vmul.f32 %v1816, %v1802
        %v1823 = vmul.f32 %v1816, %v1803
        %v1824 = vmul.f32 %v1816, %v1804
        %v1825 = vmul.f32 %v1816, %v1805
        %v1826 = vmul.f32 %v1816, %v1806
        %v1827 = vmul.f32 %v1816, %v1807
        %v1828 = vmul.f32 %v1816, %v1808
        %v1829 = vmul.f32 %v1816, %v1809
        %v1830 = vmul.f32 %v1816, %v1810
        %v1831 = vmul.f32 %v1816, %v1811
        %v1832 = vmul.f32 %v1816, %v1812
        %v1833 = vadd.f32 %v1796, 1e-08
        %v1834 = vrsqrt.pop %v1833
        %v1835 = vmul.f32 %v1817, %v1834
        %v1836 = vmul.f32 %v1818, %v1834
        %v1837 = vmul.f32 %v1819, %v1834
        %v1838 = vmul.f32 %v1820, %v1834
        %v1839 = vmul.f32 %v1821, %v1834
        %v1840 = vmul.f32 %v1822, %v1834
        %v1841 = vmul.f32 %v1823, %v1834
        %v1842 = vmul.f32 %v1824, %v1834
        %v1843 = vmul.f32 %v1825, %v1834
        %v1844 = vmul.f32 %v1826, %v1834
        %v1845 = vmul.f32 %v1827, %v1834
        %v1846 = vmul.f32 %v1828, %v1834
        %v1847 = vmul.f32 %v1829, %v1834
        %v1848 = vmul.f32 %v1830, %v1834
        %v1849 = vmul.f32 %v1831, %v1834
        %v1850 = vmul.f32 %v1832, %v1834
        %v1851 = vlaneseq
        %v1852 = vshrl.u32 %v1851, 7
        %v1853 = vsub.s32 0, %v1852
        %v1854 = vrot.slane %v1724, %v1853
        %v1855 = vadd.f32 %v1835, %v1854
        %v1856 = vadd.f32 %v1836, %v1854
        %v1857 = vadd.f32 %v1837, %v1854
        %v1858 = vadd.f32 %v1838, %v1854
        %v1859 = vadd.f32 %v1839, %v1854
        %v1860 = vadd.f32 %v1840, %v1854
        %v1861 = vadd.f32 %v1841, %v1854
        %v1862 = vadd.f32 %v1842, %v1854
        %v1863 = vadd.f32 %v1843, %v1854
        %v1864 = vadd.f32 %v1844, %v1854
        %v1865 = vadd.f32 %v1845, %v1854
        %v1866 = vadd.f32 %v1846, %v1854
        %v1867 = vadd.f32 %v1847, %v1854
        %v1868 = vadd.f32 %v1848, %v1854
        %v1869 = vadd.f32 %v1849, %v1854
        %v1870 = vadd.f32 %v1850, %v1854
        %1871 = vst [vmem:[#allocation2 + $0x1] sm:$0xff] %v1855
        %1872 = vst [vmem:[#allocation2 + $0x9] sm:$0xff] %v1856
        %1873 = vst [vmem:[#allocation2 + $0x11] sm:$0xff] %v1857
        %1874 = vst [vmem:[#allocation2 + $0x19] sm:$0xff] %v1858
        %1875 = vst [vmem:[#allocation2 + $0x21] sm:$0xff] %v1859
        %1876 = vst [vmem:[#allocation2 + $0x29] sm:$0xff] %v1860
        %1877 = vst [vmem:[#allocation2 + $0x31] sm:$0xff] %v1861
        %1878 = vst [vmem:[#allocation2 + $0x39] sm:$0xff] %v1862
        %1879 = vst [vmem:[#allocation2 + $0x41] sm:$0xff] %v1863
        %1880 = vst [vmem:[#allocation2 + $0x49] sm:$0xff] %v1864
        %1881 = vst [vmem:[#allocation2 + $0x51] sm:$0xff] %v1865
        %1882 = vst [vmem:[#allocation2 + $0x59] sm:$0xff] %v1866
        %1883 = vst [vmem:[#allocation2 + $0x61] sm:$0xff] %v1867
        %1884 = vst [vmem:[#allocation2 + $0x69] sm:$0xff] %v1868
        %1885 = vst [vmem:[#allocation2 + $0x71] sm:$0xff] %v1869
        %1886 = vst [vmem:[#allocation2 + $0x79] sm:$0xff] %v1870
        %1887 = vst [vmem:[#allocation2 - $0x1] sm:$0x2] %v1855
        %1888 = vst [vmem:[#allocation2 + $0x7b] sm:$0x40] %v1870
        %v1889 = vld [vmem:[%s13] sm:$0x7]
        %v1890 = vld [vmem:[#allocation2] sm:$0xff]
        %v1891 = vld [vmem:[#allocation2 + $0x8] sm:$0xff]
        %v1892 = vld [vmem:[#allocation2 + $0x10] sm:$0xff]
        %v1893 = vld [vmem:[#allocation2 + $0x18] sm:$0xff]
        %v1894 = vld [vmem:[#allocation2 + $0x20] sm:$0xff]
        %v1895 = vld [vmem:[#allocation2 + $0x28] sm:$0xff]
        %v1896 = vld [vmem:[#allocation2 + $0x30] sm:$0xff]
        %v1897 = vld [vmem:[#allocation2 + $0x38] sm:$0xff]
        %v1898 = vld [vmem:[#allocation2 + $0x40] sm:$0xff]
        %v1899 = vld [vmem:[#allocation2 + $0x48] sm:$0xff]
        %v1900 = vld [vmem:[#allocation2 + $0x50] sm:$0xff]
        %v1901 = vld [vmem:[#allocation2 + $0x58] sm:$0xff]
        %v1902 = vld [vmem:[#allocation2 + $0x60] sm:$0xff]
        %v1903 = vld [vmem:[#allocation2 + $0x68] sm:$0xff]
        %v1904 = vld [vmem:[#allocation2 + $0x70] sm:$0xff]
        %v1905 = vld [vmem:[#allocation2 + $0x78] sm:$0xff]
        %v1906 = vlaneseq
        %v1907 = vshrl.u32 %v1906, 7
        %v1908 = vsub.s32 0, %v1907
        %v1909 = vrot.slane %v1889, %v1908
        %v1910 = vmul.f32 %v1890, %v1909
        %v1911 = vmul.f32 %v1891, %v1909
        %v1912 = vmul.f32 %v1892, %v1909
        %v1913 = vmul.f32 %v1893, %v1909
        %v1914 = vmul.f32 %v1894, %v1909
        %v1915 = vmul.f32 %v1895, %v1909
        %v1916 = vmul.f32 %v1896, %v1909
        %v1917 = vmul.f32 %v1897, %v1909
        %v1918 = vmul.f32 %v1898, %v1909
        %v1919 = vmul.f32 %v1899, %v1909
        %v1920 = vmul.f32 %v1900, %v1909
        %v1921 = vmul.f32 %v1901, %v1909
        %v1922 = vmul.f32 %v1902, %v1909
        %v1923 = vmul.f32 %v1903, %v1909
        %v1924 = vmul.f32 %v1904, %v1909
        %v1925 = vmul.f32 %v1905, %v1909
        %v1926 = vld [vmem:[#allocation2 + $0x1] sm:$0xff]
        %v1927 = vld [vmem:[#allocation2 + $0x9] sm:$0xff]
        %v1928 = vld [vmem:[#allocation2 + $0x11] sm:$0xff]
        %v1929 = vld [vmem:[#allocation2 + $0x19] sm:$0xff]
        %v1930 = vld [vmem:[#allocation2 + $0x21] sm:$0xff]
        %v1931 = vld [vmem:[#allocation2 + $0x29] sm:$0xff]
        %v1932 = vld [vmem:[#allocation2 + $0x31] sm:$0xff]
        %v1933 = vld [vmem:[#allocation2 + $0x39] sm:$0xff]
        %v1934 = vld [vmem:[#allocation2 + $0x41] sm:$0xff]
        %v1935 = vld [vmem:[#allocation2 + $0x49] sm:$0xff]
        %v1936 = vld [vmem:[#allocation2 + $0x51] sm:$0xff]
        %v1937 = vld [vmem:[#allocation2 + $0x59] sm:$0xff]
        %v1938 = vld [vmem:[#allocation2 + $0x61] sm:$0xff]
        %v1939 = vld [vmem:[#allocation2 + $0x69] sm:$0xff]
        %v1940 = vld [vmem:[#allocation2 + $0x71] sm:$0xff]
        %v1941 = vld [vmem:[#allocation2 + $0x79] sm:$0xff]
        %v1942 = vlaneseq
        %v1943 = vshrl.u32 %v1942, 7
        %v1944 = vsub.s32 1, %v1943
        %v1945 = vrot.slane %v1889, %v1944
        %v1946 = vmul.f32 %v1926, %v1945
        %v1947 = vmul.f32 %v1927, %v1945
        %v1948 = vmul.f32 %v1928, %v1945
        %v1949 = vmul.f32 %v1929, %v1945
        %v1950 = vmul.f32 %v1930, %v1945
        %v1951 = vmul.f32 %v1931, %v1945
        %v1952 = vmul.f32 %v1932, %v1945
        %v1953 = vmul.f32 %v1933, %v1945
        %v1954 = vmul.f32 %v1934, %v1945
        %v1955 = vmul.f32 %v1935, %v1945
        %v1956 = vmul.f32 %v1936, %v1945
        %v1957 = vmul.f32 %v1937, %v1945
        %v1958 = vmul.f32 %v1938, %v1945
        %v1959 = vmul.f32 %v1939, %v1945
        %v1960 = vmul.f32 %v1940, %v1945
        %v1961 = vmul.f32 %v1941, %v1945
        %v1962 = vadd.f32 %v1910, %v1946
        %v1963 = vadd.f32 %v1911, %v1947
        %v1964 = vadd.f32 %v1912, %v1948
        %v1965 = vadd.f32 %v1913, %v1949
        %v1966 = vadd.f32 %v1914, %v1950
        %v1967 = vadd.f32 %v1915, %v1951
        %v1968 = vadd.f32 %v1916, %v1952
        %v1969 = vadd.f32 %v1917, %v1953
        %v1970 = vadd.f32 %v1918, %v1954
        %v1971 = vadd.f32 %v1919, %v1955
        %v1972 = vadd.f32 %v1920, %v1956
        %v1973 = vadd.f32 %v1921, %v1957
        %v1974 = vadd.f32 %v1922, %v1958
        %v1975 = vadd.f32 %v1923, %v1959
        %v1976 = vadd.f32 %v1924, %v1960
        %v1977 = vadd.f32 %v1925, %v1961
        %v1978 = vld [vmem:[#allocation2 + $0x2] sm:$0xff]
        %v1979 = vld [vmem:[#allocation2 + $0xa] sm:$0xff]
        %v1980 = vld [vmem:[#allocation2 + $0x12] sm:$0xff]
        %v1981 = vld [vmem:[#allocation2 + $0x1a] sm:$0xff]
        %v1982 = vld [vmem:[#allocation2 + $0x22] sm:$0xff]
        %v1983 = vld [vmem:[#allocation2 + $0x2a] sm:$0xff]
        %v1984 = vld [vmem:[#allocation2 + $0x32] sm:$0xff]
        %v1985 = vld [vmem:[#allocation2 + $0x3a] sm:$0xff]
        %v1986 = vld [vmem:[#allocation2 + $0x42] sm:$0xff]
        %v1987 = vld [vmem:[#allocation2 + $0x4a] sm:$0xff]
        %v1988 = vld [vmem:[#allocation2 + $0x52] sm:$0xff]
        %v1989 = vld [vmem:[#allocation2 + $0x5a] sm:$0xff]
        %v1990 = vld [vmem:[#allocation2 + $0x62] sm:$0xff]
        %v1991 = vld [vmem:[#allocation2 + $0x6a] sm:$0xff]
        %v1992 = vld [vmem:[#allocation2 + $0x72] sm:$0xff]
        %v1993 = vld [vmem:[#allocation2 + $0x7a] sm:$0xff]
        %v1994 = vlaneseq
        %v1995 = vshrl.u32 %v1994, 7
        %v1996 = vsub.s32 2, %v1995
        %v1997 = vrot.slane %v1889, %v1996
        %v1998 = vmul.f32 %v1978, %v1997
        %v1999 = vmul.f32 %v1979, %v1997
        %v2000 = vmul.f32 %v1980, %v1997
        %v2001 = vmul.f32 %v1981, %v1997
        %v2002 = vmul.f32 %v1982, %v1997
        %v2003 = vmul.f32 %v1983, %v1997
        %v2004 = vmul.f32 %v1984, %v1997
        %v2005 = vmul.f32 %v1985, %v1997
        %v2006 = vmul.f32 %v1986, %v1997
        %v2007 = vmul.f32 %v1987, %v1997
        %v2008 = vmul.f32 %v1988, %v1997
        %v2009 = vmul.f32 %v1989, %v1997
        %v2010 = vmul.f32 %v1990, %v1997
        %v2011 = vmul.f32 %v1991, %v1997
        %v2012 = vmul.f32 %v1992, %v1997
        %v2013 = vmul.f32 %v1993, %v1997
        %v2014 = vadd.f32 %v1962, %v1998
        %v2015 = vadd.f32 %v1963, %v1999
        %v2016 = vadd.f32 %v1964, %v2000
        %v2017 = vadd.f32 %v1965, %v2001
        %v2018 = vadd.f32 %v1966, %v2002
        %v2019 = vadd.f32 %v1967, %v2003
        %v2020 = vadd.f32 %v1968, %v2004
        %v2021 = vadd.f32 %v1969, %v2005
        %v2022 = vadd.f32 %v1970, %v2006
        %v2023 = vadd.f32 %v1971, %v2007
        %v2024 = vadd.f32 %v1972, %v2008
        %v2025 = vadd.f32 %v1973, %v2009
        %v2026 = vadd.f32 %v1974, %v2010
        %v2027 = vadd.f32 %v1975, %v2011
        %v2028 = vadd.f32 %v1976, %v2012
        %v2029 = vadd.f32 %v1977, %v2013
        %s2030 = sld [smem:[#allocation7]]
        %vm2031 = vcmp.ge.f32.partialorder %v2014, 0.0
        %vm2032 = vcmp.ge.f32.partialorder %v2015, 0.0
        %vm2033 = vcmp.ge.f32.partialorder %v2016, 0.0
        %vm2034 = vcmp.ge.f32.partialorder %v2017, 0.0
        %vm2035 = vcmp.ge.f32.partialorder %v2018, 0.0
        %vm2036 = vcmp.ge.f32.partialorder %v2019, 0.0
        %vm2037 = vcmp.ge.f32.partialorder %v2020, 0.0
        %vm2038 = vcmp.ge.f32.partialorder %v2021, 0.0
        %vm2039 = vcmp.ge.f32.partialorder %v2022, 0.0
        %vm2040 = vcmp.ge.f32.partialorder %v2023, 0.0
        %vm2041 = vcmp.ge.f32.partialorder %v2024, 0.0
        %vm2042 = vcmp.ge.f32.partialorder %v2025, 0.0
        %vm2043 = vcmp.ge.f32.partialorder %v2026, 0.0
        %vm2044 = vcmp.ge.f32.partialorder %v2027, 0.0
        %vm2045 = vcmp.ge.f32.partialorder %v2028, 0.0
        %vm2046 = vcmp.ge.f32.partialorder %v2029, 0.0
        %v2047 = vstv %s2030
        %v2048 = vmul.f32 %v2047, %v2014
        %v2049 = vmul.f32 %v2047, %v2015
        %v2050 = vmul.f32 %v2047, %v2016
        %v2051 = vmul.f32 %v2047, %v2017
        %v2052 = vmul.f32 %v2047, %v2018
        %v2053 = vmul.f32 %v2047, %v2019
        %v2054 = vmul.f32 %v2047, %v2020
        %v2055 = vmul.f32 %v2047, %v2021
        %v2056 = vmul.f32 %v2047, %v2022
        %v2057 = vmul.f32 %v2047, %v2023
        %v2058 = vmul.f32 %v2047, %v2024
        %v2059 = vmul.f32 %v2047, %v2025
        %v2060 = vmul.f32 %v2047, %v2026
        %v2061 = vmul.f32 %v2047, %v2027
        %v2062 = vmul.f32 %v2047, %v2028
        %v2063 = vmul.f32 %v2047, %v2029
        %v2064 = vsel %vm2031, %v2014, %v2048
        %v2065 = vsel %vm2032, %v2015, %v2049
        %v2066 = vsel %vm2033, %v2016, %v2050
        %v2067 = vsel %vm2034, %v2017, %v2051
        %v2068 = vsel %vm2035, %v2018, %v2052
        %v2069 = vsel %vm2036, %v2019, %v2053
        %v2070 = vsel %vm2037, %v2020, %v2054
        %v2071 = vsel %vm2038, %v2021, %v2055
        %v2072 = vsel %vm2039, %v2022, %v2056
        %v2073 = vsel %vm2040, %v2023, %v2057
        %v2074 = vsel %vm2041, %v2024, %v2058
        %v2075 = vsel %vm2042, %v2025, %v2059
        %v2076 = vsel %vm2043, %v2026, %v2060
        %v2077 = vsel %vm2044, %v2027, %v2061
        %v2078 = vsel %vm2045, %v2028, %v2062
        %v2079 = vsel %vm2046, %v2029, %v2063
        %v2080 = vld [vmem:[#allocation17] sm:$0x1]
        %v2081 = vld [vmem:[#allocation18] sm:$0x1]
        %v2082 = vadd.f32 %v2064, %v2065
        %v2083 = vadd.f32 %v2082, %v2066
        %v2084 = vadd.f32 %v2083, %v2067
        %v2085 = vadd.f32 %v2084, %v2068
        %v2086 = vadd.f32 %v2085, %v2069
        %v2087 = vadd.f32 %v2086, %v2070
        %v2088 = vadd.f32 %v2087, %v2071
        %v2089 = vadd.f32 %v2088, %v2072
        %v2090 = vadd.f32 %v2089, %v2073
        %v2091 = vadd.f32 %v2090, %v2074
        %v2092 = vadd.f32 %v2091, %v2075
        %v2093 = vadd.f32 %v2092, %v2076
        %v2094 = vadd.f32 %v2093, %v2077
        %v2095 = vadd.f32 %v2094, %v2078
        %v2096 = vadd.f32 %v2095, %v2079
        %2097 = vadd.xlane.f32.xlu0 %v2096
        %v2098 = vpop.xlane.xlu0 %2097
        %v2099 = vrot.slane %v2098, 4
        %v2100 = vadd.f32 %v2098, %v2099
        %v2101 = vrot.slane %v2100, 2
        %v2102 = vadd.f32 %v2100, %v2101
        %v2103 = vrot.slane %v2102, 1
        %v2104 = vadd.f32 %v2102, %v2103
        %s2105 = vtos %v2104
        %v2106 = vstv %s2105
        %v2107 = vmul.f32 %v2064, %v2064
        %v2108 = vmul.f32 %v2065, %v2065
        %v2109 = vmul.f32 %v2066, %v2066
        %v2110 = vmul.f32 %v2067, %v2067
        %v2111 = vmul.f32 %v2068, %v2068
        %v2112 = vmul.f32 %v2069, %v2069
        %v2113 = vmul.f32 %v2070, %v2070
        %v2114 = vmul.f32 %v2071, %v2071
        %v2115 = vmul.f32 %v2072, %v2072
        %v2116 = vmul.f32 %v2073, %v2073
        %v2117 = vmul.f32 %v2074, %v2074
        %v2118 = vmul.f32 %v2075, %v2075
        %v2119 = vmul.f32 %v2076, %v2076
        %v2120 = vmul.f32 %v2077, %v2077
        %v2121 = vmul.f32 %v2078, %v2078
        %v2122 = vmul.f32 %v2079, %v2079
        %v2123 = vadd.f32 %v2107, %v2108
        %v2124 = vadd.f32 %v2123, %v2109
        %v2125 = vadd.f32 %v2124, %v2110
        %v2126 = vadd.f32 %v2125, %v2111
        %v2127 = vadd.f32 %v2126, %v2112
        %v2128 = vadd.f32 %v2127, %v2113
        %v2129 = vadd.f32 %v2128, %v2114
        %v2130 = vadd.f32 %v2129, %v2115
        %v2131 = vadd.f32 %v2130, %v2116
        %v2132 = vadd.f32 %v2131, %v2117
        %v2133 = vadd.f32 %v2132, %v2118
        %v2134 = vadd.f32 %v2133, %v2119
        %v2135 = vadd.f32 %v2134, %v2120
        %v2136 = vadd.f32 %v2135, %v2121
        %v2137 = vadd.f32 %v2136, %v2122
        %2138 = vadd.xlane.f32.xlu0 %v2137
        %v2139 = vpop.xlane.xlu0 %2138
        %v2140 = vrot.slane %v2139, 4
        %v2141 = vadd.f32 %v2139, %v2140
        %v2142 = vrot.slane %v2141, 2
        %v2143 = vadd.f32 %v2141, %v2142
        %v2144 = vrot.slane %v2143, 1
        %v2145 = vadd.f32 %v2143, %v2144
        %s2146 = vtos %v2145
        %v2147 = vstv %s2146
        %v2148 = vmul.f32 %v2106, %v1791
        %v2149 = vmul.f32 %v2147, %v1791
        %v2150 = vmul.f32 %v2148, %v2148
        %v2151 = vsub.f32 %v2149, %v2150
        %v2152 = vmax.f32 %v2151, 0.0
        %v2153 = vsub.f32 %v2064, %v2148
        %v2154 = vsub.f32 %v2065, %v2148
        %v2155 = vsub.f32 %v2066, %v2148
        %v2156 = vsub.f32 %v2067, %v2148
        %v2157 = vsub.f32 %v2068, %v2148
        %v2158 = vsub.f32 %v2069, %v2148
        %v2159 = vsub.f32 %v2070, %v2148
        %v2160 = vsub.f32 %v2071, %v2148
        %v2161 = vsub.f32 %v2072, %v2148
        %v2162 = vsub.f32 %v2073, %v2148
        %v2163 = vsub.f32 %v2074, %v2148
        %v2164 = vsub.f32 %v2075, %v2148
        %v2165 = vsub.f32 %v2076, %v2148
        %v2166 = vsub.f32 %v2077, %v2148
        %v2167 = vsub.f32 %v2078, %v2148
        %v2168 = vsub.f32 %v2079, %v2148
        %v2169 = vlaneseq
        %v2170 = vshrl.u32 %v2169, 7
        %v2171 = vsub.s32 0, %v2170
        %v2172 = vrot.slane %v2080, %v2171
        %v2173 = vmul.f32 %v2172, %v2153
        %v2174 = vmul.f32 %v2172, %v2154
        %v2175 = vmul.f32 %v2172, %v2155
        %v2176 = vmul.f32 %v2172, %v2156
        %v2177 = vmul.f32 %v2172, %v2157
        %v2178 = vmul.f32 %v2172, %v2158
        %v2179 = vmul.f32 %v2172, %v2159
        %v2180 = vmul.f32 %v2172, %v2160
        %v2181 = vmul.f32 %v2172, %v2161
        %v2182 = vmul.f32 %v2172, %v2162
        %v2183 = vmul.f32 %v2172, %v2163
        %v2184 = vmul.f32 %v2172, %v2164
        %v2185 = vmul.f32 %v2172, %v2165
        %v2186 = vmul.f32 %v2172, %v2166
        %v2187 = vmul.f32 %v2172, %v2167
        %v2188 = vmul.f32 %v2172, %v2168
        %v2189 = vadd.f32 %v2152, 1e-08
        %v2190 = vrsqrt.pop %v2189
        %v2191 = vmul.f32 %v2173, %v2190
        %v2192 = vmul.f32 %v2174, %v2190
        %v2193 = vmul.f32 %v2175, %v2190
        %v2194 = vmul.f32 %v2176, %v2190
        %v2195 = vmul.f32 %v2177, %v2190
        %v2196 = vmul.f32 %v2178, %v2190
        %v2197 = vmul.f32 %v2179, %v2190
        %v2198 = vmul.f32 %v2180, %v2190
        %v2199 = vmul.f32 %v2181, %v2190
        %v2200 = vmul.f32 %v2182, %v2190
        %v2201 = vmul.f32 %v2183, %v2190
        %v2202 = vmul.f32 %v2184, %v2190
        %v2203 = vmul.f32 %v2185, %v2190
        %v2204 = vmul.f32 %v2186, %v2190
        %v2205 = vmul.f32 %v2187, %v2190
        %v2206 = vmul.f32 %v2188, %v2190
        %v2207 = vlaneseq
        %v2208 = vshrl.u32 %v2207, 7
        %v2209 = vsub.s32 0, %v2208
        %v2210 = vrot.slane %v2081, %v2209
        %v2211 = vadd.f32 %v2191, %v2210
        %v2212 = vadd.f32 %v2192, %v2210
        %v2213 = vadd.f32 %v2193, %v2210
        %v2214 = vadd.f32 %v2194, %v2210
        %v2215 = vadd.f32 %v2195, %v2210
        %v2216 = vadd.f32 %v2196, %v2210
        %v2217 = vadd.f32 %v2197, %v2210
        %v2218 = vadd.f32 %v2198, %v2210
        %v2219 = vadd.f32 %v2199, %v2210
        %v2220 = vadd.f32 %v2200, %v2210
        %v2221 = vadd.f32 %v2201, %v2210
        %v2222 = vadd.f32 %v2202, %v2210
        %v2223 = vadd.f32 %v2203, %v2210
        %v2224 = vadd.f32 %v2204, %v2210
        %v2225 = vadd.f32 %v2205, %v2210
        %v2226 = vadd.f32 %v2206, %v2210
        %v2227 = vld [vmem:[#allocation20] sm:$0xf]
        %v2228 = vld [vmem:[#allocation20 + $0x4] sm:$0xf]
        %v2229 = vld [vmem:[#allocation20 + $0x8] sm:$0xf]
        %v2230 = vld [vmem:[#allocation20 + $0xc] sm:$0xf]
        %v2231 = vld [vmem:[#allocation20 + $0x10] sm:$0xf]
        %v2232 = vld [vmem:[#allocation20 + $0x14] sm:$0xf]
        %v2233 = vld [vmem:[#allocation20 + $0x18] sm:$0xf]
        %v2234 = vld [vmem:[#allocation20 + $0x1c] sm:$0xf]
        %v2235 = vld [vmem:[#allocation20 + $0x20] sm:$0xf]
        %v2236 = vld [vmem:[#allocation20 + $0x24] sm:$0xf]
        %v2237 = vld [vmem:[#allocation20 + $0x28] sm:$0xf]
        %v2238 = vld [vmem:[#allocation20 + $0x2c] sm:$0xf]
        %v2239 = vld [vmem:[#allocation20 + $0x30] sm:$0xf]
        %v2240 = vld [vmem:[#allocation20 + $0x34] sm:$0xf]
        %v2241 = vld [vmem:[#allocation20 + $0x38] sm:$0xf]
        %v2242 = vld [vmem:[#allocation20 + $0x3c] sm:$0xf]
        %v2243 = vpack.c.bf16 %v2212, %v2211
        %v2244 = vpack.c.bf16 %v2214, %v2213
        %v2245 = vpack.c.bf16 %v2216, %v2215
        %v2246 = vpack.c.bf16 %v2218, %v2217
        %v2247 = vpack.c.bf16 %v2220, %v2219
        %v2248 = vpack.c.bf16 %v2222, %v2221
        %v2249 = vpack.c.bf16 %v2224, %v2223
        %v2250 = vpack.c.bf16 %v2226, %v2225
        %v2267 = vunpack.c.l.b16 %v2227
        %v2268 = vunpack.c.l.b16 %v2228
        %v2269 = vunpack.c.l.b16 %v2229
        %v2270 = vunpack.c.l.b16 %v2230
        %v2271 = vunpack.c.l.b16 %v2231
        %v2272 = vunpack.c.l.b16 %v2232
        %v2273 = vunpack.c.l.b16 %v2233
        %v2274 = vunpack.c.l.b16 %v2234
        %v2275 = vunpack.c.l.b16 %v2235
        %v2276 = vunpack.c.l.b16 %v2236
        %v2277 = vunpack.c.l.b16 %v2237
        %v2278 = vunpack.c.l.b16 %v2238
        %v2279 = vunpack.c.l.b16 %v2239
        %v2280 = vunpack.c.l.b16 %v2240
        %v2281 = vunpack.c.l.b16 %v2241
        %v2282 = vunpack.c.l.b16 %v2242
        %v2283 = vpack.c.b16 %v2268, %v2267
        %v2284 = vpack.c.b16 %v2270, %v2269
        %v2285 = vpack.c.b16 %v2272, %v2271
        %v2286 = vpack.c.b16 %v2274, %v2273
        %v2287 = vpack.c.b16 %v2276, %v2275
        %v2288 = vpack.c.b16 %v2278, %v2277
        %v2289 = vpack.c.b16 %v2280, %v2279
        %v2290 = vpack.c.b16 %v2282, %v2281
        %2299 = vmatprep.subr.bf16.mxu0 0
        %2300 = vmatpush1.bf16.msra.mxu0 %v2283
        %2301 = vmatprep.subr.bf16.mxu0 0
        %2302 = vmatpush1.bf16.msra.mxu0 %v2284
        %2303 = vmatprep.subr.bf16.mxu0 0
        %2304 = vmatpush1.bf16.msra.mxu0 %v2285
        %2305 = vmatprep.subr.bf16.mxu0 0
        %2306 = vmatpush1.bf16.msra.mxu0 %v2286
        %2307 = vmatprep.subr.bf16.mxu0 0
        %2308 = vmatpush1.bf16.msra.mxu0 %v2287
        %2309 = vmatprep.subr.bf16.mxu0 0
        %2310 = vmatpush1.bf16.msra.mxu0 %v2288
        %2311 = vmatprep.subr.bf16.mxu0 0
        %2312 = vmatpush1.bf16.msra.mxu0 %v2289
        %2313 = vmatprep.subr.bf16.mxu0 0
        %2314 = vmatpush1.bf16.msra.mxu0 %v2290
        %2315 = vmatprep.subr.bf16.mxu0 0
        %2316 = vmatpush1.bf16.msra.mxu0 0
        %2317 = vmatprep.subr.bf16.mxu0 0
        %2318 = vmatpush1.bf16.msra.mxu0 0
        %2319 = vmatprep.subr.bf16.mxu0 0
        %2320 = vmatpush1.bf16.msra.mxu0 0
        %2321 = vmatprep.subr.bf16.mxu0 0
        %2322 = vmatpush1.bf16.msra.mxu0 0
        %2323 = vmatprep.subr.bf16.mxu0 0
        %2324 = vmatpush1.bf16.msra.mxu0 0
        %2325 = vmatprep.subr.bf16.mxu0 0
        %2326 = vmatpush1.bf16.msra.mxu0 0
        %2327 = vmatprep.subr.bf16.mxu0 0
        %2328 = vmatpush1.bf16.msra.mxu0 0
        %2329 = vmatprep.subr.bf16.mxu0 0
        %2330 = vmatpush1.bf16.msra.mxu0 0
        %2331 = vmatprep.mubr.bf16.mxu0 0
        %2332 = vmatmul.mubr.bf16.gmra.mrb[0].mxu0 %v2243
        %v2333 = vpop.f32.mrb[0].mxu0
        %v2334 = vadd.f32 %v1488, %v2333
        %v2335 = vpop.f32.mrb[0].mxu0
        %v2336 = vpop.f32.mrb[0].mxu0
        %v2337 = vadd.f32 %v1489, %v2336
        %v2338 = vpop.f32.mrb[0].mxu0
        %2339 = vmatprep.mubr.bf16.mxu0 0
        %2340 = vmatmul.mubr.bf16.gmra.mrb[0].mxu0 %v2244
        %v2341 = vpop.f32.mrb[0].mxu0
        %v2342 = vadd.f32 %v1490, %v2341
        %v2343 = vpop.f32.mrb[0].mxu0
        %v2344 = vpop.f32.mrb[0].mxu0
        %v2345 = vadd.f32 %v1491, %v2344
        %v2346 = vpop.f32.mrb[0].mxu0
        %2347 = vmatprep.mubr.bf16.mxu0 0
        %2348 = vmatmul.mubr.bf16.gmra.mrb[0].mxu0 %v2245
        %v2349 = vpop.f32.mrb[0].mxu0
        %v2350 = vadd.f32 %v1492, %v2349
        %v2351 = vpop.f32.mrb[0].mxu0
        %v2352 = vpop.f32.mrb[0].mxu0
        %v2353 = vadd.f32 %v1493, %v2352
        %v2354 = vpop.f32.mrb[0].mxu0
        %2355 = vmatprep.mubr.bf16.mxu0 0
        %2356 = vmatmul.mubr.bf16.gmra.mrb[0].mxu0 %v2246
        %v2357 = vpop.f32.mrb[0].mxu0
        %v2358 = vadd.f32 %v1494, %v2357
        %v2359 = vpop.f32.mrb[0].mxu0
        %v2360 = vpop.f32.mrb[0].mxu0
        %v2361 = vadd.f32 %v1495, %v2360
        %v2362 = vpop.f32.mrb[0].mxu0
        %2363 = vmatprep.mubr.bf16.mxu0 0
        %2364 = vmatmul.mubr.bf16.gmra.mrb[0].mxu0 %v2247
        %v2365 = vpop.f32.mrb[0].mxu0
        %v2366 = vadd.f32 %v1496, %v2365
        %v2367 = vpop.f32.mrb[0].mxu0
        %v2368 = vpop.f32.mrb[0].mxu0
        %v2369 = vadd.f32 %v1497, %v2368
        %v2370 = vpop.f32.mrb[0].mxu0
        %2371 = vmatprep.mubr.bf16.mxu0 0
        %2372 = vmatmul.mubr.bf16.gmra.mrb[0].mxu0 %v2248
        %v2373 = vpop.f32.mrb[0].mxu0
        %v2374 = vadd.f32 %v1498, %v2373
        %v2375 = vpop.f32.mrb[0].mxu0
        %v2376 = vpop.f32.mrb[0].mxu0
        %v2377 = vadd.f32 %v1499, %v2376
        %v2378 = vpop.f32.mrb[0].mxu0
        %2379 = vmatprep.mubr.bf16.mxu0 0
        %2380 = vmatmul.mubr.bf16.gmra.mrb[0].mxu0 %v2249
        %v2381 = vpop.f32.mrb[0].mxu0
        %v2382 = vadd.f32 %v1500, %v2381
        %v2383 = vpop.f32.mrb[0].mxu0
        %v2384 = vpop.f32.mrb[0].mxu0
        %v2385 = vadd.f32 %v1501, %v2384
        %v2386 = vpop.f32.mrb[0].mxu0
        %2387 = vmatprep.mubr.bf16.mxu0 0
        %2388 = vmatmul.mubr.bf16.gmra.mrb[0].mxu0 %v2250
        %v2389 = vpop.f32.mrb[0].mxu0
        %v2390 = vadd.f32 %v1502, %v2389
        %v2391 = vpop.f32.mrb[0].mxu0
        %v2392 = vpop.f32.mrb[0].mxu0
        %v2393 = vadd.f32 %v1503, %v2392
        %v2394 = vpop.f32.mrb[0].mxu0
        %2395 = vdwg.mxu0
        %s2396 = scalar_lea.vmem %s10, 64
        %v2397 = vld [vmem:[%s2396] sm:$0xf]
        %v2398 = vld [vmem:[%s2396 + $0x4] sm:$0xf]
        %v2399 = vld [vmem:[%s2396 + $0x8] sm:$0xf]
        %v2400 = vld [vmem:[%s2396 + $0xc] sm:$0xf]
        %v2401 = vld [vmem:[%s2396 + $0x10] sm:$0xf]
        %v2402 = vld [vmem:[%s2396 + $0x14] sm:$0xf]
        %v2403 = vld [vmem:[%s2396 + $0x18] sm:$0xf]
        %v2404 = vld [vmem:[%s2396 + $0x1c] sm:$0xf]
        %v2405 = vld [vmem:[%s2396 + $0x20] sm:$0xf]
        %v2406 = vld [vmem:[%s2396 + $0x24] sm:$0xf]
        %v2407 = vld [vmem:[%s2396 + $0x28] sm:$0xf]
        %v2408 = vld [vmem:[%s2396 + $0x2c] sm:$0xf]
        %v2409 = vld [vmem:[%s2396 + $0x30] sm:$0xf]
        %v2410 = vld [vmem:[%s2396 + $0x34] sm:$0xf]
        %v2411 = vld [vmem:[%s2396 + $0x38] sm:$0xf]
        %v2412 = vld [vmem:[%s2396 + $0x3c] sm:$0xf]
        %v2413 = vpack.c.bf16 %v2337, %v2334
        %v2414 = vpack.c.bf16 %v2345, %v2342
        %v2415 = vpack.c.bf16 %v2353, %v2350
        %v2416 = vpack.c.bf16 %v2361, %v2358
        %v2417 = vpack.c.bf16 %v2369, %v2366
        %v2418 = vpack.c.bf16 %v2377, %v2374
        %v2419 = vpack.c.bf16 %v2385, %v2382
        %v2420 = vpack.c.bf16 %v2393, %v2390
        %v2437 = vunpack.c.l.b16 %v2397
        %v2438 = vunpack.c.l.b16 %v2398
        %v2439 = vunpack.c.l.b16 %v2399
        %v2440 = vunpack.c.l.b16 %v2400
        %v2441 = vunpack.c.l.b16 %v2401
        %v2442 = vunpack.c.l.b16 %v2402
        %v2443 = vunpack.c.l.b16 %v2403
        %v2444 = vunpack.c.l.b16 %v2404
        %v2445 = vunpack.c.l.b16 %v2405
        %v2446 = vunpack.c.l.b16 %v2406
        %v2447 = vunpack.c.l.b16 %v2407
        %v2448 = vunpack.c.l.b16 %v2408
        %v2449 = vunpack.c.l.b16 %v2409
        %v2450 = vunpack.c.l.b16 %v2410
        %v2451 = vunpack.c.l.b16 %v2411
        %v2452 = vunpack.c.l.b16 %v2412
        %v2453 = vpack.c.b16 %v2438, %v2437
        %v2454 = vpack.c.b16 %v2440, %v2439
        %v2455 = vpack.c.b16 %v2442, %v2441
        %v2456 = vpack.c.b16 %v2444, %v2443
        %v2457 = vpack.c.b16 %v2446, %v2445
        %v2458 = vpack.c.b16 %v2448, %v2447
        %v2459 = vpack.c.b16 %v2450, %v2449
        %v2460 = vpack.c.b16 %v2452, %v2451
        %2469 = vmatprep.subr.bf16.mxu0 0
        %2470 = vmatpush1.bf16.msra.mxu0 %v2453
        %2471 = vmatprep.subr.bf16.mxu0 0
        %2472 = vmatpush1.bf16.msra.mxu0 %v2454
        %2473 = vmatprep.subr.bf16.mxu0 0
        %2474 = vmatpush1.bf16.msra.mxu0 %v2455
        %2475 = vmatprep.subr.bf16.mxu0 0
        %2476 = vmatpush1.bf16.msra.mxu0 %v2456
        %2477 = vmatprep.subr.bf16.mxu0 0
        %2478 = vmatpush1.bf16.msra.mxu0 %v2457
        %2479 = vmatprep.subr.bf16.mxu0 0
        %2480 = vmatpush1.bf16.msra.mxu0 %v2458
        %2481 = vmatprep.subr.bf16.mxu0 0
        %2482 = vmatpush1.bf16.msra.mxu0 %v2459
        %2483 = vmatprep.subr.bf16.mxu0 0
        %2484 = vmatpush1.bf16.msra.mxu0 %v2460
        %2485 = vmatprep.subr.bf16.mxu0 0
        %2486 = vmatpush1.bf16.msra.mxu0 0
        %2487 = vmatprep.subr.bf16.mxu0 0
        %2488 = vmatpush1.bf16.msra.mxu0 0
        %2489 = vmatprep.subr.bf16.mxu0 0
        %2490 = vmatpush1.bf16.msra.mxu0 0
        %2491 = vmatprep.subr.bf16.mxu0 0
        %2492 = vmatpush1.bf16.msra.mxu0 0
        %2493 = vmatprep.subr.bf16.mxu0 0
        %2494 = vmatpush1.bf16.msra.mxu0 0
        %2495 = vmatprep.subr.bf16.mxu0 0
        %2496 = vmatpush1.bf16.msra.mxu0 0
        %2497 = vmatprep.subr.bf16.mxu0 0
        %2498 = vmatpush1.bf16.msra.mxu0 0
        %2499 = vmatprep.subr.bf16.mxu0 0
        %2500 = vmatpush1.bf16.msra.mxu0 0
        %2501 = vmatprep.mubr.bf16.mxu0 0
        %2502 = vmatmul.mubr.bf16.gmra.mrb[0].mxu0 %v2413
        %v2503 = vpop.f32.mrb[0].mxu0
        %v2504 = vadd.f32 0.0, %v2503
        %v2505 = vpop.f32.mrb[0].mxu0
        %v2506 = vpop.f32.mrb[0].mxu0
        %v2507 = vadd.f32 0.0, %v2506
        %v2508 = vpop.f32.mrb[0].mxu0
        %2509 = vmatprep.mubr.bf16.mxu0 0
        %2510 = vmatmul.mubr.bf16.gmra.mrb[0].mxu0 %v2414
        %v2511 = vpop.f32.mrb[0].mxu0
        %v2512 = vadd.f32 0.0, %v2511
        %v2513 = vpop.f32.mrb[0].mxu0
        %v2514 = vpop.f32.mrb[0].mxu0
        %v2515 = vadd.f32 0.0, %v2514
        %v2516 = vpop.f32.mrb[0].mxu0
        %2517 = vmatprep.mubr.bf16.mxu0 0
        %2518 = vmatmul.mubr.bf16.gmra.mrb[0].mxu0 %v2415
        %v2519 = vpop.f32.mrb[0].mxu0
        %v2520 = vadd.f32 0.0, %v2519
        %v2521 = vpop.f32.mrb[0].mxu0
        %v2522 = vpop.f32.mrb[0].mxu0
        %v2523 = vadd.f32 0.0, %v2522
        %v2524 = vpop.f32.mrb[0].mxu0
        %2525 = vmatprep.mubr.bf16.mxu0 0
        %2526 = vmatmul.mubr.bf16.gmra.mrb[0].mxu0 %v2416
        %v2527 = vpop.f32.mrb[0].mxu0
        %v2528 = vadd.f32 0.0, %v2527
        %v2529 = vpop.f32.mrb[0].mxu0
        %v2530 = vpop.f32.mrb[0].mxu0
        %v2531 = vadd.f32 0.0, %v2530
        %v2532 = vpop.f32.mrb[0].mxu0
        %2533 = vmatprep.mubr.bf16.mxu0 0
        %2534 = vmatmul.mubr.bf16.gmra.mrb[0].mxu0 %v2417
        %v2535 = vpop.f32.mrb[0].mxu0
        %v2536 = vadd.f32 0.0, %v2535
        %v2537 = vpop.f32.mrb[0].mxu0
        %v2538 = vpop.f32.mrb[0].mxu0
        %v2539 = vadd.f32 0.0, %v2538
        %v2540 = vpop.f32.mrb[0].mxu0
        %2541 = vmatprep.mubr.bf16.mxu0 0
        %2542 = vmatmul.mubr.bf16.gmra.mrb[0].mxu0 %v2418
        %v2543 = vpop.f32.mrb[0].mxu0
        %v2544 = vadd.f32 0.0, %v2543
        %v2545 = vpop.f32.mrb[0].mxu0
        %v2546 = vpop.f32.mrb[0].mxu0
        %v2547 = vadd.f32 0.0, %v2546
        %v2548 = vpop.f32.mrb[0].mxu0
        %2549 = vmatprep.mubr.bf16.mxu0 0
        %2550 = vmatmul.mubr.bf16.gmra.mrb[0].mxu0 %v2419
        %v2551 = vpop.f32.mrb[0].mxu0
        %v2552 = vadd.f32 0.0, %v2551
        %v2553 = vpop.f32.mrb[0].mxu0
        %v2554 = vpop.f32.mrb[0].mxu0
        %v2555 = vadd.f32 0.0, %v2554
        %v2556 = vpop.f32.mrb[0].mxu0
        %2557 = vmatprep.mubr.bf16.mxu0 0
        %2558 = vmatmul.mubr.bf16.gmra.mrb[0].mxu0 %v2420
        %v2559 = vpop.f32.mrb[0].mxu0
        %v2560 = vadd.f32 0.0, %v2559
        %v2561 = vpop.f32.mrb[0].mxu0
        %v2562 = vpop.f32.mrb[0].mxu0
        %v2563 = vadd.f32 0.0, %v2562
        %v2564 = vpop.f32.mrb[0].mxu0
        %2565 = vdwg.mxu0
        %s2566 = sld [smem:[#allocation3 + $0x1]]
        %vm2567 = vcmp.ge.f32.partialorder %v2504, 0.0
        %vm2568 = vcmp.ge.f32.partialorder %v2507, 0.0
        %vm2569 = vcmp.ge.f32.partialorder %v2512, 0.0
        %vm2570 = vcmp.ge.f32.partialorder %v2515, 0.0
        %vm2571 = vcmp.ge.f32.partialorder %v2520, 0.0
        %vm2572 = vcmp.ge.f32.partialorder %v2523, 0.0
        %vm2573 = vcmp.ge.f32.partialorder %v2528, 0.0
        %vm2574 = vcmp.ge.f32.partialorder %v2531, 0.0
        %vm2575 = vcmp.ge.f32.partialorder %v2536, 0.0
        %vm2576 = vcmp.ge.f32.partialorder %v2539, 0.0
        %vm2577 = vcmp.ge.f32.partialorder %v2544, 0.0
        %vm2578 = vcmp.ge.f32.partialorder %v2547, 0.0
        %vm2579 = vcmp.ge.f32.partialorder %v2552, 0.0
        %vm2580 = vcmp.ge.f32.partialorder %v2555, 0.0
        %vm2581 = vcmp.ge.f32.partialorder %v2560, 0.0
        %vm2582 = vcmp.ge.f32.partialorder %v2563, 0.0
        %v2583 = vstv %s2566
        %v2584 = vmul.f32 %v2583, %v2504
        %v2585 = vmul.f32 %v2583, %v2507
        %v2586 = vmul.f32 %v2583, %v2512
        %v2587 = vmul.f32 %v2583, %v2515
        %v2588 = vmul.f32 %v2583, %v2520
        %v2589 = vmul.f32 %v2583, %v2523
        %v2590 = vmul.f32 %v2583, %v2528
        %v2591 = vmul.f32 %v2583, %v2531
        %v2592 = vmul.f32 %v2583, %v2536
        %v2593 = vmul.f32 %v2583, %v2539
        %v2594 = vmul.f32 %v2583, %v2544
        %v2595 = vmul.f32 %v2583, %v2547
        %v2596 = vmul.f32 %v2583, %v2552
        %v2597 = vmul.f32 %v2583, %v2555
        %v2598 = vmul.f32 %v2583, %v2560
        %v2599 = vmul.f32 %v2583, %v2563
        %v2600 = vsel %vm2567, %v2504, %v2584
        %v2601 = vsel %vm2568, %v2507, %v2585
        %v2602 = vsel %vm2569, %v2512, %v2586
        %v2603 = vsel %vm2570, %v2515, %v2587
        %v2604 = vsel %vm2571, %v2520, %v2588
        %v2605 = vsel %vm2572, %v2523, %v2589
        %v2606 = vsel %vm2573, %v2528, %v2590
        %v2607 = vsel %vm2574, %v2531, %v2591
        %v2608 = vsel %vm2575, %v2536, %v2592
        %v2609 = vsel %vm2576, %v2539, %v2593
        %v2610 = vsel %vm2577, %v2544, %v2594
        %v2611 = vsel %vm2578, %v2547, %v2595
        %v2612 = vsel %vm2579, %v2552, %v2596
        %v2613 = vsel %vm2580, %v2555, %v2597
        %v2614 = vsel %vm2581, %v2560, %v2598
        %v2615 = vsel %vm2582, %v2563, %v2599
        %v2616 = vld [vmem:[#allocation14 + $0x1] sm:$0x1]
        %v2617 = vld [vmem:[#allocation15 + $0x1] sm:$0x1]
        %v2618 = vadd.f32 %v2600, %v2601
        %v2619 = vadd.f32 %v2618, %v2602
        %v2620 = vadd.f32 %v2619, %v2603
        %v2621 = vadd.f32 %v2620, %v2604
        %v2622 = vadd.f32 %v2621, %v2605
        %v2623 = vadd.f32 %v2622, %v2606
        %v2624 = vadd.f32 %v2623, %v2607
        %v2625 = vadd.f32 %v2624, %v2608
        %v2626 = vadd.f32 %v2625, %v2609
        %v2627 = vadd.f32 %v2626, %v2610
        %v2628 = vadd.f32 %v2627, %v2611
        %v2629 = vadd.f32 %v2628, %v2612
        %v2630 = vadd.f32 %v2629, %v2613
        %v2631 = vadd.f32 %v2630, %v2614
        %v2632 = vadd.f32 %v2631, %v2615
        %2633 = vadd.xlane.f32.xlu0 %v2632
        %v2634 = vpop.xlane.xlu0 %2633
        %v2635 = vrot.slane %v2634, 4
        %v2636 = vadd.f32 %v2634, %v2635
        %v2637 = vrot.slane %v2636, 2
        %v2638 = vadd.f32 %v2636, %v2637
        %v2639 = vrot.slane %v2638, 1
        %v2640 = vadd.f32 %v2638, %v2639
        %s2641 = vtos %v2640
        %v2642 = vstv %s2641
        %v2643 = vmul.f32 %v2600, %v2600
        %v2644 = vmul.f32 %v2601, %v2601
        %v2645 = vmul.f32 %v2602, %v2602
        %v2646 = vmul.f32 %v2603, %v2603
        %v2647 = vmul.f32 %v2604, %v2604
        %v2648 = vmul.f32 %v2605, %v2605
        %v2649 = vmul.f32 %v2606, %v2606
        %v2650 = vmul.f32 %v2607, %v2607
        %v2651 = vmul.f32 %v2608, %v2608
        %v2652 = vmul.f32 %v2609, %v2609
        %v2653 = vmul.f32 %v2610, %v2610
        %v2654 = vmul.f32 %v2611, %v2611
        %v2655 = vmul.f32 %v2612, %v2612
        %v2656 = vmul.f32 %v2613, %v2613
        %v2657 = vmul.f32 %v2614, %v2614
        %v2658 = vmul.f32 %v2615, %v2615
        %v2659 = vadd.f32 %v2643, %v2644
        %v2660 = vadd.f32 %v2659, %v2645
        %v2661 = vadd.f32 %v2660, %v2646
        %v2662 = vadd.f32 %v2661, %v2647
        %v2663 = vadd.f32 %v2662, %v2648
        %v2664 = vadd.f32 %v2663, %v2649
        %v2665 = vadd.f32 %v2664, %v2650
        %v2666 = vadd.f32 %v2665, %v2651
        %v2667 = vadd.f32 %v2666, %v2652
        %v2668 = vadd.f32 %v2667, %v2653
        %v2669 = vadd.f32 %v2668, %v2654
        %v2670 = vadd.f32 %v2669, %v2655
        %v2671 = vadd.f32 %v2670, %v2656
        %v2672 = vadd.f32 %v2671, %v2657
        %v2673 = vadd.f32 %v2672, %v2658
        %2674 = vadd.xlane.f32.xlu0 %v2673
        %v2675 = vpop.xlane.xlu0 %2674
        %v2676 = vrot.slane %v2675, 4
        %v2677 = vadd.f32 %v2675, %v2676
        %v2678 = vrot.slane %v2677, 2
        %v2679 = vadd.f32 %v2677, %v2678
        %v2680 = vrot.slane %v2679, 1
        %v2681 = vadd.f32 %v2679, %v2680
        %s2682 = vtos %v2681
        %v2683 = vstv %s2682
        %v2684 = vmul.f32 %v2642, %v1791
        %v2685 = vmul.f32 %v2683, %v1791
        %v2686 = vmul.f32 %v2684, %v2684
        %v2687 = vsub.f32 %v2685, %v2686
        %v2688 = vmax.f32 %v2687, 0.0
        %v2689 = vsub.f32 %v2600, %v2684
        %v2690 = vsub.f32 %v2601, %v2684
        %v2691 = vsub.f32 %v2602, %v2684
        %v2692 = vsub.f32 %v2603, %v2684
        %v2693 = vsub.f32 %v2604, %v2684
        %v2694 = vsub.f32 %v2605, %v2684
        %v2695 = vsub.f32 %v2606, %v2684
        %v2696 = vsub.f32 %v2607, %v2684
        %v2697 = vsub.f32 %v2608, %v2684
        %v2698 = vsub.f32 %v2609, %v2684
        %v2699 = vsub.f32 %v2610, %v2684
        %v2700 = vsub.f32 %v2611, %v2684
        %v2701 = vsub.f32 %v2612, %v2684
        %v2702 = vsub.f32 %v2613, %v2684
        %v2703 = vsub.f32 %v2614, %v2684
        %v2704 = vsub.f32 %v2615, %v2684
        %v2705 = vlaneseq
        %v2706 = vshrl.u32 %v2705, 7
        %v2707 = vsub.s32 0, %v2706
        %v2708 = vrot.slane %v2616, %v2707
        %v2709 = vmul.f32 %v2708, %v2689
        %v2710 = vmul.f32 %v2708, %v2690
        %v2711 = vmul.f32 %v2708, %v2691
        %v2712 = vmul.f32 %v2708, %v2692
        %v2713 = vmul.f32 %v2708, %v2693
        %v2714 = vmul.f32 %v2708, %v2694
        %v2715 = vmul.f32 %v2708, %v2695
        %v2716 = vmul.f32 %v2708, %v2696
        %v2717 = vmul.f32 %v2708, %v2697
        %v2718 = vmul.f32 %v2708, %v2698
        %v2719 = vmul.f32 %v2708, %v2699
        %v2720 = vmul.f32 %v2708, %v2700
        %v2721 = vmul.f32 %v2708, %v2701
        %v2722 = vmul.f32 %v2708, %v2702
        %v2723 = vmul.f32 %v2708, %v2703
        %v2724 = vmul.f32 %v2708, %v2704
        %v2725 = vadd.f32 %v2688, 1e-08
        %v2726 = vrsqrt.pop %v2725
        %v2727 = vmul.f32 %v2709, %v2726
        %v2728 = vmul.f32 %v2710, %v2726
        %v2729 = vmul.f32 %v2711, %v2726
        %v2730 = vmul.f32 %v2712, %v2726
        %v2731 = vmul.f32 %v2713, %v2726
        %v2732 = vmul.f32 %v2714, %v2726
        %v2733 = vmul.f32 %v2715, %v2726
        %v2734 = vmul.f32 %v2716, %v2726
        %v2735 = vmul.f32 %v2717, %v2726
        %v2736 = vmul.f32 %v2718, %v2726
        %v2737 = vmul.f32 %v2719, %v2726
        %v2738 = vmul.f32 %v2720, %v2726
        %v2739 = vmul.f32 %v2721, %v2726
        %v2740 = vmul.f32 %v2722, %v2726
        %v2741 = vmul.f32 %v2723, %v2726
        %v2742 = vmul.f32 %v2724, %v2726
        %v2743 = vlaneseq
        %v2744 = vshrl.u32 %v2743, 7
        %v2745 = vsub.s32 0, %v2744
        %v2746 = vrot.slane %v2617, %v2745
        %v2747 = vadd.f32 %v2727, %v2746
        %v2748 = vadd.f32 %v2728, %v2746
        %v2749 = vadd.f32 %v2729, %v2746
        %v2750 = vadd.f32 %v2730, %v2746
        %v2751 = vadd.f32 %v2731, %v2746
        %v2752 = vadd.f32 %v2732, %v2746
        %v2753 = vadd.f32 %v2733, %v2746
        %v2754 = vadd.f32 %v2734, %v2746
        %v2755 = vadd.f32 %v2735, %v2746
        %v2756 = vadd.f32 %v2736, %v2746
        %v2757 = vadd.f32 %v2737, %v2746
        %v2758 = vadd.f32 %v2738, %v2746
        %v2759 = vadd.f32 %v2739, %v2746
        %v2760 = vadd.f32 %v2740, %v2746
        %v2761 = vadd.f32 %v2741, %v2746
        %v2762 = vadd.f32 %v2742, %v2746
        %2763 = vst [vmem:[#allocation2 + $0x2] sm:$0xff] %v2747
        %2764 = vst [vmem:[#allocation2 + $0xa] sm:$0xff] %v2748
        %2765 = vst [vmem:[#allocation2 + $0x12] sm:$0xff] %v2749
        %2766 = vst [vmem:[#allocation2 + $0x1a] sm:$0xff] %v2750
        %2767 = vst [vmem:[#allocation2 + $0x22] sm:$0xff] %v2751
        %2768 = vst [vmem:[#allocation2 + $0x2a] sm:$0xff] %v2752
        %2769 = vst [vmem:[#allocation2 + $0x32] sm:$0xff] %v2753
        %2770 = vst [vmem:[#allocation2 + $0x3a] sm:$0xff] %v2754
        %2771 = vst [vmem:[#allocation2 + $0x42] sm:$0xff] %v2755
        %2772 = vst [vmem:[#allocation2 + $0x4a] sm:$0xff] %v2756
        %2773 = vst [vmem:[#allocation2 + $0x52] sm:$0xff] %v2757
        %2774 = vst [vmem:[#allocation2 + $0x5a] sm:$0xff] %v2758
        %2775 = vst [vmem:[#allocation2 + $0x62] sm:$0xff] %v2759
        %2776 = vst [vmem:[#allocation2 + $0x6a] sm:$0xff] %v2760
        %2777 = vst [vmem:[#allocation2 + $0x72] sm:$0xff] %v2761
        %2778 = vst [vmem:[#allocation2 + $0x7a] sm:$0xff] %v2762
        %2779 = vst [vmem:[#allocation2] sm:$0x2] %v2747
        %2780 = vst [vmem:[#allocation2 + $0x7c] sm:$0x40] %v2762
        %2781 = vst [vmem:[#allocation2 - $0x2] sm:$0x4] %v2747
        %2782 = vst [vmem:[#allocation2 + $0x7e] sm:$0x20] %v2762
        %s2783 = scalar_lea.vmem %s13, 4
        %v2784 = vld [vmem:[%s2783] sm:$0x7]
        %v2785 = vld [vmem:[#allocation2] sm:$0xff]
        %v2786 = vld [vmem:[#allocation2 + $0x8] sm:$0xff]
        %v2787 = vld [vmem:[#allocation2 + $0x10] sm:$0xff]
        %v2788 = vld [vmem:[#allocation2 + $0x18] sm:$0xff]
        %v2789 = vld [vmem:[#allocation2 + $0x20] sm:$0xff]
        %v2790 = vld [vmem:[#allocation2 + $0x28] sm:$0xff]
        %v2791 = vld [vmem:[#allocation2 + $0x30] sm:$0xff]
        %v2792 = vld [vmem:[#allocation2 + $0x38] sm:$0xff]
        %v2793 = vld [vmem:[#allocation2 + $0x40] sm:$0xff]
        %v2794 = vld [vmem:[#allocation2 + $0x48] sm:$0xff]
        %v2795 = vld [vmem:[#allocation2 + $0x50] sm:$0xff]
        %v2796 = vld [vmem:[#allocation2 + $0x58] sm:$0xff]
        %v2797 = vld [vmem:[#allocation2 + $0x60] sm:$0xff]
        %v2798 = vld [vmem:[#allocation2 + $0x68] sm:$0xff]
        %v2799 = vld [vmem:[#allocation2 + $0x70] sm:$0xff]
        %v2800 = vld [vmem:[#allocation2 + $0x78] sm:$0xff]
        %v2801 = vlaneseq
        %v2802 = vshrl.u32 %v2801, 7
        %v2803 = vsub.s32 0, %v2802
        %v2804 = vrot.slane %v2784, %v2803
        %v2805 = vmul.f32 %v2785, %v2804
        %v2806 = vmul.f32 %v2786, %v2804
        %v2807 = vmul.f32 %v2787, %v2804
        %v2808 = vmul.f32 %v2788, %v2804
        %v2809 = vmul.f32 %v2789, %v2804
        %v2810 = vmul.f32 %v2790, %v2804
        %v2811 = vmul.f32 %v2791, %v2804
        %v2812 = vmul.f32 %v2792, %v2804
        %v2813 = vmul.f32 %v2793, %v2804
        %v2814 = vmul.f32 %v2794, %v2804
        %v2815 = vmul.f32 %v2795, %v2804
        %v2816 = vmul.f32 %v2796, %v2804
        %v2817 = vmul.f32 %v2797, %v2804
        %v2818 = vmul.f32 %v2798, %v2804
        %v2819 = vmul.f32 %v2799, %v2804
        %v2820 = vmul.f32 %v2800, %v2804
        %v2821 = vld [vmem:[#allocation2 + $0x2] sm:$0xff]
        %v2822 = vld [vmem:[#allocation2 + $0xa] sm:$0xff]
        %v2823 = vld [vmem:[#allocation2 + $0x12] sm:$0xff]
        %v2824 = vld [vmem:[#allocation2 + $0x1a] sm:$0xff]
        %v2825 = vld [vmem:[#allocation2 + $0x22] sm:$0xff]
        %v2826 = vld [vmem:[#allocation2 + $0x2a] sm:$0xff]
        %v2827 = vld [vmem:[#allocation2 + $0x32] sm:$0xff]
        %v2828 = vld [vmem:[#allocation2 + $0x3a] sm:$0xff]
        %v2829 = vld [vmem:[#allocation2 + $0x42] sm:$0xff]
        %v2830 = vld [vmem:[#allocation2 + $0x4a] sm:$0xff]
        %v2831 = vld [vmem:[#allocation2 + $0x52] sm:$0xff]
        %v2832 = vld [vmem:[#allocation2 + $0x5a] sm:$0xff]
        %v2833 = vld [vmem:[#allocation2 + $0x62] sm:$0xff]
        %v2834 = vld [vmem:[#allocation2 + $0x6a] sm:$0xff]
        %v2835 = vld [vmem:[#allocation2 + $0x72] sm:$0xff]
        %v2836 = vld [vmem:[#allocation2 + $0x7a] sm:$0xff]
        %v2837 = vlaneseq
        %v2838 = vshrl.u32 %v2837, 7
        %v2839 = vsub.s32 1, %v2838
        %v2840 = vrot.slane %v2784, %v2839
        %v2841 = vmul.f32 %v2821, %v2840
        %v2842 = vmul.f32 %v2822, %v2840
        %v2843 = vmul.f32 %v2823, %v2840
        %v2844 = vmul.f32 %v2824, %v2840
        %v2845 = vmul.f32 %v2825, %v2840
        %v2846 = vmul.f32 %v2826, %v2840
        %v2847 = vmul.f32 %v2827, %v2840
        %v2848 = vmul.f32 %v2828, %v2840
        %v2849 = vmul.f32 %v2829, %v2840
        %v2850 = vmul.f32 %v2830, %v2840
        %v2851 = vmul.f32 %v2831, %v2840
        %v2852 = vmul.f32 %v2832, %v2840
        %v2853 = vmul.f32 %v2833, %v2840
        %v2854 = vmul.f32 %v2834, %v2840
        %v2855 = vmul.f32 %v2835, %v2840
        %v2856 = vmul.f32 %v2836, %v2840
        %v2857 = vadd.f32 %v2805, %v2841
        %v2858 = vadd.f32 %v2806, %v2842
        %v2859 = vadd.f32 %v2807, %v2843
        %v2860 = vadd.f32 %v2808, %v2844
        %v2861 = vadd.f32 %v2809, %v2845
        %v2862 = vadd.f32 %v2810, %v2846
        %v2863 = vadd.f32 %v2811, %v2847
        %v2864 = vadd.f32 %v2812, %v2848
        %v2865 = vadd.f32 %v2813, %v2849
        %v2866 = vadd.f32 %v2814, %v2850
        %v2867 = vadd.f32 %v2815, %v2851
        %v2868 = vadd.f32 %v2816, %v2852
        %v2869 = vadd.f32 %v2817, %v2853
        %v2870 = vadd.f32 %v2818, %v2854
        %v2871 = vadd.f32 %v2819, %v2855
        %v2872 = vadd.f32 %v2820, %v2856
        %v2873 = vld [vmem:[#allocation2 + $0x4] sm:$0xff]
        %v2874 = vld [vmem:[#allocation2 + $0xc] sm:$0xff]
        %v2875 = vld [vmem:[#allocation2 + $0x14] sm:$0xff]
        %v2876 = vld [vmem:[#allocation2 + $0x1c] sm:$0xff]
        %v2877 = vld [vmem:[#allocation2 + $0x24] sm:$0xff]
        %v2878 = vld [vmem:[#allocation2 + $0x2c] sm:$0xff]
        %v2879 = vld [vmem:[#allocation2 + $0x34] sm:$0xff]
        %v2880 = vld [vmem:[#allocation2 + $0x3c] sm:$0xff]
        %v2881 = vld [vmem:[#allocation2 + $0x44] sm:$0xff]
        %v2882 = vld [vmem:[#allocation2 + $0x4c] sm:$0xff]
        %v2883 = vld [vmem:[#allocation2 + $0x54] sm:$0xff]
        %v2884 = vld [vmem:[#allocation2 + $0x5c] sm:$0xff]
        %v2885 = vld [vmem:[#allocation2 + $0x64] sm:$0xff]
        %v2886 = vld [vmem:[#allocation2 + $0x6c] sm:$0xff]
        %v2887 = vld [vmem:[#allocation2 + $0x74] sm:$0xff]
        %v2888 = vld [vmem:[#allocation2 + $0x7c] sm:$0xff]
        %v2889 = vlaneseq
        %v2890 = vshrl.u32 %v2889, 7
        %v2891 = vsub.s32 2, %v2890
        %v2892 = vrot.slane %v2784, %v2891
        %v2893 = vmul.f32 %v2873, %v2892
        %v2894 = vmul.f32 %v2874, %v2892
        %v2895 = vmul.f32 %v2875, %v2892
        %v2896 = vmul.f32 %v2876, %v2892
        %v2897 = vmul.f32 %v2877, %v2892
        %v2898 = vmul.f32 %v2878, %v2892
        %v2899 = vmul.f32 %v2879, %v2892
        %v2900 = vmul.f32 %v2880, %v2892
        %v2901 = vmul.f32 %v2881, %v2892
        %v2902 = vmul.f32 %v2882, %v2892
        %v2903 = vmul.f32 %v2883, %v2892
        %v2904 = vmul.f32 %v2884, %v2892
        %v2905 = vmul.f32 %v2885, %v2892
        %v2906 = vmul.f32 %v2886, %v2892
        %v2907 = vmul.f32 %v2887, %v2892
        %v2908 = vmul.f32 %v2888, %v2892
        %v2909 = vadd.f32 %v2857, %v2893
        %v2910 = vadd.f32 %v2858, %v2894
        %v2911 = vadd.f32 %v2859, %v2895
        %v2912 = vadd.f32 %v2860, %v2896
        %v2913 = vadd.f32 %v2861, %v2897
        %v2914 = vadd.f32 %v2862, %v2898
        %v2915 = vadd.f32 %v2863, %v2899
        %v2916 = vadd.f32 %v2864, %v2900
        %v2917 = vadd.f32 %v2865, %v2901
        %v2918 = vadd.f32 %v2866, %v2902
        %v2919 = vadd.f32 %v2867, %v2903
        %v2920 = vadd.f32 %v2868, %v2904
        %v2921 = vadd.f32 %v2869, %v2905
        %v2922 = vadd.f32 %v2870, %v2906
        %v2923 = vadd.f32 %v2871, %v2907
        %v2924 = vadd.f32 %v2872, %v2908
        %s2925 = sld [smem:[#allocation7 + $0x1]]
        %vm2926 = vcmp.ge.f32.partialorder %v2909, 0.0
        %vm2927 = vcmp.ge.f32.partialorder %v2910, 0.0
        %vm2928 = vcmp.ge.f32.partialorder %v2911, 0.0
        %vm2929 = vcmp.ge.f32.partialorder %v2912, 0.0
        %vm2930 = vcmp.ge.f32.partialorder %v2913, 0.0
        %vm2931 = vcmp.ge.f32.partialorder %v2914, 0.0
        %vm2932 = vcmp.ge.f32.partialorder %v2915, 0.0
        %vm2933 = vcmp.ge.f32.partialorder %v2916, 0.0
        %vm2934 = vcmp.ge.f32.partialorder %v2917, 0.0
        %vm2935 = vcmp.ge.f32.partialorder %v2918, 0.0
        %vm2936 = vcmp.ge.f32.partialorder %v2919, 0.0
        %vm2937 = vcmp.ge.f32.partialorder %v2920, 0.0
        %vm2938 = vcmp.ge.f32.partialorder %v2921, 0.0
        %vm2939 = vcmp.ge.f32.partialorder %v2922, 0.0
        %vm2940 = vcmp.ge.f32.partialorder %v2923, 0.0
        %vm2941 = vcmp.ge.f32.partialorder %v2924, 0.0
        %v2942 = vstv %s2925
        %v2943 = vmul.f32 %v2942, %v2909
        %v2944 = vmul.f32 %v2942, %v2910
        %v2945 = vmul.f32 %v2942, %v2911
        %v2946 = vmul.f32 %v2942, %v2912
        %v2947 = vmul.f32 %v2942, %v2913
        %v2948 = vmul.f32 %v2942, %v2914
        %v2949 = vmul.f32 %v2942, %v2915
        %v2950 = vmul.f32 %v2942, %v2916
        %v2951 = vmul.f32 %v2942, %v2917
        %v2952 = vmul.f32 %v2942, %v2918
        %v2953 = vmul.f32 %v2942, %v2919
        %v2954 = vmul.f32 %v2942, %v2920
        %v2955 = vmul.f32 %v2942, %v2921
        %v2956 = vmul.f32 %v2942, %v2922
        %v2957 = vmul.f32 %v2942, %v2923
        %v2958 = vmul.f32 %v2942, %v2924
        %v2959 = vsel %vm2926, %v2909, %v2943
        %v2960 = vsel %vm2927, %v2910, %v2944
        %v2961 = vsel %vm2928, %v2911, %v2945
        %v2962 = vsel %vm2929, %v2912, %v2946
        %v2963 = vsel %vm2930, %v2913, %v2947
        %v2964 = vsel %vm2931, %v2914, %v2948
        %v2965 = vsel %vm2932, %v2915, %v2949
        %v2966 = vsel %vm2933, %v2916, %v2950
        %v2967 = vsel %vm2934, %v2917, %v2951
        %v2968 = vsel %vm2935, %v2918, %v2952
        %v2969 = vsel %vm2936, %v2919, %v2953
        %v2970 = vsel %vm2937, %v2920, %v2954
        %v2971 = vsel %vm2938, %v2921, %v2955
        %v2972 = vsel %vm2939, %v2922, %v2956
        %v2973 = vsel %vm2940, %v2923, %v2957
        %v2974 = vsel %vm2941, %v2924, %v2958
        %v2975 = vld [vmem:[#allocation17 + $0x1] sm:$0x1]
        %v2976 = vld [vmem:[#allocation18 + $0x1] sm:$0x1]
        %v2977 = vadd.f32 %v2959, %v2960
        %v2978 = vadd.f32 %v2977, %v2961
        %v2979 = vadd.f32 %v2978, %v2962
        %v2980 = vadd.f32 %v2979, %v2963
        %v2981 = vadd.f32 %v2980, %v2964
        %v2982 = vadd.f32 %v2981, %v2965
        %v2983 = vadd.f32 %v2982, %v2966
        %v2984 = vadd.f32 %v2983, %v2967
        %v2985 = vadd.f32 %v2984, %v2968
        %v2986 = vadd.f32 %v2985, %v2969
        %v2987 = vadd.f32 %v2986, %v2970
        %v2988 = vadd.f32 %v2987, %v2971
        %v2989 = vadd.f32 %v2988, %v2972
        %v2990 = vadd.f32 %v2989, %v2973
        %v2991 = vadd.f32 %v2990, %v2974
        %2992 = vadd.xlane.f32.xlu0 %v2991
        %v2993 = vpop.xlane.xlu0 %2992
        %v2994 = vrot.slane %v2993, 4
        %v2995 = vadd.f32 %v2993, %v2994
        %v2996 = vrot.slane %v2995, 2
        %v2997 = vadd.f32 %v2995, %v2996
        %v2998 = vrot.slane %v2997, 1
        %v2999 = vadd.f32 %v2997, %v2998
        %s3000 = vtos %v2999
        %v3001 = vstv %s3000
        %v3002 = vmul.f32 %v2959, %v2959
        %v3003 = vmul.f32 %v2960, %v2960
        %v3004 = vmul.f32 %v2961, %v2961
        %v3005 = vmul.f32 %v2962, %v2962
        %v3006 = vmul.f32 %v2963, %v2963
        %v3007 = vmul.f32 %v2964, %v2964
        %v3008 = vmul.f32 %v2965, %v2965
        %v3009 = vmul.f32 %v2966, %v2966
        %v3010 = vmul.f32 %v2967, %v2967
        %v3011 = vmul.f32 %v2968, %v2968
        %v3012 = vmul.f32 %v2969, %v2969
        %v3013 = vmul.f32 %v2970, %v2970
        %v3014 = vmul.f32 %v2971, %v2971
        %v3015 = vmul.f32 %v2972, %v2972
        %v3016 = vmul.f32 %v2973, %v2973
        %v3017 = vmul.f32 %v2974, %v2974
        %v3018 = vadd.f32 %v3002, %v3003
        %v3019 = vadd.f32 %v3018, %v3004
        %v3020 = vadd.f32 %v3019, %v3005
        %v3021 = vadd.f32 %v3020, %v3006
        %v3022 = vadd.f32 %v3021, %v3007
        %v3023 = vadd.f32 %v3022, %v3008
        %v3024 = vadd.f32 %v3023, %v3009
        %v3025 = vadd.f32 %v3024, %v3010
        %v3026 = vadd.f32 %v3025, %v3011
        %v3027 = vadd.f32 %v3026, %v3012
        %v3028 = vadd.f32 %v3027, %v3013
        %v3029 = vadd.f32 %v3028, %v3014
        %v3030 = vadd.f32 %v3029, %v3015
        %v3031 = vadd.f32 %v3030, %v3016
        %v3032 = vadd.f32 %v3031, %v3017
        %3033 = vadd.xlane.f32.xlu0 %v3032
        %v3034 = vpop.xlane.xlu0 %3033
        %v3035 = vrot.slane %v3034, 4
        %v3036 = vadd.f32 %v3034, %v3035
        %v3037 = vrot.slane %v3036, 2
        %v3038 = vadd.f32 %v3036, %v3037
        %v3039 = vrot.slane %v3038, 1
        %v3040 = vadd.f32 %v3038, %v3039
        %s3041 = vtos %v3040
        %v3042 = vstv %s3041
        %v3043 = vmul.f32 %v3001, %v1791
        %v3044 = vmul.f32 %v3042, %v1791
        %v3045 = vmul.f32 %v3043, %v3043
        %v3046 = vsub.f32 %v3044, %v3045
        %v3047 = vmax.f32 %v3046, 0.0
        %v3048 = vsub.f32 %v2959, %v3043
        %v3049 = vsub.f32 %v2960, %v3043
        %v3050 = vsub.f32 %v2961, %v3043
        %v3051 = vsub.f32 %v2962, %v3043
        %v3052 = vsub.f32 %v2963, %v3043
        %v3053 = vsub.f32 %v2964, %v3043
        %v3054 = vsub.f32 %v2965, %v3043
        %v3055 = vsub.f32 %v2966, %v3043
        %v3056 = vsub.f32 %v2967, %v3043
        %v3057 = vsub.f32 %v2968, %v3043
        %v3058 = vsub.f32 %v2969, %v3043
        %v3059 = vsub.f32 %v2970, %v3043
        %v3060 = vsub.f32 %v2971, %v3043
        %v3061 = vsub.f32 %v2972, %v3043
        %v3062 = vsub.f32 %v2973, %v3043
        %v3063 = vsub.f32 %v2974, %v3043
        %v3064 = vlaneseq
        %v3065 = vshrl.u32 %v3064, 7
        %v3066 = vsub.s32 0, %v3065
        %v3067 = vrot.slane %v2975, %v3066
        %v3068 = vmul.f32 %v3067, %v3048
        %v3069 = vmul.f32 %v3067, %v3049
        %v3070 = vmul.f32 %v3067, %v3050
        %v3071 = vmul.f32 %v3067, %v3051
        %v3072 = vmul.f32 %v3067, %v3052
        %v3073 = vmul.f32 %v3067, %v3053
        %v3074 = vmul.f32 %v3067, %v3054
        %v3075 = vmul.f32 %v3067, %v3055
        %v3076 = vmul.f32 %v3067, %v3056
        %v3077 = vmul.f32 %v3067, %v3057
        %v3078 = vmul.f32 %v3067, %v3058
        %v3079 = vmul.f32 %v3067, %v3059
        %v3080 = vmul.f32 %v3067, %v3060
        %v3081 = vmul.f32 %v3067, %v3061
        %v3082 = vmul.f32 %v3067, %v3062
        %v3083 = vmul.f32 %v3067, %v3063
        %v3084 = vadd.f32 %v3047, 1e-08
        %v3085 = vrsqrt.pop %v3084
        %v3086 = vmul.f32 %v3068, %v3085
        %v3087 = vmul.f32 %v3069, %v3085
        %v3088 = vmul.f32 %v3070, %v3085
        %v3089 = vmul.f32 %v3071, %v3085
        %v3090 = vmul.f32 %v3072, %v3085
        %v3091 = vmul.f32 %v3073, %v3085
        %v3092 = vmul.f32 %v3074, %v3085
        %v3093 = vmul.f32 %v3075, %v3085
        %v3094 = vmul.f32 %v3076, %v3085
        %v3095 = vmul.f32 %v3077, %v3085
        %v3096 = vmul.f32 %v3078, %v3085
        %v3097 = vmul.f32 %v3079, %v3085
        %v3098 = vmul.f32 %v3080, %v3085
        %v3099 = vmul.f32 %v3081, %v3085
        %v3100 = vmul.f32 %v3082, %v3085
        %v3101 = vmul.f32 %v3083, %v3085
        %v3102 = vlaneseq
        %v3103 = vshrl.u32 %v3102, 7
        %v3104 = vsub.s32 0, %v3103
        %v3105 = vrot.slane %v2976, %v3104
        %v3106 = vadd.f32 %v3086, %v3105
        %v3107 = vadd.f32 %v3087, %v3105
        %v3108 = vadd.f32 %v3088, %v3105
        %v3109 = vadd.f32 %v3089, %v3105
        %v3110 = vadd.f32 %v3090, %v3105
        %v3111 = vadd.f32 %v3091, %v3105
        %v3112 = vadd.f32 %v3092, %v3105
        %v3113 = vadd.f32 %v3093, %v3105
        %v3114 = vadd.f32 %v3094, %v3105
        %v3115 = vadd.f32 %v3095, %v3105
        %v3116 = vadd.f32 %v3096, %v3105
        %v3117 = vadd.f32 %v3097, %v3105
        %v3118 = vadd.f32 %v3098, %v3105
        %v3119 = vadd.f32 %v3099, %v3105
        %v3120 = vadd.f32 %v3100, %v3105
        %v3121 = vadd.f32 %v3101, %v3105
        %s3122 = scalar_lea.vmem [#allocation20], 64
        %v3123 = vld [vmem:[%s3122] sm:$0xf]
        %v3124 = vld [vmem:[%s3122 + $0x4] sm:$0xf]
        %v3125 = vld [vmem:[%s3122 + $0x8] sm:$0xf]
        %v3126 = vld [vmem:[%s3122 + $0xc] sm:$0xf]
        %v3127 = vld [vmem:[%s3122 + $0x10] sm:$0xf]
        %v3128 = vld [vmem:[%s3122 + $0x14] sm:$0xf]
        %v3129 = vld [vmem:[%s3122 + $0x18] sm:$0xf]
        %v3130 = vld [vmem:[%s3122 + $0x1c] sm:$0xf]
        %v3131 = vld [vmem:[%s3122 + $0x20] sm:$0xf]
        %v3132 = vld [vmem:[%s3122 + $0x24] sm:$0xf]
        %v3133 = vld [vmem:[%s3122 + $0x28] sm:$0xf]
        %v3134 = vld [vmem:[%s3122 + $0x2c] sm:$0xf]
        %v3135 = vld [vmem:[%s3122 + $0x30] sm:$0xf]
        %v3136 = vld [vmem:[%s3122 + $0x34] sm:$0xf]
        %v3137 = vld [vmem:[%s3122 + $0x38] sm:$0xf]
        %v3138 = vld [vmem:[%s3122 + $0x3c] sm:$0xf]
        %v3139 = vpack.c.bf16 %v3107, %v3106
        %v3140 = vpack.c.bf16 %v3109, %v3108
        %v3141 = vpack.c.bf16 %v3111, %v3110
        %v3142 = vpack.c.bf16 %v3113, %v3112
        %v3143 = vpack.c.bf16 %v3115, %v3114
        %v3144 = vpack.c.bf16 %v3117, %v3116
        %v3145 = vpack.c.bf16 %v3119, %v3118
        %v3146 = vpack.c.bf16 %v3121, %v3120
        %v3163 = vunpack.c.l.b16 %v3123
        %v3164 = vunpack.c.l.b16 %v3124
        %v3165 = vunpack.c.l.b16 %v3125
        %v3166 = vunpack.c.l.b16 %v3126
        %v3167 = vunpack.c.l.b16 %v3127
        %v3168 = vunpack.c.l.b16 %v3128
        %v3169 = vunpack.c.l.b16 %v3129
        %v3170 = vunpack.c.l.b16 %v3130
        %v3171 = vunpack.c.l.b16 %v3131
        %v3172 = vunpack.c.l.b16 %v3132
        %v3173 = vunpack.c.l.b16 %v3133
        %v3174 = vunpack.c.l.b16 %v3134
        %v3175 = vunpack.c.l.b16 %v3135
        %v3176 = vunpack.c.l.b16 %v3136
        %v3177 = vunpack.c.l.b16 %v3137
        %v3178 = vunpack.c.l.b16 %v3138
        %v3179 = vpack.c.b16 %v3164, %v3163
        %v3180 = vpack.c.b16 %v3166, %v3165
        %v3181 = vpack.c.b16 %v3168, %v3167
        %v3182 = vpack.c.b16 %v3170, %v3169
        %v3183 = vpack.c.b16 %v3172, %v3171
        %v3184 = vpack.c.b16 %v3174, %v3173
        %v3185 = vpack.c.b16 %v3176, %v3175
        %v3186 = vpack.c.b16 %v3178, %v3177
        %3195 = vmatprep.subr.bf16.mxu0 0
        %3196 = vmatpush1.bf16.msra.mxu0 %v3179
        %3197 = vmatprep.subr.bf16.mxu0 0
        %3198 = vmatpush1.bf16.msra.mxu0 %v3180
        %3199 = vmatprep.subr.bf16.mxu0 0
        %3200 = vmatpush1.bf16.msra.mxu0 %v3181
        %3201 = vmatprep.subr.bf16.mxu0 0
        %3202 = vmatpush1.bf16.msra.mxu0 %v3182
        %3203 = vmatprep.subr.bf16.mxu0 0
        %3204 = vmatpush1.bf16.msra.mxu0 %v3183
        %3205 = vmatprep.subr.bf16.mxu0 0
        %3206 = vmatpush1.bf16.msra.mxu0 %v3184
        %3207 = vmatprep.subr.bf16.mxu0 0
        %3208 = vmatpush1.bf16.msra.mxu0 %v3185
        %3209 = vmatprep.subr.bf16.mxu0 0
        %3210 = vmatpush1.bf16.msra.mxu0 %v3186
        %3211 = vmatprep.subr.bf16.mxu0 0
        %3212 = vmatpush1.bf16.msra.mxu0 0
        %3213 = vmatprep.subr.bf16.mxu0 0
        %3214 = vmatpush1.bf16.msra.mxu0 0
        %3215 = vmatprep.subr.bf16.mxu0 0
        %3216 = vmatpush1.bf16.msra.mxu0 0
        %3217 = vmatprep.subr.bf16.mxu0 0
        %3218 = vmatpush1.bf16.msra.mxu0 0
        %3219 = vmatprep.subr.bf16.mxu0 0
        %3220 = vmatpush1.bf16.msra.mxu0 0
        %3221 = vmatprep.subr.bf16.mxu0 0
        %3222 = vmatpush1.bf16.msra.mxu0 0
        %3223 = vmatprep.subr.bf16.mxu0 0
        %3224 = vmatpush1.bf16.msra.mxu0 0
        %3225 = vmatprep.subr.bf16.mxu0 0
        %3226 = vmatpush1.bf16.msra.mxu0 0
        %3227 = vmatprep.mubr.bf16.mxu0 0
        %3228 = vmatmul.mubr.bf16.gmra.mrb[0].mxu0 %v3139
        %v3229 = vpop.f32.mrb[0].mxu0
        %v3230 = vadd.f32 %v2334, %v3229
        %v3231 = vpop.f32.mrb[0].mxu0
        %v3232 = vpop.f32.mrb[0].mxu0
        %v3233 = vadd.f32 %v2337, %v3232
        %v3234 = vpop.f32.mrb[0].mxu0
        %3235 = vmatprep.mubr.bf16.mxu0 0
        %3236 = vmatmul.mubr.bf16.gmra.mrb[0].mxu0 %v3140
        %v3237 = vpop.f32.mrb[0].mxu0
        %v3238 = vadd.f32 %v2342, %v3237
        %v3239 = vpop.f32.mrb[0].mxu0
        %v3240 = vpop.f32.mrb[0].mxu0
        %v3241 = vadd.f32 %v2345, %v3240
        %v3242 = vpop.f32.mrb[0].mxu0
        %3243 = vmatprep.mubr.bf16.mxu0 0
        %3244 = vmatmul.mubr.bf16.gmra.mrb[0].mxu0 %v3141
        %v3245 = vpop.f32.mrb[0].mxu0
        %v3246 = vadd.f32 %v2350, %v3245
        %v3247 = vpop.f32.mrb[0].mxu0
        %v3248 = vpop.f32.mrb[0].mxu0
        %v3249 = vadd.f32 %v2353, %v3248
        %v3250 = vpop.f32.mrb[0].mxu0
        %3251 = vmatprep.mubr.bf16.mxu0 0
        %3252 = vmatmul.mubr.bf16.gmra.mrb[0].mxu0 %v3142
        %v3253 = vpop.f32.mrb[0].mxu0
        %v3254 = vadd.f32 %v2358, %v3253
        %v3255 = vpop.f32.mrb[0].mxu0
        %v3256 = vpop.f32.mrb[0].mxu0
        %v3257 = vadd.f32 %v2361, %v3256
        %v3258 = vpop.f32.mrb[0].mxu0
        %3259 = vmatprep.mubr.bf16.mxu0 0
        %3260 = vmatmul.mubr.bf16.gmra.mrb[0].mxu0 %v3143
        %v3261 = vpop.f32.mrb[0].mxu0
        %v3262 = vadd.f32 %v2366, %v3261
        %v3263 = vpop.f32.mrb[0].mxu0
        %v3264 = vpop.f32.mrb[0].mxu0
        %v3265 = vadd.f32 %v2369, %v3264
        %v3266 = vpop.f32.mrb[0].mxu0
        %3267 = vmatprep.mubr.bf16.mxu0 0
        %3268 = vmatmul.mubr.bf16.gmra.mrb[0].mxu0 %v3144
        %v3269 = vpop.f32.mrb[0].mxu0
        %v3270 = vadd.f32 %v2374, %v3269
        %v3271 = vpop.f32.mrb[0].mxu0
        %v3272 = vpop.f32.mrb[0].mxu0
        %v3273 = vadd.f32 %v2377, %v3272
        %v3274 = vpop.f32.mrb[0].mxu0
        %3275 = vmatprep.mubr.bf16.mxu0 0
        %3276 = vmatmul.mubr.bf16.gmra.mrb[0].mxu0 %v3145
        %v3277 = vpop.f32.mrb[0].mxu0
        %v3278 = vadd.f32 %v2382, %v3277
        %v3279 = vpop.f32.mrb[0].mxu0
        %v3280 = vpop.f32.mrb[0].mxu0
        %v3281 = vadd.f32 %v2385, %v3280
        %v3282 = vpop.f32.mrb[0].mxu0
        %3283 = vmatprep.mubr.bf16.mxu0 0
        %3284 = vmatmul.mubr.bf16.gmra.mrb[0].mxu0 %v3146
        %v3285 = vpop.f32.mrb[0].mxu0
        %v3286 = vadd.f32 %v2390, %v3285
        %v3287 = vpop.f32.mrb[0].mxu0
        %v3288 = vpop.f32.mrb[0].mxu0
        %v3289 = vadd.f32 %v2393, %v3288
        %v3290 = vpop.f32.mrb[0].mxu0
        %3291 = vdwg.mxu0
        %s3292 = scalar_lea.vmem %s7, 64
        %v3293 = vld [vmem:[%s3292] sm:$0xf]
        %v3294 = vld [vmem:[%s3292 + $0x4] sm:$0xf]
        %v3295 = vld [vmem:[%s3292 + $0x8] sm:$0xf]
        %v3296 = vld [vmem:[%s3292 + $0xc] sm:$0xf]
        %v3297 = vld [vmem:[%s3292 + $0x10] sm:$0xf]
        %v3298 = vld [vmem:[%s3292 + $0x14] sm:$0xf]
        %v3299 = vld [vmem:[%s3292 + $0x18] sm:$0xf]
        %v3300 = vld [vmem:[%s3292 + $0x1c] sm:$0xf]
        %v3301 = vld [vmem:[%s3292 + $0x20] sm:$0xf]
        %v3302 = vld [vmem:[%s3292 + $0x24] sm:$0xf]
        %v3303 = vld [vmem:[%s3292 + $0x28] sm:$0xf]
        %v3304 = vld [vmem:[%s3292 + $0x2c] sm:$0xf]
        %v3305 = vld [vmem:[%s3292 + $0x30] sm:$0xf]
        %v3306 = vld [vmem:[%s3292 + $0x34] sm:$0xf]
        %v3307 = vld [vmem:[%s3292 + $0x38] sm:$0xf]
        %v3308 = vld [vmem:[%s3292 + $0x3c] sm:$0xf]
        %v3309 = vpack.c.bf16 %v3233, %v3230
        %v3310 = vpack.c.bf16 %v3241, %v3238
        %v3311 = vpack.c.bf16 %v3249, %v3246
        %v3312 = vpack.c.bf16 %v3257, %v3254
        %v3313 = vpack.c.bf16 %v3265, %v3262
        %v3314 = vpack.c.bf16 %v3273, %v3270
        %v3315 = vpack.c.bf16 %v3281, %v3278
        %v3316 = vpack.c.bf16 %v3289, %v3286
        %s3317 = scalar_lea.vmem %s8, 32
        %v3318 = vld [vmem:[%s3317] sm:$0xf]
        %v3319 = vld [vmem:[%s3317 + $0x4] sm:$0xf]
        %v3320 = vld [vmem:[%s3317 + $0x8] sm:$0xf]
        %v3321 = vld [vmem:[%s3317 + $0xc] sm:$0xf]
        %v3322 = vld [vmem:[%s3317 + $0x10] sm:$0xf]
        %v3323 = vld [vmem:[%s3317 + $0x14] sm:$0xf]
        %v3324 = vld [vmem:[%s3317 + $0x18] sm:$0xf]
        %v3325 = vld [vmem:[%s3317 + $0x1c] sm:$0xf]
        %v3334 = vunpack.c.l.b16 %v3318
        %v3335 = vunpack.c.l.b16 %v3319
        %v3336 = vunpack.c.l.b16 %v3320
        %v3337 = vunpack.c.l.b16 %v3321
        %v3338 = vunpack.c.l.b16 %v3322
        %v3339 = vunpack.c.l.b16 %v3323
        %v3340 = vunpack.c.l.b16 %v3324
        %v3341 = vunpack.c.l.b16 %v3325
        %v3342 = vpack.c.b16 %v3335, %v3334
        %v3343 = vpack.c.b16 %v3337, %v3336
        %v3344 = vpack.c.b16 %v3339, %v3338
        %v3345 = vpack.c.b16 %v3341, %v3340
        %3350 = vmatprep.subr.bf16.mxu0 0
        %3351 = vmatpush1.bf16.msra.mxu0 %v3342
        %3352 = vmatprep.subr.bf16.mxu0 0
        %3353 = vmatpush1.bf16.msra.mxu0 %v3343
        %3354 = vmatprep.subr.bf16.mxu0 0
        %3355 = vmatpush1.bf16.msra.mxu0 %v3344
        %3356 = vmatprep.subr.bf16.mxu0 0
        %3357 = vmatpush1.bf16.msra.mxu0 %v3345
        %3358 = vmatprep.subr.bf16.mxu0 0
        %3359 = vmatpush1.bf16.msra.mxu0 0
        %3360 = vmatprep.subr.bf16.mxu0 0
        %3361 = vmatpush1.bf16.msra.mxu0 0
        %3362 = vmatprep.subr.bf16.mxu0 0
        %3363 = vmatpush1.bf16.msra.mxu0 0
        %3364 = vmatprep.subr.bf16.mxu0 0
        %3365 = vmatpush1.bf16.msra.mxu0 0
        %3366 = vmatprep.subr.bf16.mxu0 0
        %3367 = vmatpush1.bf16.msra.mxu0 0
        %3368 = vmatprep.subr.bf16.mxu0 0
        %3369 = vmatpush1.bf16.msra.mxu0 0
        %3370 = vmatprep.subr.bf16.mxu0 0
        %3371 = vmatpush1.bf16.msra.mxu0 0
        %3372 = vmatprep.subr.bf16.mxu0 0
        %3373 = vmatpush1.bf16.msra.mxu0 0
        %3374 = vmatprep.subr.bf16.mxu0 0
        %3375 = vmatpush1.bf16.msra.mxu0 0
        %3376 = vmatprep.subr.bf16.mxu0 0
        %3377 = vmatpush1.bf16.msra.mxu0 0
        %3378 = vmatprep.subr.bf16.mxu0 0
        %3379 = vmatpush1.bf16.msra.mxu0 0
        %3380 = vmatprep.subr.bf16.mxu0 0
        %3381 = vmatpush1.bf16.msra.mxu0 0
        %3382 = vmatprep.mubr.bf16.mxu0 0
        %3383 = vmatmul.mubr.bf16.gmra.mrb[0].mxu0 %v1290
        %v3384 = vpop.f32.mrb[0].mxu0
        %v3385 = vadd.f32 0.0, %v3384
        %v3386 = vpop.f32.mrb[0].mxu0
        %v3387 = vpop.f32.mrb[0].mxu0
        %v3388 = vpop.f32.mrb[0].mxu0
        %3389 = vdwg.mxu0
        %v3390 = vlaneseq
        %v3391 = vshrl.u32 %v3390, 7
        %v3392 = vsub.s32 0, %v3391
        %v3393 = vrot.slane %v3385, %v3392
        %v3410 = vunpack.c.l.b16 %v3293
        %v3411 = vunpack.c.l.b16 %v3294
        %v3412 = vunpack.c.l.b16 %v3295
        %v3413 = vunpack.c.l.b16 %v3296
        %v3414 = vunpack.c.l.b16 %v3297
        %v3415 = vunpack.c.l.b16 %v3298
        %v3416 = vunpack.c.l.b16 %v3299
        %v3417 = vunpack.c.l.b16 %v3300
        %v3418 = vunpack.c.l.b16 %v3301
        %v3419 = vunpack.c.l.b16 %v3302
        %v3420 = vunpack.c.l.b16 %v3303
        %v3421 = vunpack.c.l.b16 %v3304
        %v3422 = vunpack.c.l.b16 %v3305
        %v3423 = vunpack.c.l.b16 %v3306
        %v3424 = vunpack.c.l.b16 %v3307
        %v3425 = vunpack.c.l.b16 %v3308
        %v3426 = vpack.c.b16 %v3411, %v3410
        %v3427 = vpack.c.b16 %v3413, %v3412
        %v3428 = vpack.c.b16 %v3415, %v3414
        %v3429 = vpack.c.b16 %v3417, %v3416
        %v3430 = vpack.c.b16 %v3419, %v3418
        %v3431 = vpack.c.b16 %v3421, %v3420
        %v3432 = vpack.c.b16 %v3423, %v3422
        %v3433 = vpack.c.b16 %v3425, %v3424
        %3442 = vmatprep.subr.bf16.mxu0 0
        %3443 = vmatpush1.bf16.msra.mxu0 %v3426
        %3444 = vmatprep.subr.bf16.mxu0 0
        %3445 = vmatpush1.bf16.msra.mxu0 %v3427
        %3446 = vmatprep.subr.bf16.mxu0 0
        %3447 = vmatpush1.bf16.msra.mxu0 %v3428
        %3448 = vmatprep.subr.bf16.mxu0 0
        %3449 = vmatpush1.bf16.msra.mxu0 %v3429
        %3450 = vmatprep.subr.bf16.mxu0 0
        %3451 = vmatpush1.bf16.msra.mxu0 %v3430
        %3452 = vmatprep.subr.bf16.mxu0 0
        %3453 = vmatpush1.bf16.msra.mxu0 %v3431
        %3454 = vmatprep.subr.bf16.mxu0 0
        %3455 = vmatpush1.bf16.msra.mxu0 %v3432
        %3456 = vmatprep.subr.bf16.mxu0 0
        %3457 = vmatpush1.bf16.msra.mxu0 %v3433
        %3458 = vmatprep.subr.bf16.mxu0 0
        %3459 = vmatpush1.bf16.msra.mxu0 0
        %3460 = vmatprep.subr.bf16.mxu0 0
        %3461 = vmatpush1.bf16.msra.mxu0 0
        %3462 = vmatprep.subr.bf16.mxu0 0
        %3463 = vmatpush1.bf16.msra.mxu0 0
        %3464 = vmatprep.subr.bf16.mxu0 0
        %3465 = vmatpush1.bf16.msra.mxu0 0
        %3466 = vmatprep.subr.bf16.mxu0 0
        %3467 = vmatpush1.bf16.msra.mxu0 0
        %3468 = vmatprep.subr.bf16.mxu0 0
        %3469 = vmatpush1.bf16.msra.mxu0 0
        %3470 = vmatprep.subr.bf16.mxu0 0
        %3471 = vmatpush1.bf16.msra.mxu0 0
        %3472 = vmatprep.subr.bf16.mxu0 0
        %3473 = vmatpush1.bf16.msra.mxu0 0
        %3474 = vmatprep.mubr.bf16.mxu0 0
        %3475 = vmatmul.mubr.bf16.gmra.mrb[0].mxu0 %v3309
        %v3476 = vpop.f32.mrb[0].mxu0
        %v3477 = vadd.f32 %v3393, %v3476
        %v3478 = vpop.f32.mrb[0].mxu0
        %v3479 = vpop.f32.mrb[0].mxu0
        %v3480 = vadd.f32 %v3393, %v3479
        %v3481 = vpop.f32.mrb[0].mxu0
        %3482 = vmatprep.mubr.bf16.mxu0 0
        %3483 = vmatmul.mubr.bf16.gmra.mrb[0].mxu0 %v3310
        %v3484 = vpop.f32.mrb[0].mxu0
        %v3485 = vadd.f32 %v3393, %v3484
        %v3486 = vpop.f32.mrb[0].mxu0
        %v3487 = vpop.f32.mrb[0].mxu0
        %v3488 = vadd.f32 %v3393, %v3487
        %v3489 = vpop.f32.mrb[0].mxu0
        %3490 = vmatprep.mubr.bf16.mxu0 0
        %3491 = vmatmul.mubr.bf16.gmra.mrb[0].mxu0 %v3311
        %v3492 = vpop.f32.mrb[0].mxu0
        %v3493 = vadd.f32 %v3393, %v3492
        %v3494 = vpop.f32.mrb[0].mxu0
        %v3495 = vpop.f32.mrb[0].mxu0
        %v3496 = vadd.f32 %v3393, %v3495
        %v3497 = vpop.f32.mrb[0].mxu0
        %3498 = vmatprep.mubr.bf16.mxu0 0
        %3499 = vmatmul.mubr.bf16.gmra.mrb[0].mxu0 %v3312
        %v3500 = vpop.f32.mrb[0].mxu0
        %v3501 = vadd.f32 %v3393, %v3500
        %v3502 = vpop.f32.mrb[0].mxu0
        %v3503 = vpop.f32.mrb[0].mxu0
        %v3504 = vadd.f32 %v3393, %v3503
        %v3505 = vpop.f32.mrb[0].mxu0
        %3506 = vmatprep.mubr.bf16.mxu0 0
        %3507 = vmatmul.mubr.bf16.gmra.mrb[0].mxu0 %v3313
        %v3508 = vpop.f32.mrb[0].mxu0
        %v3509 = vadd.f32 %v3393, %v3508
        %v3510 = vpop.f32.mrb[0].mxu0
        %v3511 = vpop.f32.mrb[0].mxu0
        %v3512 = vadd.f32 %v3393, %v3511
        %v3513 = vpop.f32.mrb[0].mxu0
        %3514 = vmatprep.mubr.bf16.mxu0 0
        %3515 = vmatmul.mubr.bf16.gmra.mrb[0].mxu0 %v3314
        %v3516 = vpop.f32.mrb[0].mxu0
        %v3517 = vadd.f32 %v3393, %v3516
        %v3518 = vpop.f32.mrb[0].mxu0
        %v3519 = vpop.f32.mrb[0].mxu0
        %v3520 = vadd.f32 %v3393, %v3519
        %v3521 = vpop.f32.mrb[0].mxu0
        %3522 = vmatprep.mubr.bf16.mxu0 0
        %3523 = vmatmul.mubr.bf16.gmra.mrb[0].mxu0 %v3315
        %v3524 = vpop.f32.mrb[0].mxu0
        %v3525 = vadd.f32 %v3393, %v3524
        %v3526 = vpop.f32.mrb[0].mxu0
        %v3527 = vpop.f32.mrb[0].mxu0
        %v3528 = vadd.f32 %v3393, %v3527
        %v3529 = vpop.f32.mrb[0].mxu0
        %3530 = vmatprep.mubr.bf16.mxu0 0
        %3531 = vmatmul.mubr.bf16.gmra.mrb[0].mxu0 %v3316
        %v3532 = vpop.f32.mrb[0].mxu0
        %v3533 = vadd.f32 %v3393, %v3532
        %v3534 = vpop.f32.mrb[0].mxu0
        %v3535 = vpop.f32.mrb[0].mxu0
        %v3536 = vadd.f32 %v3393, %v3535
        %v3537 = vpop.f32.mrb[0].mxu0
        %3538 = vdwg.mxu0
        %s3539 = scalar_lea.vmem [#allocation12], 1
        %v3540 = vld [vmem:[%s3539] sm:$0x1]
        %v3542 = vlaneseq
        %v3543 = vshrl.u32 %v3542, 7
        %v3544 = vsub.s32 0, %v3543
        %v3545 = vrot.slane %v3540, %v3544
        %v3547 = vadd.f32 %v3477, %v3545
        %v3548 = vadd.f32 %v3480, %v3545
        %v3549 = vadd.f32 %v3485, %v3545
        %v3550 = vadd.f32 %v3488, %v3545
        %v3551 = vadd.f32 %v3493, %v3545
        %v3552 = vadd.f32 %v3496, %v3545
        %v3553 = vadd.f32 %v3501, %v3545
        %v3554 = vadd.f32 %v3504, %v3545
        %v3555 = vadd.f32 %v3509, %v3545
        %v3556 = vadd.f32 %v3512, %v3545
        %v3557 = vadd.f32 %v3517, %v3545
        %v3558 = vadd.f32 %v3520, %v3545
        %v3559 = vadd.f32 %v3525, %v3545
        %v3560 = vadd.f32 %v3528, %v3545
        %v3561 = vadd.f32 %v3533, %v3545
        %v3562 = vadd.f32 %v3536, %v3545
        %s3563 = scalar_lea.vmem %s10, 128
        %v3564 = vld [vmem:[%s3563] sm:$0xf]
        %v3565 = vld [vmem:[%s3563 + $0x4] sm:$0xf]
        %v3566 = vld [vmem:[%s3563 + $0x8] sm:$0xf]
        %v3567 = vld [vmem:[%s3563 + $0xc] sm:$0xf]
        %v3568 = vld [vmem:[%s3563 + $0x10] sm:$0xf]
        %v3569 = vld [vmem:[%s3563 + $0x14] sm:$0xf]
        %v3570 = vld [vmem:[%s3563 + $0x18] sm:$0xf]
        %v3571 = vld [vmem:[%s3563 + $0x1c] sm:$0xf]
        %v3572 = vld [vmem:[%s3563 + $0x20] sm:$0xf]
        %v3573 = vld [vmem:[%s3563 + $0x24] sm:$0xf]
        %v3574 = vld [vmem:[%s3563 + $0x28] sm:$0xf]
        %v3575 = vld [vmem:[%s3563 + $0x2c] sm:$0xf]
        %v3576 = vld [vmem:[%s3563 + $0x30] sm:$0xf]
        %v3577 = vld [vmem:[%s3563 + $0x34] sm:$0xf]
        %v3578 = vld [vmem:[%s3563 + $0x38] sm:$0xf]
        %v3579 = vld [vmem:[%s3563 + $0x3c] sm:$0xf]
        %v3580 = vpack.c.bf16 %v3548, %v3547
        %v3581 = vpack.c.bf16 %v3550, %v3549
        %v3582 = vpack.c.bf16 %v3552, %v3551
        %v3583 = vpack.c.bf16 %v3554, %v3553
        %v3584 = vpack.c.bf16 %v3556, %v3555
        %v3585 = vpack.c.bf16 %v3558, %v3557
        %v3586 = vpack.c.bf16 %v3560, %v3559
        %v3587 = vpack.c.bf16 %v3562, %v3561
        %v3604 = vunpack.c.l.b16 %v3564
        %v3605 = vunpack.c.l.b16 %v3565
        %v3606 = vunpack.c.l.b16 %v3566
        %v3607 = vunpack.c.l.b16 %v3567
        %v3608 = vunpack.c.l.b16 %v3568
        %v3609 = vunpack.c.l.b16 %v3569
        %v3610 = vunpack.c.l.b16 %v3570
        %v3611 = vunpack.c.l.b16 %v3571
        %v3612 = vunpack.c.l.b16 %v3572
        %v3613 = vunpack.c.l.b16 %v3573
        %v3614 = vunpack.c.l.b16 %v3574
        %v3615 = vunpack.c.l.b16 %v3575
        %v3616 = vunpack.c.l.b16 %v3576
        %v3617 = vunpack.c.l.b16 %v3577
        %v3618 = vunpack.c.l.b16 %v3578
        %v3619 = vunpack.c.l.b16 %v3579
        %v3620 = vpack.c.b16 %v3605, %v3604
        %v3621 = vpack.c.b16 %v3607, %v3606
        %v3622 = vpack.c.b16 %v3609, %v3608
        %v3623 = vpack.c.b16 %v3611, %v3610
        %v3624 = vpack.c.b16 %v3613, %v3612
        %v3625 = vpack.c.b16 %v3615, %v3614
        %v3626 = vpack.c.b16 %v3617, %v3616
        %v3627 = vpack.c.b16 %v3619, %v3618
        %3636 = vmatprep.subr.bf16.mxu0 0
        %3637 = vmatpush1.bf16.msra.mxu0 %v3620
        %3638 = vmatprep.subr.bf16.mxu0 0
        %3639 = vmatpush1.bf16.msra.mxu0 %v3621
        %3640 = vmatprep.subr.bf16.mxu0 0
        %3641 = vmatpush1.bf16.msra.mxu0 %v3622
        %3642 = vmatprep.subr.bf16.mxu0 0
        %3643 = vmatpush1.bf16.msra.mxu0 %v3623
        %3644 = vmatprep.subr.bf16.mxu0 0
        %3645 = vmatpush1.bf16.msra.mxu0 %v3624
        %3646 = vmatprep.subr.bf16.mxu0 0
        %3647 = vmatpush1.bf16.msra.mxu0 %v3625
        %3648 = vmatprep.subr.bf16.mxu0 0
        %3649 = vmatpush1.bf16.msra.mxu0 %v3626
        %3650 = vmatprep.subr.bf16.mxu0 0
        %3651 = vmatpush1.bf16.msra.mxu0 %v3627
        %3652 = vmatprep.subr.bf16.mxu0 0
        %3653 = vmatpush1.bf16.msra.mxu0 0
        %3654 = vmatprep.subr.bf16.mxu0 0
        %3655 = vmatpush1.bf16.msra.mxu0 0
        %3656 = vmatprep.subr.bf16.mxu0 0
        %3657 = vmatpush1.bf16.msra.mxu0 0
        %3658 = vmatprep.subr.bf16.mxu0 0
        %3659 = vmatpush1.bf16.msra.mxu0 0
        %3660 = vmatprep.subr.bf16.mxu0 0
        %3661 = vmatpush1.bf16.msra.mxu0 0
        %3662 = vmatprep.subr.bf16.mxu0 0
        %3663 = vmatpush1.bf16.msra.mxu0 0
        %3664 = vmatprep.subr.bf16.mxu0 0
        %3665 = vmatpush1.bf16.msra.mxu0 0
        %3666 = vmatprep.subr.bf16.mxu0 0
        %3667 = vmatpush1.bf16.msra.mxu0 0
        %3668 = vmatprep.mubr.bf16.mxu0 0
        %3669 = vmatmul.mubr.bf16.gmra.mrb[0].mxu0 %v3580
        %v3670 = vpop.f32.mrb[0].mxu0
        %v3671 = vadd.f32 0.0, %v3670
        %v3672 = vpop.f32.mrb[0].mxu0
        %v3673 = vpop.f32.mrb[0].mxu0
        %v3674 = vadd.f32 0.0, %v3673
        %v3675 = vpop.f32.mrb[0].mxu0
        %3676 = vmatprep.mubr.bf16.mxu0 0
        %3677 = vmatmul.mubr.bf16.gmra.mrb[0].mxu0 %v3581
        %v3678 = vpop.f32.mrb[0].mxu0
        %v3679 = vadd.f32 0.0, %v3678
        %v3680 = vpop.f32.mrb[0].mxu0
        %v3681 = vpop.f32.mrb[0].mxu0
        %v3682 = vadd.f32 0.0, %v3681
        %v3683 = vpop.f32.mrb[0].mxu0
        %3684 = vmatprep.mubr.bf16.mxu0 0
        %3685 = vmatmul.mubr.bf16.gmra.mrb[0].mxu0 %v3582
        %v3686 = vpop.f32.mrb[0].mxu0
        %v3687 = vadd.f32 0.0, %v3686
        %v3688 = vpop.f32.mrb[0].mxu0
        %v3689 = vpop.f32.mrb[0].mxu0
        %v3690 = vadd.f32 0.0, %v3689
        %v3691 = vpop.f32.mrb[0].mxu0
        %3692 = vmatprep.mubr.bf16.mxu0 0
        %3693 = vmatmul.mubr.bf16.gmra.mrb[0].mxu0 %v3583
        %v3694 = vpop.f32.mrb[0].mxu0
        %v3695 = vadd.f32 0.0, %v3694
        %v3696 = vpop.f32.mrb[0].mxu0
        %v3697 = vpop.f32.mrb[0].mxu0
        %v3698 = vadd.f32 0.0, %v3697
        %v3699 = vpop.f32.mrb[0].mxu0
        %3700 = vmatprep.mubr.bf16.mxu0 0
        %3701 = vmatmul.mubr.bf16.gmra.mrb[0].mxu0 %v3584
        %v3702 = vpop.f32.mrb[0].mxu0
        %v3703 = vadd.f32 0.0, %v3702
        %v3704 = vpop.f32.mrb[0].mxu0
        %v3705 = vpop.f32.mrb[0].mxu0
        %v3706 = vadd.f32 0.0, %v3705
        %v3707 = vpop.f32.mrb[0].mxu0
        %3708 = vmatprep.mubr.bf16.mxu0 0
        %3709 = vmatmul.mubr.bf16.gmra.mrb[0].mxu0 %v3585
        %v3710 = vpop.f32.mrb[0].mxu0
        %v3711 = vadd.f32 0.0, %v3710
        %v3712 = vpop.f32.mrb[0].mxu0
        %v3713 = vpop.f32.mrb[0].mxu0
        %v3714 = vadd.f32 0.0, %v3713
        %v3715 = vpop.f32.mrb[0].mxu0
        %3716 = vmatprep.mubr.bf16.mxu0 0
        %3717 = vmatmul.mubr.bf16.gmra.mrb[0].mxu0 %v3586
        %v3718 = vpop.f32.mrb[0].mxu0
        %v3719 = vadd.f32 0.0, %v3718
        %v3720 = vpop.f32.mrb[0].mxu0
        %v3721 = vpop.f32.mrb[0].mxu0
        %v3722 = vadd.f32 0.0, %v3721
        %v3723 = vpop.f32.mrb[0].mxu0
        %3724 = vmatprep.mubr.bf16.mxu0 0
        %3725 = vmatmul.mubr.bf16.gmra.mrb[0].mxu0 %v3587
        %v3726 = vpop.f32.mrb[0].mxu0
        %v3727 = vadd.f32 0.0, %v3726
        %v3728 = vpop.f32.mrb[0].mxu0
        %v3729 = vpop.f32.mrb[0].mxu0
        %v3730 = vadd.f32 0.0, %v3729
        %v3731 = vpop.f32.mrb[0].mxu0
        %3732 = vdwg.mxu0
        %s3733 = sld [smem:[#allocation3 + $0x2]]
        %vm3734 = vcmp.ge.f32.partialorder %v3671, 0.0
        %vm3735 = vcmp.ge.f32.partialorder %v3674, 0.0
        %vm3736 = vcmp.ge.f32.partialorder %v3679, 0.0
        %vm3737 = vcmp.ge.f32.partialorder %v3682, 0.0
        %vm3738 = vcmp.ge.f32.partialorder %v3687, 0.0
        %vm3739 = vcmp.ge.f32.partialorder %v3690, 0.0
        %vm3740 = vcmp.ge.f32.partialorder %v3695, 0.0
        %vm3741 = vcmp.ge.f32.partialorder %v3698, 0.0
        %vm3742 = vcmp.ge.f32.partialorder %v3703, 0.0
        %vm3743 = vcmp.ge.f32.partialorder %v3706, 0.0
        %vm3744 = vcmp.ge.f32.partialorder %v3711, 0.0
        %vm3745 = vcmp.ge.f32.partialorder %v3714, 0.0
        %vm3746 = vcmp.ge.f32.partialorder %v3719, 0.0
        %vm3747 = vcmp.ge.f32.partialorder %v3722, 0.0
        %vm3748 = vcmp.ge.f32.partialorder %v3727, 0.0
        %vm3749 = vcmp.ge.f32.partialorder %v3730, 0.0
        %v3750 = vstv %s3733
        %v3751 = vmul.f32 %v3750, %v3671
        %v3752 = vmul.f32 %v3750, %v3674
        %v3753 = vmul.f32 %v3750, %v3679
        %v3754 = vmul.f32 %v3750, %v3682
        %v3755 = vmul.f32 %v3750, %v3687
        %v3756 = vmul.f32 %v3750, %v3690
        %v3757 = vmul.f32 %v3750, %v3695
        %v3758 = vmul.f32 %v3750, %v3698
        %v3759 = vmul.f32 %v3750, %v3703
        %v3760 = vmul.f32 %v3750, %v3706
        %v3761 = vmul.f32 %v3750, %v3711
        %v3762 = vmul.f32 %v3750, %v3714
        %v3763 = vmul.f32 %v3750, %v3719
        %v3764 = vmul.f32 %v3750, %v3722
        %v3765 = vmul.f32 %v3750, %v3727
        %v3766 = vmul.f32 %v3750, %v3730
        %v3767 = vsel %vm3734, %v3671, %v3751
        %v3768 = vsel %vm3735, %v3674, %v3752
        %v3769 = vsel %vm3736, %v3679, %v3753
        %v3770 = vsel %vm3737, %v3682, %v3754
        %v3771 = vsel %vm3738, %v3687, %v3755
        %v3772 = vsel %vm3739, %v3690, %v3756
        %v3773 = vsel %vm3740, %v3695, %v3757
        %v3774 = vsel %vm3741, %v3698, %v3758
        %v3775 = vsel %vm3742, %v3703, %v3759
        %v3776 = vsel %vm3743, %v3706, %v3760
        %v3777 = vsel %vm3744, %v3711, %v3761
        %v3778 = vsel %vm3745, %v3714, %v3762
        %v3779 = vsel %vm3746, %v3719, %v3763
        %v3780 = vsel %vm3747, %v3722, %v3764
        %v3781 = vsel %vm3748, %v3727, %v3765
        %v3782 = vsel %vm3749, %v3730, %v3766
        %v3783 = vld [vmem:[#allocation14 + $0x2] sm:$0x1]
        %v3784 = vld [vmem:[#allocation15 + $0x2] sm:$0x1]
        %v3785 = vadd.f32 %v3767, %v3768
        %v3786 = vadd.f32 %v3785, %v3769
        %v3787 = vadd.f32 %v3786, %v3770
        %v3788 = vadd.f32 %v3787, %v3771
        %v3789 = vadd.f32 %v3788, %v3772
        %v3790 = vadd.f32 %v3789, %v3773
        %v3791 = vadd.f32 %v3790, %v3774
        %v3792 = vadd.f32 %v3791, %v3775
        %v3793 = vadd.f32 %v3792, %v3776
        %v3794 = vadd.f32 %v3793, %v3777
        %v3795 = vadd.f32 %v3794, %v3778
        %v3796 = vadd.f32 %v3795, %v3779
        %v3797 = vadd.f32 %v3796, %v3780
        %v3798 = vadd.f32 %v3797, %v3781
        %v3799 = vadd.f32 %v3798, %v3782
        %3800 = vadd.xlane.f32.xlu0 %v3799
        %v3801 = vpop.xlane.xlu0 %3800
        %v3802 = vrot.slane %v3801, 4
        %v3803 = vadd.f32 %v3801, %v3802
        %v3804 = vrot.slane %v3803, 2
        %v3805 = vadd.f32 %v3803, %v3804
        %v3806 = vrot.slane %v3805, 1
        %v3807 = vadd.f32 %v3805, %v3806
        %s3808 = vtos %v3807
        %v3809 = vstv %s3808
        %v3810 = vmul.f32 %v3767, %v3767
        %v3811 = vmul.f32 %v3768, %v3768
        %v3812 = vmul.f32 %v3769, %v3769
        %v3813 = vmul.f32 %v3770, %v3770
        %v3814 = vmul.f32 %v3771, %v3771
        %v3815 = vmul.f32 %v3772, %v3772
        %v3816 = vmul.f32 %v3773, %v3773
        %v3817 = vmul.f32 %v3774, %v3774
        %v3818 = vmul.f32 %v3775, %v3775
        %v3819 = vmul.f32 %v3776, %v3776
        %v3820 = vmul.f32 %v3777, %v3777
        %v3821 = vmul.f32 %v3778, %v3778
        %v3822 = vmul.f32 %v3779, %v3779
        %v3823 = vmul.f32 %v3780, %v3780
        %v3824 = vmul.f32 %v3781, %v3781
        %v3825 = vmul.f32 %v3782, %v3782
        %v3826 = vadd.f32 %v3810, %v3811
        %v3827 = vadd.f32 %v3826, %v3812
        %v3828 = vadd.f32 %v3827, %v3813
        %v3829 = vadd.f32 %v3828, %v3814
        %v3830 = vadd.f32 %v3829, %v3815
        %v3831 = vadd.f32 %v3830, %v3816
        %v3832 = vadd.f32 %v3831, %v3817
        %v3833 = vadd.f32 %v3832, %v3818
        %v3834 = vadd.f32 %v3833, %v3819
        %v3835 = vadd.f32 %v3834, %v3820
        %v3836 = vadd.f32 %v3835, %v3821
        %v3837 = vadd.f32 %v3836, %v3822
        %v3838 = vadd.f32 %v3837, %v3823
        %v3839 = vadd.f32 %v3838, %v3824
        %v3840 = vadd.f32 %v3839, %v3825
        %3841 = vadd.xlane.f32.xlu0 %v3840
        %v3842 = vpop.xlane.xlu0 %3841
        %v3843 = vrot.slane %v3842, 4
        %v3844 = vadd.f32 %v3842, %v3843
        %v3845 = vrot.slane %v3844, 2
        %v3846 = vadd.f32 %v3844, %v3845
        %v3847 = vrot.slane %v3846, 1
        %v3848 = vadd.f32 %v3846, %v3847
        %s3849 = vtos %v3848
        %v3850 = vstv %s3849
        %v3851 = vmul.f32 %v3809, %v1791
        %v3852 = vmul.f32 %v3850, %v1791
        %v3853 = vmul.f32 %v3851, %v3851
        %v3854 = vsub.f32 %v3852, %v3853
        %v3855 = vmax.f32 %v3854, 0.0
        %v3856 = vsub.f32 %v3767, %v3851
        %v3857 = vsub.f32 %v3768, %v3851
        %v3858 = vsub.f32 %v3769, %v3851
        %v3859 = vsub.f32 %v3770, %v3851
        %v3860 = vsub.f32 %v3771, %v3851
        %v3861 = vsub.f32 %v3772, %v3851
        %v3862 = vsub.f32 %v3773, %v3851
        %v3863 = vsub.f32 %v3774, %v3851
        %v3864 = vsub.f32 %v3775, %v3851
        %v3865 = vsub.f32 %v3776, %v3851
        %v3866 = vsub.f32 %v3777, %v3851
        %v3867 = vsub.f32 %v3778, %v3851
        %v3868 = vsub.f32 %v3779, %v3851
        %v3869 = vsub.f32 %v3780, %v3851
        %v3870 = vsub.f32 %v3781, %v3851
        %v3871 = vsub.f32 %v3782, %v3851
        %v3872 = vlaneseq
        %v3873 = vshrl.u32 %v3872, 7
        %v3874 = vsub.s32 0, %v3873
        %v3875 = vrot.slane %v3783, %v3874
        %v3876 = vmul.f32 %v3875, %v3856
        %v3877 = vmul.f32 %v3875, %v3857
        %v3878 = vmul.f32 %v3875, %v3858
        %v3879 = vmul.f32 %v3875, %v3859
        %v3880 = vmul.f32 %v3875, %v3860
        %v3881 = vmul.f32 %v3875, %v3861
        %v3882 = vmul.f32 %v3875, %v3862
        %v3883 = vmul.f32 %v3875, %v3863
        %v3884 = vmul.f32 %v3875, %v3864
        %v3885 = vmul.f32 %v3875, %v3865
        %v3886 = vmul.f32 %v3875, %v3866
        %v3887 = vmul.f32 %v3875, %v3867
        %v3888 = vmul.f32 %v3875, %v3868
        %v3889 = vmul.f32 %v3875, %v3869
        %v3890 = vmul.f32 %v3875, %v3870
        %v3891 = vmul.f32 %v3875, %v3871
        %v3892 = vadd.f32 %v3855, 1e-08
        %v3893 = vrsqrt.pop %v3892
        %v3894 = vmul.f32 %v3876, %v3893
        %v3895 = vmul.f32 %v3877, %v3893
        %v3896 = vmul.f32 %v3878, %v3893
        %v3897 = vmul.f32 %v3879, %v3893
        %v3898 = vmul.f32 %v3880, %v3893
        %v3899 = vmul.f32 %v3881, %v3893
        %v3900 = vmul.f32 %v3882, %v3893
        %v3901 = vmul.f32 %v3883, %v3893
        %v3902 = vmul.f32 %v3884, %v3893
        %v3903 = vmul.f32 %v3885, %v3893
        %v3904 = vmul.f32 %v3886, %v3893
        %v3905 = vmul.f32 %v3887, %v3893
        %v3906 = vmul.f32 %v3888, %v3893
        %v3907 = vmul.f32 %v3889, %v3893
        %v3908 = vmul.f32 %v3890, %v3893
        %v3909 = vmul.f32 %v3891, %v3893
        %v3910 = vlaneseq
        %v3911 = vshrl.u32 %v3910, 7
        %v3912 = vsub.s32 0, %v3911
        %v3913 = vrot.slane %v3784, %v3912
        %v3914 = vadd.f32 %v3894, %v3913
        %v3915 = vadd.f32 %v3895, %v3913
        %v3916 = vadd.f32 %v3896, %v3913
        %v3917 = vadd.f32 %v3897, %v3913
        %v3918 = vadd.f32 %v3898, %v3913
        %v3919 = vadd.f32 %v3899, %v3913
        %v3920 = vadd.f32 %v3900, %v3913
        %v3921 = vadd.f32 %v3901, %v3913
        %v3922 = vadd.f32 %v3902, %v3913
        %v3923 = vadd.f32 %v3903, %v3913
        %v3924 = vadd.f32 %v3904, %v3913
        %v3925 = vadd.f32 %v3905, %v3913
        %v3926 = vadd.f32 %v3906, %v3913
        %v3927 = vadd.f32 %v3907, %v3913
        %v3928 = vadd.f32 %v3908, %v3913
        %v3929 = vadd.f32 %v3909, %v3913
        %3930 = vst [vmem:[#allocation2 + $0x1] sm:$0xff] %v3914
        %3931 = vst [vmem:[#allocation2 + $0x9] sm:$0xff] %v3915
        %3932 = vst [vmem:[#allocation2 + $0x11] sm:$0xff] %v3916
        %3933 = vst [vmem:[#allocation2 + $0x19] sm:$0xff] %v3917
        %3934 = vst [vmem:[#allocation2 + $0x21] sm:$0xff] %v3918
        %3935 = vst [vmem:[#allocation2 + $0x29] sm:$0xff] %v3919
        %3936 = vst [vmem:[#allocation2 + $0x31] sm:$0xff] %v3920
        %3937 = vst [vmem:[#allocation2 + $0x39] sm:$0xff] %v3921
        %3938 = vst [vmem:[#allocation2 + $0x41] sm:$0xff] %v3922
        %3939 = vst [vmem:[#allocation2 + $0x49] sm:$0xff] %v3923
        %3940 = vst [vmem:[#allocation2 + $0x51] sm:$0xff] %v3924
        %3941 = vst [vmem:[#allocation2 + $0x59] sm:$0xff] %v3925
        %3942 = vst [vmem:[#allocation2 + $0x61] sm:$0xff] %v3926
        %3943 = vst [vmem:[#allocation2 + $0x69] sm:$0xff] %v3927
        %3944 = vst [vmem:[#allocation2 + $0x71] sm:$0xff] %v3928
        %3945 = vst [vmem:[#allocation2 + $0x79] sm:$0xff] %v3929
        %3946 = vst [vmem:[#allocation2 - $0x1] sm:$0x2] %v3914
        %3947 = vst [vmem:[#allocation2 + $0x7b] sm:$0x40] %v3929
        %s3948 = scalar_lea.vmem %s13, 8
        %v3949 = vld [vmem:[%s3948] sm:$0x7]
        %v3950 = vld [vmem:[#allocation2] sm:$0xff]
        %v3951 = vld [vmem:[#allocation2 + $0x8] sm:$0xff]
        %v3952 = vld [vmem:[#allocation2 + $0x10] sm:$0xff]
        %v3953 = vld [vmem:[#allocation2 + $0x18] sm:$0xff]
        %v3954 = vld [vmem:[#allocation2 + $0x20] sm:$0xff]
        %v3955 = vld [vmem:[#allocation2 + $0x28] sm:$0xff]
        %v3956 = vld [vmem:[#allocation2 + $0x30] sm:$0xff]
        %v3957 = vld [vmem:[#allocation2 + $0x38] sm:$0xff]
        %v3958 = vld [vmem:[#allocation2 + $0x40] sm:$0xff]
        %v3959 = vld [vmem:[#allocation2 + $0x48] sm:$0xff]
        %v3960 = vld [vmem:[#allocation2 + $0x50] sm:$0xff]
        %v3961 = vld [vmem:[#allocation2 + $0x58] sm:$0xff]
        %v3962 = vld [vmem:[#allocation2 + $0x60] sm:$0xff]
        %v3963 = vld [vmem:[#allocation2 + $0x68] sm:$0xff]
        %v3964 = vld [vmem:[#allocation2 + $0x70] sm:$0xff]
        %v3965 = vld [vmem:[#allocation2 + $0x78] sm:$0xff]
        %v3966 = vlaneseq
        %v3967 = vshrl.u32 %v3966, 7
        %v3968 = vsub.s32 0, %v3967
        %v3969 = vrot.slane %v3949, %v3968
        %v3970 = vmul.f32 %v3950, %v3969
        %v3971 = vmul.f32 %v3951, %v3969
        %v3972 = vmul.f32 %v3952, %v3969
        %v3973 = vmul.f32 %v3953, %v3969
        %v3974 = vmul.f32 %v3954, %v3969
        %v3975 = vmul.f32 %v3955, %v3969
        %v3976 = vmul.f32 %v3956, %v3969
        %v3977 = vmul.f32 %v3957, %v3969
        %v3978 = vmul.f32 %v3958, %v3969
        %v3979 = vmul.f32 %v3959, %v3969
        %v3980 = vmul.f32 %v3960, %v3969
        %v3981 = vmul.f32 %v3961, %v3969
        %v3982 = vmul.f32 %v3962, %v3969
        %v3983 = vmul.f32 %v3963, %v3969
        %v3984 = vmul.f32 %v3964, %v3969
        %v3985 = vmul.f32 %v3965, %v3969
        %v3986 = vld [vmem:[#allocation2 + $0x1] sm:$0xff]
        %v3987 = vld [vmem:[#allocation2 + $0x9] sm:$0xff]
        %v3988 = vld [vmem:[#allocation2 + $0x11] sm:$0xff]
        %v3989 = vld [vmem:[#allocation2 + $0x19] sm:$0xff]
        %v3990 = vld [vmem:[#allocation2 + $0x21] sm:$0xff]
        %v3991 = vld [vmem:[#allocation2 + $0x29] sm:$0xff]
        %v3992 = vld [vmem:[#allocation2 + $0x31] sm:$0xff]
        %v3993 = vld [vmem:[#allocation2 + $0x39] sm:$0xff]
        %v3994 = vld [vmem:[#allocation2 + $0x41] sm:$0xff]
        %v3995 = vld [vmem:[#allocation2 + $0x49] sm:$0xff]
        %v3996 = vld [vmem:[#allocation2 + $0x51] sm:$0xff]
        %v3997 = vld [vmem:[#allocation2 + $0x59] sm:$0xff]
        %v3998 = vld [vmem:[#allocation2 + $0x61] sm:$0xff]
        %v3999 = vld [vmem:[#allocation2 + $0x69] sm:$0xff]
        %v4000 = vld [vmem:[#allocation2 + $0x71] sm:$0xff]
        %v4001 = vld [vmem:[#allocation2 + $0x79] sm:$0xff]
        %v4002 = vlaneseq
        %v4003 = vshrl.u32 %v4002, 7
        %v4004 = vsub.s32 1, %v4003
        %v4005 = vrot.slane %v3949, %v4004
        %v4006 = vmul.f32 %v3986, %v4005
        %v4007 = vmul.f32 %v3987, %v4005
        %v4008 = vmul.f32 %v3988, %v4005
        %v4009 = vmul.f32 %v3989, %v4005
        %v4010 = vmul.f32 %v3990, %v4005
        %v4011 = vmul.f32 %v3991, %v4005
        %v4012 = vmul.f32 %v3992, %v4005
        %v4013 = vmul.f32 %v3993, %v4005
        %v4014 = vmul.f32 %v3994, %v4005
        %v4015 = vmul.f32 %v3995, %v4005
        %v4016 = vmul.f32 %v3996, %v4005
        %v4017 = vmul.f32 %v3997, %v4005
        %v4018 = vmul.f32 %v3998, %v4005
        %v4019 = vmul.f32 %v3999, %v4005
        %v4020 = vmul.f32 %v4000, %v4005
        %v4021 = vmul.f32 %v4001, %v4005
        %v4022 = vadd.f32 %v3970, %v4006
        %v4023 = vadd.f32 %v3971, %v4007
        %v4024 = vadd.f32 %v3972, %v4008
        %v4025 = vadd.f32 %v3973, %v4009
        %v4026 = vadd.f32 %v3974, %v4010
        %v4027 = vadd.f32 %v3975, %v4011
        %v4028 = vadd.f32 %v3976, %v4012
        %v4029 = vadd.f32 %v3977, %v4013
        %v4030 = vadd.f32 %v3978, %v4014
        %v4031 = vadd.f32 %v3979, %v4015
        %v4032 = vadd.f32 %v3980, %v4016
        %v4033 = vadd.f32 %v3981, %v4017
        %v4034 = vadd.f32 %v3982, %v4018
        %v4035 = vadd.f32 %v3983, %v4019
        %v4036 = vadd.f32 %v3984, %v4020
        %v4037 = vadd.f32 %v3985, %v4021
        %v4038 = vld [vmem:[#allocation2 + $0x2] sm:$0xff]
        %v4039 = vld [vmem:[#allocation2 + $0xa] sm:$0xff]
        %v4040 = vld [vmem:[#allocation2 + $0x12] sm:$0xff]
        %v4041 = vld [vmem:[#allocation2 + $0x1a] sm:$0xff]
        %v4042 = vld [vmem:[#allocation2 + $0x22] sm:$0xff]
        %v4043 = vld [vmem:[#allocation2 + $0x2a] sm:$0xff]
        %v4044 = vld [vmem:[#allocation2 + $0x32] sm:$0xff]
        %v4045 = vld [vmem:[#allocation2 + $0x3a] sm:$0xff]
        %v4046 = vld [vmem:[#allocation2 + $0x42] sm:$0xff]
        %v4047 = vld [vmem:[#allocation2 + $0x4a] sm:$0xff]
        %v4048 = vld [vmem:[#allocation2 + $0x52] sm:$0xff]
        %v4049 = vld [vmem:[#allocation2 + $0x5a] sm:$0xff]
        %v4050 = vld [vmem:[#allocation2 + $0x62] sm:$0xff]
        %v4051 = vld [vmem:[#allocation2 + $0x6a] sm:$0xff]
        %v4052 = vld [vmem:[#allocation2 + $0x72] sm:$0xff]
        %v4053 = vld [vmem:[#allocation2 + $0x7a] sm:$0xff]
        %v4054 = vlaneseq
        %v4055 = vshrl.u32 %v4054, 7
        %v4056 = vsub.s32 2, %v4055
        %v4057 = vrot.slane %v3949, %v4056
        %v4058 = vmul.f32 %v4038, %v4057
        %v4059 = vmul.f32 %v4039, %v4057
        %v4060 = vmul.f32 %v4040, %v4057
        %v4061 = vmul.f32 %v4041, %v4057
        %v4062 = vmul.f32 %v4042, %v4057
        %v4063 = vmul.f32 %v4043, %v4057
        %v4064 = vmul.f32 %v4044, %v4057
        %v4065 = vmul.f32 %v4045, %v4057
        %v4066 = vmul.f32 %v4046, %v4057
        %v4067 = vmul.f32 %v4047, %v4057
        %v4068 = vmul.f32 %v4048, %v4057
        %v4069 = vmul.f32 %v4049, %v4057
        %v4070 = vmul.f32 %v4050, %v4057
        %v4071 = vmul.f32 %v4051, %v4057
        %v4072 = vmul.f32 %v4052, %v4057
        %v4073 = vmul.f32 %v4053, %v4057
        %v4074 = vadd.f32 %v4022, %v4058
        %v4075 = vadd.f32 %v4023, %v4059
        %v4076 = vadd.f32 %v4024, %v4060
        %v4077 = vadd.f32 %v4025, %v4061
        %v4078 = vadd.f32 %v4026, %v4062
        %v4079 = vadd.f32 %v4027, %v4063
        %v4080 = vadd.f32 %v4028, %v4064
        %v4081 = vadd.f32 %v4029, %v4065
        %v4082 = vadd.f32 %v4030, %v4066
        %v4083 = vadd.f32 %v4031, %v4067
        %v4084 = vadd.f32 %v4032, %v4068
        %v4085 = vadd.f32 %v4033, %v4069
        %v4086 = vadd.f32 %v4034, %v4070
        %v4087 = vadd.f32 %v4035, %v4071
        %v4088 = vadd.f32 %v4036, %v4072
        %v4089 = vadd.f32 %v4037, %v4073
        %s4090 = sld [smem:[#allocation7 + $0x2]]
        %vm4091 = vcmp.ge.f32.partialorder %v4074, 0.0
        %vm4092 = vcmp.ge.f32.partialorder %v4075, 0.0
        %vm4093 = vcmp.ge.f32.partialorder %v4076, 0.0
        %vm4094 = vcmp.ge.f32.partialorder %v4077, 0.0
        %vm4095 = vcmp.ge.f32.partialorder %v4078, 0.0
        %vm4096 = vcmp.ge.f32.partialorder %v4079, 0.0
        %vm4097 = vcmp.ge.f32.partialorder %v4080, 0.0
        %vm4098 = vcmp.ge.f32.partialorder %v4081, 0.0
        %vm4099 = vcmp.ge.f32.partialorder %v4082, 0.0
        %vm4100 = vcmp.ge.f32.partialorder %v4083, 0.0
        %vm4101 = vcmp.ge.f32.partialorder %v4084, 0.0
        %vm4102 = vcmp.ge.f32.partialorder %v4085, 0.0
        %vm4103 = vcmp.ge.f32.partialorder %v4086, 0.0
        %vm4104 = vcmp.ge.f32.partialorder %v4087, 0.0
        %vm4105 = vcmp.ge.f32.partialorder %v4088, 0.0
        %vm4106 = vcmp.ge.f32.partialorder %v4089, 0.0
        %v4107 = vstv %s4090
        %v4108 = vmul.f32 %v4107, %v4074
        %v4109 = vmul.f32 %v4107, %v4075
        %v4110 = vmul.f32 %v4107, %v4076
        %v4111 = vmul.f32 %v4107, %v4077
        %v4112 = vmul.f32 %v4107, %v4078
        %v4113 = vmul.f32 %v4107, %v4079
        %v4114 = vmul.f32 %v4107, %v4080
        %v4115 = vmul.f32 %v4107, %v4081
        %v4116 = vmul.f32 %v4107, %v4082
        %v4117 = vmul.f32 %v4107, %v4083
        %v4118 = vmul.f32 %v4107, %v4084
        %v4119 = vmul.f32 %v4107, %v4085
        %v4120 = vmul.f32 %v4107, %v4086
        %v4121 = vmul.f32 %v4107, %v4087
        %v4122 = vmul.f32 %v4107, %v4088
        %v4123 = vmul.f32 %v4107, %v4089
        %v4124 = vsel %vm4091, %v4074, %v4108
        %v4125 = vsel %vm4092, %v4075, %v4109
        %v4126 = vsel %vm4093, %v4076, %v4110
        %v4127 = vsel %vm4094, %v4077, %v4111
        %v4128 = vsel %vm4095, %v4078, %v4112
        %v4129 = vsel %vm4096, %v4079, %v4113
        %v4130 = vsel %vm4097, %v4080, %v4114
        %v4131 = vsel %vm4098, %v4081, %v4115
        %v4132 = vsel %vm4099, %v4082, %v4116
        %v4133 = vsel %vm4100, %v4083, %v4117
        %v4134 = vsel %vm4101, %v4084, %v4118
        %v4135 = vsel %vm4102, %v4085, %v4119
        %v4136 = vsel %vm4103, %v4086, %v4120
        %v4137 = vsel %vm4104, %v4087, %v4121
        %v4138 = vsel %vm4105, %v4088, %v4122
        %v4139 = vsel %vm4106, %v4089, %v4123
        %v4140 = vld [vmem:[#allocation17 + $0x2] sm:$0x1]
        %v4141 = vld [vmem:[#allocation18 + $0x2] sm:$0x1]
        %v4142 = vadd.f32 %v4124, %v4125
        %v4143 = vadd.f32 %v4142, %v4126
        %v4144 = vadd.f32 %v4143, %v4127
        %v4145 = vadd.f32 %v4144, %v4128
        %v4146 = vadd.f32 %v4145, %v4129
        %v4147 = vadd.f32 %v4146, %v4130
        %v4148 = vadd.f32 %v4147, %v4131
        %v4149 = vadd.f32 %v4148, %v4132
        %v4150 = vadd.f32 %v4149, %v4133
        %v4151 = vadd.f32 %v4150, %v4134
        %v4152 = vadd.f32 %v4151, %v4135
        %v4153 = vadd.f32 %v4152, %v4136
        %v4154 = vadd.f32 %v4153, %v4137
        %v4155 = vadd.f32 %v4154, %v4138
        %v4156 = vadd.f32 %v4155, %v4139
        %4157 = vadd.xlane.f32.xlu0 %v4156
        %v4158 = vpop.xlane.xlu0 %4157
        %v4159 = vrot.slane %v4158, 4
        %v4160 = vadd.f32 %v4158, %v4159
        %v4161 = vrot.slane %v4160, 2
        %v4162 = vadd.f32 %v4160, %v4161
        %v4163 = vrot.slane %v4162, 1
        %v4164 = vadd.f32 %v4162, %v4163
        %s4165 = vtos %v4164
        %v4166 = vstv %s4165
        %v4167 = vmul.f32 %v4124, %v4124
        %v4168 = vmul.f32 %v4125, %v4125
        %v4169 = vmul.f32 %v4126, %v4126
        %v4170 = vmul.f32 %v4127, %v4127
        %v4171 = vmul.f32 %v4128, %v4128
        %v4172 = vmul.f32 %v4129, %v4129
        %v4173 = vmul.f32 %v4130, %v4130
        %v4174 = vmul.f32 %v4131, %v4131
        %v4175 = vmul.f32 %v4132, %v4132
        %v4176 = vmul.f32 %v4133, %v4133
        %v4177 = vmul.f32 %v4134, %v4134
        %v4178 = vmul.f32 %v4135, %v4135
        %v4179 = vmul.f32 %v4136, %v4136
        %v4180 = vmul.f32 %v4137, %v4137
        %v4181 = vmul.f32 %v4138, %v4138
        %v4182 = vmul.f32 %v4139, %v4139
        %v4183 = vadd.f32 %v4167, %v4168
        %v4184 = vadd.f32 %v4183, %v4169
        %v4185 = vadd.f32 %v4184, %v4170
        %v4186 = vadd.f32 %v4185, %v4171
        %v4187 = vadd.f32 %v4186, %v4172
        %v4188 = vadd.f32 %v4187, %v4173
        %v4189 = vadd.f32 %v4188, %v4174
        %v4190 = vadd.f32 %v4189, %v4175
        %v4191 = vadd.f32 %v4190, %v4176
        %v4192 = vadd.f32 %v4191, %v4177
        %v4193 = vadd.f32 %v4192, %v4178
        %v4194 = vadd.f32 %v4193, %v4179
        %v4195 = vadd.f32 %v4194, %v4180
        %v4196 = vadd.f32 %v4195, %v4181
        %v4197 = vadd.f32 %v4196, %v4182
        %4198 = vadd.xlane.f32.xlu0 %v4197
        %v4199 = vpop.xlane.xlu0 %4198
        %v4200 = vrot.slane %v4199, 4
        %v4201 = vadd.f32 %v4199, %v4200
        %v4202 = vrot.slane %v4201, 2
        %v4203 = vadd.f32 %v4201, %v4202
        %v4204 = vrot.slane %v4203, 1
        %v4205 = vadd.f32 %v4203, %v4204
        %s4206 = vtos %v4205
        %v4207 = vstv %s4206
        %v4208 = vmul.f32 %v4166, %v1791
        %v4209 = vmul.f32 %v4207, %v1791
        %v4210 = vmul.f32 %v4208, %v4208
        %v4211 = vsub.f32 %v4209, %v4210
        %v4212 = vmax.f32 %v4211, 0.0
        %v4213 = vsub.f32 %v4124, %v4208
        %v4214 = vsub.f32 %v4125, %v4208
        %v4215 = vsub.f32 %v4126, %v4208
        %v4216 = vsub.f32 %v4127, %v4208
        %v4217 = vsub.f32 %v4128, %v4208
        %v4218 = vsub.f32 %v4129, %v4208
        %v4219 = vsub.f32 %v4130, %v4208
        %v4220 = vsub.f32 %v4131, %v4208
        %v4221 = vsub.f32 %v4132, %v4208
        %v4222 = vsub.f32 %v4133, %v4208
        %v4223 = vsub.f32 %v4134, %v4208
        %v4224 = vsub.f32 %v4135, %v4208
        %v4225 = vsub.f32 %v4136, %v4208
        %v4226 = vsub.f32 %v4137, %v4208
        %v4227 = vsub.f32 %v4138, %v4208
        %v4228 = vsub.f32 %v4139, %v4208
        %v4229 = vlaneseq
        %v4230 = vshrl.u32 %v4229, 7
        %v4231 = vsub.s32 0, %v4230
        %v4232 = vrot.slane %v4140, %v4231
        %v4233 = vmul.f32 %v4232, %v4213
        %v4234 = vmul.f32 %v4232, %v4214
        %v4235 = vmul.f32 %v4232, %v4215
        %v4236 = vmul.f32 %v4232, %v4216
        %v4237 = vmul.f32 %v4232, %v4217
        %v4238 = vmul.f32 %v4232, %v4218
        %v4239 = vmul.f32 %v4232, %v4219
        %v4240 = vmul.f32 %v4232, %v4220
        %v4241 = vmul.f32 %v4232, %v4221
        %v4242 = vmul.f32 %v4232, %v4222
        %v4243 = vmul.f32 %v4232, %v4223
        %v4244 = vmul.f32 %v4232, %v4224
        %v4245 = vmul.f32 %v4232, %v4225
        %v4246 = vmul.f32 %v4232, %v4226
        %v4247 = vmul.f32 %v4232, %v4227
        %v4248 = vmul.f32 %v4232, %v4228
        %v4249 = vadd.f32 %v4212, 1e-08
        %v4250 = vrsqrt.pop %v4249
        %v4251 = vmul.f32 %v4233, %v4250
        %v4252 = vmul.f32 %v4234, %v4250
        %v4253 = vmul.f32 %v4235, %v4250
        %v4254 = vmul.f32 %v4236, %v4250
        %v4255 = vmul.f32 %v4237, %v4250
        %v4256 = vmul.f32 %v4238, %v4250
        %v4257 = vmul.f32 %v4239, %v4250
        %v4258 = vmul.f32 %v4240, %v4250
        %v4259 = vmul.f32 %v4241, %v4250
        %v4260 = vmul.f32 %v4242, %v4250
        %v4261 = vmul.f32 %v4243, %v4250
        %v4262 = vmul.f32 %v4244, %v4250
        %v4263 = vmul.f32 %v4245, %v4250
        %v4264 = vmul.f32 %v4246, %v4250
        %v4265 = vmul.f32 %v4247, %v4250
        %v4266 = vmul.f32 %v4248, %v4250
        %v4267 = vlaneseq
        %v4268 = vshrl.u32 %v4267, 7
        %v4269 = vsub.s32 0, %v4268
        %v4270 = vrot.slane %v4141, %v4269
        %v4271 = vadd.f32 %v4251, %v4270
        %v4272 = vadd.f32 %v4252, %v4270
        %v4273 = vadd.f32 %v4253, %v4270
        %v4274 = vadd.f32 %v4254, %v4270
        %v4275 = vadd.f32 %v4255, %v4270
        %v4276 = vadd.f32 %v4256, %v4270
        %v4277 = vadd.f32 %v4257, %v4270
        %v4278 = vadd.f32 %v4258, %v4270
        %v4279 = vadd.f32 %v4259, %v4270
        %v4280 = vadd.f32 %v4260, %v4270
        %v4281 = vadd.f32 %v4261, %v4270
        %v4282 = vadd.f32 %v4262, %v4270
        %v4283 = vadd.f32 %v4263, %v4270
        %v4284 = vadd.f32 %v4264, %v4270
        %v4285 = vadd.f32 %v4265, %v4270
        %v4286 = vadd.f32 %v4266, %v4270
        %s4287 = scalar_lea.vmem [#allocation20], 128
        %v4288 = vld [vmem:[%s4287] sm:$0xf]
        %v4289 = vld [vmem:[%s4287 + $0x4] sm:$0xf]
        %v4290 = vld [vmem:[%s4287 + $0x8] sm:$0xf]
        %v4291 = vld [vmem:[%s4287 + $0xc] sm:$0xf]
        %v4292 = vld [vmem:[%s4287 + $0x10] sm:$0xf]
        %v4293 = vld [vmem:[%s4287 + $0x14] sm:$0xf]
        %v4294 = vld [vmem:[%s4287 + $0x18] sm:$0xf]
        %v4295 = vld [vmem:[%s4287 + $0x1c] sm:$0xf]
        %v4296 = vld [vmem:[%s4287 + $0x20] sm:$0xf]
        %v4297 = vld [vmem:[%s4287 + $0x24] sm:$0xf]
        %v4298 = vld [vmem:[%s4287 + $0x28] sm:$0xf]
        %v4299 = vld [vmem:[%s4287 + $0x2c] sm:$0xf]
        %v4300 = vld [vmem:[%s4287 + $0x30] sm:$0xf]
        %v4301 = vld [vmem:[%s4287 + $0x34] sm:$0xf]
        %v4302 = vld [vmem:[%s4287 + $0x38] sm:$0xf]
        %v4303 = vld [vmem:[%s4287 + $0x3c] sm:$0xf]
        %v4304 = vpack.c.bf16 %v4272, %v4271
        %v4305 = vpack.c.bf16 %v4274, %v4273
        %v4306 = vpack.c.bf16 %v4276, %v4275
        %v4307 = vpack.c.bf16 %v4278, %v4277
        %v4308 = vpack.c.bf16 %v4280, %v4279
        %v4309 = vpack.c.bf16 %v4282, %v4281
        %v4310 = vpack.c.bf16 %v4284, %v4283
        %v4311 = vpack.c.bf16 %v4286, %v4285
        %v4328 = vunpack.c.l.b16 %v4288
        %v4329 = vunpack.c.l.b16 %v4289
        %v4330 = vunpack.c.l.b16 %v4290
        %v4331 = vunpack.c.l.b16 %v4291
        %v4332 = vunpack.c.l.b16 %v4292
        %v4333 = vunpack.c.l.b16 %v4293
        %v4334 = vunpack.c.l.b16 %v4294
        %v4335 = vunpack.c.l.b16 %v4295
        %v4336 = vunpack.c.l.b16 %v4296
        %v4337 = vunpack.c.l.b16 %v4297
        %v4338 = vunpack.c.l.b16 %v4298
        %v4339 = vunpack.c.l.b16 %v4299
        %v4340 = vunpack.c.l.b16 %v4300
        %v4341 = vunpack.c.l.b16 %v4301
        %v4342 = vunpack.c.l.b16 %v4302
        %v4343 = vunpack.c.l.b16 %v4303
        %v4344 = vpack.c.b16 %v4329, %v4328
        %v4345 = vpack.c.b16 %v4331, %v4330
        %v4346 = vpack.c.b16 %v4333, %v4332
        %v4347 = vpack.c.b16 %v4335, %v4334
        %v4348 = vpack.c.b16 %v4337, %v4336
        %v4349 = vpack.c.b16 %v4339, %v4338
        %v4350 = vpack.c.b16 %v4341, %v4340
        %v4351 = vpack.c.b16 %v4343, %v4342
        %4360 = vmatprep.subr.bf16.mxu0 0
        %4361 = vmatpush1.bf16.msra.mxu0 %v4344
        %4362 = vmatprep.subr.bf16.mxu0 0
        %4363 = vmatpush1.bf16.msra.mxu0 %v4345
        %4364 = vmatprep.subr.bf16.mxu0 0
        %4365 = vmatpush1.bf16.msra.mxu0 %v4346
        %4366 = vmatprep.subr.bf16.mxu0 0
        %4367 = vmatpush1.bf16.msra.mxu0 %v4347
        %4368 = vmatprep.subr.bf16.mxu0 0
        %4369 = vmatpush1.bf16.msra.mxu0 %v4348
        %4370 = vmatprep.subr.bf16.mxu0 0
        %4371 = vmatpush1.bf16.msra.mxu0 %v4349
        %4372 = vmatprep.subr.bf16.mxu0 0
        %4373 = vmatpush1.bf16.msra.mxu0 %v4350
        %4374 = vmatprep.subr.bf16.mxu0 0
        %4375 = vmatpush1.bf16.msra.mxu0 %v4351
        %4376 = vmatprep.subr.bf16.mxu0 0
        %4377 = vmatpush1.bf16.msra.mxu0 0
        %4378 = vmatprep.subr.bf16.mxu0 0
        %4379 = vmatpush1.bf16.msra.mxu0 0
        %4380 = vmatprep.subr.bf16.mxu0 0
        %4381 = vmatpush1.bf16.msra.mxu0 0
        %4382 = vmatprep.subr.bf16.mxu0 0
        %4383 = vmatpush1.bf16.msra.mxu0 0
        %4384 = vmatprep.subr.bf16.mxu0 0
        %4385 = vmatpush1.bf16.msra.mxu0 0
        %4386 = vmatprep.subr.bf16.mxu0 0
        %4387 = vmatpush1.bf16.msra.mxu0 0
        %4388 = vmatprep.subr.bf16.mxu0 0
        %4389 = vmatpush1.bf16.msra.mxu0 0
        %4390 = vmatprep.subr.bf16.mxu0 0
        %4391 = vmatpush1.bf16.msra.mxu0 0
        %4392 = vmatprep.mubr.bf16.mxu0 0
        %4393 = vmatmul.mubr.bf16.gmra.mrb[0].mxu0 %v4304
        %v4394 = vpop.f32.mrb[0].mxu0
        %v4395 = vadd.f32 %v3547, %v4394
        %v4396 = vpop.f32.mrb[0].mxu0
        %v4397 = vpop.f32.mrb[0].mxu0
        %v4398 = vadd.f32 %v3548, %v4397
        %v4399 = vpop.f32.mrb[0].mxu0
        %4400 = vmatprep.mubr.bf16.mxu0 0
        %4401 = vmatmul.mubr.bf16.gmra.mrb[0].mxu0 %v4305
        %v4402 = vpop.f32.mrb[0].mxu0
        %v4403 = vadd.f32 %v3549, %v4402
        %v4404 = vpop.f32.mrb[0].mxu0
        %v4405 = vpop.f32.mrb[0].mxu0
        %v4406 = vadd.f32 %v3550, %v4405
        %v4407 = vpop.f32.mrb[0].mxu0
        %4408 = vmatprep.mubr.bf16.mxu0 0
        %4409 = vmatmul.mubr.bf16.gmra.mrb[0].mxu0 %v4306
        %v4410 = vpop.f32.mrb[0].mxu0
        %v4411 = vadd.f32 %v3551, %v4410
        %v4412 = vpop.f32.mrb[0].mxu0
        %v4413 = vpop.f32.mrb[0].mxu0
        %v4414 = vadd.f32 %v3552, %v4413
        %v4415 = vpop.f32.mrb[0].mxu0
        %4416 = vmatprep.mubr.bf16.mxu0 0
        %4417 = vmatmul.mubr.bf16.gmra.mrb[0].mxu0 %v4307
        %v4418 = vpop.f32.mrb[0].mxu0
        %v4419 = vadd.f32 %v3553, %v4418
        %v4420 = vpop.f32.mrb[0].mxu0
        %v4421 = vpop.f32.mrb[0].mxu0
        %v4422 = vadd.f32 %v3554, %v4421
        %v4423 = vpop.f32.mrb[0].mxu0
        %4424 = vmatprep.mubr.bf16.mxu0 0
        %4425 = vmatmul.mubr.bf16.gmra.mrb[0].mxu0 %v4308
        %v4426 = vpop.f32.mrb[0].mxu0
        %v4427 = vadd.f32 %v3555, %v4426
        %v4428 = vpop.f32.mrb[0].mxu0
        %v4429 = vpop.f32.mrb[0].mxu0
        %v4430 = vadd.f32 %v3556, %v4429
        %v4431 = vpop.f32.mrb[0].mxu0
        %4432 = vmatprep.mubr.bf16.mxu0 0
        %4433 = vmatmul.mubr.bf16.gmra.mrb[0].mxu0 %v4309
        %v4434 = vpop.f32.mrb[0].mxu0
        %v4435 = vadd.f32 %v3557, %v4434
        %v4436 = vpop.f32.mrb[0].mxu0
        %v4437 = vpop.f32.mrb[0].mxu0
        %v4438 = vadd.f32 %v3558, %v4437
        %v4439 = vpop.f32.mrb[0].mxu0
        %4440 = vmatprep.mubr.bf16.mxu0 0
        %4441 = vmatmul.mubr.bf16.gmra.mrb[0].mxu0 %v4310
        %v4442 = vpop.f32.mrb[0].mxu0
        %v4443 = vadd.f32 %v3559, %v4442
        %v4444 = vpop.f32.mrb[0].mxu0
        %v4445 = vpop.f32.mrb[0].mxu0
        %v4446 = vadd.f32 %v3560, %v4445
        %v4447 = vpop.f32.mrb[0].mxu0
        %4448 = vmatprep.mubr.bf16.mxu0 0
        %4449 = vmatmul.mubr.bf16.gmra.mrb[0].mxu0 %v4311
        %v4450 = vpop.f32.mrb[0].mxu0
        %v4451 = vadd.f32 %v3561, %v4450
        %v4452 = vpop.f32.mrb[0].mxu0
        %v4453 = vpop.f32.mrb[0].mxu0
        %v4454 = vadd.f32 %v3562, %v4453
        %v4455 = vpop.f32.mrb[0].mxu0
        %4456 = vdwg.mxu0
        %s4457 = scalar_lea.vmem %s10, 192
        %v4458 = vld [vmem:[%s4457] sm:$0xf]
        %v4459 = vld [vmem:[%s4457 + $0x4] sm:$0xf]
        %v4460 = vld [vmem:[%s4457 + $0x8] sm:$0xf]
        %v4461 = vld [vmem:[%s4457 + $0xc] sm:$0xf]
        %v4462 = vld [vmem:[%s4457 + $0x10] sm:$0xf]
        %v4463 = vld [vmem:[%s4457 + $0x14] sm:$0xf]
        %v4464 = vld [vmem:[%s4457 + $0x18] sm:$0xf]
        %v4465 = vld [vmem:[%s4457 + $0x1c] sm:$0xf]
        %v4466 = vld [vmem:[%s4457 + $0x20] sm:$0xf]
        %v4467 = vld [vmem:[%s4457 + $0x24] sm:$0xf]
        %v4468 = vld [vmem:[%s4457 + $0x28] sm:$0xf]
        %v4469 = vld [vmem:[%s4457 + $0x2c] sm:$0xf]
        %v4470 = vld [vmem:[%s4457 + $0x30] sm:$0xf]
        %v4471 = vld [vmem:[%s4457 + $0x34] sm:$0xf]
        %v4472 = vld [vmem:[%s4457 + $0x38] sm:$0xf]
        %v4473 = vld [vmem:[%s4457 + $0x3c] sm:$0xf]
        %v4474 = vpack.c.bf16 %v4398, %v4395
        %v4475 = vpack.c.bf16 %v4406, %v4403
        %v4476 = vpack.c.bf16 %v4414, %v4411
        %v4477 = vpack.c.bf16 %v4422, %v4419
        %v4478 = vpack.c.bf16 %v4430, %v4427
        %v4479 = vpack.c.bf16 %v4438, %v4435
        %v4480 = vpack.c.bf16 %v4446, %v4443
        %v4481 = vpack.c.bf16 %v4454, %v4451
        %v4498 = vunpack.c.l.b16 %v4458
        %v4499 = vunpack.c.l.b16 %v4459
        %v4500 = vunpack.c.l.b16 %v4460
        %v4501 = vunpack.c.l.b16 %v4461
        %v4502 = vunpack.c.l.b16 %v4462
        %v4503 = vunpack.c.l.b16 %v4463
        %v4504 = vunpack.c.l.b16 %v4464
        %v4505 = vunpack.c.l.b16 %v4465
        %v4506 = vunpack.c.l.b16 %v4466
        %v4507 = vunpack.c.l.b16 %v4467
        %v4508 = vunpack.c.l.b16 %v4468
        %v4509 = vunpack.c.l.b16 %v4469
        %v4510 = vunpack.c.l.b16 %v4470
        %v4511 = vunpack.c.l.b16 %v4471
        %v4512 = vunpack.c.l.b16 %v4472
        %v4513 = vunpack.c.l.b16 %v4473
        %v4514 = vpack.c.b16 %v4499, %v4498
        %v4515 = vpack.c.b16 %v4501, %v4500
        %v4516 = vpack.c.b16 %v4503, %v4502
        %v4517 = vpack.c.b16 %v4505, %v4504
        %v4518 = vpack.c.b16 %v4507, %v4506
        %v4519 = vpack.c.b16 %v4509, %v4508
        %v4520 = vpack.c.b16 %v4511, %v4510
        %v4521 = vpack.c.b16 %v4513, %v4512
        %4530 = vmatprep.subr.bf16.mxu0 0
        %4531 = vmatpush1.bf16.msra.mxu0 %v4514
        %4532 = vmatprep.subr.bf16.mxu0 0
        %4533 = vmatpush1.bf16.msra.mxu0 %v4515
        %4534 = vmatprep.subr.bf16.mxu0 0
        %4535 = vmatpush1.bf16.msra.mxu0 %v4516
        %4536 = vmatprep.subr.bf16.mxu0 0
        %4537 = vmatpush1.bf16.msra.mxu0 %v4517
        %4538 = vmatprep.subr.bf16.mxu0 0
        %4539 = vmatpush1.bf16.msra.mxu0 %v4518
        %4540 = vmatprep.subr.bf16.mxu0 0
        %4541 = vmatpush1.bf16.msra.mxu0 %v4519
        %4542 = vmatprep.subr.bf16.mxu0 0
        %4543 = vmatpush1.bf16.msra.mxu0 %v4520
        %4544 = vmatprep.subr.bf16.mxu0 0
        %4545 = vmatpush1.bf16.msra.mxu0 %v4521
        %4546 = vmatprep.subr.bf16.mxu0 0
        %4547 = vmatpush1.bf16.msra.mxu0 0
        %4548 = vmatprep.subr.bf16.mxu0 0
        %4549 = vmatpush1.bf16.msra.mxu0 0
        %4550 = vmatprep.subr.bf16.mxu0 0
        %4551 = vmatpush1.bf16.msra.mxu0 0
        %4552 = vmatprep.subr.bf16.mxu0 0
        %4553 = vmatpush1.bf16.msra.mxu0 0
        %4554 = vmatprep.subr.bf16.mxu0 0
        %4555 = vmatpush1.bf16.msra.mxu0 0
        %4556 = vmatprep.subr.bf16.mxu0 0
        %4557 = vmatpush1.bf16.msra.mxu0 0
        %4558 = vmatprep.subr.bf16.mxu0 0
        %4559 = vmatpush1.bf16.msra.mxu0 0
        %4560 = vmatprep.subr.bf16.mxu0 0
        %4561 = vmatpush1.bf16.msra.mxu0 0
        %4562 = vmatprep.mubr.bf16.mxu0 0
        %4563 = vmatmul.mubr.bf16.gmra.mrb[0].mxu0 %v4474
        %v4564 = vpop.f32.mrb[0].mxu0
        %v4565 = vadd.f32 0.0, %v4564
        %v4566 = vpop.f32.mrb[0].mxu0
        %v4567 = vpop.f32.mrb[0].mxu0
        %v4568 = vadd.f32 0.0, %v4567
        %v4569 = vpop.f32.mrb[0].mxu0
        %4570 = vmatprep.mubr.bf16.mxu0 0
        %4571 = vmatmul.mubr.bf16.gmra.mrb[0].mxu0 %v4475
        %v4572 = vpop.f32.mrb[0].mxu0
        %v4573 = vadd.f32 0.0, %v4572
        %v4574 = vpop.f32.mrb[0].mxu0
        %v4575 = vpop.f32.mrb[0].mxu0
        %v4576 = vadd.f32 0.0, %v4575
        %v4577 = vpop.f32.mrb[0].mxu0
        %4578 = vmatprep.mubr.bf16.mxu0 0
        %4579 = vmatmul.mubr.bf16.gmra.mrb[0].mxu0 %v4476
        %v4580 = vpop.f32.mrb[0].mxu0
        %v4581 = vadd.f32 0.0, %v4580
        %v4582 = vpop.f32.mrb[0].mxu0
        %v4583 = vpop.f32.mrb[0].mxu0
        %v4584 = vadd.f32 0.0, %v4583
        %v4585 = vpop.f32.mrb[0].mxu0
        %4586 = vmatprep.mubr.bf16.mxu0 0
        %4587 = vmatmul.mubr.bf16.gmra.mrb[0].mxu0 %v4477
        %v4588 = vpop.f32.mrb[0].mxu0
        %v4589 = vadd.f32 0.0, %v4588
        %v4590 = vpop.f32.mrb[0].mxu0
        %v4591 = vpop.f32.mrb[0].mxu0
        %v4592 = vadd.f32 0.0, %v4591
        %v4593 = vpop.f32.mrb[0].mxu0
        %4594 = vmatprep.mubr.bf16.mxu0 0
        %4595 = vmatmul.mubr.bf16.gmra.mrb[0].mxu0 %v4478
        %v4596 = vpop.f32.mrb[0].mxu0
        %v4597 = vadd.f32 0.0, %v4596
        %v4598 = vpop.f32.mrb[0].mxu0
        %v4599 = vpop.f32.mrb[0].mxu0
        %v4600 = vadd.f32 0.0, %v4599
        %v4601 = vpop.f32.mrb[0].mxu0
        %4602 = vmatprep.mubr.bf16.mxu0 0
        %4603 = vmatmul.mubr.bf16.gmra.mrb[0].mxu0 %v4479
        %v4604 = vpop.f32.mrb[0].mxu0
        %v4605 = vadd.f32 0.0, %v4604
        %v4606 = vpop.f32.mrb[0].mxu0
        %v4607 = vpop.f32.mrb[0].mxu0
        %v4608 = vadd.f32 0.0, %v4607
        %v4609 = vpop.f32.mrb[0].mxu0
        %4610 = vmatprep.mubr.bf16.mxu0 0
        %4611 = vmatmul.mubr.bf16.gmra.mrb[0].mxu0 %v4480
        %v4612 = vpop.f32.mrb[0].mxu0
        %v4613 = vadd.f32 0.0, %v4612
        %v4614 = vpop.f32.mrb[0].mxu0
        %v4615 = vpop.f32.mrb[0].mxu0
        %v4616 = vadd.f32 0.0, %v4615
        %v4617 = vpop.f32.mrb[0].mxu0
        %4618 = vmatprep.mubr.bf16.mxu0 0
        %4619 = vmatmul.mubr.bf16.gmra.mrb[0].mxu0 %v4481
        %v4620 = vpop.f32.mrb[0].mxu0
        %v4621 = vadd.f32 0.0, %v4620
        %v4622 = vpop.f32.mrb[0].mxu0
        %v4623 = vpop.f32.mrb[0].mxu0
        %v4624 = vadd.f32 0.0, %v4623
        %v4625 = vpop.f32.mrb[0].mxu0
        %4626 = vdwg.mxu0
        %s4627 = sld [smem:[#allocation3 + $0x3]]
        %vm4628 = vcmp.ge.f32.partialorder %v4565, 0.0
        %vm4629 = vcmp.ge.f32.partialorder %v4568, 0.0
        %vm4630 = vcmp.ge.f32.partialorder %v4573, 0.0
        %vm4631 = vcmp.ge.f32.partialorder %v4576, 0.0
        %vm4632 = vcmp.ge.f32.partialorder %v4581, 0.0
        %vm4633 = vcmp.ge.f32.partialorder %v4584, 0.0
        %vm4634 = vcmp.ge.f32.partialorder %v4589, 0.0
        %vm4635 = vcmp.ge.f32.partialorder %v4592, 0.0
        %vm4636 = vcmp.ge.f32.partialorder %v4597, 0.0
        %vm4637 = vcmp.ge.f32.partialorder %v4600, 0.0
        %vm4638 = vcmp.ge.f32.partialorder %v4605, 0.0
        %vm4639 = vcmp.ge.f32.partialorder %v4608, 0.0
        %vm4640 = vcmp.ge.f32.partialorder %v4613, 0.0
        %vm4641 = vcmp.ge.f32.partialorder %v4616, 0.0
        %vm4642 = vcmp.ge.f32.partialorder %v4621, 0.0
        %vm4643 = vcmp.ge.f32.partialorder %v4624, 0.0
        %v4644 = vstv %s4627
        %v4645 = vmul.f32 %v4644, %v4565
        %v4646 = vmul.f32 %v4644, %v4568
        %v4647 = vmul.f32 %v4644, %v4573
        %v4648 = vmul.f32 %v4644, %v4576
        %v4649 = vmul.f32 %v4644, %v4581
        %v4650 = vmul.f32 %v4644, %v4584
        %v4651 = vmul.f32 %v4644, %v4589
        %v4652 = vmul.f32 %v4644, %v4592
        %v4653 = vmul.f32 %v4644, %v4597
        %v4654 = vmul.f32 %v4644, %v4600
        %v4655 = vmul.f32 %v4644, %v4605
        %v4656 = vmul.f32 %v4644, %v4608
        %v4657 = vmul.f32 %v4644, %v4613
        %v4658 = vmul.f32 %v4644, %v4616
        %v4659 = vmul.f32 %v4644, %v4621
        %v4660 = vmul.f32 %v4644, %v4624
        %v4661 = vsel %vm4628, %v4565, %v4645
        %v4662 = vsel %vm4629, %v4568, %v4646
        %v4663 = vsel %vm4630, %v4573, %v4647
        %v4664 = vsel %vm4631, %v4576, %v4648
        %v4665 = vsel %vm4632, %v4581, %v4649
        %v4666 = vsel %vm4633, %v4584, %v4650
        %v4667 = vsel %vm4634, %v4589, %v4651
        %v4668 = vsel %vm4635, %v4592, %v4652
        %v4669 = vsel %vm4636, %v4597, %v4653
        %v4670 = vsel %vm4637, %v4600, %v4654
        %v4671 = vsel %vm4638, %v4605, %v4655
        %v4672 = vsel %vm4639, %v4608, %v4656
        %v4673 = vsel %vm4640, %v4613, %v4657
        %v4674 = vsel %vm4641, %v4616, %v4658
        %v4675 = vsel %vm4642, %v4621, %v4659
        %v4676 = vsel %vm4643, %v4624, %v4660
        %v4677 = vld [vmem:[#allocation14 + $0x3] sm:$0x1]
        %v4678 = vld [vmem:[#allocation15 + $0x3] sm:$0x1]
        %v4679 = vadd.f32 %v4661, %v4662
        %v4680 = vadd.f32 %v4679, %v4663
        %v4681 = vadd.f32 %v4680, %v4664
        %v4682 = vadd.f32 %v4681, %v4665
        %v4683 = vadd.f32 %v4682, %v4666
        %v4684 = vadd.f32 %v4683, %v4667
        %v4685 = vadd.f32 %v4684, %v4668
        %v4686 = vadd.f32 %v4685, %v4669
        %v4687 = vadd.f32 %v4686, %v4670
        %v4688 = vadd.f32 %v4687, %v4671
        %v4689 = vadd.f32 %v4688, %v4672
        %v4690 = vadd.f32 %v4689, %v4673
        %v4691 = vadd.f32 %v4690, %v4674
        %v4692 = vadd.f32 %v4691, %v4675
        %v4693 = vadd.f32 %v4692, %v4676
        %4694 = vadd.xlane.f32.xlu0 %v4693
        %v4695 = vpop.xlane.xlu0 %4694
        %v4696 = vrot.slane %v4695, 4
        %v4697 = vadd.f32 %v4695, %v4696
        %v4698 = vrot.slane %v4697, 2
        %v4699 = vadd.f32 %v4697, %v4698
        %v4700 = vrot.slane %v4699, 1
        %v4701 = vadd.f32 %v4699, %v4700
        %s4702 = vtos %v4701
        %v4703 = vstv %s4702
        %v4704 = vmul.f32 %v4661, %v4661
        %v4705 = vmul.f32 %v4662, %v4662
        %v4706 = vmul.f32 %v4663, %v4663
        %v4707 = vmul.f32 %v4664, %v4664
        %v4708 = vmul.f32 %v4665, %v4665
        %v4709 = vmul.f32 %v4666, %v4666
        %v4710 = vmul.f32 %v4667, %v4667
        %v4711 = vmul.f32 %v4668, %v4668
        %v4712 = vmul.f32 %v4669, %v4669
        %v4713 = vmul.f32 %v4670, %v4670
        %v4714 = vmul.f32 %v4671, %v4671
        %v4715 = vmul.f32 %v4672, %v4672
        %v4716 = vmul.f32 %v4673, %v4673
        %v4717 = vmul.f32 %v4674, %v4674
        %v4718 = vmul.f32 %v4675, %v4675
        %v4719 = vmul.f32 %v4676, %v4676
        %v4720 = vadd.f32 %v4704, %v4705
        %v4721 = vadd.f32 %v4720, %v4706
        %v4722 = vadd.f32 %v4721, %v4707
        %v4723 = vadd.f32 %v4722, %v4708
        %v4724 = vadd.f32 %v4723, %v4709
        %v4725 = vadd.f32 %v4724, %v4710
        %v4726 = vadd.f32 %v4725, %v4711
        %v4727 = vadd.f32 %v4726, %v4712
        %v4728 = vadd.f32 %v4727, %v4713
        %v4729 = vadd.f32 %v4728, %v4714
        %v4730 = vadd.f32 %v4729, %v4715
        %v4731 = vadd.f32 %v4730, %v4716
        %v4732 = vadd.f32 %v4731, %v4717
        %v4733 = vadd.f32 %v4732, %v4718
        %v4734 = vadd.f32 %v4733, %v4719
        %4735 = vadd.xlane.f32.xlu0 %v4734
        %v4736 = vpop.xlane.xlu0 %4735
        %v4737 = vrot.slane %v4736, 4
        %v4738 = vadd.f32 %v4736, %v4737
        %v4739 = vrot.slane %v4738, 2
        %v4740 = vadd.f32 %v4738, %v4739
        %v4741 = vrot.slane %v4740, 1
        %v4742 = vadd.f32 %v4740, %v4741
        %s4743 = vtos %v4742
        %v4744 = vstv %s4743
        %v4745 = vmul.f32 %v4703, %v1791
        %v4746 = vmul.f32 %v4744, %v1791
        %v4747 = vmul.f32 %v4745, %v4745
        %v4748 = vsub.f32 %v4746, %v4747
        %v4749 = vmax.f32 %v4748, 0.0
        %v4750 = vsub.f32 %v4661, %v4745
        %v4751 = vsub.f32 %v4662, %v4745
        %v4752 = vsub.f32 %v4663, %v4745
        %v4753 = vsub.f32 %v4664, %v4745
        %v4754 = vsub.f32 %v4665, %v4745
        %v4755 = vsub.f32 %v4666, %v4745
        %v4756 = vsub.f32 %v4667, %v4745
        %v4757 = vsub.f32 %v4668, %v4745
        %v4758 = vsub.f32 %v4669, %v4745
        %v4759 = vsub.f32 %v4670, %v4745
        %v4760 = vsub.f32 %v4671, %v4745
        %v4761 = vsub.f32 %v4672, %v4745
        %v4762 = vsub.f32 %v4673, %v4745
        %v4763 = vsub.f32 %v4674, %v4745
        %v4764 = vsub.f32 %v4675, %v4745
        %v4765 = vsub.f32 %v4676, %v4745
        %v4766 = vlaneseq
        %v4767 = vshrl.u32 %v4766, 7
        %v4768 = vsub.s32 0, %v4767
        %v4769 = vrot.slane %v4677, %v4768
        %v4770 = vmul.f32 %v4769, %v4750
        %v4771 = vmul.f32 %v4769, %v4751
        %v4772 = vmul.f32 %v4769, %v4752
        %v4773 = vmul.f32 %v4769, %v4753
        %v4774 = vmul.f32 %v4769, %v4754
        %v4775 = vmul.f32 %v4769, %v4755
        %v4776 = vmul.f32 %v4769, %v4756
        %v4777 = vmul.f32 %v4769, %v4757
        %v4778 = vmul.f32 %v4769, %v4758
        %v4779 = vmul.f32 %v4769, %v4759
        %v4780 = vmul.f32 %v4769, %v4760
        %v4781 = vmul.f32 %v4769, %v4761
        %v4782 = vmul.f32 %v4769, %v4762
        %v4783 = vmul.f32 %v4769, %v4763
        %v4784 = vmul.f32 %v4769, %v4764
        %v4785 = vmul.f32 %v4769, %v4765
        %v4786 = vadd.f32 %v4749, 1e-08
        %v4787 = vrsqrt.pop %v4786
        %v4788 = vmul.f32 %v4770, %v4787
        %v4789 = vmul.f32 %v4771, %v4787
        %v4790 = vmul.f32 %v4772, %v4787
        %v4791 = vmul.f32 %v4773, %v4787
        %v4792 = vmul.f32 %v4774, %v4787
        %v4793 = vmul.f32 %v4775, %v4787
        %v4794 = vmul.f32 %v4776, %v4787
        %v4795 = vmul.f32 %v4777, %v4787
        %v4796 = vmul.f32 %v4778, %v4787
        %v4797 = vmul.f32 %v4779, %v4787
        %v4798 = vmul.f32 %v4780, %v4787
        %v4799 = vmul.f32 %v4781, %v4787
        %v4800 = vmul.f32 %v4782, %v4787
        %v4801 = vmul.f32 %v4783, %v4787
        %v4802 = vmul.f32 %v4784, %v4787
        %v4803 = vmul.f32 %v4785, %v4787
        %v4804 = vlaneseq
        %v4805 = vshrl.u32 %v4804, 7
        %v4806 = vsub.s32 0, %v4805
        %v4807 = vrot.slane %v4678, %v4806
        %v4808 = vadd.f32 %v4788, %v4807
        %v4809 = vadd.f32 %v4789, %v4807
        %v4810 = vadd.f32 %v4790, %v4807
        %v4811 = vadd.f32 %v4791, %v4807
        %v4812 = vadd.f32 %v4792, %v4807
        %v4813 = vadd.f32 %v4793, %v4807
        %v4814 = vadd.f32 %v4794, %v4807
        %v4815 = vadd.f32 %v4795, %v4807
        %v4816 = vadd.f32 %v4796, %v4807
        %v4817 = vadd.f32 %v4797, %v4807
        %v4818 = vadd.f32 %v4798, %v4807
        %v4819 = vadd.f32 %v4799, %v4807
        %v4820 = vadd.f32 %v4800, %v4807
        %v4821 = vadd.f32 %v4801, %v4807
        %v4822 = vadd.f32 %v4802, %v4807
        %v4823 = vadd.f32 %v4803, %v4807
        %4824 = vst [vmem:[#allocation2 + $0x2] sm:$0xff] %v4808
        %4825 = vst [vmem:[#allocation2 + $0xa] sm:$0xff] %v4809
        %4826 = vst [vmem:[#allocation2 + $0x12] sm:$0xff] %v4810
        %4827 = vst [vmem:[#allocation2 + $0x1a] sm:$0xff] %v4811
        %4828 = vst [vmem:[#allocation2 + $0x22] sm:$0xff] %v4812
        %4829 = vst [vmem:[#allocation2 + $0x2a] sm:$0xff] %v4813
        %4830 = vst [vmem:[#allocation2 + $0x32] sm:$0xff] %v4814
        %4831 = vst [vmem:[#allocation2 + $0x3a] sm:$0xff] %v4815
        %4832 = vst [vmem:[#allocation2 + $0x42] sm:$0xff] %v4816
        %4833 = vst [vmem:[#allocation2 + $0x4a] sm:$0xff] %v4817
        %4834 = vst [vmem:[#allocation2 + $0x52] sm:$0xff] %v4818
        %4835 = vst [vmem:[#allocation2 + $0x5a] sm:$0xff] %v4819
        %4836 = vst [vmem:[#allocation2 + $0x62] sm:$0xff] %v4820
        %4837 = vst [vmem:[#allocation2 + $0x6a] sm:$0xff] %v4821
        %4838 = vst [vmem:[#allocation2 + $0x72] sm:$0xff] %v4822
        %4839 = vst [vmem:[#allocation2 + $0x7a] sm:$0xff] %v4823
        %4840 = vst [vmem:[#allocation2] sm:$0x2] %v4808
        %4841 = vst [vmem:[#allocation2 + $0x7c] sm:$0x40] %v4823
        %4842 = vst [vmem:[#allocation2 - $0x2] sm:$0x4] %v4808
        %4843 = vst [vmem:[#allocation2 + $0x7e] sm:$0x20] %v4823
        %s4844 = scalar_lea.vmem %s13, 12
        %v4845 = vld [vmem:[%s4844] sm:$0x7]
        %v4846 = vld [vmem:[#allocation2] sm:$0xff]
        %v4847 = vld [vmem:[#allocation2 + $0x8] sm:$0xff]
        %v4848 = vld [vmem:[#allocation2 + $0x10] sm:$0xff]
        %v4849 = vld [vmem:[#allocation2 + $0x18] sm:$0xff]
        %v4850 = vld [vmem:[#allocation2 + $0x20] sm:$0xff]
        %v4851 = vld [vmem:[#allocation2 + $0x28] sm:$0xff]
        %v4852 = vld [vmem:[#allocation2 + $0x30] sm:$0xff]
        %v4853 = vld [vmem:[#allocation2 + $0x38] sm:$0xff]
        %v4854 = vld [vmem:[#allocation2 + $0x40] sm:$0xff]
        %v4855 = vld [vmem:[#allocation2 + $0x48] sm:$0xff]
        %v4856 = vld [vmem:[#allocation2 + $0x50] sm:$0xff]
        %v4857 = vld [vmem:[#allocation2 + $0x58] sm:$0xff]
        %v4858 = vld [vmem:[#allocation2 + $0x60] sm:$0xff]
        %v4859 = vld [vmem:[#allocation2 + $0x68] sm:$0xff]
        %v4860 = vld [vmem:[#allocation2 + $0x70] sm:$0xff]
        %v4861 = vld [vmem:[#allocation2 + $0x78] sm:$0xff]
        %v4862 = vlaneseq
        %v4863 = vshrl.u32 %v4862, 7
        %v4864 = vsub.s32 0, %v4863
        %v4865 = vrot.slane %v4845, %v4864
        %v4866 = vmul.f32 %v4846, %v4865
        %v4867 = vmul.f32 %v4847, %v4865
        %v4868 = vmul.f32 %v4848, %v4865
        %v4869 = vmul.f32 %v4849, %v4865
        %v4870 = vmul.f32 %v4850, %v4865
        %v4871 = vmul.f32 %v4851, %v4865
        %v4872 = vmul.f32 %v4852, %v4865
        %v4873 = vmul.f32 %v4853, %v4865
        %v4874 = vmul.f32 %v4854, %v4865
        %v4875 = vmul.f32 %v4855, %v4865
        %v4876 = vmul.f32 %v4856, %v4865
        %v4877 = vmul.f32 %v4857, %v4865
        %v4878 = vmul.f32 %v4858, %v4865
        %v4879 = vmul.f32 %v4859, %v4865
        %v4880 = vmul.f32 %v4860, %v4865
        %v4881 = vmul.f32 %v4861, %v4865
        %v4882 = vld [vmem:[#allocation2 + $0x2] sm:$0xff]
        %v4883 = vld [vmem:[#allocation2 + $0xa] sm:$0xff]
        %v4884 = vld [vmem:[#allocation2 + $0x12] sm:$0xff]
        %v4885 = vld [vmem:[#allocation2 + $0x1a] sm:$0xff]
        %v4886 = vld [vmem:[#allocation2 + $0x22] sm:$0xff]
        %v4887 = vld [vmem:[#allocation2 + $0x2a] sm:$0xff]
        %v4888 = vld [vmem:[#allocation2 + $0x32] sm:$0xff]
        %v4889 = vld [vmem:[#allocation2 + $0x3a] sm:$0xff]
        %v4890 = vld [vmem:[#allocation2 + $0x42] sm:$0xff]
        %v4891 = vld [vmem:[#allocation2 + $0x4a] sm:$0xff]
        %v4892 = vld [vmem:[#allocation2 + $0x52] sm:$0xff]
        %v4893 = vld [vmem:[#allocation2 + $0x5a] sm:$0xff]
        %v4894 = vld [vmem:[#allocation2 + $0x62] sm:$0xff]
        %v4895 = vld [vmem:[#allocation2 + $0x6a] sm:$0xff]
        %v4896 = vld [vmem:[#allocation2 + $0x72] sm:$0xff]
        %v4897 = vld [vmem:[#allocation2 + $0x7a] sm:$0xff]
        %v4898 = vlaneseq
        %v4899 = vshrl.u32 %v4898, 7
        %v4900 = vsub.s32 1, %v4899
        %v4901 = vrot.slane %v4845, %v4900
        %v4902 = vmul.f32 %v4882, %v4901
        %v4903 = vmul.f32 %v4883, %v4901
        %v4904 = vmul.f32 %v4884, %v4901
        %v4905 = vmul.f32 %v4885, %v4901
        %v4906 = vmul.f32 %v4886, %v4901
        %v4907 = vmul.f32 %v4887, %v4901
        %v4908 = vmul.f32 %v4888, %v4901
        %v4909 = vmul.f32 %v4889, %v4901
        %v4910 = vmul.f32 %v4890, %v4901
        %v4911 = vmul.f32 %v4891, %v4901
        %v4912 = vmul.f32 %v4892, %v4901
        %v4913 = vmul.f32 %v4893, %v4901
        %v4914 = vmul.f32 %v4894, %v4901
        %v4915 = vmul.f32 %v4895, %v4901
        %v4916 = vmul.f32 %v4896, %v4901
        %v4917 = vmul.f32 %v4897, %v4901
        %v4918 = vadd.f32 %v4866, %v4902
        %v4919 = vadd.f32 %v4867, %v4903
        %v4920 = vadd.f32 %v4868, %v4904
        %v4921 = vadd.f32 %v4869, %v4905
        %v4922 = vadd.f32 %v4870, %v4906
        %v4923 = vadd.f32 %v4871, %v4907
        %v4924 = vadd.f32 %v4872, %v4908
        %v4925 = vadd.f32 %v4873, %v4909
        %v4926 = vadd.f32 %v4874, %v4910
        %v4927 = vadd.f32 %v4875, %v4911
        %v4928 = vadd.f32 %v4876, %v4912
        %v4929 = vadd.f32 %v4877, %v4913
        %v4930 = vadd.f32 %v4878, %v4914
        %v4931 = vadd.f32 %v4879, %v4915
        %v4932 = vadd.f32 %v4880, %v4916
        %v4933 = vadd.f32 %v4881, %v4917
        %v4934 = vld [vmem:[#allocation2 + $0x4] sm:$0xff]
        %v4935 = vld [vmem:[#allocation2 + $0xc] sm:$0xff]
        %v4936 = vld [vmem:[#allocation2 + $0x14] sm:$0xff]
        %v4937 = vld [vmem:[#allocation2 + $0x1c] sm:$0xff]
        %v4938 = vld [vmem:[#allocation2 + $0x24] sm:$0xff]
        %v4939 = vld [vmem:[#allocation2 + $0x2c] sm:$0xff]
        %v4940 = vld [vmem:[#allocation2 + $0x34] sm:$0xff]
        %v4941 = vld [vmem:[#allocation2 + $0x3c] sm:$0xff]
        %v4942 = vld [vmem:[#allocation2 + $0x44] sm:$0xff]
        %v4943 = vld [vmem:[#allocation2 + $0x4c] sm:$0xff]
        %v4944 = vld [vmem:[#allocation2 + $0x54] sm:$0xff]
        %v4945 = vld [vmem:[#allocation2 + $0x5c] sm:$0xff]
        %v4946 = vld [vmem:[#allocation2 + $0x64] sm:$0xff]
        %v4947 = vld [vmem:[#allocation2 + $0x6c] sm:$0xff]
        %v4948 = vld [vmem:[#allocation2 + $0x74] sm:$0xff]
        %v4949 = vld [vmem:[#allocation2 + $0x7c] sm:$0xff]
        %v4950 = vlaneseq
        %v4951 = vshrl.u32 %v4950, 7
        %v4952 = vsub.s32 2, %v4951
        %v4953 = vrot.slane %v4845, %v4952
        %v4954 = vmul.f32 %v4934, %v4953
        %v4955 = vmul.f32 %v4935, %v4953
        %v4956 = vmul.f32 %v4936, %v4953
        %v4957 = vmul.f32 %v4937, %v4953
        %v4958 = vmul.f32 %v4938, %v4953
        %v4959 = vmul.f32 %v4939, %v4953
        %v4960 = vmul.f32 %v4940, %v4953
        %v4961 = vmul.f32 %v4941, %v4953
        %v4962 = vmul.f32 %v4942, %v4953
        %v4963 = vmul.f32 %v4943, %v4953
        %v4964 = vmul.f32 %v4944, %v4953
        %v4965 = vmul.f32 %v4945, %v4953
        %v4966 = vmul.f32 %v4946, %v4953
        %v4967 = vmul.f32 %v4947, %v4953
        %v4968 = vmul.f32 %v4948, %v4953
        %v4969 = vmul.f32 %v4949, %v4953
        %v4970 = vadd.f32 %v4918, %v4954
        %v4971 = vadd.f32 %v4919, %v4955
        %v4972 = vadd.f32 %v4920, %v4956
        %v4973 = vadd.f32 %v4921, %v4957
        %v4974 = vadd.f32 %v4922, %v4958
        %v4975 = vadd.f32 %v4923, %v4959
        %v4976 = vadd.f32 %v4924, %v4960
        %v4977 = vadd.f32 %v4925, %v4961
        %v4978 = vadd.f32 %v4926, %v4962
        %v4979 = vadd.f32 %v4927, %v4963
        %v4980 = vadd.f32 %v4928, %v4964
        %v4981 = vadd.f32 %v4929, %v4965
        %v4982 = vadd.f32 %v4930, %v4966
        %v4983 = vadd.f32 %v4931, %v4967
        %v4984 = vadd.f32 %v4932, %v4968
        %v4985 = vadd.f32 %v4933, %v4969
        %s4986 = sld [smem:[#allocation7 + $0x3]]
        %vm4987 = vcmp.ge.f32.partialorder %v4970, 0.0
        %vm4988 = vcmp.ge.f32.partialorder %v4971, 0.0
        %vm4989 = vcmp.ge.f32.partialorder %v4972, 0.0
        %vm4990 = vcmp.ge.f32.partialorder %v4973, 0.0
        %vm4991 = vcmp.ge.f32.partialorder %v4974, 0.0
        %vm4992 = vcmp.ge.f32.partialorder %v4975, 0.0
        %vm4993 = vcmp.ge.f32.partialorder %v4976, 0.0
        %vm4994 = vcmp.ge.f32.partialorder %v4977, 0.0
        %vm4995 = vcmp.ge.f32.partialorder %v4978, 0.0
        %vm4996 = vcmp.ge.f32.partialorder %v4979, 0.0
        %vm4997 = vcmp.ge.f32.partialorder %v4980, 0.0
        %vm4998 = vcmp.ge.f32.partialorder %v4981, 0.0
        %vm4999 = vcmp.ge.f32.partialorder %v4982, 0.0
        %vm5000 = vcmp.ge.f32.partialorder %v4983, 0.0
        %vm5001 = vcmp.ge.f32.partialorder %v4984, 0.0
        %vm5002 = vcmp.ge.f32.partialorder %v4985, 0.0
        %v5003 = vstv %s4986
        %v5004 = vmul.f32 %v5003, %v4970
        %v5005 = vmul.f32 %v5003, %v4971
        %v5006 = vmul.f32 %v5003, %v4972
        %v5007 = vmul.f32 %v5003, %v4973
        %v5008 = vmul.f32 %v5003, %v4974
        %v5009 = vmul.f32 %v5003, %v4975
        %v5010 = vmul.f32 %v5003, %v4976
        %v5011 = vmul.f32 %v5003, %v4977
        %v5012 = vmul.f32 %v5003, %v4978
        %v5013 = vmul.f32 %v5003, %v4979
        %v5014 = vmul.f32 %v5003, %v4980
        %v5015 = vmul.f32 %v5003, %v4981
        %v5016 = vmul.f32 %v5003, %v4982
        %v5017 = vmul.f32 %v5003, %v4983
        %v5018 = vmul.f32 %v5003, %v4984
        %v5019 = vmul.f32 %v5003, %v4985
        %v5020 = vsel %vm4987, %v4970, %v5004
        %v5021 = vsel %vm4988, %v4971, %v5005
        %v5022 = vsel %vm4989, %v4972, %v5006
        %v5023 = vsel %vm4990, %v4973, %v5007
        %v5024 = vsel %vm4991, %v4974, %v5008
        %v5025 = vsel %vm4992, %v4975, %v5009
        %v5026 = vsel %vm4993, %v4976, %v5010
        %v5027 = vsel %vm4994, %v4977, %v5011
        %v5028 = vsel %vm4995, %v4978, %v5012
        %v5029 = vsel %vm4996, %v4979, %v5013
        %v5030 = vsel %vm4997, %v4980, %v5014
        %v5031 = vsel %vm4998, %v4981, %v5015
        %v5032 = vsel %vm4999, %v4982, %v5016
        %v5033 = vsel %vm5000, %v4983, %v5017
        %v5034 = vsel %vm5001, %v4984, %v5018
        %v5035 = vsel %vm5002, %v4985, %v5019
        %v5036 = vld [vmem:[#allocation17 + $0x3] sm:$0x1]
        %v5037 = vld [vmem:[#allocation18 + $0x3] sm:$0x1]
        %v5038 = vadd.f32 %v5020, %v5021
        %v5039 = vadd.f32 %v5038, %v5022
        %v5040 = vadd.f32 %v5039, %v5023
        %v5041 = vadd.f32 %v5040, %v5024
        %v5042 = vadd.f32 %v5041, %v5025
        %v5043 = vadd.f32 %v5042, %v5026
        %v5044 = vadd.f32 %v5043, %v5027
        %v5045 = vadd.f32 %v5044, %v5028
        %v5046 = vadd.f32 %v5045, %v5029
        %v5047 = vadd.f32 %v5046, %v5030
        %v5048 = vadd.f32 %v5047, %v5031
        %v5049 = vadd.f32 %v5048, %v5032
        %v5050 = vadd.f32 %v5049, %v5033
        %v5051 = vadd.f32 %v5050, %v5034
        %v5052 = vadd.f32 %v5051, %v5035
        %5053 = vadd.xlane.f32.xlu0 %v5052
        %v5054 = vpop.xlane.xlu0 %5053
        %v5055 = vrot.slane %v5054, 4
        %v5056 = vadd.f32 %v5054, %v5055
        %v5057 = vrot.slane %v5056, 2
        %v5058 = vadd.f32 %v5056, %v5057
        %v5059 = vrot.slane %v5058, 1
        %v5060 = vadd.f32 %v5058, %v5059
        %s5061 = vtos %v5060
        %v5062 = vstv %s5061
        %v5063 = vmul.f32 %v5020, %v5020
        %v5064 = vmul.f32 %v5021, %v5021
        %v5065 = vmul.f32 %v5022, %v5022
        %v5066 = vmul.f32 %v5023, %v5023
        %v5067 = vmul.f32 %v5024, %v5024
        %v5068 = vmul.f32 %v5025, %v5025
        %v5069 = vmul.f32 %v5026, %v5026
        %v5070 = vmul.f32 %v5027, %v5027
        %v5071 = vmul.f32 %v5028, %v5028
        %v5072 = vmul.f32 %v5029, %v5029
        %v5073 = vmul.f32 %v5030, %v5030
        %v5074 = vmul.f32 %v5031, %v5031
        %v5075 = vmul.f32 %v5032, %v5032
        %v5076 = vmul.f32 %v5033, %v5033
        %v5077 = vmul.f32 %v5034, %v5034
        %v5078 = vmul.f32 %v5035, %v5035
        %v5079 = vadd.f32 %v5063, %v5064
        %v5080 = vadd.f32 %v5079, %v5065
        %v5081 = vadd.f32 %v5080, %v5066
        %v5082 = vadd.f32 %v5081, %v5067
        %v5083 = vadd.f32 %v5082, %v5068
        %v5084 = vadd.f32 %v5083, %v5069
        %v5085 = vadd.f32 %v5084, %v5070
        %v5086 = vadd.f32 %v5085, %v5071
        %v5087 = vadd.f32 %v5086, %v5072
        %v5088 = vadd.f32 %v5087, %v5073
        %v5089 = vadd.f32 %v5088, %v5074
        %v5090 = vadd.f32 %v5089, %v5075
        %v5091 = vadd.f32 %v5090, %v5076
        %v5092 = vadd.f32 %v5091, %v5077
        %v5093 = vadd.f32 %v5092, %v5078
        %5094 = vadd.xlane.f32.xlu0 %v5093
        %v5095 = vpop.xlane.xlu0 %5094
        %v5096 = vrot.slane %v5095, 4
        %v5097 = vadd.f32 %v5095, %v5096
        %v5098 = vrot.slane %v5097, 2
        %v5099 = vadd.f32 %v5097, %v5098
        %v5100 = vrot.slane %v5099, 1
        %v5101 = vadd.f32 %v5099, %v5100
        %s5102 = vtos %v5101
        %v5103 = vstv %s5102
        %v5104 = vmul.f32 %v5062, %v1791
        %v5105 = vmul.f32 %v5103, %v1791
        %v5106 = vmul.f32 %v5104, %v5104
        %v5107 = vsub.f32 %v5105, %v5106
        %v5108 = vmax.f32 %v5107, 0.0
        %v5109 = vsub.f32 %v5020, %v5104
        %v5110 = vsub.f32 %v5021, %v5104
        %v5111 = vsub.f32 %v5022, %v5104
        %v5112 = vsub.f32 %v5023, %v5104
        %v5113 = vsub.f32 %v5024, %v5104
        %v5114 = vsub.f32 %v5025, %v5104
        %v5115 = vsub.f32 %v5026, %v5104
        %v5116 = vsub.f32 %v5027, %v5104
        %v5117 = vsub.f32 %v5028, %v5104
        %v5118 = vsub.f32 %v5029, %v5104
        %v5119 = vsub.f32 %v5030, %v5104
        %v5120 = vsub.f32 %v5031, %v5104
        %v5121 = vsub.f32 %v5032, %v5104
        %v5122 = vsub.f32 %v5033, %v5104
        %v5123 = vsub.f32 %v5034, %v5104
        %v5124 = vsub.f32 %v5035, %v5104
        %v5125 = vlaneseq
        %v5126 = vshrl.u32 %v5125, 7
        %v5127 = vsub.s32 0, %v5126
        %v5128 = vrot.slane %v5036, %v5127
        %v5129 = vmul.f32 %v5128, %v5109
        %v5130 = vmul.f32 %v5128, %v5110
        %v5131 = vmul.f32 %v5128, %v5111
        %v5132 = vmul.f32 %v5128, %v5112
        %v5133 = vmul.f32 %v5128, %v5113
        %v5134 = vmul.f32 %v5128, %v5114
        %v5135 = vmul.f32 %v5128, %v5115
        %v5136 = vmul.f32 %v5128, %v5116
        %v5137 = vmul.f32 %v5128, %v5117
        %v5138 = vmul.f32 %v5128, %v5118
        %v5139 = vmul.f32 %v5128, %v5119
        %v5140 = vmul.f32 %v5128, %v5120
        %v5141 = vmul.f32 %v5128, %v5121
        %v5142 = vmul.f32 %v5128, %v5122
        %v5143 = vmul.f32 %v5128, %v5123
        %v5144 = vmul.f32 %v5128, %v5124
        %v5145 = vadd.f32 %v5108, 1e-08
        %v5146 = vrsqrt.pop %v5145
        %v5147 = vmul.f32 %v5129, %v5146
        %v5148 = vmul.f32 %v5130, %v5146
        %v5149 = vmul.f32 %v5131, %v5146
        %v5150 = vmul.f32 %v5132, %v5146
        %v5151 = vmul.f32 %v5133, %v5146
        %v5152 = vmul.f32 %v5134, %v5146
        %v5153 = vmul.f32 %v5135, %v5146
        %v5154 = vmul.f32 %v5136, %v5146
        %v5155 = vmul.f32 %v5137, %v5146
        %v5156 = vmul.f32 %v5138, %v5146
        %v5157 = vmul.f32 %v5139, %v5146
        %v5158 = vmul.f32 %v5140, %v5146
        %v5159 = vmul.f32 %v5141, %v5146
        %v5160 = vmul.f32 %v5142, %v5146
        %v5161 = vmul.f32 %v5143, %v5146
        %v5162 = vmul.f32 %v5144, %v5146
        %v5163 = vlaneseq
        %v5164 = vshrl.u32 %v5163, 7
        %v5165 = vsub.s32 0, %v5164
        %v5166 = vrot.slane %v5037, %v5165
        %v5167 = vadd.f32 %v5147, %v5166
        %v5168 = vadd.f32 %v5148, %v5166
        %v5169 = vadd.f32 %v5149, %v5166
        %v5170 = vadd.f32 %v5150, %v5166
        %v5171 = vadd.f32 %v5151, %v5166
        %v5172 = vadd.f32 %v5152, %v5166
        %v5173 = vadd.f32 %v5153, %v5166
        %v5174 = vadd.f32 %v5154, %v5166
        %v5175 = vadd.f32 %v5155, %v5166
        %v5176 = vadd.f32 %v5156, %v5166
        %v5177 = vadd.f32 %v5157, %v5166
        %v5178 = vadd.f32 %v5158, %v5166
        %v5179 = vadd.f32 %v5159, %v5166
        %v5180 = vadd.f32 %v5160, %v5166
        %v5181 = vadd.f32 %v5161, %v5166
        %v5182 = vadd.f32 %v5162, %v5166
        %s5183 = scalar_lea.vmem [#allocation20], 192
        %v5184 = vld [vmem:[%s5183] sm:$0xf]
        %v5185 = vld [vmem:[%s5183 + $0x4] sm:$0xf]
        %v5186 = vld [vmem:[%s5183 + $0x8] sm:$0xf]
        %v5187 = vld [vmem:[%s5183 + $0xc] sm:$0xf]
        %v5188 = vld [vmem:[%s5183 + $0x10] sm:$0xf]
        %v5189 = vld [vmem:[%s5183 + $0x14] sm:$0xf]
        %v5190 = vld [vmem:[%s5183 + $0x18] sm:$0xf]
        %v5191 = vld [vmem:[%s5183 + $0x1c] sm:$0xf]
        %v5192 = vld [vmem:[%s5183 + $0x20] sm:$0xf]
        %v5193 = vld [vmem:[%s5183 + $0x24] sm:$0xf]
        %v5194 = vld [vmem:[%s5183 + $0x28] sm:$0xf]
        %v5195 = vld [vmem:[%s5183 + $0x2c] sm:$0xf]
        %v5196 = vld [vmem:[%s5183 + $0x30] sm:$0xf]
        %v5197 = vld [vmem:[%s5183 + $0x34] sm:$0xf]
        %v5198 = vld [vmem:[%s5183 + $0x38] sm:$0xf]
        %v5199 = vld [vmem:[%s5183 + $0x3c] sm:$0xf]
        %v5200 = vpack.c.bf16 %v5168, %v5167
        %v5201 = vpack.c.bf16 %v5170, %v5169
        %v5202 = vpack.c.bf16 %v5172, %v5171
        %v5203 = vpack.c.bf16 %v5174, %v5173
        %v5204 = vpack.c.bf16 %v5176, %v5175
        %v5205 = vpack.c.bf16 %v5178, %v5177
        %v5206 = vpack.c.bf16 %v5180, %v5179
        %v5207 = vpack.c.bf16 %v5182, %v5181
        %v5224 = vunpack.c.l.b16 %v5184
        %v5225 = vunpack.c.l.b16 %v5185
        %v5226 = vunpack.c.l.b16 %v5186
        %v5227 = vunpack.c.l.b16 %v5187
        %v5228 = vunpack.c.l.b16 %v5188
        %v5229 = vunpack.c.l.b16 %v5189
        %v5230 = vunpack.c.l.b16 %v5190
        %v5231 = vunpack.c.l.b16 %v5191
        %v5232 = vunpack.c.l.b16 %v5192
        %v5233 = vunpack.c.l.b16 %v5193
        %v5234 = vunpack.c.l.b16 %v5194
        %v5235 = vunpack.c.l.b16 %v5195
        %v5236 = vunpack.c.l.b16 %v5196
        %v5237 = vunpack.c.l.b16 %v5197
        %v5238 = vunpack.c.l.b16 %v5198
        %v5239 = vunpack.c.l.b16 %v5199
        %v5240 = vpack.c.b16 %v5225, %v5224
        %v5241 = vpack.c.b16 %v5227, %v5226
        %v5242 = vpack.c.b16 %v5229, %v5228
        %v5243 = vpack.c.b16 %v5231, %v5230
        %v5244 = vpack.c.b16 %v5233, %v5232
        %v5245 = vpack.c.b16 %v5235, %v5234
        %v5246 = vpack.c.b16 %v5237, %v5236
        %v5247 = vpack.c.b16 %v5239, %v5238
        %5256 = vmatprep.subr.bf16.mxu0 0
        %5257 = vmatpush1.bf16.msra.mxu0 %v5240
        %5258 = vmatprep.subr.bf16.mxu0 0
        %5259 = vmatpush1.bf16.msra.mxu0 %v5241
        %5260 = vmatprep.subr.bf16.mxu0 0
        %5261 = vmatpush1.bf16.msra.mxu0 %v5242
        %5262 = vmatprep.subr.bf16.mxu0 0
        %5263 = vmatpush1.bf16.msra.mxu0 %v5243
        %5264 = vmatprep.subr.bf16.mxu0 0
        %5265 = vmatpush1.bf16.msra.mxu0 %v5244
        %5266 = vmatprep.subr.bf16.mxu0 0
        %5267 = vmatpush1.bf16.msra.mxu0 %v5245
        %5268 = vmatprep.subr.bf16.mxu0 0
        %5269 = vmatpush1.bf16.msra.mxu0 %v5246
        %5270 = vmatprep.subr.bf16.mxu0 0
        %5271 = vmatpush1.bf16.msra.mxu0 %v5247
        %5272 = vmatprep.subr.bf16.mxu0 0
        %5273 = vmatpush1.bf16.msra.mxu0 0
        %5274 = vmatprep.subr.bf16.mxu0 0
        %5275 = vmatpush1.bf16.msra.mxu0 0
        %5276 = vmatprep.subr.bf16.mxu0 0
        %5277 = vmatpush1.bf16.msra.mxu0 0
        %5278 = vmatprep.subr.bf16.mxu0 0
        %5279 = vmatpush1.bf16.msra.mxu0 0
        %5280 = vmatprep.subr.bf16.mxu0 0
        %5281 = vmatpush1.bf16.msra.mxu0 0
        %5282 = vmatprep.subr.bf16.mxu0 0
        %5283 = vmatpush1.bf16.msra.mxu0 0
        %5284 = vmatprep.subr.bf16.mxu0 0
        %5285 = vmatpush1.bf16.msra.mxu0 0
        %5286 = vmatprep.subr.bf16.mxu0 0
        %5287 = vmatpush1.bf16.msra.mxu0 0
        %5288 = vmatprep.mubr.bf16.mxu0 0
        %5289 = vmatmul.mubr.bf16.gmra.mrb[0].mxu0 %v5200
        %v5290 = vpop.f32.mrb[0].mxu0
        %v5291 = vadd.f32 %v4395, %v5290
        %v5292 = vpop.f32.mrb[0].mxu0
        %v5293 = vpop.f32.mrb[0].mxu0
        %v5294 = vadd.f32 %v4398, %v5293
        %v5295 = vpop.f32.mrb[0].mxu0
        %5296 = vmatprep.mubr.bf16.mxu0 0
        %5297 = vmatmul.mubr.bf16.gmra.mrb[0].mxu0 %v5201
        %v5298 = vpop.f32.mrb[0].mxu0
        %v5299 = vadd.f32 %v4403, %v5298
        %v5300 = vpop.f32.mrb[0].mxu0
        %v5301 = vpop.f32.mrb[0].mxu0
        %v5302 = vadd.f32 %v4406, %v5301
        %v5303 = vpop.f32.mrb[0].mxu0
        %5304 = vmatprep.mubr.bf16.mxu0 0
        %5305 = vmatmul.mubr.bf16.gmra.mrb[0].mxu0 %v5202
        %v5306 = vpop.f32.mrb[0].mxu0
        %v5307 = vadd.f32 %v4411, %v5306
        %v5308 = vpop.f32.mrb[0].mxu0
        %v5309 = vpop.f32.mrb[0].mxu0
        %v5310 = vadd.f32 %v4414, %v5309
        %v5311 = vpop.f32.mrb[0].mxu0
        %5312 = vmatprep.mubr.bf16.mxu0 0
        %5313 = vmatmul.mubr.bf16.gmra.mrb[0].mxu0 %v5203
        %v5314 = vpop.f32.mrb[0].mxu0
        %v5315 = vadd.f32 %v4419, %v5314
        %v5316 = vpop.f32.mrb[0].mxu0
        %v5317 = vpop.f32.mrb[0].mxu0
        %v5318 = vadd.f32 %v4422, %v5317
        %v5319 = vpop.f32.mrb[0].mxu0
        %5320 = vmatprep.mubr.bf16.mxu0 0
        %5321 = vmatmul.mubr.bf16.gmra.mrb[0].mxu0 %v5204
        %v5322 = vpop.f32.mrb[0].mxu0
        %v5323 = vadd.f32 %v4427, %v5322
        %v5324 = vpop.f32.mrb[0].mxu0
        %v5325 = vpop.f32.mrb[0].mxu0
        %v5326 = vadd.f32 %v4430, %v5325
        %v5327 = vpop.f32.mrb[0].mxu0
        %5328 = vmatprep.mubr.bf16.mxu0 0
        %5329 = vmatmul.mubr.bf16.gmra.mrb[0].mxu0 %v5205
        %v5330 = vpop.f32.mrb[0].mxu0
        %v5331 = vadd.f32 %v4435, %v5330
        %v5332 = vpop.f32.mrb[0].mxu0
        %v5333 = vpop.f32.mrb[0].mxu0
        %v5334 = vadd.f32 %v4438, %v5333
        %v5335 = vpop.f32.mrb[0].mxu0
        %5336 = vmatprep.mubr.bf16.mxu0 0
        %5337 = vmatmul.mubr.bf16.gmra.mrb[0].mxu0 %v5206
        %v5338 = vpop.f32.mrb[0].mxu0
        %v5339 = vadd.f32 %v4443, %v5338
        %v5340 = vpop.f32.mrb[0].mxu0
        %v5341 = vpop.f32.mrb[0].mxu0
        %v5342 = vadd.f32 %v4446, %v5341
        %v5343 = vpop.f32.mrb[0].mxu0
        %5344 = vmatprep.mubr.bf16.mxu0 0
        %5345 = vmatmul.mubr.bf16.gmra.mrb[0].mxu0 %v5207
        %v5346 = vpop.f32.mrb[0].mxu0
        %v5347 = vadd.f32 %v4451, %v5346
        %v5348 = vpop.f32.mrb[0].mxu0
        %v5349 = vpop.f32.mrb[0].mxu0
        %v5350 = vadd.f32 %v4454, %v5349
        %v5351 = vpop.f32.mrb[0].mxu0
        %5352 = vdwg.mxu0
        %v5353 = vld [vmem:[#allocation21] sm:$0xf]
        %v5354 = vld [vmem:[#allocation21 + $0x4] sm:$0xf]
        %v5355 = vld [vmem:[#allocation21 + $0x8] sm:$0xf]
        %v5356 = vld [vmem:[#allocation21 + $0xc] sm:$0xf]
        %v5357 = vld [vmem:[#allocation21 + $0x10] sm:$0xf]
        %v5358 = vld [vmem:[#allocation21 + $0x14] sm:$0xf]
        %v5359 = vld [vmem:[#allocation21 + $0x18] sm:$0xf]
        %v5360 = vld [vmem:[#allocation21 + $0x1c] sm:$0xf]
        %v5361 = vld [vmem:[#allocation21 + $0x20] sm:$0xf]
        %v5362 = vld [vmem:[#allocation21 + $0x24] sm:$0xf]
        %v5363 = vld [vmem:[#allocation21 + $0x28] sm:$0xf]
        %v5364 = vld [vmem:[#allocation21 + $0x2c] sm:$0xf]
        %v5365 = vld [vmem:[#allocation21 + $0x30] sm:$0xf]
        %v5366 = vld [vmem:[#allocation21 + $0x34] sm:$0xf]
        %v5367 = vld [vmem:[#allocation21 + $0x38] sm:$0xf]
        %v5368 = vld [vmem:[#allocation21 + $0x3c] sm:$0xf]
        %v5369 = vpack.c.bf16 %v5294, %v5291
        %v5370 = vpack.c.bf16 %v5302, %v5299
        %v5371 = vpack.c.bf16 %v5310, %v5307
        %v5372 = vpack.c.bf16 %v5318, %v5315
        %v5373 = vpack.c.bf16 %v5326, %v5323
        %v5374 = vpack.c.bf16 %v5334, %v5331
        %v5375 = vpack.c.bf16 %v5342, %v5339
        %v5376 = vpack.c.bf16 %v5350, %v5347
        %v5393 = vunpack.c.l.b16 %v5353
        %v5394 = vunpack.c.l.b16 %v5354
        %v5395 = vunpack.c.l.b16 %v5355
        %v5396 = vunpack.c.l.b16 %v5356
        %v5397 = vunpack.c.l.b16 %v5357
        %v5398 = vunpack.c.l.b16 %v5358
        %v5399 = vunpack.c.l.b16 %v5359
        %v5400 = vunpack.c.l.b16 %v5360
        %v5401 = vunpack.c.l.b16 %v5361
        %v5402 = vunpack.c.l.b16 %v5362
        %v5403 = vunpack.c.l.b16 %v5363
        %v5404 = vunpack.c.l.b16 %v5364
        %v5405 = vunpack.c.l.b16 %v5365
        %v5406 = vunpack.c.l.b16 %v5366
        %v5407 = vunpack.c.l.b16 %v5367
        %v5408 = vunpack.c.l.b16 %v5368
        %v5409 = vpack.c.b16 %v5394, %v5393
        %v5410 = vpack.c.b16 %v5396, %v5395
        %v5411 = vpack.c.b16 %v5398, %v5397
        %v5412 = vpack.c.b16 %v5400, %v5399
        %v5413 = vpack.c.b16 %v5402, %v5401
        %v5414 = vpack.c.b16 %v5404, %v5403
        %v5415 = vpack.c.b16 %v5406, %v5405
        %v5416 = vpack.c.b16 %v5408, %v5407
        %5425 = vmatprep.subr.bf16.mxu0 0
        %5426 = vmatpush1.bf16.msra.mxu0 %v5409
        %5427 = vmatprep.subr.bf16.mxu0 0
        %5428 = vmatpush1.bf16.msra.mxu0 %v5410
        %5429 = vmatprep.subr.bf16.mxu0 0
        %5430 = vmatpush1.bf16.msra.mxu0 %v5411
        %5431 = vmatprep.subr.bf16.mxu0 0
        %5432 = vmatpush1.bf16.msra.mxu0 %v5412
        %5433 = vmatprep.subr.bf16.mxu0 0
        %5434 = vmatpush1.bf16.msra.mxu0 %v5413
        %5435 = vmatprep.subr.bf16.mxu0 0
        %5436 = vmatpush1.bf16.msra.mxu0 %v5414
        %5437 = vmatprep.subr.bf16.mxu0 0
        %5438 = vmatpush1.bf16.msra.mxu0 %v5415
        %5439 = vmatprep.subr.bf16.mxu0 0
        %5440 = vmatpush1.bf16.msra.mxu0 %v5416
        %5441 = vmatprep.subr.bf16.mxu0 0
        %5442 = vmatpush1.bf16.msra.mxu0 0
        %5443 = vmatprep.subr.bf16.mxu0 0
        %5444 = vmatpush1.bf16.msra.mxu0 0
        %5445 = vmatprep.subr.bf16.mxu0 0
        %5446 = vmatpush1.bf16.msra.mxu0 0
        %5447 = vmatprep.subr.bf16.mxu0 0
        %5448 = vmatpush1.bf16.msra.mxu0 0
        %5449 = vmatprep.subr.bf16.mxu0 0
        %5450 = vmatpush1.bf16.msra.mxu0 0
        %5451 = vmatprep.subr.bf16.mxu0 0
        %5452 = vmatpush1.bf16.msra.mxu0 0
        %5453 = vmatprep.subr.bf16.mxu0 0
        %5454 = vmatpush1.bf16.msra.mxu0 0
        %5455 = vmatprep.subr.bf16.mxu0 0
        %5456 = vmatpush1.bf16.msra.mxu0 0
        %5457 = vmatprep.mubr.bf16.mxu0 0
        %5458 = vmatmul.mubr.bf16.gmra.mrb[0].mxu0 %v5369
        %v5459 = vpop.f32.mrb[0].mxu0
        %v5460 = vadd.f32 0.0, %v5459
        %v5461 = vpop.f32.mrb[0].mxu0
        %v5462 = vpop.f32.mrb[0].mxu0
        %v5463 = vadd.f32 0.0, %v5462
        %v5464 = vpop.f32.mrb[0].mxu0
        %5465 = vmatprep.mubr.bf16.mxu0 0
        %5466 = vmatmul.mubr.bf16.gmra.mrb[0].mxu0 %v5370
        %v5467 = vpop.f32.mrb[0].mxu0
        %v5468 = vadd.f32 0.0, %v5467
        %v5469 = vpop.f32.mrb[0].mxu0
        %v5470 = vpop.f32.mrb[0].mxu0
        %v5471 = vadd.f32 0.0, %v5470
        %v5472 = vpop.f32.mrb[0].mxu0
        %5473 = vmatprep.mubr.bf16.mxu0 0
        %5474 = vmatmul.mubr.bf16.gmra.mrb[0].mxu0 %v5371
        %v5475 = vpop.f32.mrb[0].mxu0
        %v5476 = vadd.f32 0.0, %v5475
        %v5477 = vpop.f32.mrb[0].mxu0
        %v5478 = vpop.f32.mrb[0].mxu0
        %v5479 = vadd.f32 0.0, %v5478
        %v5480 = vpop.f32.mrb[0].mxu0
        %5481 = vmatprep.mubr.bf16.mxu0 0
        %5482 = vmatmul.mubr.bf16.gmra.mrb[0].mxu0 %v5372
        %v5483 = vpop.f32.mrb[0].mxu0
        %v5484 = vadd.f32 0.0, %v5483
        %v5485 = vpop.f32.mrb[0].mxu0
        %v5486 = vpop.f32.mrb[0].mxu0
        %v5487 = vadd.f32 0.0, %v5486
        %v5488 = vpop.f32.mrb[0].mxu0
        %5489 = vmatprep.mubr.bf16.mxu0 0
        %5490 = vmatmul.mubr.bf16.gmra.mrb[0].mxu0 %v5373
        %v5491 = vpop.f32.mrb[0].mxu0
        %v5492 = vadd.f32 0.0, %v5491
        %v5493 = vpop.f32.mrb[0].mxu0
        %v5494 = vpop.f32.mrb[0].mxu0
        %v5495 = vadd.f32 0.0, %v5494
        %v5496 = vpop.f32.mrb[0].mxu0
        %5497 = vmatprep.mubr.bf16.mxu0 0
        %5498 = vmatmul.mubr.bf16.gmra.mrb[0].mxu0 %v5374
        %v5499 = vpop.f32.mrb[0].mxu0
        %v5500 = vadd.f32 0.0, %v5499
        %v5501 = vpop.f32.mrb[0].mxu0
        %v5502 = vpop.f32.mrb[0].mxu0
        %v5503 = vadd.f32 0.0, %v5502
        %v5504 = vpop.f32.mrb[0].mxu0
        %5505 = vmatprep.mubr.bf16.mxu0 0
        %5506 = vmatmul.mubr.bf16.gmra.mrb[0].mxu0 %v5375
        %v5507 = vpop.f32.mrb[0].mxu0
        %v5508 = vadd.f32 0.0, %v5507
        %v5509 = vpop.f32.mrb[0].mxu0
        %v5510 = vpop.f32.mrb[0].mxu0
        %v5511 = vadd.f32 0.0, %v5510
        %v5512 = vpop.f32.mrb[0].mxu0
        %5513 = vmatprep.mubr.bf16.mxu0 0
        %5514 = vmatmul.mubr.bf16.gmra.mrb[0].mxu0 %v5376
        %v5515 = vpop.f32.mrb[0].mxu0
        %v5516 = vadd.f32 0.0, %v5515
        %v5517 = vpop.f32.mrb[0].mxu0
        %v5518 = vpop.f32.mrb[0].mxu0
        %v5519 = vadd.f32 0.0, %v5518
        %v5520 = vpop.f32.mrb[0].mxu0
        %5521 = vdwg.mxu0
        %v5522 = vmax.f32 %v5460, 0.0
        %v5523 = vmax.f32 %v5463, 0.0
        %v5524 = vmax.f32 %v5468, 0.0
        %v5525 = vmax.f32 %v5471, 0.0
        %v5526 = vmax.f32 %v5476, 0.0
        %v5527 = vmax.f32 %v5479, 0.0
        %v5528 = vmax.f32 %v5484, 0.0
        %v5529 = vmax.f32 %v5487, 0.0
        %v5530 = vmax.f32 %v5492, 0.0
        %v5531 = vmax.f32 %v5495, 0.0
        %v5532 = vmax.f32 %v5500, 0.0
        %v5533 = vmax.f32 %v5503, 0.0
        %v5534 = vmax.f32 %v5508, 0.0
        %v5535 = vmax.f32 %v5511, 0.0
        %v5536 = vmax.f32 %v5516, 0.0
        %v5537 = vmax.f32 %v5519, 0.0
        %5538 = vst [vmem:[%s748] sm:$0xff] %v5522
        %5539 = vst [vmem:[%s748 + $0x8] sm:$0xff] %v5523
        %5540 = vst [vmem:[%s748 + $0x10] sm:$0xff] %v5524
        %5541 = vst [vmem:[%s748 + $0x18] sm:$0xff] %v5525
        %5542 = vst [vmem:[%s748 + $0x20] sm:$0xff] %v5526
        %5543 = vst [vmem:[%s748 + $0x28] sm:$0xff] %v5527
        %5544 = vst [vmem:[%s748 + $0x30] sm:$0xff] %v5528
        %5545 = vst [vmem:[%s748 + $0x38] sm:$0xff] %v5529
        %5546 = vst [vmem:[%s748 + $0x40] sm:$0xff] %v5530
        %5547 = vst [vmem:[%s748 + $0x48] sm:$0xff] %v5531
        %5548 = vst [vmem:[%s748 + $0x50] sm:$0xff] %v5532
        %5549 = vst [vmem:[%s748 + $0x58] sm:$0xff] %v5533
        %5550 = vst [vmem:[%s748 + $0x60] sm:$0xff] %v5534
        %5551 = vst [vmem:[%s748 + $0x68] sm:$0xff] %v5535
        %5552 = vst [vmem:[%s748 + $0x70] sm:$0xff] %v5536
        %5553 = vst [vmem:[%s748 + $0x78] sm:$0xff] %v5537
        %p5554 = scmp.lt.s32.totalorder %s37, 1
        %s5555 = scalar_select %p5554, %s37, 1
        %s5556 = smul.addr %s5555, 16
        %s5557 = smul.addr %s5556, 8
        %s5558 = scalar_lea.vmem %s18, %s5557
        // Predicated region
        $region141: #{masknet_forward.1} parent=91 // pred_check
          %p5559 = pneg %p443
        $region142: #{masknet_forward.1} parent=91 // pred_check_branch
          %5561 = sbr.rel (%p5559) target = $region144
        $region143: #{masknet_forward.1} parent=91 // pred_region
          _
        $region144: #{masknet_forward.1} parent=91 // pred_fallthru
          _
      $region92: #{masknet_forward.1} parent=5 // pred_fallthru
        _
      %p5562 = scmp.le.s32.totalorder 2, %s32
      // Predicated region
      $region145: #{masknet_forward.1} parent=5 // pred_check
        %p5563 = pneg %p5562
      $region146: #{masknet_forward.1} parent=5 // pred_check_branch
        %5565 = sbr.rel (%p5563) target = $region148
      $region147: #{masknet_forward.1} parent=5 // pred_region
        %s5566 = ssub.s32 %s32, 2
        // Predicated region
        $region149: #{masknet_forward.1} parent=147 // pred_check
          %p5567 = pneg %p449
        $region150: #{masknet_forward.1} parent=147 // pred_check_branch
          %5569 = sbr.rel (%p5567) target = $region152
        $region151: #{masknet_forward.1} parent=147 // pred_region
          %p5570 = scmp.lt.s32.totalorder %s38, 1
          %s5571 = scalar_select %p5570, %s38, 1
          %s5572 = smul.addr %s5571, 16
          %s5573 = smul.addr %s5572, 8
          %s5574 = scalar_lea.vmem %s18, %s5573
        $region152: #{masknet_forward.1} parent=147 // pred_fallthru
          _
      $region148: #{masknet_forward.1} parent=5 // pred_fallthru
        _
    $region6: #{masknet_forward.1} parent=1 // loop_footer
      %s36 = sadd.s32 1, %s32
    $region7: #{masknet_forward.1} parent=1 // loop_footer_branch
      %31 = sbr.rel target = $region3
    $region8: #{masknet_forward.1} parent=1 // loop_exit
      _
    %5575 = vsyncpa [#allocation4], 1
    %s5576 = scalar_lea.sflag [#allocation4], 1
    %5577 = vsyncpa %s5576, 1
    %5578 = vsyncpa [#allocation10], 1
    %5579 = vsyncpa [#allocation13], 1
    %5580 = vsyncpa [#allocation16], 1
    %5581 = vsyncpa [#allocation19], 1
    %5582 = vsyncpa [#allocation22], 1
    %5583 = vsyncpa [#allocation5], 1
    %s5584 = scalar_lea.sflag [#allocation5], 1
    %5585 = vsyncpa %s5584, 1
    %5586 = vsyncpa [#allocation6], 1
    %s5587 = scalar_lea.sflag [#allocation6], 1
    %5588 = vsyncpa %s5587, 1

</llo_original>
